<compile_context>
chip_gen: v6e
topology: v6e:2x2x1
jax: 0.10.0
libtpu: 0.0.40
codegen_flags: <defaults>
</compile_context>

<pallas_src>
import numpy as np
import jax
import jax.numpy as jnp
from jax.experimental import pallas as pl
from jax.experimental.pallas import tpu as pltpu

HID = 128          # hidden_dim (from the module)
IN0 = 2            # LSTM input_size
NCLS = 10
SEQ = 8            # sequence length for the demo (batch_first input is (B, T, 2))
BATCH = 8          # multiple of 8 -> per-timestep row slices are sublane-aligned
G = 8 * HID        # 1024 fused gate lanes: [i_f,f_f,o_f,g_f | g_r,o_r,f_r,i_r]


# --------------------------------------------------------------------------- #
# Kernel
# --------------------------------------------------------------------------- #
def bilstm_net_kernel(x_ref,
                      w0_ref, b0_ref, whh0_ref,
                      w1_ref, b1_ref, whh1_ref,
                      h0l0_ref, c0l0_ref, h0l1_ref, c0l1_ref,
                      wout_ref, bout_ref,
                      o_ref,
                      p_ref, seq_ref):
    T, B, H = SEQ, BATCH, HID

    def fused_bilstm_recurrence(whh_bf16, h, c, store_seq):
        # Forward / reverse directions fused into one recurrence: state h=[h_f|h_r]
        # (B, 256); per step a single (B,256)x(256,1024) bf16 MXU matmul against the
        # block-diagonal W_hh, with f32 accumulation.
        rev_last = None
        for k in range(T):                       # fwd time t=k, rev time t=T-1-k
            # TODO(synk): keep whh resident in the MXU across steps
            # (pltpu.matmul_push_rhs/matmul_acc_lhs/matmul_pop) instead of jnp.dot.
            hh = jnp.dot(h.astype(jnp.bfloat16), whh_bf16,
                         preferred_element_type=jnp.float32)
            pf = p_ref[k * B:(k + 1) * B, 0:4 * H]                 # fwd gates @ t=k
            pr = p_ref[(T - 1 - k) * B:(T - k) * B, 4 * H:8 * H]   # rev gates @ t=T-1-k
            g = jnp.concatenate([pf, pr], axis=1) + hh

            sa = jax.nn.sigmoid(g[:, 0:3 * H])        # [ i_f | f_f | o_f ]
            tg = jnp.tanh(g[:, 3 * H:5 * H])          # [ g_f | g_r ]  contiguous tanh
            sb = jax.nn.sigmoid(g[:, 5 * H:8 * H])    # [ o_r | f_r | i_r ]

            i = jnp.concatenate([sa[:, 0:H], sb[:, 2 * H:3 * H]], axis=1)   # [i_f|i_r]
            f = jnp.concatenate([sa[:, H:2 * H], sb[:, H:2 * H]], axis=1)   # [f_f|f_r]
            o = jnp.concatenate([sa[:, 2 * H:3 * H], sb[:, 0:H]], axis=1)   # [o_f|o_r]

            c = f * c + i * tg
            h = o * jnp.tanh(c)
            if store_seq:
                # layer output at time t = [h_f(t) | h_r(t)]; 128-lane aligned stores
                seq_ref[k * B:(k + 1) * B, 0:H] = h[:, 0:H]
                seq_ref[(T - 1 - k) * B:(T - k) * B, H:2 * H] = h[:, H:2 * H]
            if k == 0:
                rev_last = h[:, H:2 * H]          # reverse-direction hidden at t = T-1
        return h, rev_last

    # ---- layer 0: merged hoisted projection via VPU outer product (K=2, no MXU) ----
    p_ref[...] = (x_ref[:, 0:1] * w0_ref[0:1, :]
                  + x_ref[:, 1:2] * w0_ref[1:2, :]
                  + b0_ref[...])
    fused_bilstm_recurrence(whh0_ref[...], h0l0_ref[...], c0l0_ref[...], True)

    # ---- layer 1: one merged bf16 MXU projection over the layer-0 output sequence ----
    p_ref[...] = (jnp.dot(seq_ref[...].astype(jnp.bfloat16), w1_ref[...],
                          preferred_element_type=jnp.float32)
                  + b1_ref[...])
    h1, rev1_last = fused_bilstm_recurrence(whh1_ref[...], h0l1_ref[...],
                                            c0l1_ref[...], False)

    # r_out[:, -1, :] = [fwd hidden @ t=T-1 | rev hidden @ t=T-1]; Linear(256, 10)
    last = jnp.concatenate([h1[:, 0:H], rev1_last], axis=1)               # (B, 256)
    o_ref[...] = (jnp.dot(last, wout_ref[...], preferred_element_type=jnp.float32)
                  + bout_ref[...])


# --------------------------------------------------------------------------- #
# Wrapper (single pallas_call, no grid: everything resident in VMEM)
# --------------------------------------------------------------------------- #
def bilstm_net_forward(x, ops, h0, c0):
    B, T, F = x.shape
    assert (B, T, F) == (BATCH, SEQ, IN0), (
        f"kernel is compiled for (B,T,F)=({BATCH},{SEQ},{IN0}), got {(B, T, F)}")
    x_tm = jnp.transpose(x, (1, 0, 2)).reshape(T * B, IN0)     # time-major rows
    # PyTorch state layout: [l0_fwd, l0_rev, l1_fwd, l1_rev]
    h0l0 = jnp.concatenate([h0[0], h0[1]], axis=1)
    c0l0 = jnp.concatenate([c0[0], c0[1]], axis=1)
    h0l1 = jnp.concatenate([h0[2], h0[3]], axis=1)
    c0l1 = jnp.concatenate([c0[2], c0[3]], axis=1)

    args = (x_tm, ops["w0"], ops["b0"], ops["whh0"],
            ops["w1"], ops["b1"], ops["whh1"],
            h0l0, c0l0, h0l1, c0l1, ops["wout"], ops["bout"])
    vmem = pl.BlockSpec(memory_space=pltpu.MemorySpace.VMEM)
    return pl.pallas_call(
        bilstm_net_kernel,
        out_shape=jax.ShapeDtypeStruct((B, NCLS), jnp.float32),
        in_specs=[vmem] * len(args),
        out_specs=vmem,
        scratch_shapes=[
            pltpu.VMEM((T * B, G), jnp.float32),        # merged hoisted projection (reused by both layers)
            pltpu.VMEM((T * B, 2 * HID), jnp.float32),  # layer-0 output sequence
        ],
    )(*args)


# --------------------------------------------------------------------------- #
# Parameter setup (deterministic)
# --------------------------------------------------------------------------- #
def make_params(key):
    ks = list(jax.random.split(key, 20))

    def u(k, shape, scale):
        return jax.random.uniform(k, shape, jnp.float32, -scale, scale)

    s = 1.0 / np.sqrt(HID)
    layer_in = {0: IN0, 1: 2 * HID}
    p = {}
    i = 0
    for l in (0, 1):
        for d in ("f", "r"):
            p[f"w_ih_l{l}{d}"] = u(ks[i], (4 * HID, layer_in[l]), s); i += 1
            p[f"w_hh_l{l}{d}"] = u(ks[i], (4 * HID, HID), s); i += 1
            p[f"b_ih_l{l}{d}"] = u(ks[i], (4 * HID,), s); i += 1
            p[f"b_hh_l{l}{d}"] = u(ks[i], (4 * HID,), s); i += 1
    so = 1.0 / np.sqrt(2 * HID)
    p["out_w"] = u(ks[16], (NCLS, 2 * HID), so)
    p["out_b"] = u(ks[17], (NCLS,), so)
    return p


# --------------------------------------------------------------------------- #
# Host-side fused-weight construction (glue)
# --------------------------------------------------------------------------- #
# Fused gate lane layout (per layer):
#   fwd half [0:512)    = [ i_f, f_f, o_f, g_f ]
#   rev half [512:1024) = [ g_r, o_r, f_r, i_r ]   (tanh block [384:640) contiguous)
_FWD_COL = {"i": 0, "f": HID, "o": 2 * HID, "g": 3 * HID}
_REV_COL = {"g": 4 * HID, "o": 5 * HID, "f": 6 * HID, "i": 7 * HID}
_GATE_ROW = {"i": 0, "f": HID, "g": 2 * HID, "o": 3 * HID}   # PyTorch row order i,f,g,o


def build_fused_operands(p):
    """Permute PyTorch (i,f,g,o) gate blocks of both directions into the fused lane
    layout, merge fwd+rev input projections into one (in, 1024) weight, fold biases,
    build the block-diagonal recurrent weight, cast recurrence matmul operands to bf16."""
    def fuse(l):
        wihf = np.asarray(p[f"w_ih_l{l}f"], np.float32)
        wihr = np.asarray(p[f"w_ih_l{l}r"], np.float32)
        whhf = np.asarray(p[f"w_hh_l{l}f"], np.float32)
        whhr = np.asarray(p[f"w_hh_l{l}r"], np.float32)
        bfv = np.asarray(p[f"b_ih_l{l}f"], np.float32) + np.asarray(p[f"b_hh_l{l}f"], np.float32)
        brv = np.asarray(p[f"b_ih_l{l}r"], np.float32) + np.asarray(p[f"b_hh_l{l}r"], np.float32)
        in_dim = wihf.shape[1]
        wproj = np.zeros((in_dim, G), np.float32)
        whh = np.zeros((2 * HID, G), np.float32)
        b = np.zeros((1, G), np.float32)
        for gname in "ifgo":
            rows = slice(_GATE_ROW[gname], _GATE_ROW[gname] + HID)
            cf, cr = _FWD_COL[gname], _REV_COL[gname]
            wproj[:, cf:cf + HID] = wihf[rows, :].T
            wproj[:, cr:cr + HID] = wihr[rows, :].T
            whh[0:HID, cf:cf + HID] = whhf[rows, :].T          # block-diagonal per dir
            whh[HID:2 * HID, cr:cr + HID] = whhr[rows, :].T
            b[0, cf:cf + HID] = bfv[rows]
            b[0, cr:cr + HID] = brv[rows]
        return wproj, whh, b

    w0, whh0, b0 = fuse(0)
    w1, whh1, b1 = fuse(1)
    return {
        "w0": jnp.asarray(w0, jnp.float32),       # layer-0 projection runs on VPU -> f32
        "b0": jnp.asarray(b0, jnp.float32),
        "whh0": jnp.asarray(whh0, jnp.bfloat16),  # recurrence matmul operands in bf16
        "w1": jnp.asarray(w1, jnp.bfloat16),
        "b1": jnp.asarray(b1, jnp.float32),
        "whh1": jnp.asarray(whh1, jnp.bfloat16),
        "wout": jnp.asarray(np.asarray(p["out_w"], np.float32).T),
        "bout": jnp.asarray(np.asarray(p["out_b"], np.float32)[None, :]),
    }


# --------------------------------------------------------------------------- #
# Pure-JAX f32 reference (PyTorch LSTM semantics) for validation
# --------------------------------------------------------------------------- #
def _ref_forward(x, p, h0, c0):
    def cell(x_t, h, c, w_ih, w_hh, b_ih, b_hh):
        z = x_t @ w_ih.T + b_ih + h @ w_hh.T + b_hh
        i = jax.nn.sigmoid(z[:, 0:HID])
        f = jax.nn.sigmoid(z[:, HID:2 * HID])
        g = jnp.tanh(z[:, 2 * HID:3 * HID])
        o = jax.nn.sigmoid(z[:, 3 * HID:4 * HID])
        c = f * c + i * g
        return o * jnp.tanh(c), c

    B, T, _ = x.shape
    inp = x
    for l in (0, 1):
        hf, cf = h0[2 * l], c0[2 * l]
        hr, cr = h0[2 * l + 1], c0[2 * l + 1]
        outs_f, outs_r = [], [None] * T
        for t in range(T):
            hf, cf = cell(inp[:, t], hf, cf, p[f"w_ih_l{l}f"], p[f"w_hh_l{l}f"],
                          p[f"b_ih_l{l}f"], p[f"b_hh_l{l}f"])
            outs_f.append(hf)
        for t in range(T - 1, -1, -1):
            hr, cr = cell(inp[:, t], hr, cr, p[f"w_ih_l{l}r"], p[f"w_hh_l{l}r"],
                          p[f"b_ih_l{l}r"], p[f"b_hh_l{l}r"])
            outs_r[t] = hr
        inp = jnp.stack([jnp.concatenate([outs_f[t], outs_r[t]], axis=1)
                         for t in range(T)], axis=1)
    return inp[:, -1, :] @ p["out_w"].T + p["out_b"]


# --------------------------------------------------------------------------- #
# Demo
# --------------------------------------------------------------------------- #
if __name__ == "__main__":
    key = jax.random.PRNGKey(0)
    kp, kx, kh, kc = jax.random.split(key, 4)

    params = make_params(kp)
    ops = build_fused_operands(params)

    x = jax.random.normal(kx, (BATCH, SEQ, IN0), jnp.float32)    # batch_first (B, T, 2)
    # forward() draws torch.rand h0/c0 (uniform [0,1)); made deterministic here.
    h0 = jax.random.uniform(kh, (4, BATCH, HID), jnp.float32)    # (num_layers*2, B, 128)
    c0 = jax.random.uniform(kc, (4, BATCH, HID), jnp.float32)

    out = bilstm_net_forward(x, ops, h0, c0)
    out = jax.block_until_ready(out)

    assert out.shape == (BATCH, NCLS)
    assert bool(jnp.all(jnp.isfinite(out)))

    # Validate against the f32 reference (kernel uses bf16 matmul operands -> loose tol).
    ref = _ref_forward(x, params, h0, c0)
    assert float(jnp.max(jnp.abs(out - ref))) < 1e-1, "mismatch vs f32 reference"
    print("KERNEL_OK")
</pallas_src>

<mosaic_0001>
module attributes {stable_mosaic.version = 11 : i64} {
  func.func @bilstm_net_kernel(%arg0: memref<64x2xf32, #tpu.memory_space<vmem>>, %arg1: memref<2x1024xf32, #tpu.memory_space<vmem>>, %arg2: memref<1x1024xf32, #tpu.memory_space<vmem>>, %arg3: memref<256x1024xbf16, #tpu.memory_space<vmem>>, %arg4: memref<256x1024xbf16, #tpu.memory_space<vmem>>, %arg5: memref<1x1024xf32, #tpu.memory_space<vmem>>, %arg6: memref<256x1024xbf16, #tpu.memory_space<vmem>>, %arg7: memref<8x256xf32, #tpu.memory_space<vmem>>, %arg8: memref<8x256xf32, #tpu.memory_space<vmem>>, %arg9: memref<8x256xf32, #tpu.memory_space<vmem>>, %arg10: memref<8x256xf32, #tpu.memory_space<vmem>>, %arg11: memref<256x10xf32, #tpu.memory_space<vmem>>, %arg12: memref<1x10xf32, #tpu.memory_space<vmem>>, %arg13: memref<8x10xf32, #tpu.memory_space<vmem>>, %arg14: memref<64x1024xf32, #tpu.memory_space<vmem>>, %arg15: memref<64x256xf32, #tpu.memory_space<vmem>>) attributes {dimension_semantics = [], scalar_prefetch = 0 : i64, scratch_operands = 2 : i64, tpu.core_type = #tpu.core_type<tc>} {
    %c0 = arith.constant 0 : index
    %c0_0 = arith.constant 0 : index
    %0 = vector.load %arg0[%c0, %c0_0] : memref<64x2xf32, #tpu.memory_space<vmem>>, vector<64x1xf32>
    %c0_1 = arith.constant 0 : index
    %c0_2 = arith.constant 0 : index
    %1 = vector.load %arg1[%c0_1, %c0_2] : memref<2x1024xf32, #tpu.memory_space<vmem>>, vector<1x1024xf32>
    %2 = vector.broadcast %0 : vector<64x1xf32> to vector<64x1024xf32>
    %3 = vector.broadcast %1 : vector<1x1024xf32> to vector<64x1024xf32>
    %4 = arith.mulf %2, %3 : vector<64x1024xf32>
    %c0_3 = arith.constant 0 : index
    %c1 = arith.constant 1 : index
    %5 = vector.load %arg0[%c0_3, %c1] : memref<64x2xf32, #tpu.memory_space<vmem>>, vector<64x1xf32>
    %c1_4 = arith.constant 1 : index
    %c0_5 = arith.constant 0 : index
    %6 = vector.load %arg1[%c1_4, %c0_5] : memref<2x1024xf32, #tpu.memory_space<vmem>>, vector<1x1024xf32>
    %7 = vector.broadcast %5 : vector<64x1xf32> to vector<64x1024xf32>
    %8 = vector.broadcast %6 : vector<1x1024xf32> to vector<64x1024xf32>
    %9 = arith.mulf %7, %8 : vector<64x1024xf32>
    %10 = arith.addf %4, %9 : vector<64x1024xf32>
    %c0_6 = arith.constant 0 : index
    %c0_7 = arith.constant 0 : index
    %11 = vector.load %arg2[%c0_6, %c0_7] : memref<1x1024xf32, #tpu.memory_space<vmem>>, vector<1x1024xf32>
    %12 = vector.broadcast %11 : vector<1x1024xf32> to vector<64x1024xf32>
    %13 = arith.addf %10, %12 : vector<64x1024xf32>
    %c0_8 = arith.constant 0 : index
    %c0_9 = arith.constant 0 : index
    %14 = vector.load %arg14[%c0_8, %c0_9] : memref<64x1024xf32, #tpu.memory_space<vmem>>, vector<64x1024xf32>
    tpu.vector_store %arg14[%c0_8, %c0_9], %13 {strides = array<i32>} : memref<64x1024xf32, #tpu.memory_space<vmem>>, vector<64x1024xf32>,
    %c0_10 = arith.constant 0 : index
    %c0_11 = arith.constant 0 : index
    %15 = vector.load %arg3[%c0_10, %c0_11] : memref<256x1024xbf16, #tpu.memory_space<vmem>>, vector<256x1024xbf16>
    %c0_12 = arith.constant 0 : index
    %c0_13 = arith.constant 0 : index
    %16 = vector.load %arg7[%c0_12, %c0_13] : memref<8x256xf32, #tpu.memory_space<vmem>>, vector<8x256xf32>
    %c0_14 = arith.constant 0 : index
    %c0_15 = arith.constant 0 : index
    %17 = vector.load %arg8[%c0_14, %c0_15] : memref<8x256xf32, #tpu.memory_space<vmem>>, vector<8x256xf32>
    %18 = arith.truncf %16 : vector<8x256xf32> to vector<8x256xbf16>
    %cst = arith.constant dense<0.000000e+00> : vector<8x1024xf32>
    %19 = tpu.matmul %18, %15, %cst {dimension_numbers = #tpu.dot_dimension_numbers<[1], [0], [0], [1], [0, 0, 1, 1], [], []>} : vector<8x256xbf16>, vector<256x1024xbf16>, vector<8x1024xf32> -> vector<8x1024xf32>
    %c0_16 = arith.constant 0 : index
    %c0_17 = arith.constant 0 : index
    %20 = vector.load %arg14[%c0_16, %c0_17] : memref<64x1024xf32, #tpu.memory_space<vmem>>, vector<8x512xf32>
    %c56 = arith.constant 56 : index
    %c512 = arith.constant 512 : index
    %21 = vector.load %arg14[%c56, %c512] : memref<64x1024xf32, #tpu.memory_space<vmem>>, vector<8x512xf32>
    %22 = tpu.concatenate %20, %21 in 1 : vector<8x512xf32>, vector<8x512xf32> -> vector<8x1024xf32>
    %23 = arith.addf %22, %19 : vector<8x1024xf32>
    %24 = vector.extract_strided_slice %23 {offsets = [0, 0], sizes = [8, 384], strides = [1, 1]} : vector<8x1024xf32> to vector<8x384xf32>
    %25 = arith.negf %24 : vector<8x384xf32>
    %26 = math.exp %25 : vector<8x384xf32>
    %cst_18 = arith.constant 1.000000e+00 : f32
    %27 = vector.broadcast %cst_18 : f32 to vector<8x384xf32>
    %28 = arith.addf %27, %26 : vector<8x384xf32>
    %29 = arith.divf %27, %28 : vector<8x384xf32>
    %30 = vector.extract_strided_slice %23 {offsets = [0, 384], sizes = [8, 256], strides = [1, 1]} : vector<8x1024xf32> to vector<8x256xf32>
    %31 = math.tanh %30 : vector<8x256xf32>
    %32 = vector.extract_strided_slice %23 {offsets = [0, 640], sizes = [8, 384], strides = [1, 1]} : vector<8x1024xf32> to vector<8x384xf32>
    %33 = arith.negf %32 : vector<8x384xf32>
    %34 = math.exp %33 : vector<8x384xf32>
    %cst_19 = arith.constant 1.000000e+00 : f32
    %35 = vector.broadcast %cst_19 : f32 to vector<8x384xf32>
    %36 = arith.addf %35, %34 : vector<8x384xf32>
    %37 = arith.divf %35, %36 : vector<8x384xf32>
    %38 = vector.extract_strided_slice %29 {offsets = [0, 0], sizes = [8, 128], strides = [1, 1]} : vector<8x384xf32> to vector<8x128xf32>
    %39 = vector.extract_strided_slice %37 {offsets = [0, 256], sizes = [8, 128], strides = [1, 1]} : vector<8x384xf32> to vector<8x128xf32>
    %40 = tpu.concatenate %38, %39 in 1 : vector<8x128xf32>, vector<8x128xf32> -> vector<8x256xf32>
    %41 = vector.extract_strided_slice %29 {offsets = [0, 128], sizes = [8, 128], strides = [1, 1]} : vector<8x384xf32> to vector<8x128xf32>
    %42 = vector.extract_strided_slice %37 {offsets = [0, 128], sizes = [8, 128], strides = [1, 1]} : vector<8x384xf32> to vector<8x128xf32>
    %43 = tpu.concatenate %41, %42 in 1 : vector<8x128xf32>, vector<8x128xf32> -> vector<8x256xf32>
    %44 = vector.extract_strided_slice %29 {offsets = [0, 256], sizes = [8, 128], strides = [1, 1]} : vector<8x384xf32> to vector<8x128xf32>
    %45 = vector.extract_strided_slice %37 {offsets = [0, 0], sizes = [8, 128], strides = [1, 1]} : vector<8x384xf32> to vector<8x128xf32>
    %46 = tpu.concatenate %44, %45 in 1 : vector<8x128xf32>, vector<8x128xf32> -> vector<8x256xf32>
    %47 = arith.mulf %43, %17 : vector<8x256xf32>
    %48 = arith.mulf %40, %31 : vector<8x256xf32>
    %49 = arith.addf %47, %48 : vector<8x256xf32>
    %50 = math.tanh %49 : vector<8x256xf32>
    %51 = arith.mulf %46, %50 : vector<8x256xf32>
    %52 = vector.extract_strided_slice %51 {offsets = [0, 0], sizes = [8, 128], strides = [1, 1]} : vector<8x256xf32> to vector<8x128xf32>
    %c0_20 = arith.constant 0 : index
    %c0_21 = arith.constant 0 : index
    %53 = vector.load %arg15[%c0_20, %c0_21] : memref<64x256xf32, #tpu.memory_space<vmem>>, vector<8x128xf32>
    tpu.vector_store %arg15[%c0_20, %c0_21], %52 {strides = array<i32>} : memref<64x256xf32, #tpu.memory_space<vmem>>, vector<8x128xf32>,
    %54 = vector.extract_strided_slice %51 {offsets = [0, 128], sizes = [8, 128], strides = [1, 1]} : vector<8x256xf32> to vector<8x128xf32>
    %c56_22 = arith.constant 56 : index
    %c128 = arith.constant 128 : index
    %55 = vector.load %arg15[%c56_22, %c128] : memref<64x256xf32, #tpu.memory_space<vmem>>, vector<8x128xf32>
    tpu.vector_store %arg15[%c56_22, %c128], %54 {strides = array<i32>} : memref<64x256xf32, #tpu.memory_space<vmem>>, vector<8x128xf32>,
    %56 = arith.truncf %51 : vector<8x256xf32> to vector<8x256xbf16>
    %cst_23 = arith.constant dense<0.000000e+00> : vector<8x1024xf32>
    %57 = tpu.matmul %56, %15, %cst_23 {dimension_numbers = #tpu.dot_dimension_numbers<[1], [0], [0], [1], [0, 0, 1, 1], [], []>} : vector<8x256xbf16>, vector<256x1024xbf16>, vector<8x1024xf32> -> vector<8x1024xf32>
    %c8 = arith.constant 8 : index
    %c0_24 = arith.constant 0 : index
    %58 = vector.load %arg14[%c8, %c0_24] : memref<64x1024xf32, #tpu.memory_space<vmem>>, vector<8x512xf32>
    %c48 = arith.constant 48 : index
    %c512_25 = arith.constant 512 : index
    %59 = vector.load %arg14[%c48, %c512_25] : memref<64x1024xf32, #tpu.memory_space<vmem>>, vector<8x512xf32>
    %60 = tpu.concatenate %58, %59 in 1 : vector<8x512xf32>, vector<8x512xf32> -> vector<8x1024xf32>
    %61 = arith.addf %60, %57 : vector<8x1024xf32>
    %62 = vector.extract_strided_slice %61 {offsets = [0, 0], sizes = [8, 384], strides = [1, 1]} : vector<8x1024xf32> to vector<8x384xf32>
    %63 = arith.negf %62 : vector<8x384xf32>
    %64 = math.exp %63 : vector<8x384xf32>
    %cst_26 = arith.constant 1.000000e+00 : f32
    %65 = vector.broadcast %cst_26 : f32 to vector<8x384xf32>
    %66 = arith.addf %65, %64 : vector<8x384xf32>
    %67 = arith.divf %65, %66 : vector<8x384xf32>
    %68 = vector.extract_strided_slice %61 {offsets = [0, 384], sizes = [8, 256], strides = [1, 1]} : vector<8x1024xf32> to vector<8x256xf32>
    %69 = math.tanh %68 : vector<8x256xf32>
    %70 = vector.extract_strided_slice %61 {offsets = [0, 640], sizes = [8, 384], strides = [1, 1]} : vector<8x1024xf32> to vector<8x384xf32>
    %71 = arith.negf %70 : vector<8x384xf32>
    %72 = math.exp %71 : vector<8x384xf32>
    %cst_27 = arith.constant 1.000000e+00 : f32
    %73 = vector.broadcast %cst_27 : f32 to vector<8x384xf32>
    %74 = arith.addf %73, %72 : vector<8x384xf32>
    %75 = arith.divf %73, %74 : vector<8x384xf32>
    %76 = vector.extract_strided_slice %67 {offsets = [0, 0], sizes = [8, 128], strides = [1, 1]} : vector<8x384xf32> to vector<8x128xf32>
    %77 = vector.extract_strided_slice %75 {offsets = [0, 256], sizes = [8, 128], strides = [1, 1]} : vector<8x384xf32> to vector<8x128xf32>
    %78 = tpu.concatenate %76, %77 in 1 : vector<8x128xf32>, vector<8x128xf32> -> vector<8x256xf32>
    %79 = vector.extract_strided_slice %67 {offsets = [0, 128], sizes = [8, 128], strides = [1, 1]} : vector<8x384xf32> to vector<8x128xf32>
    %80 = vector.extract_strided_slice %75 {offsets = [0, 128], sizes = [8, 128], strides = [1, 1]} : vector<8x384xf32> to vector<8x128xf32>
    %81 = tpu.concatenate %79, %80 in 1 : vector<8x128xf32>, vector<8x128xf32> -> vector<8x256xf32>
    %82 = vector.extract_strided_slice %67 {offsets = [0, 256], sizes = [8, 128], strides = [1, 1]} : vector<8x384xf32> to vector<8x128xf32>
    %83 = vector.extract_strided_slice %75 {offsets = [0, 0], sizes = [8, 128], strides = [1, 1]} : vector<8x384xf32> to vector<8x128xf32>
    %84 = tpu.concatenate %82, %83 in 1 : vector<8x128xf32>, vector<8x128xf32> -> vector<8x256xf32>
    %85 = arith.mulf %81, %49 : vector<8x256xf32>
    %86 = arith.mulf %78, %69 : vector<8x256xf32>
    %87 = arith.addf %85, %86 : vector<8x256xf32>
    %88 = math.tanh %87 : vector<8x256xf32>
    %89 = arith.mulf %84, %88 : vector<8x256xf32>
    %90 = vector.extract_strided_slice %89 {offsets = [0, 0], sizes = [8, 128], strides = [1, 1]} : vector<8x256xf32> to vector<8x128xf32>
    %c8_28 = arith.constant 8 : index
    %c0_29 = arith.constant 0 : index
    %91 = vector.load %arg15[%c8_28, %c0_29] : memref<64x256xf32, #tpu.memory_space<vmem>>, vector<8x128xf32>
    tpu.vector_store %arg15[%c8_28, %c0_29], %90 {strides = array<i32>} : memref<64x256xf32, #tpu.memory_space<vmem>>, vector<8x128xf32>,
    %92 = vector.extract_strided_slice %89 {offsets = [0, 128], sizes = [8, 128], strides = [1, 1]} : vector<8x256xf32> to vector<8x128xf32>
    %c48_30 = arith.constant 48 : index
    %c128_31 = arith.constant 128 : index
    %93 = vector.load %arg15[%c48_30, %c128_31] : memref<64x256xf32, #tpu.memory_space<vmem>>, vector<8x128xf32>
    tpu.vector_store %arg15[%c48_30, %c128_31], %92 {strides = array<i32>} : memref<64x256xf32, #tpu.memory_space<vmem>>, vector<8x128xf32>,
    %94 = arith.truncf %89 : vector<8x256xf32> to vector<8x256xbf16>
    %cst_32 = arith.constant dense<0.000000e+00> : vector<8x1024xf32>
    %95 = tpu.matmul %94, %15, %cst_32 {dimension_numbers = #tpu.dot_dimension_numbers<[1], [0], [0], [1], [0, 0, 1, 1], [], []>} : vector<8x256xbf16>, vector<256x1024xbf16>, vector<8x1024xf32> -> vector<8x1024xf32>
    %c16 = arith.constant 16 : index
    %c0_33 = arith.constant 0 : index
    %96 = vector.load %arg14[%c16, %c0_33] : memref<64x1024xf32, #tpu.memory_space<vmem>>, vector<8x512xf32>
    %c40 = arith.constant 40 : index
    %c512_34 = arith.constant 512 : index
    %97 = vector.load %arg14[%c40, %c512_34] : memref<64x1024xf32, #tpu.memory_space<vmem>>, vector<8x512xf32>
    %98 = tpu.concatenate %96, %97 in 1 : vector<8x512xf32>, vector<8x512xf32> -> vector<8x1024xf32>
    %99 = arith.addf %98, %95 : vector<8x1024xf32>
    %100 = vector.extract_strided_slice %99 {offsets = [0, 0], sizes = [8, 384], strides = [1, 1]} : vector<8x1024xf32> to vector<8x384xf32>
    %101 = arith.negf %100 : vector<8x384xf32>
    %102 = math.exp %101 : vector<8x384xf32>
    %cst_35 = arith.constant 1.000000e+00 : f32
    %103 = vector.broadcast %cst_35 : f32 to vector<8x384xf32>
    %104 = arith.addf %103, %102 : vector<8x384xf32>
    %105 = arith.divf %103, %104 : vector<8x384xf32>
    %106 = vector.extract_strided_slice %99 {offsets = [0, 384], sizes = [8, 256], strides = [1, 1]} : vector<8x1024xf32> to vector<8x256xf32>
    %107 = math.tanh %106 : vector<8x256xf32>
    %108 = vector.extract_strided_slice %99 {offsets = [0, 640], sizes = [8, 384], strides = [1, 1]} : vector<8x1024xf32> to vector<8x384xf32>
    %109 = arith.negf %108 : vector<8x384xf32>
    %110 = math.exp %109 : vector<8x384xf32>
    %cst_36 = arith.constant 1.000000e+00 : f32
    %111 = vector.broadcast %cst_36 : f32 to vector<8x384xf32>
    %112 = arith.addf %111, %110 : vector<8x384xf32>
    %113 = arith.divf %111, %112 : vector<8x384xf32>
    %114 = vector.extract_strided_slice %105 {offsets = [0, 0], sizes = [8, 128], strides = [1, 1]} : vector<8x384xf32> to vector<8x128xf32>
    %115 = vector.extract_strided_slice %113 {offsets = [0, 256], sizes = [8, 128], strides = [1, 1]} : vector<8x384xf32> to vector<8x128xf32>
    %116 = tpu.concatenate %114, %115 in 1 : vector<8x128xf32>, vector<8x128xf32> -> vector<8x256xf32>
    %117 = vector.extract_strided_slice %105 {offsets = [0, 128], sizes = [8, 128], strides = [1, 1]} : vector<8x384xf32> to vector<8x128xf32>
    %118 = vector.extract_strided_slice %113 {offsets = [0, 128], sizes = [8, 128], strides = [1, 1]} : vector<8x384xf32> to vector<8x128xf32>
    %119 = tpu.concatenate %117, %118 in 1 : vector<8x128xf32>, vector<8x128xf32> -> vector<8x256xf32>
    %120 = vector.extract_strided_slice %105 {offsets = [0, 256], sizes = [8, 128], strides = [1, 1]} : vector<8x384xf32> to vector<8x128xf32>
    %121 = vector.extract_strided_slice %113 {offsets = [0, 0], sizes = [8, 128], strides = [1, 1]} : vector<8x384xf32> to vector<8x128xf32>
    %122 = tpu.concatenate %120, %121 in 1 : vector<8x128xf32>, vector<8x128xf32> -> vector<8x256xf32>
    %123 = arith.mulf %119, %87 : vector<8x256xf32>
    %124 = arith.mulf %116, %107 : vector<8x256xf32>
    %125 = arith.addf %123, %124 : vector<8x256xf32>
    %126 = math.tanh %125 : vector<8x256xf32>
    %127 = arith.mulf %122, %126 : vector<8x256xf32>
    %128 = vector.extract_strided_slice %127 {offsets = [0, 0], sizes = [8, 128], strides = [1, 1]} : vector<8x256xf32> to vector<8x128xf32>
    %c16_37 = arith.constant 16 : index
    %c0_38 = arith.constant 0 : index
    %129 = vector.load %arg15[%c16_37, %c0_38] : memref<64x256xf32, #tpu.memory_space<vmem>>, vector<8x128xf32>
    tpu.vector_store %arg15[%c16_37, %c0_38], %128 {strides = array<i32>} : memref<64x256xf32, #tpu.memory_space<vmem>>, vector<8x128xf32>,
    %130 = vector.extract_strided_slice %127 {offsets = [0, 128], sizes = [8, 128], strides = [1, 1]} : vector<8x256xf32> to vector<8x128xf32>
    %c40_39 = arith.constant 40 : index
    %c128_40 = arith.constant 128 : index
    %131 = vector.load %arg15[%c40_39, %c128_40] : memref<64x256xf32, #tpu.memory_space<vmem>>, vector<8x128xf32>
    tpu.vector_store %arg15[%c40_39, %c128_40], %130 {strides = array<i32>} : memref<64x256xf32, #tpu.memory_space<vmem>>, vector<8x128xf32>,
    %132 = arith.truncf %127 : vector<8x256xf32> to vector<8x256xbf16>
    %cst_41 = arith.constant dense<0.000000e+00> : vector<8x1024xf32>
    %133 = tpu.matmul %132, %15, %cst_41 {dimension_numbers = #tpu.dot_dimension_numbers<[1], [0], [0], [1], [0, 0, 1, 1], [], []>} : vector<8x256xbf16>, vector<256x1024xbf16>, vector<8x1024xf32> -> vector<8x1024xf32>
    %c24 = arith.constant 24 : index
    %c0_42 = arith.constant 0 : index
    %134 = vector.load %arg14[%c24, %c0_42] : memref<64x1024xf32, #tpu.memory_space<vmem>>, vector<8x512xf32>
    %c32 = arith.constant 32 : index
    %c512_43 = arith.constant 512 : index
    %135 = vector.load %arg14[%c32, %c512_43] : memref<64x1024xf32, #tpu.memory_space<vmem>>, vector<8x512xf32>
    %136 = tpu.concatenate %134, %135 in 1 : vector<8x512xf32>, vector<8x512xf32> -> vector<8x1024xf32>
    %137 = arith.addf %136, %133 : vector<8x1024xf32>
    %138 = vector.extract_strided_slice %137 {offsets = [0, 0], sizes = [8, 384], strides = [1, 1]} : vector<8x1024xf32> to vector<8x384xf32>
    %139 = arith.negf %138 : vector<8x384xf32>
    %140 = math.exp %139 : vector<8x384xf32>
    %cst_44 = arith.constant 1.000000e+00 : f32
    %141 = vector.broadcast %cst_44 : f32 to vector<8x384xf32>
    %142 = arith.addf %141, %140 : vector<8x384xf32>
    %143 = arith.divf %141, %142 : vector<8x384xf32>
    %144 = vector.extract_strided_slice %137 {offsets = [0, 384], sizes = [8, 256], strides = [1, 1]} : vector<8x1024xf32> to vector<8x256xf32>
    %145 = math.tanh %144 : vector<8x256xf32>
    %146 = vector.extract_strided_slice %137 {offsets = [0, 640], sizes = [8, 384], strides = [1, 1]} : vector<8x1024xf32> to vector<8x384xf32>
    %147 = arith.negf %146 : vector<8x384xf32>
    %148 = math.exp %147 : vector<8x384xf32>
    %cst_45 = arith.constant 1.000000e+00 : f32
    %149 = vector.broadcast %cst_45 : f32 to vector<8x384xf32>
    %150 = arith.addf %149, %148 : vector<8x384xf32>
    %151 = arith.divf %149, %150 : vector<8x384xf32>
    %152 = vector.extract_strided_slice %143 {offsets = [0, 0], sizes = [8, 128], strides = [1, 1]} : vector<8x384xf32> to vector<8x128xf32>
    %153 = vector.extract_strided_slice %151 {offsets = [0, 256], sizes = [8, 128], strides = [1, 1]} : vector<8x384xf32> to vector<8x128xf32>
    %154 = tpu.concatenate %152, %153 in 1 : vector<8x128xf32>, vector<8x128xf32> -> vector<8x256xf32>
    %155 = vector.extract_strided_slice %143 {offsets = [0, 128], sizes = [8, 128], strides = [1, 1]} : vector<8x384xf32> to vector<8x128xf32>
    %156 = vector.extract_strided_slice %151 {offsets = [0, 128], sizes = [8, 128], strides = [1, 1]} : vector<8x384xf32> to vector<8x128xf32>
    %157 = tpu.concatenate %155, %156 in 1 : vector<8x128xf32>, vector<8x128xf32> -> vector<8x256xf32>
    %158 = vector.extract_strided_slice %143 {offsets = [0, 256], sizes = [8, 128], strides = [1, 1]} : vector<8x384xf32> to vector<8x128xf32>
    %159 = vector.extract_strided_slice %151 {offsets = [0, 0], sizes = [8, 128], strides = [1, 1]} : vector<8x384xf32> to vector<8x128xf32>
    %160 = tpu.concatenate %158, %159 in 1 : vector<8x128xf32>, vector<8x128xf32> -> vector<8x256xf32>
    %161 = arith.mulf %157, %125 : vector<8x256xf32>
    %162 = arith.mulf %154, %145 : vector<8x256xf32>
    %163 = arith.addf %161, %162 : vector<8x256xf32>
    %164 = math.tanh %163 : vector<8x256xf32>
    %165 = arith.mulf %160, %164 : vector<8x256xf32>
    %166 = vector.extract_strided_slice %165 {offsets = [0, 0], sizes = [8, 128], strides = [1, 1]} : vector<8x256xf32> to vector<8x128xf32>
    %c24_46 = arith.constant 24 : index
    %c0_47 = arith.constant 0 : index
    %167 = vector.load %arg15[%c24_46, %c0_47] : memref<64x256xf32, #tpu.memory_space<vmem>>, vector<8x128xf32>
    tpu.vector_store %arg15[%c24_46, %c0_47], %166 {strides = array<i32>} : memref<64x256xf32, #tpu.memory_space<vmem>>, vector<8x128xf32>,
    %168 = vector.extract_strided_slice %165 {offsets = [0, 128], sizes = [8, 128], strides = [1, 1]} : vector<8x256xf32> to vector<8x128xf32>
    %c32_48 = arith.constant 32 : index
    %c128_49 = arith.constant 128 : index
    %169 = vector.load %arg15[%c32_48, %c128_49] : memref<64x256xf32, #tpu.memory_space<vmem>>, vector<8x128xf32>
    tpu.vector_store %arg15[%c32_48, %c128_49], %168 {strides = array<i32>} : memref<64x256xf32, #tpu.memory_space<vmem>>, vector<8x128xf32>,
    %170 = arith.truncf %165 : vector<8x256xf32> to vector<8x256xbf16>
    %cst_50 = arith.constant dense<0.000000e+00> : vector<8x1024xf32>
    %171 = tpu.matmul %170, %15, %cst_50 {dimension_numbers = #tpu.dot_dimension_numbers<[1], [0], [0], [1], [0, 0, 1, 1], [], []>} : vector<8x256xbf16>, vector<256x1024xbf16>, vector<8x1024xf32> -> vector<8x1024xf32>
    %c32_51 = arith.constant 32 : index
    %c0_52 = arith.constant 0 : index
    %172 = vector.load %arg14[%c32_51, %c0_52] : memref<64x1024xf32, #tpu.memory_space<vmem>>, vector<8x512xf32>
    %c24_53 = arith.constant 24 : index
    %c512_54 = arith.constant 512 : index
    %173 = vector.load %arg14[%c24_53, %c512_54] : memref<64x1024xf32, #tpu.memory_space<vmem>>, vector<8x512xf32>
    %174 = tpu.concatenate %172, %173 in 1 : vector<8x512xf32>, vector<8x512xf32> -> vector<8x1024xf32>
    %175 = arith.addf %174, %171 : vector<8x1024xf32>
    %176 = vector.extract_strided_slice %175 {offsets = [0, 0], sizes = [8, 384], strides = [1, 1]} : vector<8x1024xf32> to vector<8x384xf32>
    %177 = arith.negf %176 : vector<8x384xf32>
    %178 = math.exp %177 : vector<8x384xf32>
    %cst_55 = arith.constant 1.000000e+00 : f32
    %179 = vector.broadcast %cst_55 : f32 to vector<8x384xf32>
    %180 = arith.addf %179, %178 : vector<8x384xf32>
    %181 = arith.divf %179, %180 : vector<8x384xf32>
    %182 = vector.extract_strided_slice %175 {offsets = [0, 384], sizes = [8, 256], strides = [1, 1]} : vector<8x1024xf32> to vector<8x256xf32>
    %183 = math.tanh %182 : vector<8x256xf32>
    %184 = vector.extract_strided_slice %175 {offsets = [0, 640], sizes = [8, 384], strides = [1, 1]} : vector<8x1024xf32> to vector<8x384xf32>
    %185 = arith.negf %184 : vector<8x384xf32>
    %186 = math.exp %185 : vector<8x384xf32>
    %cst_56 = arith.constant 1.000000e+00 : f32
    %187 = vector.broadcast %cst_56 : f32 to vector<8x384xf32>
    %188 = arith.addf %187, %186 : vector<8x384xf32>
    %189 = arith.divf %187, %188 : vector<8x384xf32>
    %190 = vector.extract_strided_slice %181 {offsets = [0, 0], sizes = [8, 128], strides = [1, 1]} : vector<8x384xf32> to vector<8x128xf32>
    %191 = vector.extract_strided_slice %189 {offsets = [0, 256], sizes = [8, 128], strides = [1, 1]} : vector<8x384xf32> to vector<8x128xf32>
    %192 = tpu.concatenate %190, %191 in 1 : vector<8x128xf32>, vector<8x128xf32> -> vector<8x256xf32>
    %193 = vector.extract_strided_slice %181 {offsets = [0, 128], sizes = [8, 128], strides = [1, 1]} : vector<8x384xf32> to vector<8x128xf32>
    %194 = vector.extract_strided_slice %189 {offsets = [0, 128], sizes = [8, 128], strides = [1, 1]} : vector<8x384xf32> to vector<8x128xf32>
    %195 = tpu.concatenate %193, %194 in 1 : vector<8x128xf32>, vector<8x128xf32> -> vector<8x256xf32>
    %196 = vector.extract_strided_slice %181 {offsets = [0, 256], sizes = [8, 128], strides = [1, 1]} : vector<8x384xf32> to vector<8x128xf32>
    %197 = vector.extract_strided_slice %189 {offsets = [0, 0], sizes = [8, 128], strides = [1, 1]} : vector<8x384xf32> to vector<8x128xf32>
    %198 = tpu.concatenate %196, %197 in 1 : vector<8x128xf32>, vector<8x128xf32> -> vector<8x256xf32>
    %199 = arith.mulf %195, %163 : vector<8x256xf32>
    %200 = arith.mulf %192, %183 : vector<8x256xf32>
    %201 = arith.addf %199, %200 : vector<8x256xf32>
    %202 = math.tanh %201 : vector<8x256xf32>
    %203 = arith.mulf %198, %202 : vector<8x256xf32>
    %204 = vector.extract_strided_slice %203 {offsets = [0, 0], sizes = [8, 128], strides = [1, 1]} : vector<8x256xf32> to vector<8x128xf32>
    %c32_57 = arith.constant 32 : index
    %c0_58 = arith.constant 0 : index
    %205 = vector.load %arg15[%c32_57, %c0_58] : memref<64x256xf32, #tpu.memory_space<vmem>>, vector<8x128xf32>
    tpu.vector_store %arg15[%c32_57, %c0_58], %204 {strides = array<i32>} : memref<64x256xf32, #tpu.memory_space<vmem>>, vector<8x128xf32>,
    %206 = vector.extract_strided_slice %203 {offsets = [0, 128], sizes = [8, 128], strides = [1, 1]} : vector<8x256xf32> to vector<8x128xf32>
    %c24_59 = arith.constant 24 : index
    %c128_60 = arith.constant 128 : index
    %207 = vector.load %arg15[%c24_59, %c128_60] : memref<64x256xf32, #tpu.memory_space<vmem>>, vector<8x128xf32>
    tpu.vector_store %arg15[%c24_59, %c128_60], %206 {strides = array<i32>} : memref<64x256xf32, #tpu.memory_space<vmem>>, vector<8x128xf32>,
    %208 = arith.truncf %203 : vector<8x256xf32> to vector<8x256xbf16>
    %cst_61 = arith.constant dense<0.000000e+00> : vector<8x1024xf32>
    %209 = tpu.matmul %208, %15, %cst_61 {dimension_numbers = #tpu.dot_dimension_numbers<[1], [0], [0], [1], [0, 0, 1, 1], [], []>} : vector<8x256xbf16>, vector<256x1024xbf16>, vector<8x1024xf32> -> vector<8x1024xf32>
    %c40_62 = arith.constant 40 : index
    %c0_63 = arith.constant 0 : index
    %210 = vector.load %arg14[%c40_62, %c0_63] : memref<64x1024xf32, #tpu.memory_space<vmem>>, vector<8x512xf32>
    %c16_64 = arith.constant 16 : index
    %c512_65 = arith.constant 512 : index
    %211 = vector.load %arg14[%c16_64, %c512_65] : memref<64x1024xf32, #tpu.memory_space<vmem>>, vector<8x512xf32>
    %212 = tpu.concatenate %210, %211 in 1 : vector<8x512xf32>, vector<8x512xf32> -> vector<8x1024xf32>
    %213 = arith.addf %212, %209 : vector<8x1024xf32>
    %214 = vector.extract_strided_slice %213 {offsets = [0, 0], sizes = [8, 384], strides = [1, 1]} : vector<8x1024xf32> to vector<8x384xf32>
    %215 = arith.negf %214 : vector<8x384xf32>
    %216 = math.exp %215 : vector<8x384xf32>
    %cst_66 = arith.constant 1.000000e+00 : f32
    %217 = vector.broadcast %cst_66 : f32 to vector<8x384xf32>
    %218 = arith.addf %217, %216 : vector<8x384xf32>
    %219 = arith.divf %217, %218 : vector<8x384xf32>
    %220 = vector.extract_strided_slice %213 {offsets = [0, 384], sizes = [8, 256], strides = [1, 1]} : vector<8x1024xf32> to vector<8x256xf32>
    %221 = math.tanh %220 : vector<8x256xf32>
    %222 = vector.extract_strided_slice %213 {offsets = [0, 640], sizes = [8, 384], strides = [1, 1]} : vector<8x1024xf32> to vector<8x384xf32>
    %223 = arith.negf %222 : vector<8x384xf32>
    %224 = math.exp %223 : vector<8x384xf32>
    %cst_67 = arith.constant 1.000000e+00 : f32
    %225 = vector.broadcast %cst_67 : f32 to vector<8x384xf32>
    %226 = arith.addf %225, %224 : vector<8x384xf32>
    %227 = arith.divf %225, %226 : vector<8x384xf32>
    %228 = vector.extract_strided_slice %219 {offsets = [0, 0], sizes = [8, 128], strides = [1, 1]} : vector<8x384xf32> to vector<8x128xf32>
    %229 = vector.extract_strided_slice %227 {offsets = [0, 256], sizes = [8, 128], strides = [1, 1]} : vector<8x384xf32> to vector<8x128xf32>
    %230 = tpu.concatenate %228, %229 in 1 : vector<8x128xf32>, vector<8x128xf32> -> vector<8x256xf32>
    %231 = vector.extract_strided_slice %219 {offsets = [0, 128], sizes = [8, 128], strides = [1, 1]} : vector<8x384xf32> to vector<8x128xf32>
    %232 = vector.extract_strided_slice %227 {offsets = [0, 128], sizes = [8, 128], strides = [1, 1]} : vector<8x384xf32> to vector<8x128xf32>
    %233 = tpu.concatenate %231, %232 in 1 : vector<8x128xf32>, vector<8x128xf32> -> vector<8x256xf32>
    %234 = vector.extract_strided_slice %219 {offsets = [0, 256], sizes = [8, 128], strides = [1, 1]} : vector<8x384xf32> to vector<8x128xf32>
    %235 = vector.extract_strided_slice %227 {offsets = [0, 0], sizes = [8, 128], strides = [1, 1]} : vector<8x384xf32> to vector<8x128xf32>
    %236 = tpu.concatenate %234, %235 in 1 : vector<8x128xf32>, vector<8x128xf32> -> vector<8x256xf32>
    %237 = arith.mulf %233, %201 : vector<8x256xf32>
    %238 = arith.mulf %230, %221 : vector<8x256xf32>
    %239 = arith.addf %237, %238 : vector<8x256xf32>
    %240 = math.tanh %239 : vector<8x256xf32>
    %241 = arith.mulf %236, %240 : vector<8x256xf32>
    %242 = vector.extract_strided_slice %241 {offsets = [0, 0], sizes = [8, 128], strides = [1, 1]} : vector<8x256xf32> to vector<8x128xf32>
    %c40_68 = arith.constant 40 : index
    %c0_69 = arith.constant 0 : index
    %243 = vector.load %arg15[%c40_68, %c0_69] : memref<64x256xf32, #tpu.memory_space<vmem>>, vector<8x128xf32>
    tpu.vector_store %arg15[%c40_68, %c0_69], %242 {strides = array<i32>} : memref<64x256xf32, #tpu.memory_space<vmem>>, vector<8x128xf32>,
    %244 = vector.extract_strided_slice %241 {offsets = [0, 128], sizes = [8, 128], strides = [1, 1]} : vector<8x256xf32> to vector<8x128xf32>
    %c16_70 = arith.constant 16 : index
    %c128_71 = arith.constant 128 : index
    %245 = vector.load %arg15[%c16_70, %c128_71] : memref<64x256xf32, #tpu.memory_space<vmem>>, vector<8x128xf32>
    tpu.vector_store %arg15[%c16_70, %c128_71], %244 {strides = array<i32>} : memref<64x256xf32, #tpu.memory_space<vmem>>, vector<8x128xf32>,
    %246 = arith.truncf %241 : vector<8x256xf32> to vector<8x256xbf16>
    %cst_72 = arith.constant dense<0.000000e+00> : vector<8x1024xf32>
    %247 = tpu.matmul %246, %15, %cst_72 {dimension_numbers = #tpu.dot_dimension_numbers<[1], [0], [0], [1], [0, 0, 1, 1], [], []>} : vector<8x256xbf16>, vector<256x1024xbf16>, vector<8x1024xf32> -> vector<8x1024xf32>
    %c48_73 = arith.constant 48 : index
    %c0_74 = arith.constant 0 : index
    %248 = vector.load %arg14[%c48_73, %c0_74] : memref<64x1024xf32, #tpu.memory_space<vmem>>, vector<8x512xf32>
    %c8_75 = arith.constant 8 : index
    %c512_76 = arith.constant 512 : index
    %249 = vector.load %arg14[%c8_75, %c512_76] : memref<64x1024xf32, #tpu.memory_space<vmem>>, vector<8x512xf32>
    %250 = tpu.concatenate %248, %249 in 1 : vector<8x512xf32>, vector<8x512xf32> -> vector<8x1024xf32>
    %251 = arith.addf %250, %247 : vector<8x1024xf32>
    %252 = vector.extract_strided_slice %251 {offsets = [0, 0], sizes = [8, 384], strides = [1, 1]} : vector<8x1024xf32> to vector<8x384xf32>
    %253 = arith.negf %252 : vector<8x384xf32>
    %254 = math.exp %253 : vector<8x384xf32>
    %cst_77 = arith.constant 1.000000e+00 : f32
    %255 = vector.broadcast %cst_77 : f32 to vector<8x384xf32>
    %256 = arith.addf %255, %254 : vector<8x384xf32>
    %257 = arith.divf %255, %256 : vector<8x384xf32>
    %258 = vector.extract_strided_slice %251 {offsets = [0, 384], sizes = [8, 256], strides = [1, 1]} : vector<8x1024xf32> to vector<8x256xf32>
    %259 = math.tanh %258 : vector<8x256xf32>
    %260 = vector.extract_strided_slice %251 {offsets = [0, 640], sizes = [8, 384], strides = [1, 1]} : vector<8x1024xf32> to vector<8x384xf32>
    %261 = arith.negf %260 : vector<8x384xf32>
    %262 = math.exp %261 : vector<8x384xf32>
    %cst_78 = arith.constant 1.000000e+00 : f32
    %263 = vector.broadcast %cst_78 : f32 to vector<8x384xf32>
    %264 = arith.addf %263, %262 : vector<8x384xf32>
    %265 = arith.divf %263, %264 : vector<8x384xf32>
    %266 = vector.extract_strided_slice %257 {offsets = [0, 0], sizes = [8, 128], strides = [1, 1]} : vector<8x384xf32> to vector<8x128xf32>
    %267 = vector.extract_strided_slice %265 {offsets = [0, 256], sizes = [8, 128], strides = [1, 1]} : vector<8x384xf32> to vector<8x128xf32>
    %268 = tpu.concatenate %266, %267 in 1 : vector<8x128xf32>, vector<8x128xf32> -> vector<8x256xf32>
    %269 = vector.extract_strided_slice %257 {offsets = [0, 128], sizes = [8, 128], strides = [1, 1]} : vector<8x384xf32> to vector<8x128xf32>
    %270 = vector.extract_strided_slice %265 {offsets = [0, 128], sizes = [8, 128], strides = [1, 1]} : vector<8x384xf32> to vector<8x128xf32>
    %271 = tpu.concatenate %269, %270 in 1 : vector<8x128xf32>, vector<8x128xf32> -> vector<8x256xf32>
    %272 = vector.extract_strided_slice %257 {offsets = [0, 256], sizes = [8, 128], strides = [1, 1]} : vector<8x384xf32> to vector<8x128xf32>
    %273 = vector.extract_strided_slice %265 {offsets = [0, 0], sizes = [8, 128], strides = [1, 1]} : vector<8x384xf32> to vector<8x128xf32>
    %274 = tpu.concatenate %272, %273 in 1 : vector<8x128xf32>, vector<8x128xf32> -> vector<8x256xf32>
    %275 = arith.mulf %271, %239 : vector<8x256xf32>
    %276 = arith.mulf %268, %259 : vector<8x256xf32>
    %277 = arith.addf %275, %276 : vector<8x256xf32>
    %278 = math.tanh %277 : vector<8x256xf32>
    %279 = arith.mulf %274, %278 : vector<8x256xf32>
    %280 = vector.extract_strided_slice %279 {offsets = [0, 0], sizes = [8, 128], strides = [1, 1]} : vector<8x256xf32> to vector<8x128xf32>
    %c48_79 = arith.constant 48 : index
    %c0_80 = arith.constant 0 : index
    %281 = vector.load %arg15[%c48_79, %c0_80] : memref<64x256xf32, #tpu.memory_space<vmem>>, vector<8x128xf32>
    tpu.vector_store %arg15[%c48_79, %c0_80], %280 {strides = array<i32>} : memref<64x256xf32, #tpu.memory_space<vmem>>, vector<8x128xf32>,
    %282 = vector.extract_strided_slice %279 {offsets = [0, 128], sizes = [8, 128], strides = [1, 1]} : vector<8x256xf32> to vector<8x128xf32>
    %c8_81 = arith.constant 8 : index
    %c128_82 = arith.constant 128 : index
    %283 = vector.load %arg15[%c8_81, %c128_82] : memref<64x256xf32, #tpu.memory_space<vmem>>, vector<8x128xf32>
    tpu.vector_store %arg15[%c8_81, %c128_82], %282 {strides = array<i32>} : memref<64x256xf32, #tpu.memory_space<vmem>>, vector<8x128xf32>,
    %284 = arith.truncf %279 : vector<8x256xf32> to vector<8x256xbf16>
    %cst_83 = arith.constant dense<0.000000e+00> : vector<8x1024xf32>
    %285 = tpu.matmul %284, %15, %cst_83 {dimension_numbers = #tpu.dot_dimension_numbers<[1], [0], [0], [1], [0, 0, 1, 1], [], []>} : vector<8x256xbf16>, vector<256x1024xbf16>, vector<8x1024xf32> -> vector<8x1024xf32>
    %c56_84 = arith.constant 56 : index
    %c0_85 = arith.constant 0 : index
    %286 = vector.load %arg14[%c56_84, %c0_85] : memref<64x1024xf32, #tpu.memory_space<vmem>>, vector<8x512xf32>
    %c0_86 = arith.constant 0 : index
    %c512_87 = arith.constant 512 : index
    %287 = vector.load %arg14[%c0_86, %c512_87] : memref<64x1024xf32, #tpu.memory_space<vmem>>, vector<8x512xf32>
    %288 = tpu.concatenate %286, %287 in 1 : vector<8x512xf32>, vector<8x512xf32> -> vector<8x1024xf32>
    %289 = arith.addf %288, %285 : vector<8x1024xf32>
    %290 = vector.extract_strided_slice %289 {offsets = [0, 0], sizes = [8, 384], strides = [1, 1]} : vector<8x1024xf32> to vector<8x384xf32>
    %291 = arith.negf %290 : vector<8x384xf32>
    %292 = math.exp %291 : vector<8x384xf32>
    %cst_88 = arith.constant 1.000000e+00 : f32
    %293 = vector.broadcast %cst_88 : f32 to vector<8x384xf32>
    %294 = arith.addf %293, %292 : vector<8x384xf32>
    %295 = arith.divf %293, %294 : vector<8x384xf32>
    %296 = vector.extract_strided_slice %289 {offsets = [0, 384], sizes = [8, 256], strides = [1, 1]} : vector<8x1024xf32> to vector<8x256xf32>
    %297 = math.tanh %296 : vector<8x256xf32>
    %298 = vector.extract_strided_slice %289 {offsets = [0, 640], sizes = [8, 384], strides = [1, 1]} : vector<8x1024xf32> to vector<8x384xf32>
    %299 = arith.negf %298 : vector<8x384xf32>
    %300 = math.exp %299 : vector<8x384xf32>
    %cst_89 = arith.constant 1.000000e+00 : f32
    %301 = vector.broadcast %cst_89 : f32 to vector<8x384xf32>
    %302 = arith.addf %301, %300 : vector<8x384xf32>
    %303 = arith.divf %301, %302 : vector<8x384xf32>
    %304 = vector.extract_strided_slice %295 {offsets = [0, 0], sizes = [8, 128], strides = [1, 1]} : vector<8x384xf32> to vector<8x128xf32>
    %305 = vector.extract_strided_slice %303 {offsets = [0, 256], sizes = [8, 128], strides = [1, 1]} : vector<8x384xf32> to vector<8x128xf32>
    %306 = tpu.concatenate %304, %305 in 1 : vector<8x128xf32>, vector<8x128xf32> -> vector<8x256xf32>
    %307 = vector.extract_strided_slice %295 {offsets = [0, 128], sizes = [8, 128], strides = [1, 1]} : vector<8x384xf32> to vector<8x128xf32>
    %308 = vector.extract_strided_slice %303 {offsets = [0, 128], sizes = [8, 128], strides = [1, 1]} : vector<8x384xf32> to vector<8x128xf32>
    %309 = tpu.concatenate %307, %308 in 1 : vector<8x128xf32>, vector<8x128xf32> -> vector<8x256xf32>
    %310 = vector.extract_strided_slice %295 {offsets = [0, 256], sizes = [8, 128], strides = [1, 1]} : vector<8x384xf32> to vector<8x128xf32>
    %311 = vector.extract_strided_slice %303 {offsets = [0, 0], sizes = [8, 128], strides = [1, 1]} : vector<8x384xf32> to vector<8x128xf32>
    %312 = tpu.concatenate %310, %311 in 1 : vector<8x128xf32>, vector<8x128xf32> -> vector<8x256xf32>
    %313 = arith.mulf %309, %277 : vector<8x256xf32>
    %314 = arith.mulf %306, %297 : vector<8x256xf32>
    %315 = arith.addf %313, %314 : vector<8x256xf32>
    %316 = math.tanh %315 : vector<8x256xf32>
    %317 = arith.mulf %312, %316 : vector<8x256xf32>
    %318 = vector.extract_strided_slice %317 {offsets = [0, 0], sizes = [8, 128], strides = [1, 1]} : vector<8x256xf32> to vector<8x128xf32>
    %c56_90 = arith.constant 56 : index
    %c0_91 = arith.constant 0 : index
    %319 = vector.load %arg15[%c56_90, %c0_91] : memref<64x256xf32, #tpu.memory_space<vmem>>, vector<8x128xf32>
    tpu.vector_store %arg15[%c56_90, %c0_91], %318 {strides = array<i32>} : memref<64x256xf32, #tpu.memory_space<vmem>>, vector<8x128xf32>,
    %320 = vector.extract_strided_slice %317 {offsets = [0, 128], sizes = [8, 128], strides = [1, 1]} : vector<8x256xf32> to vector<8x128xf32>
    %c0_92 = arith.constant 0 : index
    %c128_93 = arith.constant 128 : index
    %321 = vector.load %arg15[%c0_92, %c128_93] : memref<64x256xf32, #tpu.memory_space<vmem>>, vector<8x128xf32>
    tpu.vector_store %arg15[%c0_92, %c128_93], %320 {strides = array<i32>} : memref<64x256xf32, #tpu.memory_space<vmem>>, vector<8x128xf32>,
    %c0_94 = arith.constant 0 : index
    %c0_95 = arith.constant 0 : index
    %322 = vector.load %arg15[%c0_94, %c0_95] : memref<64x256xf32, #tpu.memory_space<vmem>>, vector<64x256xf32>
    %323 = arith.truncf %322 : vector<64x256xf32> to vector<64x256xbf16>
    %c0_96 = arith.constant 0 : index
    %c0_97 = arith.constant 0 : index
    %324 = vector.load %arg4[%c0_96, %c0_97] : memref<256x1024xbf16, #tpu.memory_space<vmem>>, vector<256x1024xbf16>
    %cst_98 = arith.constant dense<0.000000e+00> : vector<64x1024xf32>
    %325 = tpu.matmul %323, %324, %cst_98 {dimension_numbers = #tpu.dot_dimension_numbers<[1], [0], [0], [1], [0, 0, 1, 1], [], []>} : vector<64x256xbf16>, vector<256x1024xbf16>, vector<64x1024xf32> -> vector<64x1024xf32>
    %c0_99 = arith.constant 0 : index
    %c0_100 = arith.constant 0 : index
    %326 = vector.load %arg5[%c0_99, %c0_100] : memref<1x1024xf32, #tpu.memory_space<vmem>>, vector<1x1024xf32>
    %327 = vector.broadcast %326 : vector<1x1024xf32> to vector<64x1024xf32>
    %328 = arith.addf %325, %327 : vector<64x1024xf32>
    %c0_101 = arith.constant 0 : index
    %c0_102 = arith.constant 0 : index
    %329 = vector.load %arg14[%c0_101, %c0_102] : memref<64x1024xf32, #tpu.memory_space<vmem>>, vector<64x1024xf32>
    tpu.vector_store %arg14[%c0_101, %c0_102], %328 {strides = array<i32>} : memref<64x1024xf32, #tpu.memory_space<vmem>>, vector<64x1024xf32>,
    %c0_103 = arith.constant 0 : index
    %c0_104 = arith.constant 0 : index
    %330 = vector.load %arg6[%c0_103, %c0_104] : memref<256x1024xbf16, #tpu.memory_space<vmem>>, vector<256x1024xbf16>
    %c0_105 = arith.constant 0 : index
    %c0_106 = arith.constant 0 : index
    %331 = vector.load %arg9[%c0_105, %c0_106] : memref<8x256xf32, #tpu.memory_space<vmem>>, vector<8x256xf32>
    %c0_107 = arith.constant 0 : index
    %c0_108 = arith.constant 0 : index
    %332 = vector.load %arg10[%c0_107, %c0_108] : memref<8x256xf32, #tpu.memory_space<vmem>>, vector<8x256xf32>
    %333 = arith.truncf %331 : vector<8x256xf32> to vector<8x256xbf16>
    %cst_109 = arith.constant dense<0.000000e+00> : vector<8x1024xf32>
    %334 = tpu.matmul %333, %330, %cst_109 {dimension_numbers = #tpu.dot_dimension_numbers<[1], [0], [0], [1], [0, 0, 1, 1], [], []>} : vector<8x256xbf16>, vector<256x1024xbf16>, vector<8x1024xf32> -> vector<8x1024xf32>
    %c0_110 = arith.constant 0 : index
    %c0_111 = arith.constant 0 : index
    %335 = vector.load %arg14[%c0_110, %c0_111] : memref<64x1024xf32, #tpu.memory_space<vmem>>, vector<8x512xf32>
    %c56_112 = arith.constant 56 : index
    %c512_113 = arith.constant 512 : index
    %336 = vector.load %arg14[%c56_112, %c512_113] : memref<64x1024xf32, #tpu.memory_space<vmem>>, vector<8x512xf32>
    %337 = tpu.concatenate %335, %336 in 1 : vector<8x512xf32>, vector<8x512xf32> -> vector<8x1024xf32>
    %338 = arith.addf %337, %334 : vector<8x1024xf32>
    %339 = vector.extract_strided_slice %338 {offsets = [0, 0], sizes = [8, 384], strides = [1, 1]} : vector<8x1024xf32> to vector<8x384xf32>
    %340 = arith.negf %339 : vector<8x384xf32>
    %341 = math.exp %340 : vector<8x384xf32>
    %cst_114 = arith.constant 1.000000e+00 : f32
    %342 = vector.broadcast %cst_114 : f32 to vector<8x384xf32>
    %343 = arith.addf %342, %341 : vector<8x384xf32>
    %344 = arith.divf %342, %343 : vector<8x384xf32>
    %345 = vector.extract_strided_slice %338 {offsets = [0, 384], sizes = [8, 256], strides = [1, 1]} : vector<8x1024xf32> to vector<8x256xf32>
    %346 = math.tanh %345 : vector<8x256xf32>
    %347 = vector.extract_strided_slice %338 {offsets = [0, 640], sizes = [8, 384], strides = [1, 1]} : vector<8x1024xf32> to vector<8x384xf32>
    %348 = arith.negf %347 : vector<8x384xf32>
    %349 = math.exp %348 : vector<8x384xf32>
    %cst_115 = arith.constant 1.000000e+00 : f32
    %350 = vector.broadcast %cst_115 : f32 to vector<8x384xf32>
    %351 = arith.addf %350, %349 : vector<8x384xf32>
    %352 = arith.divf %350, %351 : vector<8x384xf32>
    %353 = vector.extract_strided_slice %344 {offsets = [0, 0], sizes = [8, 128], strides = [1, 1]} : vector<8x384xf32> to vector<8x128xf32>
    %354 = vector.extract_strided_slice %352 {offsets = [0, 256], sizes = [8, 128], strides = [1, 1]} : vector<8x384xf32> to vector<8x128xf32>
    %355 = tpu.concatenate %353, %354 in 1 : vector<8x128xf32>, vector<8x128xf32> -> vector<8x256xf32>
    %356 = vector.extract_strided_slice %344 {offsets = [0, 128], sizes = [8, 128], strides = [1, 1]} : vector<8x384xf32> to vector<8x128xf32>
    %357 = vector.extract_strided_slice %352 {offsets = [0, 128], sizes = [8, 128], strides = [1, 1]} : vector<8x384xf32> to vector<8x128xf32>
    %358 = tpu.concatenate %356, %357 in 1 : vector<8x128xf32>, vector<8x128xf32> -> vector<8x256xf32>
    %359 = vector.extract_strided_slice %344 {offsets = [0, 256], sizes = [8, 128], strides = [1, 1]} : vector<8x384xf32> to vector<8x128xf32>
    %360 = vector.extract_strided_slice %352 {offsets = [0, 0], sizes = [8, 128], strides = [1, 1]} : vector<8x384xf32> to vector<8x128xf32>
    %361 = tpu.concatenate %359, %360 in 1 : vector<8x128xf32>, vector<8x128xf32> -> vector<8x256xf32>
    %362 = arith.mulf %358, %332 : vector<8x256xf32>
    %363 = arith.mulf %355, %346 : vector<8x256xf32>
    %364 = arith.addf %362, %363 : vector<8x256xf32>
    %365 = math.tanh %364 : vector<8x256xf32>
    %366 = arith.mulf %361, %365 : vector<8x256xf32>
    %367 = vector.extract_strided_slice %366 {offsets = [0, 128], sizes = [8, 128], strides = [1, 1]} : vector<8x256xf32> to vector<8x128xf32>
    %368 = arith.truncf %366 : vector<8x256xf32> to vector<8x256xbf16>
    %cst_116 = arith.constant dense<0.000000e+00> : vector<8x1024xf32>
    %369 = tpu.matmul %368, %330, %cst_116 {dimension_numbers = #tpu.dot_dimension_numbers<[1], [0], [0], [1], [0, 0, 1, 1], [], []>} : vector<8x256xbf16>, vector<256x1024xbf16>, vector<8x1024xf32> -> vector<8x1024xf32>
    %c8_117 = arith.constant 8 : index
    %c0_118 = arith.constant 0 : index
    %370 = vector.load %arg14[%c8_117, %c0_118] : memref<64x1024xf32, #tpu.memory_space<vmem>>, vector<8x512xf32>
    %c48_119 = arith.constant 48 : index
    %c512_120 = arith.constant 512 : index
    %371 = vector.load %arg14[%c48_119, %c512_120] : memref<64x1024xf32, #tpu.memory_space<vmem>>, vector<8x512xf32>
    %372 = tpu.concatenate %370, %371 in 1 : vector<8x512xf32>, vector<8x512xf32> -> vector<8x1024xf32>
    %373 = arith.addf %372, %369 : vector<8x1024xf32>
    %374 = vector.extract_strided_slice %373 {offsets = [0, 0], sizes = [8, 384], strides = [1, 1]} : vector<8x1024xf32> to vector<8x384xf32>
    %375 = arith.negf %374 : vector<8x384xf32>
    %376 = math.exp %375 : vector<8x384xf32>
    %cst_121 = arith.constant 1.000000e+00 : f32
    %377 = vector.broadcast %cst_121 : f32 to vector<8x384xf32>
    %378 = arith.addf %377, %376 : vector<8x384xf32>
    %379 = arith.divf %377, %378 : vector<8x384xf32>
    %380 = vector.extract_strided_slice %373 {offsets = [0, 384], sizes = [8, 256], strides = [1, 1]} : vector<8x1024xf32> to vector<8x256xf32>
    %381 = math.tanh %380 : vector<8x256xf32>
    %382 = vector.extract_strided_slice %373 {offsets = [0, 640], sizes = [8, 384], strides = [1, 1]} : vector<8x1024xf32> to vector<8x384xf32>
    %383 = arith.negf %382 : vector<8x384xf32>
    %384 = math.exp %383 : vector<8x384xf32>
    %cst_122 = arith.constant 1.000000e+00 : f32
    %385 = vector.broadcast %cst_122 : f32 to vector<8x384xf32>
    %386 = arith.addf %385, %384 : vector<8x384xf32>
    %387 = arith.divf %385, %386 : vector<8x384xf32>
    %388 = vector.extract_strided_slice %379 {offsets = [0, 0], sizes = [8, 128], strides = [1, 1]} : vector<8x384xf32> to vector<8x128xf32>
    %389 = vector.extract_strided_slice %387 {offsets = [0, 256], sizes = [8, 128], strides = [1, 1]} : vector<8x384xf32> to vector<8x128xf32>
    %390 = tpu.concatenate %388, %389 in 1 : vector<8x128xf32>, vector<8x128xf32> -> vector<8x256xf32>
    %391 = vector.extract_strided_slice %379 {offsets = [0, 128], sizes = [8, 128], strides = [1, 1]} : vector<8x384xf32> to vector<8x128xf32>
    %392 = vector.extract_strided_slice %387 {offsets = [0, 128], sizes = [8, 128], strides = [1, 1]} : vector<8x384xf32> to vector<8x128xf32>
    %393 = tpu.concatenate %391, %392 in 1 : vector<8x128xf32>, vector<8x128xf32> -> vector<8x256xf32>
    %394 = vector.extract_strided_slice %379 {offsets = [0, 256], sizes = [8, 128], strides = [1, 1]} : vector<8x384xf32> to vector<8x128xf32>
    %395 = vector.extract_strided_slice %387 {offsets = [0, 0], sizes = [8, 128], strides = [1, 1]} : vector<8x384xf32> to vector<8x128xf32>
    %396 = tpu.concatenate %394, %395 in 1 : vector<8x128xf32>, vector<8x128xf32> -> vector<8x256xf32>
    %397 = arith.mulf %393, %364 : vector<8x256xf32>
    %398 = arith.mulf %390, %381 : vector<8x256xf32>
    %399 = arith.addf %397, %398 : vector<8x256xf32>
    %400 = math.tanh %399 : vector<8x256xf32>
    %401 = arith.mulf %396, %400 : vector<8x256xf32>
    %402 = arith.truncf %401 : vector<8x256xf32> to vector<8x256xbf16>
    %cst_123 = arith.constant dense<0.000000e+00> : vector<8x1024xf32>
    %403 = tpu.matmul %402, %330, %cst_123 {dimension_numbers = #tpu.dot_dimension_numbers<[1], [0], [0], [1], [0, 0, 1, 1], [], []>} : vector<8x256xbf16>, vector<256x1024xbf16>, vector<8x1024xf32> -> vector<8x1024xf32>
    %c16_124 = arith.constant 16 : index
    %c0_125 = arith.constant 0 : index
    %404 = vector.load %arg14[%c16_124, %c0_125] : memref<64x1024xf32, #tpu.memory_space<vmem>>, vector<8x512xf32>
    %c40_126 = arith.constant 40 : index
    %c512_127 = arith.constant 512 : index
    %405 = vector.load %arg14[%c40_126, %c512_127] : memref<64x1024xf32, #tpu.memory_space<vmem>>, vector<8x512xf32>
    %406 = tpu.concatenate %404, %405 in 1 : vector<8x512xf32>, vector<8x512xf32> -> vector<8x1024xf32>
    %407 = arith.addf %406, %403 : vector<8x1024xf32>
    %408 = vector.extract_strided_slice %407 {offsets = [0, 0], sizes = [8, 384], strides = [1, 1]} : vector<8x1024xf32> to vector<8x384xf32>
    %409 = arith.negf %408 : vector<8x384xf32>
    %410 = math.exp %409 : vector<8x384xf32>
    %cst_128 = arith.constant 1.000000e+00 : f32
    %411 = vector.broadcast %cst_128 : f32 to vector<8x384xf32>
    %412 = arith.addf %411, %410 : vector<8x384xf32>
    %413 = arith.divf %411, %412 : vector<8x384xf32>
    %414 = vector.extract_strided_slice %407 {offsets = [0, 384], sizes = [8, 256], strides = [1, 1]} : vector<8x1024xf32> to vector<8x256xf32>
    %415 = math.tanh %414 : vector<8x256xf32>
    %416 = vector.extract_strided_slice %407 {offsets = [0, 640], sizes = [8, 384], strides = [1, 1]} : vector<8x1024xf32> to vector<8x384xf32>
    %417 = arith.negf %416 : vector<8x384xf32>
    %418 = math.exp %417 : vector<8x384xf32>
    %cst_129 = arith.constant 1.000000e+00 : f32
    %419 = vector.broadcast %cst_129 : f32 to vector<8x384xf32>
    %420 = arith.addf %419, %418 : vector<8x384xf32>
    %421 = arith.divf %419, %420 : vector<8x384xf32>
    %422 = vector.extract_strided_slice %413 {offsets = [0, 0], sizes = [8, 128], strides = [1, 1]} : vector<8x384xf32> to vector<8x128xf32>
    %423 = vector.extract_strided_slice %421 {offsets = [0, 256], sizes = [8, 128], strides = [1, 1]} : vector<8x384xf32> to vector<8x128xf32>
    %424 = tpu.concatenate %422, %423 in 1 : vector<8x128xf32>, vector<8x128xf32> -> vector<8x256xf32>
    %425 = vector.extract_strided_slice %413 {offsets = [0, 128], sizes = [8, 128], strides = [1, 1]} : vector<8x384xf32> to vector<8x128xf32>
    %426 = vector.extract_strided_slice %421 {offsets = [0, 128], sizes = [8, 128], strides = [1, 1]} : vector<8x384xf32> to vector<8x128xf32>
    %427 = tpu.concatenate %425, %426 in 1 : vector<8x128xf32>, vector<8x128xf32> -> vector<8x256xf32>
    %428 = vector.extract_strided_slice %413 {offsets = [0, 256], sizes = [8, 128], strides = [1, 1]} : vector<8x384xf32> to vector<8x128xf32>
    %429 = vector.extract_strided_slice %421 {offsets = [0, 0], sizes = [8, 128], strides = [1, 1]} : vector<8x384xf32> to vector<8x128xf32>
    %430 = tpu.concatenate %428, %429 in 1 : vector<8x128xf32>, vector<8x128xf32> -> vector<8x256xf32>
    %431 = arith.mulf %427, %399 : vector<8x256xf32>
    %432 = arith.mulf %424, %415 : vector<8x256xf32>
    %433 = arith.addf %431, %432 : vector<8x256xf32>
    %434 = math.tanh %433 : vector<8x256xf32>
    %435 = arith.mulf %430, %434 : vector<8x256xf32>
    %436 = arith.truncf %435 : vector<8x256xf32> to vector<8x256xbf16>
    %cst_130 = arith.constant dense<0.000000e+00> : vector<8x1024xf32>
    %437 = tpu.matmul %436, %330, %cst_130 {dimension_numbers = #tpu.dot_dimension_numbers<[1], [0], [0], [1], [0, 0, 1, 1], [], []>} : vector<8x256xbf16>, vector<256x1024xbf16>, vector<8x1024xf32> -> vector<8x1024xf32>
    %c24_131 = arith.constant 24 : index
    %c0_132 = arith.constant 0 : index
    %438 = vector.load %arg14[%c24_131, %c0_132] : memref<64x1024xf32, #tpu.memory_space<vmem>>, vector<8x512xf32>
    %c32_133 = arith.constant 32 : index
    %c512_134 = arith.constant 512 : index
    %439 = vector.load %arg14[%c32_133, %c512_134] : memref<64x1024xf32, #tpu.memory_space<vmem>>, vector<8x512xf32>
    %440 = tpu.concatenate %438, %439 in 1 : vector<8x512xf32>, vector<8x512xf32> -> vector<8x1024xf32>
    %441 = arith.addf %440, %437 : vector<8x1024xf32>
    %442 = vector.extract_strided_slice %441 {offsets = [0, 0], sizes = [8, 384], strides = [1, 1]} : vector<8x1024xf32> to vector<8x384xf32>
    %443 = arith.negf %442 : vector<8x384xf32>
    %444 = math.exp %443 : vector<8x384xf32>
    %cst_135 = arith.constant 1.000000e+00 : f32
    %445 = vector.broadcast %cst_135 : f32 to vector<8x384xf32>
    %446 = arith.addf %445, %444 : vector<8x384xf32>
    %447 = arith.divf %445, %446 : vector<8x384xf32>
    %448 = vector.extract_strided_slice %441 {offsets = [0, 384], sizes = [8, 256], strides = [1, 1]} : vector<8x1024xf32> to vector<8x256xf32>
    %449 = math.tanh %448 : vector<8x256xf32>
    %450 = vector.extract_strided_slice %441 {offsets = [0, 640], sizes = [8, 384], strides = [1, 1]} : vector<8x1024xf32> to vector<8x384xf32>
    %451 = arith.negf %450 : vector<8x384xf32>
    %452 = math.exp %451 : vector<8x384xf32>
    %cst_136 = arith.constant 1.000000e+00 : f32
    %453 = vector.broadcast %cst_136 : f32 to vector<8x384xf32>
    %454 = arith.addf %453, %452 : vector<8x384xf32>
    %455 = arith.divf %453, %454 : vector<8x384xf32>
    %456 = vector.extract_strided_slice %447 {offsets = [0, 0], sizes = [8, 128], strides = [1, 1]} : vector<8x384xf32> to vector<8x128xf32>
    %457 = vector.extract_strided_slice %455 {offsets = [0, 256], sizes = [8, 128], strides = [1, 1]} : vector<8x384xf32> to vector<8x128xf32>
    %458 = tpu.concatenate %456, %457 in 1 : vector<8x128xf32>, vector<8x128xf32> -> vector<8x256xf32>
    %459 = vector.extract_strided_slice %447 {offsets = [0, 128], sizes = [8, 128], strides = [1, 1]} : vector<8x384xf32> to vector<8x128xf32>
    %460 = vector.extract_strided_slice %455 {offsets = [0, 128], sizes = [8, 128], strides = [1, 1]} : vector<8x384xf32> to vector<8x128xf32>
    %461 = tpu.concatenate %459, %460 in 1 : vector<8x128xf32>, vector<8x128xf32> -> vector<8x256xf32>
    %462 = vector.extract_strided_slice %447 {offsets = [0, 256], sizes = [8, 128], strides = [1, 1]} : vector<8x384xf32> to vector<8x128xf32>
    %463 = vector.extract_strided_slice %455 {offsets = [0, 0], sizes = [8, 128], strides = [1, 1]} : vector<8x384xf32> to vector<8x128xf32>
    %464 = tpu.concatenate %462, %463 in 1 : vector<8x128xf32>, vector<8x128xf32> -> vector<8x256xf32>
    %465 = arith.mulf %461, %433 : vector<8x256xf32>
    %466 = arith.mulf %458, %449 : vector<8x256xf32>
    %467 = arith.addf %465, %466 : vector<8x256xf32>
    %468 = math.tanh %467 : vector<8x256xf32>
    %469 = arith.mulf %464, %468 : vector<8x256xf32>
    %470 = arith.truncf %469 : vector<8x256xf32> to vector<8x256xbf16>
    %cst_137 = arith.constant dense<0.000000e+00> : vector<8x1024xf32>
    %471 = tpu.matmul %470, %330, %cst_137 {dimension_numbers = #tpu.dot_dimension_numbers<[1], [0], [0], [1], [0, 0, 1, 1], [], []>} : vector<8x256xbf16>, vector<256x1024xbf16>, vector<8x1024xf32> -> vector<8x1024xf32>
    %c32_138 = arith.constant 32 : index
    %c0_139 = arith.constant 0 : index
    %472 = vector.load %arg14[%c32_138, %c0_139] : memref<64x1024xf32, #tpu.memory_space<vmem>>, vector<8x512xf32>
    %c24_140 = arith.constant 24 : index
    %c512_141 = arith.constant 512 : index
    %473 = vector.load %arg14[%c24_140, %c512_141] : memref<64x1024xf32, #tpu.memory_space<vmem>>, vector<8x512xf32>
    %474 = tpu.concatenate %472, %473 in 1 : vector<8x512xf32>, vector<8x512xf32> -> vector<8x1024xf32>
    %475 = arith.addf %474, %471 : vector<8x1024xf32>
    %476 = vector.extract_strided_slice %475 {offsets = [0, 0], sizes = [8, 384], strides = [1, 1]} : vector<8x1024xf32> to vector<8x384xf32>
    %477 = arith.negf %476 : vector<8x384xf32>
    %478 = math.exp %477 : vector<8x384xf32>
    %cst_142 = arith.constant 1.000000e+00 : f32
    %479 = vector.broadcast %cst_142 : f32 to vector<8x384xf32>
    %480 = arith.addf %479, %478 : vector<8x384xf32>
    %481 = arith.divf %479, %480 : vector<8x384xf32>
    %482 = vector.extract_strided_slice %475 {offsets = [0, 384], sizes = [8, 256], strides = [1, 1]} : vector<8x1024xf32> to vector<8x256xf32>
    %483 = math.tanh %482 : vector<8x256xf32>
    %484 = vector.extract_strided_slice %475 {offsets = [0, 640], sizes = [8, 384], strides = [1, 1]} : vector<8x1024xf32> to vector<8x384xf32>
    %485 = arith.negf %484 : vector<8x384xf32>
    %486 = math.exp %485 : vector<8x384xf32>
    %cst_143 = arith.constant 1.000000e+00 : f32
    %487 = vector.broadcast %cst_143 : f32 to vector<8x384xf32>
    %488 = arith.addf %487, %486 : vector<8x384xf32>
    %489 = arith.divf %487, %488 : vector<8x384xf32>
    %490 = vector.extract_strided_slice %481 {offsets = [0, 0], sizes = [8, 128], strides = [1, 1]} : vector<8x384xf32> to vector<8x128xf32>
    %491 = vector.extract_strided_slice %489 {offsets = [0, 256], sizes = [8, 128], strides = [1, 1]} : vector<8x384xf32> to vector<8x128xf32>
    %492 = tpu.concatenate %490, %491 in 1 : vector<8x128xf32>, vector<8x128xf32> -> vector<8x256xf32>
    %493 = vector.extract_strided_slice %481 {offsets = [0, 128], sizes = [8, 128], strides = [1, 1]} : vector<8x384xf32> to vector<8x128xf32>
    %494 = vector.extract_strided_slice %489 {offsets = [0, 128], sizes = [8, 128], strides = [1, 1]} : vector<8x384xf32> to vector<8x128xf32>
    %495 = tpu.concatenate %493, %494 in 1 : vector<8x128xf32>, vector<8x128xf32> -> vector<8x256xf32>
    %496 = vector.extract_strided_slice %481 {offsets = [0, 256], sizes = [8, 128], strides = [1, 1]} : vector<8x384xf32> to vector<8x128xf32>
    %497 = vector.extract_strided_slice %489 {offsets = [0, 0], sizes = [8, 128], strides = [1, 1]} : vector<8x384xf32> to vector<8x128xf32>
    %498 = tpu.concatenate %496, %497 in 1 : vector<8x128xf32>, vector<8x128xf32> -> vector<8x256xf32>
    %499 = arith.mulf %495, %467 : vector<8x256xf32>
    %500 = arith.mulf %492, %483 : vector<8x256xf32>
    %501 = arith.addf %499, %500 : vector<8x256xf32>
    %502 = math.tanh %501 : vector<8x256xf32>
    %503 = arith.mulf %498, %502 : vector<8x256xf32>
    %504 = arith.truncf %503 : vector<8x256xf32> to vector<8x256xbf16>
    %cst_144 = arith.constant dense<0.000000e+00> : vector<8x1024xf32>
    %505 = tpu.matmul %504, %330, %cst_144 {dimension_numbers = #tpu.dot_dimension_numbers<[1], [0], [0], [1], [0, 0, 1, 1], [], []>} : vector<8x256xbf16>, vector<256x1024xbf16>, vector<8x1024xf32> -> vector<8x1024xf32>
    %c40_145 = arith.constant 40 : index
    %c0_146 = arith.constant 0 : index
    %506 = vector.load %arg14[%c40_145, %c0_146] : memref<64x1024xf32, #tpu.memory_space<vmem>>, vector<8x512xf32>
    %c16_147 = arith.constant 16 : index
    %c512_148 = arith.constant 512 : index
    %507 = vector.load %arg14[%c16_147, %c512_148] : memref<64x1024xf32, #tpu.memory_space<vmem>>, vector<8x512xf32>
    %508 = tpu.concatenate %506, %507 in 1 : vector<8x512xf32>, vector<8x512xf32> -> vector<8x1024xf32>
    %509 = arith.addf %508, %505 : vector<8x1024xf32>
    %510 = vector.extract_strided_slice %509 {offsets = [0, 0], sizes = [8, 384], strides = [1, 1]} : vector<8x1024xf32> to vector<8x384xf32>
    %511 = arith.negf %510 : vector<8x384xf32>
    %512 = math.exp %511 : vector<8x384xf32>
    %cst_149 = arith.constant 1.000000e+00 : f32
    %513 = vector.broadcast %cst_149 : f32 to vector<8x384xf32>
    %514 = arith.addf %513, %512 : vector<8x384xf32>
    %515 = arith.divf %513, %514 : vector<8x384xf32>
    %516 = vector.extract_strided_slice %509 {offsets = [0, 384], sizes = [8, 256], strides = [1, 1]} : vector<8x1024xf32> to vector<8x256xf32>
    %517 = math.tanh %516 : vector<8x256xf32>
    %518 = vector.extract_strided_slice %509 {offsets = [0, 640], sizes = [8, 384], strides = [1, 1]} : vector<8x1024xf32> to vector<8x384xf32>
    %519 = arith.negf %518 : vector<8x384xf32>
    %520 = math.exp %519 : vector<8x384xf32>
    %cst_150 = arith.constant 1.000000e+00 : f32
    %521 = vector.broadcast %cst_150 : f32 to vector<8x384xf32>
    %522 = arith.addf %521, %520 : vector<8x384xf32>
    %523 = arith.divf %521, %522 : vector<8x384xf32>
    %524 = vector.extract_strided_slice %515 {offsets = [0, 0], sizes = [8, 128], strides = [1, 1]} : vector<8x384xf32> to vector<8x128xf32>
    %525 = vector.extract_strided_slice %523 {offsets = [0, 256], sizes = [8, 128], strides = [1, 1]} : vector<8x384xf32> to vector<8x128xf32>
    %526 = tpu.concatenate %524, %525 in 1 : vector<8x128xf32>, vector<8x128xf32> -> vector<8x256xf32>
    %527 = vector.extract_strided_slice %515 {offsets = [0, 128], sizes = [8, 128], strides = [1, 1]} : vector<8x384xf32> to vector<8x128xf32>
    %528 = vector.extract_strided_slice %523 {offsets = [0, 128], sizes = [8, 128], strides = [1, 1]} : vector<8x384xf32> to vector<8x128xf32>
    %529 = tpu.concatenate %527, %528 in 1 : vector<8x128xf32>, vector<8x128xf32> -> vector<8x256xf32>
    %530 = vector.extract_strided_slice %515 {offsets = [0, 256], sizes = [8, 128], strides = [1, 1]} : vector<8x384xf32> to vector<8x128xf32>
    %531 = vector.extract_strided_slice %523 {offsets = [0, 0], sizes = [8, 128], strides = [1, 1]} : vector<8x384xf32> to vector<8x128xf32>
    %532 = tpu.concatenate %530, %531 in 1 : vector<8x128xf32>, vector<8x128xf32> -> vector<8x256xf32>
    %533 = arith.mulf %529, %501 : vector<8x256xf32>
    %534 = arith.mulf %526, %517 : vector<8x256xf32>
    %535 = arith.addf %533, %534 : vector<8x256xf32>
    %536 = math.tanh %535 : vector<8x256xf32>
    %537 = arith.mulf %532, %536 : vector<8x256xf32>
    %538 = arith.truncf %537 : vector<8x256xf32> to vector<8x256xbf16>
    %cst_151 = arith.constant dense<0.000000e+00> : vector<8x1024xf32>
    %539 = tpu.matmul %538, %330, %cst_151 {dimension_numbers = #tpu.dot_dimension_numbers<[1], [0], [0], [1], [0, 0, 1, 1], [], []>} : vector<8x256xbf16>, vector<256x1024xbf16>, vector<8x1024xf32> -> vector<8x1024xf32>
    %c48_152 = arith.constant 48 : index
    %c0_153 = arith.constant 0 : index
    %540 = vector.load %arg14[%c48_152, %c0_153] : memref<64x1024xf32, #tpu.memory_space<vmem>>, vector<8x512xf32>
    %c8_154 = arith.constant 8 : index
    %c512_155 = arith.constant 512 : index
    %541 = vector.load %arg14[%c8_154, %c512_155] : memref<64x1024xf32, #tpu.memory_space<vmem>>, vector<8x512xf32>
    %542 = tpu.concatenate %540, %541 in 1 : vector<8x512xf32>, vector<8x512xf32> -> vector<8x1024xf32>
    %543 = arith.addf %542, %539 : vector<8x1024xf32>
    %544 = vector.extract_strided_slice %543 {offsets = [0, 0], sizes = [8, 384], strides = [1, 1]} : vector<8x1024xf32> to vector<8x384xf32>
    %545 = arith.negf %544 : vector<8x384xf32>
    %546 = math.exp %545 : vector<8x384xf32>
    %cst_156 = arith.constant 1.000000e+00 : f32
    %547 = vector.broadcast %cst_156 : f32 to vector<8x384xf32>
    %548 = arith.addf %547, %546 : vector<8x384xf32>
    %549 = arith.divf %547, %548 : vector<8x384xf32>
    %550 = vector.extract_strided_slice %543 {offsets = [0, 384], sizes = [8, 256], strides = [1, 1]} : vector<8x1024xf32> to vector<8x256xf32>
    %551 = math.tanh %550 : vector<8x256xf32>
    %552 = vector.extract_strided_slice %543 {offsets = [0, 640], sizes = [8, 384], strides = [1, 1]} : vector<8x1024xf32> to vector<8x384xf32>
    %553 = arith.negf %552 : vector<8x384xf32>
    %554 = math.exp %553 : vector<8x384xf32>
    %cst_157 = arith.constant 1.000000e+00 : f32
    %555 = vector.broadcast %cst_157 : f32 to vector<8x384xf32>
    %556 = arith.addf %555, %554 : vector<8x384xf32>
    %557 = arith.divf %555, %556 : vector<8x384xf32>
    %558 = vector.extract_strided_slice %549 {offsets = [0, 0], sizes = [8, 128], strides = [1, 1]} : vector<8x384xf32> to vector<8x128xf32>
    %559 = vector.extract_strided_slice %557 {offsets = [0, 256], sizes = [8, 128], strides = [1, 1]} : vector<8x384xf32> to vector<8x128xf32>
    %560 = tpu.concatenate %558, %559 in 1 : vector<8x128xf32>, vector<8x128xf32> -> vector<8x256xf32>
    %561 = vector.extract_strided_slice %549 {offsets = [0, 128], sizes = [8, 128], strides = [1, 1]} : vector<8x384xf32> to vector<8x128xf32>
    %562 = vector.extract_strided_slice %557 {offsets = [0, 128], sizes = [8, 128], strides = [1, 1]} : vector<8x384xf32> to vector<8x128xf32>
    %563 = tpu.concatenate %561, %562 in 1 : vector<8x128xf32>, vector<8x128xf32> -> vector<8x256xf32>
    %564 = vector.extract_strided_slice %549 {offsets = [0, 256], sizes = [8, 128], strides = [1, 1]} : vector<8x384xf32> to vector<8x128xf32>
    %565 = vector.extract_strided_slice %557 {offsets = [0, 0], sizes = [8, 128], strides = [1, 1]} : vector<8x384xf32> to vector<8x128xf32>
    %566 = tpu.concatenate %564, %565 in 1 : vector<8x128xf32>, vector<8x128xf32> -> vector<8x256xf32>
    %567 = arith.mulf %563, %535 : vector<8x256xf32>
    %568 = arith.mulf %560, %551 : vector<8x256xf32>
    %569 = arith.addf %567, %568 : vector<8x256xf32>
    %570 = math.tanh %569 : vector<8x256xf32>
    %571 = arith.mulf %566, %570 : vector<8x256xf32>
    %572 = arith.truncf %571 : vector<8x256xf32> to vector<8x256xbf16>
    %cst_158 = arith.constant dense<0.000000e+00> : vector<8x1024xf32>
    %573 = tpu.matmul %572, %330, %cst_158 {dimension_numbers = #tpu.dot_dimension_numbers<[1], [0], [0], [1], [0, 0, 1, 1], [], []>} : vector<8x256xbf16>, vector<256x1024xbf16>, vector<8x1024xf32> -> vector<8x1024xf32>
    %c56_159 = arith.constant 56 : index
    %c0_160 = arith.constant 0 : index
    %574 = vector.load %arg14[%c56_159, %c0_160] : memref<64x1024xf32, #tpu.memory_space<vmem>>, vector<8x512xf32>
    %c0_161 = arith.constant 0 : index
    %c512_162 = arith.constant 512 : index
    %575 = vector.load %arg14[%c0_161, %c512_162] : memref<64x1024xf32, #tpu.memory_space<vmem>>, vector<8x512xf32>
    %576 = tpu.concatenate %574, %575 in 1 : vector<8x512xf32>, vector<8x512xf32> -> vector<8x1024xf32>
    %577 = arith.addf %576, %573 : vector<8x1024xf32>
    %578 = vector.extract_strided_slice %577 {offsets = [0, 0], sizes = [8, 384], strides = [1, 1]} : vector<8x1024xf32> to vector<8x384xf32>
    %579 = arith.negf %578 : vector<8x384xf32>
    %580 = math.exp %579 : vector<8x384xf32>
    %cst_163 = arith.constant 1.000000e+00 : f32
    %581 = vector.broadcast %cst_163 : f32 to vector<8x384xf32>
    %582 = arith.addf %581, %580 : vector<8x384xf32>
    %583 = arith.divf %581, %582 : vector<8x384xf32>
    %584 = vector.extract_strided_slice %577 {offsets = [0, 384], sizes = [8, 256], strides = [1, 1]} : vector<8x1024xf32> to vector<8x256xf32>
    %585 = math.tanh %584 : vector<8x256xf32>
    %586 = vector.extract_strided_slice %577 {offsets = [0, 640], sizes = [8, 384], strides = [1, 1]} : vector<8x1024xf32> to vector<8x384xf32>
    %587 = arith.negf %586 : vector<8x384xf32>
    %588 = math.exp %587 : vector<8x384xf32>
    %cst_164 = arith.constant 1.000000e+00 : f32
    %589 = vector.broadcast %cst_164 : f32 to vector<8x384xf32>
    %590 = arith.addf %589, %588 : vector<8x384xf32>
    %591 = arith.divf %589, %590 : vector<8x384xf32>
    %592 = vector.extract_strided_slice %583 {offsets = [0, 0], sizes = [8, 128], strides = [1, 1]} : vector<8x384xf32> to vector<8x128xf32>
    %593 = vector.extract_strided_slice %591 {offsets = [0, 256], sizes = [8, 128], strides = [1, 1]} : vector<8x384xf32> to vector<8x128xf32>
    %594 = tpu.concatenate %592, %593 in 1 : vector<8x128xf32>, vector<8x128xf32> -> vector<8x256xf32>
    %595 = vector.extract_strided_slice %583 {offsets = [0, 128], sizes = [8, 128], strides = [1, 1]} : vector<8x384xf32> to vector<8x128xf32>
    %596 = vector.extract_strided_slice %591 {offsets = [0, 128], sizes = [8, 128], strides = [1, 1]} : vector<8x384xf32> to vector<8x128xf32>
    %597 = tpu.concatenate %595, %596 in 1 : vector<8x128xf32>, vector<8x128xf32> -> vector<8x256xf32>
    %598 = vector.extract_strided_slice %583 {offsets = [0, 256], sizes = [8, 128], strides = [1, 1]} : vector<8x384xf32> to vector<8x128xf32>
    %599 = vector.extract_strided_slice %591 {offsets = [0, 0], sizes = [8, 128], strides = [1, 1]} : vector<8x384xf32> to vector<8x128xf32>
    %600 = tpu.concatenate %598, %599 in 1 : vector<8x128xf32>, vector<8x128xf32> -> vector<8x256xf32>
    %601 = arith.mulf %597, %569 : vector<8x256xf32>
    %602 = arith.mulf %594, %585 : vector<8x256xf32>
    %603 = arith.addf %601, %602 : vector<8x256xf32>
    %604 = math.tanh %603 : vector<8x256xf32>
    %605 = arith.mulf %600, %604 : vector<8x256xf32>
    %606 = vector.extract_strided_slice %605 {offsets = [0, 0], sizes = [8, 128], strides = [1, 1]} : vector<8x256xf32> to vector<8x128xf32>
    %607 = tpu.concatenate %606, %367 in 1 : vector<8x128xf32>, vector<8x128xf32> -> vector<8x256xf32>
    %c0_165 = arith.constant 0 : index
    %c0_166 = arith.constant 0 : index
    %608 = vector.load %arg11[%c0_165, %c0_166] : memref<256x10xf32, #tpu.memory_space<vmem>>, vector<256x10xf32>
    %cst_167 = arith.constant dense<0.000000e+00> : vector<8x10xf32>
    %609 = tpu.matmul %607, %608, %cst_167 {dimension_numbers = #tpu.dot_dimension_numbers<[1], [0], [0], [1], [0, 0, 1, 1], [], []>} : vector<8x256xf32>, vector<256x10xf32>, vector<8x10xf32> -> vector<8x10xf32>
    %c0_168 = arith.constant 0 : index
    %c0_169 = arith.constant 0 : index
    %610 = vector.load %arg12[%c0_168, %c0_169] : memref<1x10xf32, #tpu.memory_space<vmem>>, vector<1x10xf32>
    %611 = vector.broadcast %610 : vector<1x10xf32> to vector<8x10xf32>
    %612 = arith.addf %609, %611 : vector<8x10xf32>
    %c0_170 = arith.constant 0 : index
    %c0_171 = arith.constant 0 : index
    %613 = vector.load %arg13[%c0_170, %c0_171] : memref<8x10xf32, #tpu.memory_space<vmem>>, vector<8x10xf32>
    tpu.vector_store %arg13[%c0_170, %c0_171], %612 {strides = array<i32>} : memref<8x10xf32, #tpu.memory_space<vmem>>, vector<8x10xf32>,
    return
  }
}

</mosaic_0001>

<llo_original>
// kernel: tpu_custom_call.1
$region0: #{tpu_custom_call.1}
  #allocation0 [shape = 'u32[]', space=smem, size = 0x4, offset = 0x4, fixed_abs, tag = 'smem constant byte address 0x4 - core index']
  #allocation1 [shape = 'u32[144,128]{1,0:T(1,128)}', space=vmem, size = 0x12000, scoped, tag = 'internal scratch']
  #allocation2 [shape = 'f32[64,1024]{1,0:T(8,128)}', space=vmem, size = 0x40000, scoped, tag = 'scratch operand']
  #allocation3 [shape = 'f32[64,256]{1,0:T(8,128)}', space=vmem, size = 0x10000, scoped, tag = 'scratch operand']
  %s0 = inlined_call_operand.vmem [shape: f32[64,2], index: 0, kind: input, shape index: {}]
  %s1 = inlined_call_operand.vmem [shape: f32[2,1024], index: 1, kind: input, shape index: {}]
  %s2 = inlined_call_operand.vmem [shape: f32[1,1024], index: 2, kind: input, shape index: {}]
  %s3 = inlined_call_operand.hbm [shape: bf16[256,1024], index: 3, kind: input, shape index: {}]
  %s4 = inlined_call_operand.hbm [shape: bf16[256,1024], index: 4, kind: input, shape index: {}]
  %s5 = inlined_call_operand.vmem [shape: f32[1,1024], index: 5, kind: input, shape index: {}]
  %s6 = inlined_call_operand.hbm [shape: bf16[256,1024], index: 6, kind: input, shape index: {}]
  %s7 = inlined_call_operand.vmem [shape: f32[8,256], index: 7, kind: input, shape index: {}]
  %s8 = inlined_call_operand.vmem [shape: f32[8,256], index: 8, kind: input, shape index: {}]
  %s9 = inlined_call_operand.vmem [shape: f32[8,256], index: 9, kind: input, shape index: {}]
  %s10 = inlined_call_operand.vmem [shape: f32[8,256], index: 10, kind: input, shape index: {}]
  %s11 = inlined_call_operand.vmem [shape: f32[256,10], index: 11, kind: input, shape index: {}]
  %s12 = inlined_call_operand.vmem [shape: f32[1,10], index: 12, kind: input, shape index: {}]
  %s13 = inlined_call_operand.hbm [shape: f32[8,10], index: 13, kind: output, shape index: {}]
  %s14 = sld [smem:[#allocation0]]
  $region74: #{tpu_custom_call.1} parent=0
    _
  %s16 = ssub.s32 1, %s14
  %s17 = scalar_select 0, %s16, %s14
  $region1: #{tpu_custom_call.1} parent=0
    #allocation4 [shape = 'u8[524288]{0}', space=vmem, size = 0x80000, scoped, tag = 'input window, operand 3, single buffered']
    #allocation5 [shape = 's32[1]{0}', space=sflag, size = 0x4, scoped, tag = 'scoped memory for tpu_custom_call.1']
    #allocation6 [shape = 's32[1]{0}', space=sflag, size = 0x4, scoped, tag = 'scoped memory for tpu_custom_call.1']
    #allocation7 [shape = 'u8[524288]{0}', space=vmem, size = 0x80000, scoped, tag = 'input window, operand 4, single buffered']
    #allocation8 [shape = 's32[1]{0}', space=sflag, size = 0x4, scoped, tag = 'scoped memory for tpu_custom_call.1']
    #allocation9 [shape = 'u8[524288]{0}', space=vmem, size = 0x80000, scoped, tag = 'input window, operand 6, single buffered']
    #allocation10 [shape = 'u8[4096]{0}', space=vmem, size = 0x1000, scoped, tag = 'output window, operand 0, single buffered']
    %18 = vsyncpa [#allocation5], 0
    %19 = vsyncpa [#allocation8], 0
    %20 = vsyncpa [#allocation6], 0
    // Predicated region
    $region2: #{tpu_custom_call.1} parent=1 // pred_check
      _
    $region3: #{tpu_custom_call.1} parent=1 // pred_check_branch
      %22 = sbr.rel (0) target = $region5
    $region4: #{tpu_custom_call.1} parent=1 // pred_region
      _
    $region5: #{tpu_custom_call.1} parent=1 // pred_fallthru
      _
    // Predicated region
    $region6: #{tpu_custom_call.1} parent=1 // pred_check
      _
    $region7: #{tpu_custom_call.1} parent=1 // pred_check_branch
      %24 = sbr.rel (0) target = $region9
    $region8: #{tpu_custom_call.1} parent=1 // pred_region
      _
    $region9: #{tpu_custom_call.1} parent=1 // pred_fallthru
      _
    // Predicated region
    $region10: #{tpu_custom_call.1} parent=1 // pred_check
      _
    $region11: #{tpu_custom_call.1} parent=1 // pred_check_branch
      %26 = sbr.rel (0) target = $region13
    $region12: #{tpu_custom_call.1} parent=1 // pred_region
      _
    $region13: #{tpu_custom_call.1} parent=1 // pred_fallthru
      _
    // Predicated region
    $region14: #{tpu_custom_call.1} parent=1 // pred_check
      _
    $region15: #{tpu_custom_call.1} parent=1 // pred_check_branch
      %28 = sbr.rel (0) target = $region17
    $region16: #{tpu_custom_call.1} parent=1 // pred_region
      %s30 = ssub.s32 16384, 16384
      %31 = vsyncadd [#allocation5], %s30
      %s32 = sshll.u32 [#allocation4], 4
      %s33 = int_to_ptr.vmem [resolvable:$true] %s32
      %38 = dma.hbm_to_vmem [thread:$0]  %s3, 16384, %s33, [#allocation5], 512, 512, 32
    $region17: #{tpu_custom_call.1} parent=1 // pred_fallthru
      _
    // Predicated region
    $region18: #{tpu_custom_call.1} parent=1 // pred_check
      _
    $region19: #{tpu_custom_call.1} parent=1 // pred_check_branch
      %40 = sbr.rel (0) target = $region21
    $region20: #{tpu_custom_call.1} parent=1 // pred_region
      %s42 = ssub.s32 16384, 16384
      %43 = vsyncadd [#allocation8], %s42
      %s44 = sshll.u32 [#allocation7], 4
      %s45 = int_to_ptr.vmem [resolvable:$true] %s44
      %50 = dma.hbm_to_vmem [thread:$0]  %s4, 16384, %s45, [#allocation8], 512, 512, 32
    $region21: #{tpu_custom_call.1} parent=1 // pred_fallthru
      _
    // Predicated region
    $region22: #{tpu_custom_call.1} parent=1 // pred_check
      _
    $region23: #{tpu_custom_call.1} parent=1 // pred_check_branch
      %52 = sbr.rel (0) target = $region25
    $region24: #{tpu_custom_call.1} parent=1 // pred_region
      _
    $region25: #{tpu_custom_call.1} parent=1 // pred_fallthru
      _
    // Predicated region
    $region26: #{tpu_custom_call.1} parent=1 // pred_check
      _
    $region27: #{tpu_custom_call.1} parent=1 // pred_check_branch
      %54 = sbr.rel (0) target = $region29
    $region28: #{tpu_custom_call.1} parent=1 // pred_region
      %s56 = ssub.s32 16384, 16384
      %57 = vsyncadd [#allocation8], %s56
      %s58 = sshll.u32 [#allocation9], 4
      %s59 = int_to_ptr.vmem [resolvable:$true] %s58
      %64 = dma.hbm_to_vmem [thread:$0]  %s6, 16384, %s59, [#allocation8], 512, 512, 32
    $region29: #{tpu_custom_call.1} parent=1 // pred_fallthru
      _
    // Predicated region
    $region30: #{tpu_custom_call.1} parent=1 // pred_check
      _
    $region31: #{tpu_custom_call.1} parent=1 // pred_check_branch
      %66 = sbr.rel (0) target = $region33
    $region32: #{tpu_custom_call.1} parent=1 // pred_region
      _
    $region33: #{tpu_custom_call.1} parent=1 // pred_fallthru
      _
    // Predicated region
    $region34: #{tpu_custom_call.1} parent=1 // pred_check
      _
    $region35: #{tpu_custom_call.1} parent=1 // pred_check_branch
      %68 = sbr.rel (0) target = $region37
    $region36: #{tpu_custom_call.1} parent=1 // pred_region
      _
    $region37: #{tpu_custom_call.1} parent=1 // pred_fallthru
      _
    // Predicated region
    $region38: #{tpu_custom_call.1} parent=1 // pred_check
      _
    $region39: #{tpu_custom_call.1} parent=1 // pred_check_branch
      %70 = sbr.rel (0) target = $region41
    $region40: #{tpu_custom_call.1} parent=1 // pred_region
      _
    $region41: #{tpu_custom_call.1} parent=1 // pred_fallthru
      _
    // Predicated region
    $region42: #{tpu_custom_call.1} parent=1 // pred_check
      _
    $region43: #{tpu_custom_call.1} parent=1 // pred_check_branch
      %72 = sbr.rel (0) target = $region45
    $region44: #{tpu_custom_call.1} parent=1 // pred_region
      _
    $region45: #{tpu_custom_call.1} parent=1 // pred_fallthru
      _
    // Predicated region
    $region46: #{tpu_custom_call.1} parent=1 // pred_check
      _
    $region47: #{tpu_custom_call.1} parent=1 // pred_check_branch
      %74 = sbr.rel (0) target = $region49
    $region48: #{tpu_custom_call.1} parent=1 // pred_region
      _
    $region49: #{tpu_custom_call.1} parent=1 // pred_fallthru
      _
    // Predicated region
    $region50: #{tpu_custom_call.1} parent=1 // pred_check
      _
    $region51: #{tpu_custom_call.1} parent=1 // pred_check_branch
      %76 = sbr.rel (0) target = $region53
    $region52: #{tpu_custom_call.1} parent=1 // pred_region
      _
    $region53: #{tpu_custom_call.1} parent=1 // pred_fallthru
      _
    // Predicated region
    $region54: #{tpu_custom_call.1} parent=1 // pred_check
      _
    $region55: #{tpu_custom_call.1} parent=1 // pred_check_branch
      %78 = sbr.rel (0) target = $region57
    $region56: #{tpu_custom_call.1} parent=1 // pred_region
      %79 = dma.done [#allocation5], 16384
    $region57: #{tpu_custom_call.1} parent=1 // pred_fallthru
      _
    // Predicated region
    $region58: #{tpu_custom_call.1} parent=1 // pred_check
      _
    $region59: #{tpu_custom_call.1} parent=1 // pred_check_branch
      %81 = sbr.rel (0) target = $region61
    $region60: #{tpu_custom_call.1} parent=1 // pred_region
      %82 = dma.done [#allocation8], 16384
    $region61: #{tpu_custom_call.1} parent=1 // pred_fallthru
      _
    // Predicated region
    $region62: #{tpu_custom_call.1} parent=1 // pred_check
      _
    $region63: #{tpu_custom_call.1} parent=1 // pred_check_branch
      %84 = sbr.rel (0) target = $region65
    $region64: #{tpu_custom_call.1} parent=1 // pred_region
      %85 = dma.done [#allocation8], 16384
    $region65: #{tpu_custom_call.1} parent=1 // pred_fallthru
      _
    %v86 = vld [vmem:[%s0] sm:$0xff]
    %v87 = vld [vmem:[%s0 + $0x8] sm:$0xff]
    %v88 = vld [vmem:[%s0 + $0x10] sm:$0xff]
    %v89 = vld [vmem:[%s0 + $0x18] sm:$0xff]
    %v90 = vld [vmem:[%s0 + $0x20] sm:$0xff]
    %v91 = vld [vmem:[%s0 + $0x28] sm:$0xff]
    %v92 = vld [vmem:[%s0 + $0x30] sm:$0xff]
    %v93 = vld [vmem:[%s0 + $0x38] sm:$0xff]
    %v94 = vld [vmem:[%s1] ss:$2 sm:$0xff]
    %96 = vset.pattern.permute.xlu0 0
    %97 = vperm.xlu0 %96, %v86
    %v98 = vpop.permute.xlu0 %97
    %101 = vset.pattern.permute.xlu0 0
    %102 = vperm.xlu0 %101, %v87
    %v103 = vpop.permute.xlu0 %102
    %106 = vset.pattern.permute.xlu0 0
    %107 = vperm.xlu0 %106, %v88
    %v108 = vpop.permute.xlu0 %107
    %111 = vset.pattern.permute.xlu0 0
    %112 = vperm.xlu0 %111, %v89
    %v113 = vpop.permute.xlu0 %112
    %116 = vset.pattern.permute.xlu0 0
    %117 = vperm.xlu0 %116, %v90
    %v118 = vpop.permute.xlu0 %117
    %121 = vset.pattern.permute.xlu0 0
    %122 = vperm.xlu0 %121, %v91
    %v123 = vpop.permute.xlu0 %122
    %126 = vset.pattern.permute.xlu0 0
    %127 = vperm.xlu0 %126, %v92
    %v128 = vpop.permute.xlu0 %127
    %131 = vset.pattern.permute.xlu0 0
    %132 = vperm.xlu0 %131, %v93
    %v133 = vpop.permute.xlu0 %132
    %v136 = vlaneseq
    %v137 = vshrl.u32 %v136, 7
    %v138 = vsub.s32 0, %v137
    %v139 = vrot.slane %v94, %v138
    %v140 = vlaneseq
    %v141 = vshrl.u32 %v140, 7
    %v142 = vsub.s32 1, %v141
    %v143 = vrot.slane %v94, %v142
    %v144 = vlaneseq
    %v145 = vshrl.u32 %v144, 7
    %v146 = vsub.s32 2, %v145
    %v147 = vrot.slane %v94, %v146
    %v148 = vlaneseq
    %v149 = vshrl.u32 %v148, 7
    %v150 = vsub.s32 3, %v149
    %v151 = vrot.slane %v94, %v150
    %v152 = vlaneseq
    %v153 = vshrl.u32 %v152, 7
    %v154 = vsub.s32 4, %v153
    %v155 = vrot.slane %v94, %v154
    %v156 = vlaneseq
    %v157 = vshrl.u32 %v156, 7
    %v158 = vsub.s32 5, %v157
    %v159 = vrot.slane %v94, %v158
    %v160 = vlaneseq
    %v161 = vshrl.u32 %v160, 7
    %v162 = vsub.s32 6, %v161
    %v163 = vrot.slane %v94, %v162
    %v164 = vlaneseq
    %v165 = vshrl.u32 %v164, 7
    %v166 = vsub.s32 7, %v165
    %v167 = vrot.slane %v94, %v166
    %v176 = vmul.f32 %v98, %v139
    %v177 = vmul.f32 %v98, %v143
    %v178 = vmul.f32 %v98, %v147
    %v179 = vmul.f32 %v98, %v151
    %v180 = vmul.f32 %v98, %v155
    %v181 = vmul.f32 %v98, %v159
    %v182 = vmul.f32 %v98, %v163
    %v183 = vmul.f32 %v98, %v167
    %v184 = vmul.f32 %v103, %v139
    %v185 = vmul.f32 %v103, %v143
    %v186 = vmul.f32 %v103, %v147
    %v187 = vmul.f32 %v103, %v151
    %v188 = vmul.f32 %v103, %v155
    %v189 = vmul.f32 %v103, %v159
    %v190 = vmul.f32 %v103, %v163
    %v191 = vmul.f32 %v103, %v167
    %v192 = vmul.f32 %v108, %v139
    %v193 = vmul.f32 %v108, %v143
    %v194 = vmul.f32 %v108, %v147
    %v195 = vmul.f32 %v108, %v151
    %v196 = vmul.f32 %v108, %v155
    %v197 = vmul.f32 %v108, %v159
    %v198 = vmul.f32 %v108, %v163
    %v199 = vmul.f32 %v108, %v167
    %v200 = vmul.f32 %v113, %v139
    %v201 = vmul.f32 %v113, %v143
    %v202 = vmul.f32 %v113, %v147
    %v203 = vmul.f32 %v113, %v151
    %v204 = vmul.f32 %v113, %v155
    %v205 = vmul.f32 %v113, %v159
    %v206 = vmul.f32 %v113, %v163
    %v207 = vmul.f32 %v113, %v167
    %v208 = vmul.f32 %v118, %v139
    %v209 = vmul.f32 %v118, %v143
    %v210 = vmul.f32 %v118, %v147
    %v211 = vmul.f32 %v118, %v151
    %v212 = vmul.f32 %v118, %v155
    %v213 = vmul.f32 %v118, %v159
    %v214 = vmul.f32 %v118, %v163
    %v215 = vmul.f32 %v118, %v167
    %v216 = vmul.f32 %v123, %v139
    %v217 = vmul.f32 %v123, %v143
    %v218 = vmul.f32 %v123, %v147
    %v219 = vmul.f32 %v123, %v151
    %v220 = vmul.f32 %v123, %v155
    %v221 = vmul.f32 %v123, %v159
    %v222 = vmul.f32 %v123, %v163
    %v223 = vmul.f32 %v123, %v167
    %v224 = vmul.f32 %v128, %v139
    %v225 = vmul.f32 %v128, %v143
    %v226 = vmul.f32 %v128, %v147
    %v227 = vmul.f32 %v128, %v151
    %v228 = vmul.f32 %v128, %v155
    %v229 = vmul.f32 %v128, %v159
    %v230 = vmul.f32 %v128, %v163
    %v231 = vmul.f32 %v128, %v167
    %v232 = vmul.f32 %v133, %v139
    %v233 = vmul.f32 %v133, %v143
    %v234 = vmul.f32 %v133, %v147
    %v235 = vmul.f32 %v133, %v151
    %v236 = vmul.f32 %v133, %v155
    %v237 = vmul.f32 %v133, %v159
    %v238 = vmul.f32 %v133, %v163
    %v239 = vmul.f32 %v133, %v167
    %s240 = scalar_lea.vmem %s1, 1
    %v241 = vld [vmem:[%s240] ss:$2 sm:$0xff]
    %242 = vset.pattern.permute.xlu0 1
    %243 = vperm.xlu0 %242, %v86
    %v244 = vpop.permute.xlu0 %243
    %246 = vset.pattern.permute.xlu0 1
    %247 = vperm.xlu0 %246, %v87
    %v248 = vpop.permute.xlu0 %247
    %250 = vset.pattern.permute.xlu0 1
    %251 = vperm.xlu0 %250, %v88
    %v252 = vpop.permute.xlu0 %251
    %254 = vset.pattern.permute.xlu0 1
    %255 = vperm.xlu0 %254, %v89
    %v256 = vpop.permute.xlu0 %255
    %258 = vset.pattern.permute.xlu0 1
    %259 = vperm.xlu0 %258, %v90
    %v260 = vpop.permute.xlu0 %259
    %262 = vset.pattern.permute.xlu0 1
    %263 = vperm.xlu0 %262, %v91
    %v264 = vpop.permute.xlu0 %263
    %266 = vset.pattern.permute.xlu0 1
    %267 = vperm.xlu0 %266, %v92
    %v268 = vpop.permute.xlu0 %267
    %270 = vset.pattern.permute.xlu0 1
    %271 = vperm.xlu0 %270, %v93
    %v272 = vpop.permute.xlu0 %271
    %v275 = vlaneseq
    %v276 = vshrl.u32 %v275, 7
    %v277 = vsub.s32 0, %v276
    %v278 = vrot.slane %v241, %v277
    %v279 = vlaneseq
    %v280 = vshrl.u32 %v279, 7
    %v281 = vsub.s32 1, %v280
    %v282 = vrot.slane %v241, %v281
    %v283 = vlaneseq
    %v284 = vshrl.u32 %v283, 7
    %v285 = vsub.s32 2, %v284
    %v286 = vrot.slane %v241, %v285
    %v287 = vlaneseq
    %v288 = vshrl.u32 %v287, 7
    %v289 = vsub.s32 3, %v288
    %v290 = vrot.slane %v241, %v289
    %v291 = vlaneseq
    %v292 = vshrl.u32 %v291, 7
    %v293 = vsub.s32 4, %v292
    %v294 = vrot.slane %v241, %v293
    %v295 = vlaneseq
    %v296 = vshrl.u32 %v295, 7
    %v297 = vsub.s32 5, %v296
    %v298 = vrot.slane %v241, %v297
    %v299 = vlaneseq
    %v300 = vshrl.u32 %v299, 7
    %v301 = vsub.s32 6, %v300
    %v302 = vrot.slane %v241, %v301
    %v303 = vlaneseq
    %v304 = vshrl.u32 %v303, 7
    %v305 = vsub.s32 7, %v304
    %v306 = vrot.slane %v241, %v305
    %v315 = vmul.f32 %v244, %v278
    %v316 = vmul.f32 %v244, %v282
    %v317 = vmul.f32 %v244, %v286
    %v318 = vmul.f32 %v244, %v290
    %v319 = vmul.f32 %v244, %v294
    %v320 = vmul.f32 %v244, %v298
    %v321 = vmul.f32 %v244, %v302
    %v322 = vmul.f32 %v244, %v306
    %v323 = vmul.f32 %v248, %v278
    %v324 = vmul.f32 %v248, %v282
    %v325 = vmul.f32 %v248, %v286
    %v326 = vmul.f32 %v248, %v290
    %v327 = vmul.f32 %v248, %v294
    %v328 = vmul.f32 %v248, %v298
    %v329 = vmul.f32 %v248, %v302
    %v330 = vmul.f32 %v248, %v306
    %v331 = vmul.f32 %v252, %v278
    %v332 = vmul.f32 %v252, %v282
    %v333 = vmul.f32 %v252, %v286
    %v334 = vmul.f32 %v252, %v290
    %v335 = vmul.f32 %v252, %v294
    %v336 = vmul.f32 %v252, %v298
    %v337 = vmul.f32 %v252, %v302
    %v338 = vmul.f32 %v252, %v306
    %v339 = vmul.f32 %v256, %v278
    %v340 = vmul.f32 %v256, %v282
    %v341 = vmul.f32 %v256, %v286
    %v342 = vmul.f32 %v256, %v290
    %v343 = vmul.f32 %v256, %v294
    %v344 = vmul.f32 %v256, %v298
    %v345 = vmul.f32 %v256, %v302
    %v346 = vmul.f32 %v256, %v306
    %v347 = vmul.f32 %v260, %v278
    %v348 = vmul.f32 %v260, %v282
    %v349 = vmul.f32 %v260, %v286
    %v350 = vmul.f32 %v260, %v290
    %v351 = vmul.f32 %v260, %v294
    %v352 = vmul.f32 %v260, %v298
    %v353 = vmul.f32 %v260, %v302
    %v354 = vmul.f32 %v260, %v306
    %v355 = vmul.f32 %v264, %v278
    %v356 = vmul.f32 %v264, %v282
    %v357 = vmul.f32 %v264, %v286
    %v358 = vmul.f32 %v264, %v290
    %v359 = vmul.f32 %v264, %v294
    %v360 = vmul.f32 %v264, %v298
    %v361 = vmul.f32 %v264, %v302
    %v362 = vmul.f32 %v264, %v306
    %v363 = vmul.f32 %v268, %v278
    %v364 = vmul.f32 %v268, %v282
    %v365 = vmul.f32 %v268, %v286
    %v366 = vmul.f32 %v268, %v290
    %v367 = vmul.f32 %v268, %v294
    %v368 = vmul.f32 %v268, %v298
    %v369 = vmul.f32 %v268, %v302
    %v370 = vmul.f32 %v268, %v306
    %v371 = vmul.f32 %v272, %v278
    %v372 = vmul.f32 %v272, %v282
    %v373 = vmul.f32 %v272, %v286
    %v374 = vmul.f32 %v272, %v290
    %v375 = vmul.f32 %v272, %v294
    %v376 = vmul.f32 %v272, %v298
    %v377 = vmul.f32 %v272, %v302
    %v378 = vmul.f32 %v272, %v306
    %v379 = vadd.f32 %v176, %v315
    %v380 = vadd.f32 %v177, %v316
    %v381 = vadd.f32 %v178, %v317
    %v382 = vadd.f32 %v179, %v318
    %v383 = vadd.f32 %v180, %v319
    %v384 = vadd.f32 %v181, %v320
    %v385 = vadd.f32 %v182, %v321
    %v386 = vadd.f32 %v183, %v322
    %v387 = vadd.f32 %v184, %v323
    %v388 = vadd.f32 %v185, %v324
    %v389 = vadd.f32 %v186, %v325
    %v390 = vadd.f32 %v187, %v326
    %v391 = vadd.f32 %v188, %v327
    %v392 = vadd.f32 %v189, %v328
    %v393 = vadd.f32 %v190, %v329
    %v394 = vadd.f32 %v191, %v330
    %v395 = vadd.f32 %v192, %v331
    %v396 = vadd.f32 %v193, %v332
    %v397 = vadd.f32 %v194, %v333
    %v398 = vadd.f32 %v195, %v334
    %v399 = vadd.f32 %v196, %v335
    %v400 = vadd.f32 %v197, %v336
    %v401 = vadd.f32 %v198, %v337
    %v402 = vadd.f32 %v199, %v338
    %v403 = vadd.f32 %v200, %v339
    %v404 = vadd.f32 %v201, %v340
    %v405 = vadd.f32 %v202, %v341
    %v406 = vadd.f32 %v203, %v342
    %v407 = vadd.f32 %v204, %v343
    %v408 = vadd.f32 %v205, %v344
    %v409 = vadd.f32 %v206, %v345
    %v410 = vadd.f32 %v207, %v346
    %v411 = vadd.f32 %v208, %v347
    %v412 = vadd.f32 %v209, %v348
    %v413 = vadd.f32 %v210, %v349
    %v414 = vadd.f32 %v211, %v350
    %v415 = vadd.f32 %v212, %v351
    %v416 = vadd.f32 %v213, %v352
    %v417 = vadd.f32 %v214, %v353
    %v418 = vadd.f32 %v215, %v354
    %v419 = vadd.f32 %v216, %v355
    %v420 = vadd.f32 %v217, %v356
    %v421 = vadd.f32 %v218, %v357
    %v422 = vadd.f32 %v219, %v358
    %v423 = vadd.f32 %v220, %v359
    %v424 = vadd.f32 %v221, %v360
    %v425 = vadd.f32 %v222, %v361
    %v426 = vadd.f32 %v223, %v362
    %v427 = vadd.f32 %v224, %v363
    %v428 = vadd.f32 %v225, %v364
    %v429 = vadd.f32 %v226, %v365
    %v430 = vadd.f32 %v227, %v366
    %v431 = vadd.f32 %v228, %v367
    %v432 = vadd.f32 %v229, %v368
    %v433 = vadd.f32 %v230, %v369
    %v434 = vadd.f32 %v231, %v370
    %v435 = vadd.f32 %v232, %v371
    %v436 = vadd.f32 %v233, %v372
    %v437 = vadd.f32 %v234, %v373
    %v438 = vadd.f32 %v235, %v374
    %v439 = vadd.f32 %v236, %v375
    %v440 = vadd.f32 %v237, %v376
    %v441 = vadd.f32 %v238, %v377
    %v442 = vadd.f32 %v239, %v378
    %v443 = vld [vmem:[%s2] sm:$0xff]
    %v445 = vlaneseq
    %v446 = vshrl.u32 %v445, 7
    %v447 = vsub.s32 0, %v446
    %v448 = vrot.slane %v443, %v447
    %v449 = vlaneseq
    %v450 = vshrl.u32 %v449, 7
    %v451 = vsub.s32 1, %v450
    %v452 = vrot.slane %v443, %v451
    %v453 = vlaneseq
    %v454 = vshrl.u32 %v453, 7
    %v455 = vsub.s32 2, %v454
    %v456 = vrot.slane %v443, %v455
    %v457 = vlaneseq
    %v458 = vshrl.u32 %v457, 7
    %v459 = vsub.s32 3, %v458
    %v460 = vrot.slane %v443, %v459
    %v461 = vlaneseq
    %v462 = vshrl.u32 %v461, 7
    %v463 = vsub.s32 4, %v462
    %v464 = vrot.slane %v443, %v463
    %v465 = vlaneseq
    %v466 = vshrl.u32 %v465, 7
    %v467 = vsub.s32 5, %v466
    %v468 = vrot.slane %v443, %v467
    %v469 = vlaneseq
    %v470 = vshrl.u32 %v469, 7
    %v471 = vsub.s32 6, %v470
    %v472 = vrot.slane %v443, %v471
    %v473 = vlaneseq
    %v474 = vshrl.u32 %v473, 7
    %v475 = vsub.s32 7, %v474
    %v476 = vrot.slane %v443, %v475
    %v485 = vadd.f32 %v379, %v448
    %v486 = vadd.f32 %v380, %v452
    %v487 = vadd.f32 %v381, %v456
    %v488 = vadd.f32 %v382, %v460
    %v489 = vadd.f32 %v383, %v464
    %v490 = vadd.f32 %v384, %v468
    %v491 = vadd.f32 %v385, %v472
    %v492 = vadd.f32 %v386, %v476
    %v493 = vadd.f32 %v387, %v448
    %v494 = vadd.f32 %v388, %v452
    %v495 = vadd.f32 %v389, %v456
    %v496 = vadd.f32 %v390, %v460
    %v497 = vadd.f32 %v391, %v464
    %v498 = vadd.f32 %v392, %v468
    %v499 = vadd.f32 %v393, %v472
    %v500 = vadd.f32 %v394, %v476
    %v501 = vadd.f32 %v395, %v448
    %v502 = vadd.f32 %v396, %v452
    %v503 = vadd.f32 %v397, %v456
    %v504 = vadd.f32 %v398, %v460
    %v505 = vadd.f32 %v399, %v464
    %v506 = vadd.f32 %v400, %v468
    %v507 = vadd.f32 %v401, %v472
    %v508 = vadd.f32 %v402, %v476
    %v509 = vadd.f32 %v403, %v448
    %v510 = vadd.f32 %v404, %v452
    %v511 = vadd.f32 %v405, %v456
    %v512 = vadd.f32 %v406, %v460
    %v513 = vadd.f32 %v407, %v464
    %v514 = vadd.f32 %v408, %v468
    %v515 = vadd.f32 %v409, %v472
    %v516 = vadd.f32 %v410, %v476
    %v517 = vadd.f32 %v411, %v448
    %v518 = vadd.f32 %v412, %v452
    %v519 = vadd.f32 %v413, %v456
    %v520 = vadd.f32 %v414, %v460
    %v521 = vadd.f32 %v415, %v464
    %v522 = vadd.f32 %v416, %v468
    %v523 = vadd.f32 %v417, %v472
    %v524 = vadd.f32 %v418, %v476
    %v525 = vadd.f32 %v419, %v448
    %v526 = vadd.f32 %v420, %v452
    %v527 = vadd.f32 %v421, %v456
    %v528 = vadd.f32 %v422, %v460
    %v529 = vadd.f32 %v423, %v464
    %v530 = vadd.f32 %v424, %v468
    %v531 = vadd.f32 %v425, %v472
    %v532 = vadd.f32 %v426, %v476
    %v533 = vadd.f32 %v427, %v448
    %v534 = vadd.f32 %v428, %v452
    %v535 = vadd.f32 %v429, %v456
    %v536 = vadd.f32 %v430, %v460
    %v537 = vadd.f32 %v431, %v464
    %v538 = vadd.f32 %v432, %v468
    %v539 = vadd.f32 %v433, %v472
    %v540 = vadd.f32 %v434, %v476
    %v541 = vadd.f32 %v435, %v448
    %v542 = vadd.f32 %v436, %v452
    %v543 = vadd.f32 %v437, %v456
    %v544 = vadd.f32 %v438, %v460
    %v545 = vadd.f32 %v439, %v464
    %v546 = vadd.f32 %v440, %v468
    %v547 = vadd.f32 %v441, %v472
    %v548 = vadd.f32 %v442, %v476
    %549 = vst [vmem:[#allocation2] sm:$0xff] %v485
    %550 = vst [vmem:[#allocation2 + $0x8] sm:$0xff] %v486
    %551 = vst [vmem:[#allocation2 + $0x10] sm:$0xff] %v487
    %552 = vst [vmem:[#allocation2 + $0x18] sm:$0xff] %v488
    %553 = vst [vmem:[#allocation2 + $0x20] sm:$0xff] %v489
    %554 = vst [vmem:[#allocation2 + $0x28] sm:$0xff] %v490
    %555 = vst [vmem:[#allocation2 + $0x30] sm:$0xff] %v491
    %556 = vst [vmem:[#allocation2 + $0x38] sm:$0xff] %v492
    %557 = vst [vmem:[#allocation2 + $0x40] sm:$0xff] %v493
    %558 = vst [vmem:[#allocation2 + $0x48] sm:$0xff] %v494
    %559 = vst [vmem:[#allocation2 + $0x50] sm:$0xff] %v495
    %560 = vst [vmem:[#allocation2 + $0x58] sm:$0xff] %v496
    %561 = vst [vmem:[#allocation2 + $0x60] sm:$0xff] %v497
    %562 = vst [vmem:[#allocation2 + $0x68] sm:$0xff] %v498
    %563 = vst [vmem:[#allocation2 + $0x70] sm:$0xff] %v499
    %564 = vst [vmem:[#allocation2 + $0x78] sm:$0xff] %v500
    %565 = vst [vmem:[#allocation2 + $0x80] sm:$0xff] %v501
    %566 = vst [vmem:[#allocation2 + $0x88] sm:$0xff] %v502
    %567 = vst [vmem:[#allocation2 + $0x90] sm:$0xff] %v503
    %568 = vst [vmem:[#allocation2 + $0x98] sm:$0xff] %v504
    %569 = vst [vmem:[#allocation2 + $0xa0] sm:$0xff] %v505
    %570 = vst [vmem:[#allocation2 + $0xa8] sm:$0xff] %v506
    %571 = vst [vmem:[#allocation2 + $0xb0] sm:$0xff] %v507
    %572 = vst [vmem:[#allocation2 + $0xb8] sm:$0xff] %v508
    %573 = vst [vmem:[#allocation2 + $0xc0] sm:$0xff] %v509
    %574 = vst [vmem:[#allocation2 + $0xc8] sm:$0xff] %v510
    %575 = vst [vmem:[#allocation2 + $0xd0] sm:$0xff] %v511
    %576 = vst [vmem:[#allocation2 + $0xd8] sm:$0xff] %v512
    %577 = vst [vmem:[#allocation2 + $0xe0] sm:$0xff] %v513
    %578 = vst [vmem:[#allocation2 + $0xe8] sm:$0xff] %v514
    %579 = vst [vmem:[#allocation2 + $0xf0] sm:$0xff] %v515
    %580 = vst [vmem:[#allocation2 + $0xf8] sm:$0xff] %v516
    %581 = vst [vmem:[#allocation2 + $0x100] sm:$0xff] %v517
    %582 = vst [vmem:[#allocation2 + $0x108] sm:$0xff] %v518
    %583 = vst [vmem:[#allocation2 + $0x110] sm:$0xff] %v519
    %584 = vst [vmem:[#allocation2 + $0x118] sm:$0xff] %v520
    %585 = vst [vmem:[#allocation2 + $0x120] sm:$0xff] %v521
    %586 = vst [vmem:[#allocation2 + $0x128] sm:$0xff] %v522
    %587 = vst [vmem:[#allocation2 + $0x130] sm:$0xff] %v523
    %588 = vst [vmem:[#allocation2 + $0x138] sm:$0xff] %v524
    %589 = vst [vmem:[#allocation2 + $0x140] sm:$0xff] %v525
    %590 = vst [vmem:[#allocation2 + $0x148] sm:$0xff] %v526
    %591 = vst [vmem:[#allocation2 + $0x150] sm:$0xff] %v527
    %592 = vst [vmem:[#allocation2 + $0x158] sm:$0xff] %v528
    %593 = vst [vmem:[#allocation2 + $0x160] sm:$0xff] %v529
    %594 = vst [vmem:[#allocation2 + $0x168] sm:$0xff] %v530
    %595 = vst [vmem:[#allocation2 + $0x170] sm:$0xff] %v531
    %596 = vst [vmem:[#allocation2 + $0x178] sm:$0xff] %v532
    %597 = vst [vmem:[#allocation2 + $0x180] sm:$0xff] %v533
    %598 = vst [vmem:[#allocation2 + $0x188] sm:$0xff] %v534
    %599 = vst [vmem:[#allocation2 + $0x190] sm:$0xff] %v535
    %600 = vst [vmem:[#allocation2 + $0x198] sm:$0xff] %v536
    %601 = vst [vmem:[#allocation2 + $0x1a0] sm:$0xff] %v537
    %602 = vst [vmem:[#allocation2 + $0x1a8] sm:$0xff] %v538
    %603 = vst [vmem:[#allocation2 + $0x1b0] sm:$0xff] %v539
    %604 = vst [vmem:[#allocation2 + $0x1b8] sm:$0xff] %v540
    %605 = vst [vmem:[#allocation2 + $0x1c0] sm:$0xff] %v541
    %606 = vst [vmem:[#allocation2 + $0x1c8] sm:$0xff] %v542
    %607 = vst [vmem:[#allocation2 + $0x1d0] sm:$0xff] %v543
    %608 = vst [vmem:[#allocation2 + $0x1d8] sm:$0xff] %v544
    %609 = vst [vmem:[#allocation2 + $0x1e0] sm:$0xff] %v545
    %610 = vst [vmem:[#allocation2 + $0x1e8] sm:$0xff] %v546
    %611 = vst [vmem:[#allocation2 + $0x1f0] sm:$0xff] %v547
    %612 = vst [vmem:[#allocation2 + $0x1f8] sm:$0xff] %v548
    %v613 = vld [vmem:[#allocation4] sm:$0xff]
    %v614 = vld [vmem:[#allocation4 + $0x8] sm:$0xff]
    %v615 = vld [vmem:[#allocation4 + $0x10] sm:$0xff]
    %v616 = vld [vmem:[#allocation4 + $0x18] sm:$0xff]
    %v617 = vld [vmem:[#allocation4 + $0x20] sm:$0xff]
    %v618 = vld [vmem:[#allocation4 + $0x28] sm:$0xff]
    %v619 = vld [vmem:[#allocation4 + $0x30] sm:$0xff]
    %v620 = vld [vmem:[#allocation4 + $0x38] sm:$0xff]
    %v621 = vld [vmem:[#allocation4 + $0x40] sm:$0xff]
    %v622 = vld [vmem:[#allocation4 + $0x48] sm:$0xff]
    %v623 = vld [vmem:[#allocation4 + $0x50] sm:$0xff]
    %v624 = vld [vmem:[#allocation4 + $0x58] sm:$0xff]
    %v625 = vld [vmem:[#allocation4 + $0x60] sm:$0xff]
    %v626 = vld [vmem:[#allocation4 + $0x68] sm:$0xff]
    %v627 = vld [vmem:[#allocation4 + $0x70] sm:$0xff]
    %v628 = vld [vmem:[#allocation4 + $0x78] sm:$0xff]
    %v629 = vld [vmem:[#allocation4 + $0x80] sm:$0xff]
    %v630 = vld [vmem:[#allocation4 + $0x88] sm:$0xff]
    %v631 = vld [vmem:[#allocation4 + $0x90] sm:$0xff]
    %v632 = vld [vmem:[#allocation4 + $0x98] sm:$0xff]
    %v633 = vld [vmem:[#allocation4 + $0xa0] sm:$0xff]
    %v634 = vld [vmem:[#allocation4 + $0xa8] sm:$0xff]
    %v635 = vld [vmem:[#allocation4 + $0xb0] sm:$0xff]
    %v636 = vld [vmem:[#allocation4 + $0xb8] sm:$0xff]
    %v637 = vld [vmem:[#allocation4 + $0xc0] sm:$0xff]
    %v638 = vld [vmem:[#allocation4 + $0xc8] sm:$0xff]
    %v639 = vld [vmem:[#allocation4 + $0xd0] sm:$0xff]
    %v640 = vld [vmem:[#allocation4 + $0xd8] sm:$0xff]
    %v641 = vld [vmem:[#allocation4 + $0xe0] sm:$0xff]
    %v642 = vld [vmem:[#allocation4 + $0xe8] sm:$0xff]
    %v643 = vld [vmem:[#allocation4 + $0xf0] sm:$0xff]
    %v644 = vld [vmem:[#allocation4 + $0xf8] sm:$0xff]
    %v645 = vld [vmem:[#allocation4 + $0x100] sm:$0xff]
    %v646 = vld [vmem:[#allocation4 + $0x108] sm:$0xff]
    %v647 = vld [vmem:[#allocation4 + $0x110] sm:$0xff]
    %v648 = vld [vmem:[#allocation4 + $0x118] sm:$0xff]
    %v649 = vld [vmem:[#allocation4 + $0x120] sm:$0xff]
    %v650 = vld [vmem:[#allocation4 + $0x128] sm:$0xff]
    %v651 = vld [vmem:[#allocation4 + $0x130] sm:$0xff]
    %v652 = vld [vmem:[#allocation4 + $0x138] sm:$0xff]
    %v653 = vld [vmem:[#allocation4 + $0x140] sm:$0xff]
    %v654 = vld [vmem:[#allocation4 + $0x148] sm:$0xff]
    %v655 = vld [vmem:[#allocation4 + $0x150] sm:$0xff]
    %v656 = vld [vmem:[#allocation4 + $0x158] sm:$0xff]
    %v657 = vld [vmem:[#allocation4 + $0x160] sm:$0xff]
    %v658 = vld [vmem:[#allocation4 + $0x168] sm:$0xff]
    %v659 = vld [vmem:[#allocation4 + $0x170] sm:$0xff]
    %v660 = vld [vmem:[#allocation4 + $0x178] sm:$0xff]
    %v661 = vld [vmem:[#allocation4 + $0x180] sm:$0xff]
    %v662 = vld [vmem:[#allocation4 + $0x188] sm:$0xff]
    %v663 = vld [vmem:[#allocation4 + $0x190] sm:$0xff]
    %v664 = vld [vmem:[#allocation4 + $0x198] sm:$0xff]
    %v665 = vld [vmem:[#allocation4 + $0x1a0] sm:$0xff]
    %v666 = vld [vmem:[#allocation4 + $0x1a8] sm:$0xff]
    %v667 = vld [vmem:[#allocation4 + $0x1b0] sm:$0xff]
    %v668 = vld [vmem:[#allocation4 + $0x1b8] sm:$0xff]
    %v669 = vld [vmem:[#allocation4 + $0x1c0] sm:$0xff]
    %v670 = vld [vmem:[#allocation4 + $0x1c8] sm:$0xff]
    %v671 = vld [vmem:[#allocation4 + $0x1d0] sm:$0xff]
    %v672 = vld [vmem:[#allocation4 + $0x1d8] sm:$0xff]
    %v673 = vld [vmem:[#allocation4 + $0x1e0] sm:$0xff]
    %v674 = vld [vmem:[#allocation4 + $0x1e8] sm:$0xff]
    %v675 = vld [vmem:[#allocation4 + $0x1f0] sm:$0xff]
    %v676 = vld [vmem:[#allocation4 + $0x1f8] sm:$0xff]
    %v677 = vld [vmem:[#allocation4 + $0x200] sm:$0xff]
    %v678 = vld [vmem:[#allocation4 + $0x208] sm:$0xff]
    %v679 = vld [vmem:[#allocation4 + $0x210] sm:$0xff]
    %v680 = vld [vmem:[#allocation4 + $0x218] sm:$0xff]
    %v681 = vld [vmem:[#allocation4 + $0x220] sm:$0xff]
    %v682 = vld [vmem:[#allocation4 + $0x228] sm:$0xff]
    %v683 = vld [vmem:[#allocation4 + $0x230] sm:$0xff]
    %v684 = vld [vmem:[#allocation4 + $0x238] sm:$0xff]
    %v685 = vld [vmem:[#allocation4 + $0x240] sm:$0xff]
    %v686 = vld [vmem:[#allocation4 + $0x248] sm:$0xff]
    %v687 = vld [vmem:[#allocation4 + $0x250] sm:$0xff]
    %v688 = vld [vmem:[#allocation4 + $0x258] sm:$0xff]
    %v689 = vld [vmem:[#allocation4 + $0x260] sm:$0xff]
    %v690 = vld [vmem:[#allocation4 + $0x268] sm:$0xff]
    %v691 = vld [vmem:[#allocation4 + $0x270] sm:$0xff]
    %v692 = vld [vmem:[#allocation4 + $0x278] sm:$0xff]
    %v693 = vld [vmem:[#allocation4 + $0x280] sm:$0xff]
    %v694 = vld [vmem:[#allocation4 + $0x288] sm:$0xff]
    %v695 = vld [vmem:[#allocation4 + $0x290] sm:$0xff]
    %v696 = vld [vmem:[#allocation4 + $0x298] sm:$0xff]
    %v697 = vld [vmem:[#allocation4 + $0x2a0] sm:$0xff]
    %v698 = vld [vmem:[#allocation4 + $0x2a8] sm:$0xff]
    %v699 = vld [vmem:[#allocation4 + $0x2b0] sm:$0xff]
    %v700 = vld [vmem:[#allocation4 + $0x2b8] sm:$0xff]
    %v701 = vld [vmem:[#allocation4 + $0x2c0] sm:$0xff]
    %v702 = vld [vmem:[#allocation4 + $0x2c8] sm:$0xff]
    %v703 = vld [vmem:[#allocation4 + $0x2d0] sm:$0xff]
    %v704 = vld [vmem:[#allocation4 + $0x2d8] sm:$0xff]
    %v705 = vld [vmem:[#allocation4 + $0x2e0] sm:$0xff]
    %v706 = vld [vmem:[#allocation4 + $0x2e8] sm:$0xff]
    %v707 = vld [vmem:[#allocation4 + $0x2f0] sm:$0xff]
    %v708 = vld [vmem:[#allocation4 + $0x2f8] sm:$0xff]
    %v709 = vld [vmem:[#allocation4 + $0x300] sm:$0xff]
    %v710 = vld [vmem:[#allocation4 + $0x308] sm:$0xff]
    %v711 = vld [vmem:[#allocation4 + $0x310] sm:$0xff]
    %v712 = vld [vmem:[#allocation4 + $0x318] sm:$0xff]
    %v713 = vld [vmem:[#allocation4 + $0x320] sm:$0xff]
    %v714 = vld [vmem:[#allocation4 + $0x328] sm:$0xff]
    %v715 = vld [vmem:[#allocation4 + $0x330] sm:$0xff]
    %v716 = vld [vmem:[#allocation4 + $0x338] sm:$0xff]
    %v717 = vld [vmem:[#allocation4 + $0x340] sm:$0xff]
    %v718 = vld [vmem:[#allocation4 + $0x348] sm:$0xff]
    %v719 = vld [vmem:[#allocation4 + $0x350] sm:$0xff]
    %v720 = vld [vmem:[#allocation4 + $0x358] sm:$0xff]
    %v721 = vld [vmem:[#allocation4 + $0x360] sm:$0xff]
    %v722 = vld [vmem:[#allocation4 + $0x368] sm:$0xff]
    %v723 = vld [vmem:[#allocation4 + $0x370] sm:$0xff]
    %v724 = vld [vmem:[#allocation4 + $0x378] sm:$0xff]
    %v725 = vld [vmem:[#allocation4 + $0x380] sm:$0xff]
    %v726 = vld [vmem:[#allocation4 + $0x388] sm:$0xff]
    %v727 = vld [vmem:[#allocation4 + $0x390] sm:$0xff]
    %v728 = vld [vmem:[#allocation4 + $0x398] sm:$0xff]
    %v729 = vld [vmem:[#allocation4 + $0x3a0] sm:$0xff]
    %v730 = vld [vmem:[#allocation4 + $0x3a8] sm:$0xff]
    %v731 = vld [vmem:[#allocation4 + $0x3b0] sm:$0xff]
    %v732 = vld [vmem:[#allocation4 + $0x3b8] sm:$0xff]
    %v733 = vld [vmem:[#allocation4 + $0x3c0] sm:$0xff]
    %v734 = vld [vmem:[#allocation4 + $0x3c8] sm:$0xff]
    %v735 = vld [vmem:[#allocation4 + $0x3d0] sm:$0xff]
    %v736 = vld [vmem:[#allocation4 + $0x3d8] sm:$0xff]
    %v737 = vld [vmem:[#allocation4 + $0x3e0] sm:$0xff]
    %v738 = vld [vmem:[#allocation4 + $0x3e8] sm:$0xff]
    %v739 = vld [vmem:[#allocation4 + $0x3f0] sm:$0xff]
    %v740 = vld [vmem:[#allocation4 + $0x3f8] sm:$0xff]
    %v741 = vld [vmem:[%s7] sm:$0xff]
    %v742 = vld [vmem:[%s7 + $0x8] sm:$0xff]
    %v743 = vld [vmem:[%s8] sm:$0xff]
    %v744 = vld [vmem:[%s8 + $0x8] sm:$0xff]
    %v745 = vpack.c.bf16 %v741, %v741
    %v746 = vpack.c.bf16 %v742, %v742
    %v875 = vunpack.c.l.b16 %v613
    %v876 = vunpack.c.h.b16 %v613
    %v877 = vunpack.c.l.b16 %v614
    %v878 = vunpack.c.h.b16 %v614
    %v879 = vunpack.c.l.b16 %v615
    %v880 = vunpack.c.h.b16 %v615
    %v881 = vunpack.c.l.b16 %v616
    %v882 = vunpack.c.h.b16 %v616
    %v883 = vunpack.c.l.b16 %v617
    %v884 = vunpack.c.h.b16 %v617
    %v885 = vunpack.c.l.b16 %v618
    %v886 = vunpack.c.h.b16 %v618
    %v887 = vunpack.c.l.b16 %v619
    %v888 = vunpack.c.h.b16 %v619
    %v889 = vunpack.c.l.b16 %v620
    %v890 = vunpack.c.h.b16 %v620
    %v891 = vunpack.c.l.b16 %v621
    %v892 = vunpack.c.h.b16 %v621
    %v893 = vunpack.c.l.b16 %v622
    %v894 = vunpack.c.h.b16 %v622
    %v895 = vunpack.c.l.b16 %v623
    %v896 = vunpack.c.h.b16 %v623
    %v897 = vunpack.c.l.b16 %v624
    %v898 = vunpack.c.h.b16 %v624
    %v899 = vunpack.c.l.b16 %v625
    %v900 = vunpack.c.h.b16 %v625
    %v901 = vunpack.c.l.b16 %v626
    %v902 = vunpack.c.h.b16 %v626
    %v903 = vunpack.c.l.b16 %v627
    %v904 = vunpack.c.h.b16 %v627
    %v905 = vunpack.c.l.b16 %v628
    %v906 = vunpack.c.h.b16 %v628
    %v907 = vunpack.c.l.b16 %v629
    %v908 = vunpack.c.h.b16 %v629
    %v909 = vunpack.c.l.b16 %v630
    %v910 = vunpack.c.h.b16 %v630
    %v911 = vunpack.c.l.b16 %v631
    %v912 = vunpack.c.h.b16 %v631
    %v913 = vunpack.c.l.b16 %v632
    %v914 = vunpack.c.h.b16 %v632
    %v915 = vunpack.c.l.b16 %v633
    %v916 = vunpack.c.h.b16 %v633
    %v917 = vunpack.c.l.b16 %v634
    %v918 = vunpack.c.h.b16 %v634
    %v919 = vunpack.c.l.b16 %v635
    %v920 = vunpack.c.h.b16 %v635
    %v921 = vunpack.c.l.b16 %v636
    %v922 = vunpack.c.h.b16 %v636
    %v923 = vunpack.c.l.b16 %v637
    %v924 = vunpack.c.h.b16 %v637
    %v925 = vunpack.c.l.b16 %v638
    %v926 = vunpack.c.h.b16 %v638
    %v927 = vunpack.c.l.b16 %v639
    %v928 = vunpack.c.h.b16 %v639
    %v929 = vunpack.c.l.b16 %v640
    %v930 = vunpack.c.h.b16 %v640
    %v931 = vunpack.c.l.b16 %v641
    %v932 = vunpack.c.h.b16 %v641
    %v933 = vunpack.c.l.b16 %v642
    %v934 = vunpack.c.h.b16 %v642
    %v935 = vunpack.c.l.b16 %v643
    %v936 = vunpack.c.h.b16 %v643
    %v937 = vunpack.c.l.b16 %v644
    %v938 = vunpack.c.h.b16 %v644
    %v939 = vunpack.c.l.b16 %v645
    %v940 = vunpack.c.h.b16 %v645
    %v941 = vunpack.c.l.b16 %v646
    %v942 = vunpack.c.h.b16 %v646
    %v943 = vunpack.c.l.b16 %v647
    %v944 = vunpack.c.h.b16 %v647
    %v945 = vunpack.c.l.b16 %v648
    %v946 = vunpack.c.h.b16 %v648
    %v947 = vunpack.c.l.b16 %v649
    %v948 = vunpack.c.h.b16 %v649
    %v949 = vunpack.c.l.b16 %v650
    %v950 = vunpack.c.h.b16 %v650
    %v951 = vunpack.c.l.b16 %v651
    %v952 = vunpack.c.h.b16 %v651
    %v953 = vunpack.c.l.b16 %v652
    %v954 = vunpack.c.h.b16 %v652
    %v955 = vunpack.c.l.b16 %v653
    %v956 = vunpack.c.h.b16 %v653
    %v957 = vunpack.c.l.b16 %v654
    %v958 = vunpack.c.h.b16 %v654
    %v959 = vunpack.c.l.b16 %v655
    %v960 = vunpack.c.h.b16 %v655
    %v961 = vunpack.c.l.b16 %v656
    %v962 = vunpack.c.h.b16 %v656
    %v963 = vunpack.c.l.b16 %v657
    %v964 = vunpack.c.h.b16 %v657
    %v965 = vunpack.c.l.b16 %v658
    %v966 = vunpack.c.h.b16 %v658
    %v967 = vunpack.c.l.b16 %v659
    %v968 = vunpack.c.h.b16 %v659
    %v969 = vunpack.c.l.b16 %v660
    %v970 = vunpack.c.h.b16 %v660
    %v971 = vunpack.c.l.b16 %v661
    %v972 = vunpack.c.h.b16 %v661
    %v973 = vunpack.c.l.b16 %v662
    %v974 = vunpack.c.h.b16 %v662
    %v975 = vunpack.c.l.b16 %v663
    %v976 = vunpack.c.h.b16 %v663
    %v977 = vunpack.c.l.b16 %v664
    %v978 = vunpack.c.h.b16 %v664
    %v979 = vunpack.c.l.b16 %v665
    %v980 = vunpack.c.h.b16 %v665
    %v981 = vunpack.c.l.b16 %v666
    %v982 = vunpack.c.h.b16 %v666
    %v983 = vunpack.c.l.b16 %v667
    %v984 = vunpack.c.h.b16 %v667
    %v985 = vunpack.c.l.b16 %v668
    %v986 = vunpack.c.h.b16 %v668
    %v987 = vunpack.c.l.b16 %v669
    %v988 = vunpack.c.h.b16 %v669
    %v989 = vunpack.c.l.b16 %v670
    %v990 = vunpack.c.h.b16 %v670
    %v991 = vunpack.c.l.b16 %v671
    %v992 = vunpack.c.h.b16 %v671
    %v993 = vunpack.c.l.b16 %v672
    %v994 = vunpack.c.h.b16 %v672
    %v995 = vunpack.c.l.b16 %v673
    %v996 = vunpack.c.h.b16 %v673
    %v997 = vunpack.c.l.b16 %v674
    %v998 = vunpack.c.h.b16 %v674
    %v999 = vunpack.c.l.b16 %v675
    %v1000 = vunpack.c.h.b16 %v675
    %v1001 = vunpack.c.l.b16 %v676
    %v1002 = vunpack.c.h.b16 %v676
    %v1003 = vunpack.c.l.b16 %v677
    %v1004 = vunpack.c.h.b16 %v677
    %v1005 = vunpack.c.l.b16 %v678
    %v1006 = vunpack.c.h.b16 %v678
    %v1007 = vunpack.c.l.b16 %v679
    %v1008 = vunpack.c.h.b16 %v679
    %v1009 = vunpack.c.l.b16 %v680
    %v1010 = vunpack.c.h.b16 %v680
    %v1011 = vunpack.c.l.b16 %v681
    %v1012 = vunpack.c.h.b16 %v681
    %v1013 = vunpack.c.l.b16 %v682
    %v1014 = vunpack.c.h.b16 %v682
    %v1015 = vunpack.c.l.b16 %v683
    %v1016 = vunpack.c.h.b16 %v683
    %v1017 = vunpack.c.l.b16 %v684
    %v1018 = vunpack.c.h.b16 %v684
    %v1019 = vunpack.c.l.b16 %v685
    %v1020 = vunpack.c.h.b16 %v685
    %v1021 = vunpack.c.l.b16 %v686
    %v1022 = vunpack.c.h.b16 %v686
    %v1023 = vunpack.c.l.b16 %v687
    %v1024 = vunpack.c.h.b16 %v687
    %v1025 = vunpack.c.l.b16 %v688
    %v1026 = vunpack.c.h.b16 %v688
    %v1027 = vunpack.c.l.b16 %v689
    %v1028 = vunpack.c.h.b16 %v689
    %v1029 = vunpack.c.l.b16 %v690
    %v1030 = vunpack.c.h.b16 %v690
    %v1031 = vunpack.c.l.b16 %v691
    %v1032 = vunpack.c.h.b16 %v691
    %v1033 = vunpack.c.l.b16 %v692
    %v1034 = vunpack.c.h.b16 %v692
    %v1035 = vunpack.c.l.b16 %v693
    %v1036 = vunpack.c.h.b16 %v693
    %v1037 = vunpack.c.l.b16 %v694
    %v1038 = vunpack.c.h.b16 %v694
    %v1039 = vunpack.c.l.b16 %v695
    %v1040 = vunpack.c.h.b16 %v695
    %v1041 = vunpack.c.l.b16 %v696
    %v1042 = vunpack.c.h.b16 %v696
    %v1043 = vunpack.c.l.b16 %v697
    %v1044 = vunpack.c.h.b16 %v697
    %v1045 = vunpack.c.l.b16 %v698
    %v1046 = vunpack.c.h.b16 %v698
    %v1047 = vunpack.c.l.b16 %v699
    %v1048 = vunpack.c.h.b16 %v699
    %v1049 = vunpack.c.l.b16 %v700
    %v1050 = vunpack.c.h.b16 %v700
    %v1051 = vunpack.c.l.b16 %v701
    %v1052 = vunpack.c.h.b16 %v701
    %v1053 = vunpack.c.l.b16 %v702
    %v1054 = vunpack.c.h.b16 %v702
    %v1055 = vunpack.c.l.b16 %v703
    %v1056 = vunpack.c.h.b16 %v703
    %v1057 = vunpack.c.l.b16 %v704
    %v1058 = vunpack.c.h.b16 %v704
    %v1059 = vunpack.c.l.b16 %v705
    %v1060 = vunpack.c.h.b16 %v705
    %v1061 = vunpack.c.l.b16 %v706
    %v1062 = vunpack.c.h.b16 %v706
    %v1063 = vunpack.c.l.b16 %v707
    %v1064 = vunpack.c.h.b16 %v707
    %v1065 = vunpack.c.l.b16 %v708
    %v1066 = vunpack.c.h.b16 %v708
    %v1067 = vunpack.c.l.b16 %v709
    %v1068 = vunpack.c.h.b16 %v709
    %v1069 = vunpack.c.l.b16 %v710
    %v1070 = vunpack.c.h.b16 %v710
    %v1071 = vunpack.c.l.b16 %v711
    %v1072 = vunpack.c.h.b16 %v711
    %v1073 = vunpack.c.l.b16 %v712
    %v1074 = vunpack.c.h.b16 %v712
    %v1075 = vunpack.c.l.b16 %v713
    %v1076 = vunpack.c.h.b16 %v713
    %v1077 = vunpack.c.l.b16 %v714
    %v1078 = vunpack.c.h.b16 %v714
    %v1079 = vunpack.c.l.b16 %v715
    %v1080 = vunpack.c.h.b16 %v715
    %v1081 = vunpack.c.l.b16 %v716
    %v1082 = vunpack.c.h.b16 %v716
    %v1083 = vunpack.c.l.b16 %v717
    %v1084 = vunpack.c.h.b16 %v717
    %v1085 = vunpack.c.l.b16 %v718
    %v1086 = vunpack.c.h.b16 %v718
    %v1087 = vunpack.c.l.b16 %v719
    %v1088 = vunpack.c.h.b16 %v719
    %v1089 = vunpack.c.l.b16 %v720
    %v1090 = vunpack.c.h.b16 %v720
    %v1091 = vunpack.c.l.b16 %v721
    %v1092 = vunpack.c.h.b16 %v721
    %v1093 = vunpack.c.l.b16 %v722
    %v1094 = vunpack.c.h.b16 %v722
    %v1095 = vunpack.c.l.b16 %v723
    %v1096 = vunpack.c.h.b16 %v723
    %v1097 = vunpack.c.l.b16 %v724
    %v1098 = vunpack.c.h.b16 %v724
    %v1099 = vunpack.c.l.b16 %v725
    %v1100 = vunpack.c.h.b16 %v725
    %v1101 = vunpack.c.l.b16 %v726
    %v1102 = vunpack.c.h.b16 %v726
    %v1103 = vunpack.c.l.b16 %v727
    %v1104 = vunpack.c.h.b16 %v727
    %v1105 = vunpack.c.l.b16 %v728
    %v1106 = vunpack.c.h.b16 %v728
    %v1107 = vunpack.c.l.b16 %v729
    %v1108 = vunpack.c.h.b16 %v729
    %v1109 = vunpack.c.l.b16 %v730
    %v1110 = vunpack.c.h.b16 %v730
    %v1111 = vunpack.c.l.b16 %v731
    %v1112 = vunpack.c.h.b16 %v731
    %v1113 = vunpack.c.l.b16 %v732
    %v1114 = vunpack.c.h.b16 %v732
    %v1115 = vunpack.c.l.b16 %v733
    %v1116 = vunpack.c.h.b16 %v733
    %v1117 = vunpack.c.l.b16 %v734
    %v1118 = vunpack.c.h.b16 %v734
    %v1119 = vunpack.c.l.b16 %v735
    %v1120 = vunpack.c.h.b16 %v735
    %v1121 = vunpack.c.l.b16 %v736
    %v1122 = vunpack.c.h.b16 %v736
    %v1123 = vunpack.c.l.b16 %v737
    %v1124 = vunpack.c.h.b16 %v737
    %v1125 = vunpack.c.l.b16 %v738
    %v1126 = vunpack.c.h.b16 %v738
    %v1127 = vunpack.c.l.b16 %v739
    %v1128 = vunpack.c.h.b16 %v739
    %v1129 = vunpack.c.l.b16 %v740
    %v1130 = vunpack.c.h.b16 %v740
    %v1131 = vpack.c.b16 %v883, %v875
    %v1132 = vpack.c.b16 %v884, %v876
    %v1133 = vpack.c.b16 %v885, %v877
    %v1134 = vpack.c.b16 %v886, %v878
    %v1135 = vpack.c.b16 %v887, %v879
    %v1136 = vpack.c.b16 %v888, %v880
    %v1137 = vpack.c.b16 %v889, %v881
    %v1138 = vpack.c.b16 %v890, %v882
    %v1139 = vpack.c.b16 %v899, %v891
    %v1140 = vpack.c.b16 %v900, %v892
    %v1141 = vpack.c.b16 %v901, %v893
    %v1142 = vpack.c.b16 %v902, %v894
    %v1143 = vpack.c.b16 %v903, %v895
    %v1144 = vpack.c.b16 %v904, %v896
    %v1145 = vpack.c.b16 %v905, %v897
    %v1146 = vpack.c.b16 %v906, %v898
    %v1147 = vpack.c.b16 %v915, %v907
    %v1148 = vpack.c.b16 %v916, %v908
    %v1149 = vpack.c.b16 %v917, %v909
    %v1150 = vpack.c.b16 %v918, %v910
    %v1151 = vpack.c.b16 %v919, %v911
    %v1152 = vpack.c.b16 %v920, %v912
    %v1153 = vpack.c.b16 %v921, %v913
    %v1154 = vpack.c.b16 %v922, %v914
    %v1155 = vpack.c.b16 %v931, %v923
    %v1156 = vpack.c.b16 %v932, %v924
    %v1157 = vpack.c.b16 %v933, %v925
    %v1158 = vpack.c.b16 %v934, %v926
    %v1159 = vpack.c.b16 %v935, %v927
    %v1160 = vpack.c.b16 %v936, %v928
    %v1161 = vpack.c.b16 %v937, %v929
    %v1162 = vpack.c.b16 %v938, %v930
    %v1163 = vpack.c.b16 %v947, %v939
    %v1164 = vpack.c.b16 %v948, %v940
    %v1165 = vpack.c.b16 %v949, %v941
    %v1166 = vpack.c.b16 %v950, %v942
    %v1167 = vpack.c.b16 %v951, %v943
    %v1168 = vpack.c.b16 %v952, %v944
    %v1169 = vpack.c.b16 %v953, %v945
    %v1170 = vpack.c.b16 %v954, %v946
    %v1171 = vpack.c.b16 %v963, %v955
    %v1172 = vpack.c.b16 %v964, %v956
    %v1173 = vpack.c.b16 %v965, %v957
    %v1174 = vpack.c.b16 %v966, %v958
    %v1175 = vpack.c.b16 %v967, %v959
    %v1176 = vpack.c.b16 %v968, %v960
    %v1177 = vpack.c.b16 %v969, %v961
    %v1178 = vpack.c.b16 %v970, %v962
    %v1179 = vpack.c.b16 %v979, %v971
    %v1180 = vpack.c.b16 %v980, %v972
    %v1181 = vpack.c.b16 %v981, %v973
    %v1182 = vpack.c.b16 %v982, %v974
    %v1183 = vpack.c.b16 %v983, %v975
    %v1184 = vpack.c.b16 %v984, %v976
    %v1185 = vpack.c.b16 %v985, %v977
    %v1186 = vpack.c.b16 %v986, %v978
    %v1187 = vpack.c.b16 %v995, %v987
    %v1188 = vpack.c.b16 %v996, %v988
    %v1189 = vpack.c.b16 %v997, %v989
    %v1190 = vpack.c.b16 %v998, %v990
    %v1191 = vpack.c.b16 %v999, %v991
    %v1192 = vpack.c.b16 %v1000, %v992
    %v1193 = vpack.c.b16 %v1001, %v993
    %v1194 = vpack.c.b16 %v1002, %v994
    %v1195 = vpack.c.b16 %v1011, %v1003
    %v1196 = vpack.c.b16 %v1012, %v1004
    %v1197 = vpack.c.b16 %v1013, %v1005
    %v1198 = vpack.c.b16 %v1014, %v1006
    %v1199 = vpack.c.b16 %v1015, %v1007
    %v1200 = vpack.c.b16 %v1016, %v1008
    %v1201 = vpack.c.b16 %v1017, %v1009
    %v1202 = vpack.c.b16 %v1018, %v1010
    %v1203 = vpack.c.b16 %v1027, %v1019
    %v1204 = vpack.c.b16 %v1028, %v1020
    %v1205 = vpack.c.b16 %v1029, %v1021
    %v1206 = vpack.c.b16 %v1030, %v1022
    %v1207 = vpack.c.b16 %v1031, %v1023
    %v1208 = vpack.c.b16 %v1032, %v1024
    %v1209 = vpack.c.b16 %v1033, %v1025
    %v1210 = vpack.c.b16 %v1034, %v1026
    %v1211 = vpack.c.b16 %v1043, %v1035
    %v1212 = vpack.c.b16 %v1044, %v1036
    %v1213 = vpack.c.b16 %v1045, %v1037
    %v1214 = vpack.c.b16 %v1046, %v1038
    %v1215 = vpack.c.b16 %v1047, %v1039
    %v1216 = vpack.c.b16 %v1048, %v1040
    %v1217 = vpack.c.b16 %v1049, %v1041
    %v1218 = vpack.c.b16 %v1050, %v1042
    %v1219 = vpack.c.b16 %v1059, %v1051
    %v1220 = vpack.c.b16 %v1060, %v1052
    %v1221 = vpack.c.b16 %v1061, %v1053
    %v1222 = vpack.c.b16 %v1062, %v1054
    %v1223 = vpack.c.b16 %v1063, %v1055
    %v1224 = vpack.c.b16 %v1064, %v1056
    %v1225 = vpack.c.b16 %v1065, %v1057
    %v1226 = vpack.c.b16 %v1066, %v1058
    %v1227 = vpack.c.b16 %v1075, %v1067
    %v1228 = vpack.c.b16 %v1076, %v1068
    %v1229 = vpack.c.b16 %v1077, %v1069
    %v1230 = vpack.c.b16 %v1078, %v1070
    %v1231 = vpack.c.b16 %v1079, %v1071
    %v1232 = vpack.c.b16 %v1080, %v1072
    %v1233 = vpack.c.b16 %v1081, %v1073
    %v1234 = vpack.c.b16 %v1082, %v1074
    %v1235 = vpack.c.b16 %v1091, %v1083
    %v1236 = vpack.c.b16 %v1092, %v1084
    %v1237 = vpack.c.b16 %v1093, %v1085
    %v1238 = vpack.c.b16 %v1094, %v1086
    %v1239 = vpack.c.b16 %v1095, %v1087
    %v1240 = vpack.c.b16 %v1096, %v1088
    %v1241 = vpack.c.b16 %v1097, %v1089
    %v1242 = vpack.c.b16 %v1098, %v1090
    %v1243 = vpack.c.b16 %v1107, %v1099
    %v1244 = vpack.c.b16 %v1108, %v1100
    %v1245 = vpack.c.b16 %v1109, %v1101
    %v1246 = vpack.c.b16 %v1110, %v1102
    %v1247 = vpack.c.b16 %v1111, %v1103
    %v1248 = vpack.c.b16 %v1112, %v1104
    %v1249 = vpack.c.b16 %v1113, %v1105
    %v1250 = vpack.c.b16 %v1114, %v1106
    %v1251 = vpack.c.b16 %v1123, %v1115
    %v1252 = vpack.c.b16 %v1124, %v1116
    %v1253 = vpack.c.b16 %v1125, %v1117
    %v1254 = vpack.c.b16 %v1126, %v1118
    %v1255 = vpack.c.b16 %v1127, %v1119
    %v1256 = vpack.c.b16 %v1128, %v1120
    %v1257 = vpack.c.b16 %v1129, %v1121
    %v1258 = vpack.c.b16 %v1130, %v1122
    %1387 = vmatprep.subr.bf16.mxu0 %v1188
    %1388 = vmatpush1.bf16.msra.mxu0 %v1187
    %1389 = vmatprep.subr.bf16.mxu0 %v1180
    %1390 = vmatpush1.bf16.msra.mxu0 %v1179
    %1391 = vmatprep.subr.bf16.mxu0 %v1172
    %1392 = vmatpush1.bf16.msra.mxu0 %v1171
    %1393 = vmatprep.subr.bf16.mxu0 %v1164
    %1394 = vmatpush1.bf16.msra.mxu0 %v1163
    %1395 = vmatprep.subr.bf16.mxu0 %v1156
    %1396 = vmatpush1.bf16.msra.mxu0 %v1155
    %1397 = vmatprep.subr.bf16.mxu0 %v1148
    %1398 = vmatpush1.bf16.msra.mxu0 %v1147
    %1399 = vmatprep.subr.bf16.mxu0 %v1140
    %1400 = vmatpush1.bf16.msra.mxu0 %v1139
    %1401 = vmatprep.subr.bf16.mxu0 %v1132
    %1402 = vmatpush1.bf16.msra.mxu0 %v1131
    %1403 = vmatprep.subr.bf16.mxu0 %v1252
    %1404 = vmatpush2.bf16.msra.mxu0 %v1251
    %1405 = vmatprep.subr.bf16.mxu0 %v1244
    %1406 = vmatpush2.bf16.msra.mxu0 %v1243
    %1407 = vmatprep.subr.bf16.mxu0 %v1236
    %1408 = vmatpush2.bf16.msra.mxu0 %v1235
    %1409 = vmatprep.subr.bf16.mxu0 %v1228
    %1410 = vmatpush2.bf16.msra.mxu0 %v1227
    %1411 = vmatprep.subr.bf16.mxu0 %v1220
    %1412 = vmatpush2.bf16.msra.mxu0 %v1219
    %1413 = vmatprep.subr.bf16.mxu0 %v1212
    %1414 = vmatpush2.bf16.msra.mxu0 %v1211
    %1415 = vmatprep.subr.bf16.mxu0 %v1204
    %1416 = vmatpush2.bf16.msra.mxu0 %v1203
    %1417 = vmatprep.subr.bf16.mxu0 %v1196
    %1418 = vmatpush2.bf16.msra.mxu0 %v1195
    %1419 = vmatprep.mubr.bf16.mxu0 %v746
    %1420 = vmatmul.mubr.bf16.gmra.mxu0 %v745
    %v1421 = vpop.f32.mrf.mxu0
    %v1422 = vadd.f32 0.0, %v1421
    %v1423 = vpop.f32.mrf.mxu0
    %v1424 = vadd.f32 0.0, %v1423
    %v1425 = vpop.f32.mrf.mxu0
    %v1426 = vpop.f32.mrf.mxu0
    %1427 = vdwg.mxu0
    %1428 = vmatprep.subr.bf16.mxu0 %v1190
    %1429 = vmatpush1.bf16.msra.mxu0 %v1189
    %1430 = vmatprep.subr.bf16.mxu0 %v1182
    %1431 = vmatpush1.bf16.msra.mxu0 %v1181
    %1432 = vmatprep.subr.bf16.mxu0 %v1174
    %1433 = vmatpush1.bf16.msra.mxu0 %v1173
    %1434 = vmatprep.subr.bf16.mxu0 %v1166
    %1435 = vmatpush1.bf16.msra.mxu0 %v1165
    %1436 = vmatprep.subr.bf16.mxu0 %v1158
    %1437 = vmatpush1.bf16.msra.mxu0 %v1157
    %1438 = vmatprep.subr.bf16.mxu0 %v1150
    %1439 = vmatpush1.bf16.msra.mxu0 %v1149
    %1440 = vmatprep.subr.bf16.mxu0 %v1142
    %1441 = vmatpush1.bf16.msra.mxu0 %v1141
    %1442 = vmatprep.subr.bf16.mxu0 %v1134
    %1443 = vmatpush1.bf16.msra.mxu0 %v1133
    %1444 = vmatprep.subr.bf16.mxu0 %v1254
    %1445 = vmatpush2.bf16.msra.mxu0 %v1253
    %1446 = vmatprep.subr.bf16.mxu0 %v1246
    %1447 = vmatpush2.bf16.msra.mxu0 %v1245
    %1448 = vmatprep.subr.bf16.mxu0 %v1238
    %1449 = vmatpush2.bf16.msra.mxu0 %v1237
    %1450 = vmatprep.subr.bf16.mxu0 %v1230
    %1451 = vmatpush2.bf16.msra.mxu0 %v1229
    %1452 = vmatprep.subr.bf16.mxu0 %v1222
    %1453 = vmatpush2.bf16.msra.mxu0 %v1221
    %1454 = vmatprep.subr.bf16.mxu0 %v1214
    %1455 = vmatpush2.bf16.msra.mxu0 %v1213
    %1456 = vmatprep.subr.bf16.mxu0 %v1206
    %1457 = vmatpush2.bf16.msra.mxu0 %v1205
    %1458 = vmatprep.subr.bf16.mxu0 %v1198
    %1459 = vmatpush2.bf16.msra.mxu0 %v1197
    %1460 = vmatprep.mubr.bf16.mxu0 %v746
    %1461 = vmatmul.mubr.bf16.gmra.mxu0 %v745
    %v1462 = vpop.f32.mrf.mxu0
    %v1463 = vadd.f32 0.0, %v1462
    %v1464 = vpop.f32.mrf.mxu0
    %v1465 = vadd.f32 0.0, %v1464
    %v1466 = vpop.f32.mrf.mxu0
    %v1467 = vpop.f32.mrf.mxu0
    %1468 = vdwg.mxu0
    %1469 = vmatprep.subr.bf16.mxu0 %v1192
    %1470 = vmatpush1.bf16.msra.mxu0 %v1191
    %1471 = vmatprep.subr.bf16.mxu0 %v1184
    %1472 = vmatpush1.bf16.msra.mxu0 %v1183
    %1473 = vmatprep.subr.bf16.mxu0 %v1176
    %1474 = vmatpush1.bf16.msra.mxu0 %v1175
    %1475 = vmatprep.subr.bf16.mxu0 %v1168
    %1476 = vmatpush1.bf16.msra.mxu0 %v1167
    %1477 = vmatprep.subr.bf16.mxu0 %v1160
    %1478 = vmatpush1.bf16.msra.mxu0 %v1159
    %1479 = vmatprep.subr.bf16.mxu0 %v1152
    %1480 = vmatpush1.bf16.msra.mxu0 %v1151
    %1481 = vmatprep.subr.bf16.mxu0 %v1144
    %1482 = vmatpush1.bf16.msra.mxu0 %v1143
    %1483 = vmatprep.subr.bf16.mxu0 %v1136
    %1484 = vmatpush1.bf16.msra.mxu0 %v1135
    %1485 = vmatprep.subr.bf16.mxu0 %v1256
    %1486 = vmatpush2.bf16.msra.mxu0 %v1255
    %1487 = vmatprep.subr.bf16.mxu0 %v1248
    %1488 = vmatpush2.bf16.msra.mxu0 %v1247
    %1489 = vmatprep.subr.bf16.mxu0 %v1240
    %1490 = vmatpush2.bf16.msra.mxu0 %v1239
    %1491 = vmatprep.subr.bf16.mxu0 %v1232
    %1492 = vmatpush2.bf16.msra.mxu0 %v1231
    %1493 = vmatprep.subr.bf16.mxu0 %v1224
    %1494 = vmatpush2.bf16.msra.mxu0 %v1223
    %1495 = vmatprep.subr.bf16.mxu0 %v1216
    %1496 = vmatpush2.bf16.msra.mxu0 %v1215
    %1497 = vmatprep.subr.bf16.mxu0 %v1208
    %1498 = vmatpush2.bf16.msra.mxu0 %v1207
    %1499 = vmatprep.subr.bf16.mxu0 %v1200
    %1500 = vmatpush2.bf16.msra.mxu0 %v1199
    %1501 = vmatprep.mubr.bf16.mxu0 %v746
    %1502 = vmatmul.mubr.bf16.gmra.mxu0 %v745
    %v1503 = vpop.f32.mrf.mxu0
    %v1504 = vadd.f32 0.0, %v1503
    %v1505 = vpop.f32.mrf.mxu0
    %v1506 = vadd.f32 0.0, %v1505
    %v1507 = vpop.f32.mrf.mxu0
    %v1508 = vpop.f32.mrf.mxu0
    %1509 = vdwg.mxu0
    %1510 = vmatprep.subr.bf16.mxu0 %v1194
    %1511 = vmatpush1.bf16.msra.mxu0 %v1193
    %1512 = vmatprep.subr.bf16.mxu0 %v1186
    %1513 = vmatpush1.bf16.msra.mxu0 %v1185
    %1514 = vmatprep.subr.bf16.mxu0 %v1178
    %1515 = vmatpush1.bf16.msra.mxu0 %v1177
    %1516 = vmatprep.subr.bf16.mxu0 %v1170
    %1517 = vmatpush1.bf16.msra.mxu0 %v1169
    %1518 = vmatprep.subr.bf16.mxu0 %v1162
    %1519 = vmatpush1.bf16.msra.mxu0 %v1161
    %1520 = vmatprep.subr.bf16.mxu0 %v1154
    %1521 = vmatpush1.bf16.msra.mxu0 %v1153
    %1522 = vmatprep.subr.bf16.mxu0 %v1146
    %1523 = vmatpush1.bf16.msra.mxu0 %v1145
    %1524 = vmatprep.subr.bf16.mxu0 %v1138
    %1525 = vmatpush1.bf16.msra.mxu0 %v1137
    %1526 = vmatprep.subr.bf16.mxu0 %v1258
    %1527 = vmatpush2.bf16.msra.mxu0 %v1257
    %1528 = vmatprep.subr.bf16.mxu0 %v1250
    %1529 = vmatpush2.bf16.msra.mxu0 %v1249
    %1530 = vmatprep.subr.bf16.mxu0 %v1242
    %1531 = vmatpush2.bf16.msra.mxu0 %v1241
    %1532 = vmatprep.subr.bf16.mxu0 %v1234
    %1533 = vmatpush2.bf16.msra.mxu0 %v1233
    %1534 = vmatprep.subr.bf16.mxu0 %v1226
    %1535 = vmatpush2.bf16.msra.mxu0 %v1225
    %1536 = vmatprep.subr.bf16.mxu0 %v1218
    %1537 = vmatpush2.bf16.msra.mxu0 %v1217
    %1538 = vmatprep.subr.bf16.mxu0 %v1210
    %1539 = vmatpush2.bf16.msra.mxu0 %v1209
    %1540 = vmatprep.subr.bf16.mxu0 %v1202
    %1541 = vmatpush2.bf16.msra.mxu0 %v1201
    %1542 = vmatprep.mubr.bf16.mxu0 %v746
    %1543 = vmatmul.mubr.bf16.gmra.mxu0 %v745
    %v1544 = vpop.f32.mrf.mxu0
    %v1545 = vadd.f32 0.0, %v1544
    %v1546 = vpop.f32.mrf.mxu0
    %v1547 = vadd.f32 0.0, %v1546
    %v1548 = vpop.f32.mrf.mxu0
    %v1549 = vpop.f32.mrf.mxu0
    %1550 = vdwg.mxu0
    %v1551 = vld [vmem:[#allocation2] sm:$0xff]
    %v1552 = vld [vmem:[#allocation2 + $0x8] sm:$0xff]
    %v1553 = vld [vmem:[#allocation2 + $0x10] sm:$0xff]
    %v1554 = vld [vmem:[#allocation2 + $0x18] sm:$0xff]
    %v1555 = vld [vmem:[#allocation2 + $0x1e0] sm:$0xff]
    %v1556 = vld [vmem:[#allocation2 + $0x1e8] sm:$0xff]
    %v1557 = vld [vmem:[#allocation2 + $0x1f0] sm:$0xff]
    %v1558 = vld [vmem:[#allocation2 + $0x1f8] sm:$0xff]
    %v1559 = vadd.f32 %v1551, %v1422
    %v1560 = vadd.f32 %v1552, %v1424
    %v1561 = vadd.f32 %v1553, %v1463
    %v1562 = vadd.f32 %v1554, %v1465
    %v1563 = vadd.f32 %v1555, %v1504
    %v1564 = vadd.f32 %v1556, %v1506
    %v1565 = vadd.f32 %v1557, %v1545
    %v1566 = vadd.f32 %v1558, %v1547
    %v1567 = vxor.u32 %v1559, 2147483648
    %v1568 = vxor.u32 %v1560, 2147483648
    %v1569 = vxor.u32 %v1561, 2147483648
    %v1570 = vmul.f32 %v1567, 1.442695
    %v1571 = vpow.pop %v1570
    %v1572 = vmul.f32 %v1568, 1.442695
    %v1573 = vpow.pop %v1572
    %v1574 = vmul.f32 %v1569, 1.442695
    %v1575 = vpow.pop %v1574
    %v1576 = vadd.f32 %v1571, 1.0
    %v1577 = vadd.f32 %v1573, 1.0
    %v1578 = vadd.f32 %v1575, 1.0
    %v1579 = vrcp.pop %v1576
    %v1580 = vmul.f32 1.0, %v1579
    %v1581 = vrcp.pop %v1577
    %v1582 = vmul.f32 1.0, %v1581
    %v1583 = vrcp.pop %v1578
    %v1584 = vmul.f32 1.0, %v1583
    %v1585 = vtanh.pop %v1562
    %v1586 = vtanh.pop %v1563
    %v1587 = vxor.u32 %v1564, 2147483648
    %v1588 = vxor.u32 %v1565, 2147483648
    %v1589 = vxor.u32 %v1566, 2147483648
    %v1590 = vmul.f32 %v1587, 1.442695
    %v1591 = vpow.pop %v1590
    %v1592 = vmul.f32 %v1588, 1.442695
    %v1593 = vpow.pop %v1592
    %v1594 = vmul.f32 %v1589, 1.442695
    %v1595 = vpow.pop %v1594
    %v1596 = vadd.f32 %v1591, 1.0
    %v1597 = vadd.f32 %v1593, 1.0
    %v1598 = vadd.f32 %v1595, 1.0
    %v1599 = vrcp.pop %v1596
    %v1600 = vmul.f32 1.0, %v1599
    %v1601 = vrcp.pop %v1597
    %v1602 = vmul.f32 1.0, %v1601
    %v1603 = vrcp.pop %v1598
    %v1604 = vmul.f32 1.0, %v1603
    %v1605 = vmul.f32 %v1582, %v743
    %v1606 = vmul.f32 %v1602, %v744
    %v1607 = vmul.f32 %v1580, %v1585
    %v1608 = vmul.f32 %v1604, %v1586
    %v1609 = vadd.f32 %v1605, %v1607
    %v1610 = vadd.f32 %v1606, %v1608
    %v1611 = vtanh.pop %v1609
    %v1612 = vtanh.pop %v1610
    %v1613 = vmul.f32 %v1584, %v1611
    %v1614 = vmul.f32 %v1600, %v1612
    %1615 = vst [vmem:[#allocation3] sm:$0xff] %v1613
    %1616 = vst [vmem:[#allocation3 + $0x78] sm:$0xff] %v1614
    %v1617 = vpack.c.bf16 %v1613, %v1613
    %v1618 = vpack.c.bf16 %v1614, %v1614
    %1619 = vmatprep.subr.bf16.mxu0 %v1188
    %1620 = vmatpush1.bf16.msra.mxu0 %v1187
    %1621 = vmatprep.subr.bf16.mxu0 %v1180
    %1622 = vmatpush1.bf16.msra.mxu0 %v1179
    %1623 = vmatprep.subr.bf16.mxu0 %v1172
    %1624 = vmatpush1.bf16.msra.mxu0 %v1171
    %1625 = vmatprep.subr.bf16.mxu0 %v1164
    %1626 = vmatpush1.bf16.msra.mxu0 %v1163
    %1627 = vmatprep.subr.bf16.mxu0 %v1156
    %1628 = vmatpush1.bf16.msra.mxu0 %v1155
    %1629 = vmatprep.subr.bf16.mxu0 %v1148
    %1630 = vmatpush1.bf16.msra.mxu0 %v1147
    %1631 = vmatprep.subr.bf16.mxu0 %v1140
    %1632 = vmatpush1.bf16.msra.mxu0 %v1139
    %1633 = vmatprep.subr.bf16.mxu0 %v1132
    %1634 = vmatpush1.bf16.msra.mxu0 %v1131
    %1635 = vmatprep.subr.bf16.mxu0 %v1252
    %1636 = vmatpush2.bf16.msra.mxu0 %v1251
    %1637 = vmatprep.subr.bf16.mxu0 %v1244
    %1638 = vmatpush2.bf16.msra.mxu0 %v1243
    %1639 = vmatprep.subr.bf16.mxu0 %v1236
    %1640 = vmatpush2.bf16.msra.mxu0 %v1235
    %1641 = vmatprep.subr.bf16.mxu0 %v1228
    %1642 = vmatpush2.bf16.msra.mxu0 %v1227
    %1643 = vmatprep.subr.bf16.mxu0 %v1220
    %1644 = vmatpush2.bf16.msra.mxu0 %v1219
    %1645 = vmatprep.subr.bf16.mxu0 %v1212
    %1646 = vmatpush2.bf16.msra.mxu0 %v1211
    %1647 = vmatprep.subr.bf16.mxu0 %v1204
    %1648 = vmatpush2.bf16.msra.mxu0 %v1203
    %1649 = vmatprep.subr.bf16.mxu0 %v1196
    %1650 = vmatpush2.bf16.msra.mxu0 %v1195
    %1651 = vmatprep.mubr.bf16.mxu0 %v1618
    %1652 = vmatmul.mubr.bf16.gmra.mxu0 %v1617
    %v1653 = vpop.f32.mrf.mxu0
    %v1654 = vadd.f32 0.0, %v1653
    %v1655 = vpop.f32.mrf.mxu0
    %v1656 = vadd.f32 0.0, %v1655
    %v1657 = vpop.f32.mrf.mxu0
    %v1658 = vpop.f32.mrf.mxu0
    %1659 = vdwg.mxu0
    %1660 = vmatprep.subr.bf16.mxu0 %v1190
    %1661 = vmatpush1.bf16.msra.mxu0 %v1189
    %1662 = vmatprep.subr.bf16.mxu0 %v1182
    %1663 = vmatpush1.bf16.msra.mxu0 %v1181
    %1664 = vmatprep.subr.bf16.mxu0 %v1174
    %1665 = vmatpush1.bf16.msra.mxu0 %v1173
    %1666 = vmatprep.subr.bf16.mxu0 %v1166
    %1667 = vmatpush1.bf16.msra.mxu0 %v1165
    %1668 = vmatprep.subr.bf16.mxu0 %v1158
    %1669 = vmatpush1.bf16.msra.mxu0 %v1157
    %1670 = vmatprep.subr.bf16.mxu0 %v1150
    %1671 = vmatpush1.bf16.msra.mxu0 %v1149
    %1672 = vmatprep.subr.bf16.mxu0 %v1142
    %1673 = vmatpush1.bf16.msra.mxu0 %v1141
    %1674 = vmatprep.subr.bf16.mxu0 %v1134
    %1675 = vmatpush1.bf16.msra.mxu0 %v1133
    %1676 = vmatprep.subr.bf16.mxu0 %v1254
    %1677 = vmatpush2.bf16.msra.mxu0 %v1253
    %1678 = vmatprep.subr.bf16.mxu0 %v1246
    %1679 = vmatpush2.bf16.msra.mxu0 %v1245
    %1680 = vmatprep.subr.bf16.mxu0 %v1238
    %1681 = vmatpush2.bf16.msra.mxu0 %v1237
    %1682 = vmatprep.subr.bf16.mxu0 %v1230
    %1683 = vmatpush2.bf16.msra.mxu0 %v1229
    %1684 = vmatprep.subr.bf16.mxu0 %v1222
    %1685 = vmatpush2.bf16.msra.mxu0 %v1221
    %1686 = vmatprep.subr.bf16.mxu0 %v1214
    %1687 = vmatpush2.bf16.msra.mxu0 %v1213
    %1688 = vmatprep.subr.bf16.mxu0 %v1206
    %1689 = vmatpush2.bf16.msra.mxu0 %v1205
    %1690 = vmatprep.subr.bf16.mxu0 %v1198
    %1691 = vmatpush2.bf16.msra.mxu0 %v1197
    %1692 = vmatprep.mubr.bf16.mxu0 %v1618
    %1693 = vmatmul.mubr.bf16.gmra.mxu0 %v1617
    %v1694 = vpop.f32.mrf.mxu0
    %v1695 = vadd.f32 0.0, %v1694
    %v1696 = vpop.f32.mrf.mxu0
    %v1697 = vadd.f32 0.0, %v1696
    %v1698 = vpop.f32.mrf.mxu0
    %v1699 = vpop.f32.mrf.mxu0
    %1700 = vdwg.mxu0
    %1701 = vmatprep.subr.bf16.mxu0 %v1192
    %1702 = vmatpush1.bf16.msra.mxu0 %v1191
    %1703 = vmatprep.subr.bf16.mxu0 %v1184
    %1704 = vmatpush1.bf16.msra.mxu0 %v1183
    %1705 = vmatprep.subr.bf16.mxu0 %v1176
    %1706 = vmatpush1.bf16.msra.mxu0 %v1175
    %1707 = vmatprep.subr.bf16.mxu0 %v1168
    %1708 = vmatpush1.bf16.msra.mxu0 %v1167
    %1709 = vmatprep.subr.bf16.mxu0 %v1160
    %1710 = vmatpush1.bf16.msra.mxu0 %v1159
    %1711 = vmatprep.subr.bf16.mxu0 %v1152
    %1712 = vmatpush1.bf16.msra.mxu0 %v1151
    %1713 = vmatprep.subr.bf16.mxu0 %v1144
    %1714 = vmatpush1.bf16.msra.mxu0 %v1143
    %1715 = vmatprep.subr.bf16.mxu0 %v1136
    %1716 = vmatpush1.bf16.msra.mxu0 %v1135
    %1717 = vmatprep.subr.bf16.mxu0 %v1256
    %1718 = vmatpush2.bf16.msra.mxu0 %v1255
    %1719 = vmatprep.subr.bf16.mxu0 %v1248
    %1720 = vmatpush2.bf16.msra.mxu0 %v1247
    %1721 = vmatprep.subr.bf16.mxu0 %v1240
    %1722 = vmatpush2.bf16.msra.mxu0 %v1239
    %1723 = vmatprep.subr.bf16.mxu0 %v1232
    %1724 = vmatpush2.bf16.msra.mxu0 %v1231
    %1725 = vmatprep.subr.bf16.mxu0 %v1224
    %1726 = vmatpush2.bf16.msra.mxu0 %v1223
    %1727 = vmatprep.subr.bf16.mxu0 %v1216
    %1728 = vmatpush2.bf16.msra.mxu0 %v1215
    %1729 = vmatprep.subr.bf16.mxu0 %v1208
    %1730 = vmatpush2.bf16.msra.mxu0 %v1207
    %1731 = vmatprep.subr.bf16.mxu0 %v1200
    %1732 = vmatpush2.bf16.msra.mxu0 %v1199
    %1733 = vmatprep.mubr.bf16.mxu0 %v1618
    %1734 = vmatmul.mubr.bf16.gmra.mxu0 %v1617
    %v1735 = vpop.f32.mrf.mxu0
    %v1736 = vadd.f32 0.0, %v1735
    %v1737 = vpop.f32.mrf.mxu0
    %v1738 = vadd.f32 0.0, %v1737
    %v1739 = vpop.f32.mrf.mxu0
    %v1740 = vpop.f32.mrf.mxu0
    %1741 = vdwg.mxu0
    %1742 = vmatprep.subr.bf16.mxu0 %v1194
    %1743 = vmatpush1.bf16.msra.mxu0 %v1193
    %1744 = vmatprep.subr.bf16.mxu0 %v1186
    %1745 = vmatpush1.bf16.msra.mxu0 %v1185
    %1746 = vmatprep.subr.bf16.mxu0 %v1178
    %1747 = vmatpush1.bf16.msra.mxu0 %v1177
    %1748 = vmatprep.subr.bf16.mxu0 %v1170
    %1749 = vmatpush1.bf16.msra.mxu0 %v1169
    %1750 = vmatprep.subr.bf16.mxu0 %v1162
    %1751 = vmatpush1.bf16.msra.mxu0 %v1161
    %1752 = vmatprep.subr.bf16.mxu0 %v1154
    %1753 = vmatpush1.bf16.msra.mxu0 %v1153
    %1754 = vmatprep.subr.bf16.mxu0 %v1146
    %1755 = vmatpush1.bf16.msra.mxu0 %v1145
    %1756 = vmatprep.subr.bf16.mxu0 %v1138
    %1757 = vmatpush1.bf16.msra.mxu0 %v1137
    %1758 = vmatprep.subr.bf16.mxu0 %v1258
    %1759 = vmatpush2.bf16.msra.mxu0 %v1257
    %1760 = vmatprep.subr.bf16.mxu0 %v1250
    %1761 = vmatpush2.bf16.msra.mxu0 %v1249
    %1762 = vmatprep.subr.bf16.mxu0 %v1242
    %1763 = vmatpush2.bf16.msra.mxu0 %v1241
    %1764 = vmatprep.subr.bf16.mxu0 %v1234
    %1765 = vmatpush2.bf16.msra.mxu0 %v1233
    %1766 = vmatprep.subr.bf16.mxu0 %v1226
    %1767 = vmatpush2.bf16.msra.mxu0 %v1225
    %1768 = vmatprep.subr.bf16.mxu0 %v1218
    %1769 = vmatpush2.bf16.msra.mxu0 %v1217
    %1770 = vmatprep.subr.bf16.mxu0 %v1210
    %1771 = vmatpush2.bf16.msra.mxu0 %v1209
    %1772 = vmatprep.subr.bf16.mxu0 %v1202
    %1773 = vmatpush2.bf16.msra.mxu0 %v1201
    %1774 = vmatprep.mubr.bf16.mxu0 %v1618
    %1775 = vmatmul.mubr.bf16.gmra.mxu0 %v1617
    %v1776 = vpop.f32.mrf.mxu0
    %v1777 = vadd.f32 0.0, %v1776
    %v1778 = vpop.f32.mrf.mxu0
    %v1779 = vadd.f32 0.0, %v1778
    %v1780 = vpop.f32.mrf.mxu0
    %v1781 = vpop.f32.mrf.mxu0
    %1782 = vdwg.mxu0
    %v1783 = vld [vmem:[#allocation2 + $0x40] sm:$0xff]
    %v1784 = vld [vmem:[#allocation2 + $0x48] sm:$0xff]
    %v1785 = vld [vmem:[#allocation2 + $0x50] sm:$0xff]
    %v1786 = vld [vmem:[#allocation2 + $0x58] sm:$0xff]
    %v1787 = vld [vmem:[#allocation2 + $0x1a0] sm:$0xff]
    %v1788 = vld [vmem:[#allocation2 + $0x1a8] sm:$0xff]
    %v1789 = vld [vmem:[#allocation2 + $0x1b0] sm:$0xff]
    %v1790 = vld [vmem:[#allocation2 + $0x1b8] sm:$0xff]
    %v1791 = vadd.f32 %v1783, %v1654
    %v1792 = vadd.f32 %v1784, %v1656
    %v1793 = vadd.f32 %v1785, %v1695
    %v1794 = vadd.f32 %v1786, %v1697
    %v1795 = vadd.f32 %v1787, %v1736
    %v1796 = vadd.f32 %v1788, %v1738
    %v1797 = vadd.f32 %v1789, %v1777
    %v1798 = vadd.f32 %v1790, %v1779
    %v1799 = vxor.u32 %v1791, 2147483648
    %v1800 = vxor.u32 %v1792, 2147483648
    %v1801 = vxor.u32 %v1793, 2147483648
    %v1802 = vmul.f32 %v1799, 1.442695
    %v1803 = vpow.pop %v1802
    %v1804 = vmul.f32 %v1800, 1.442695
    %v1805 = vpow.pop %v1804
    %v1806 = vmul.f32 %v1801, 1.442695
    %v1807 = vpow.pop %v1806
    %v1808 = vadd.f32 %v1803, 1.0
    %v1809 = vadd.f32 %v1805, 1.0
    %v1810 = vadd.f32 %v1807, 1.0
    %v1811 = vrcp.pop %v1808
    %v1812 = vmul.f32 1.0, %v1811
    %v1813 = vrcp.pop %v1809
    %v1814 = vmul.f32 1.0, %v1813
    %v1815 = vrcp.pop %v1810
    %v1816 = vmul.f32 1.0, %v1815
    %v1817 = vtanh.pop %v1794
    %v1818 = vtanh.pop %v1795
    %v1819 = vxor.u32 %v1796, 2147483648
    %v1820 = vxor.u32 %v1797, 2147483648
    %v1821 = vxor.u32 %v1798, 2147483648
    %v1822 = vmul.f32 %v1819, 1.442695
    %v1823 = vpow.pop %v1822
    %v1824 = vmul.f32 %v1820, 1.442695
    %v1825 = vpow.pop %v1824
    %v1826 = vmul.f32 %v1821, 1.442695
    %v1827 = vpow.pop %v1826
    %v1828 = vadd.f32 %v1823, 1.0
    %v1829 = vadd.f32 %v1825, 1.0
    %v1830 = vadd.f32 %v1827, 1.0
    %v1831 = vrcp.pop %v1828
    %v1832 = vmul.f32 1.0, %v1831
    %v1833 = vrcp.pop %v1829
    %v1834 = vmul.f32 1.0, %v1833
    %v1835 = vrcp.pop %v1830
    %v1836 = vmul.f32 1.0, %v1835
    %v1837 = vmul.f32 %v1814, %v1609
    %v1838 = vmul.f32 %v1834, %v1610
    %v1839 = vmul.f32 %v1812, %v1817
    %v1840 = vmul.f32 %v1836, %v1818
    %v1841 = vadd.f32 %v1837, %v1839
    %v1842 = vadd.f32 %v1838, %v1840
    %v1843 = vtanh.pop %v1841
    %v1844 = vtanh.pop %v1842
    %v1845 = vmul.f32 %v1816, %v1843
    %v1846 = vmul.f32 %v1832, %v1844
    %1847 = vst [vmem:[#allocation3 + $0x10] sm:$0xff] %v1845
    %1848 = vst [vmem:[#allocation3 + $0x68] sm:$0xff] %v1846
    %v1849 = vpack.c.bf16 %v1845, %v1845
    %v1850 = vpack.c.bf16 %v1846, %v1846
    %1851 = vmatprep.subr.bf16.mxu0 %v1188
    %1852 = vmatpush1.bf16.msra.mxu0 %v1187
    %1853 = vmatprep.subr.bf16.mxu0 %v1180
    %1854 = vmatpush1.bf16.msra.mxu0 %v1179
    %1855 = vmatprep.subr.bf16.mxu0 %v1172
    %1856 = vmatpush1.bf16.msra.mxu0 %v1171
    %1857 = vmatprep.subr.bf16.mxu0 %v1164
    %1858 = vmatpush1.bf16.msra.mxu0 %v1163
    %1859 = vmatprep.subr.bf16.mxu0 %v1156
    %1860 = vmatpush1.bf16.msra.mxu0 %v1155
    %1861 = vmatprep.subr.bf16.mxu0 %v1148
    %1862 = vmatpush1.bf16.msra.mxu0 %v1147
    %1863 = vmatprep.subr.bf16.mxu0 %v1140
    %1864 = vmatpush1.bf16.msra.mxu0 %v1139
    %1865 = vmatprep.subr.bf16.mxu0 %v1132
    %1866 = vmatpush1.bf16.msra.mxu0 %v1131
    %1867 = vmatprep.subr.bf16.mxu0 %v1252
    %1868 = vmatpush2.bf16.msra.mxu0 %v1251
    %1869 = vmatprep.subr.bf16.mxu0 %v1244
    %1870 = vmatpush2.bf16.msra.mxu0 %v1243
    %1871 = vmatprep.subr.bf16.mxu0 %v1236
    %1872 = vmatpush2.bf16.msra.mxu0 %v1235
    %1873 = vmatprep.subr.bf16.mxu0 %v1228
    %1874 = vmatpush2.bf16.msra.mxu0 %v1227
    %1875 = vmatprep.subr.bf16.mxu0 %v1220
    %1876 = vmatpush2.bf16.msra.mxu0 %v1219
    %1877 = vmatprep.subr.bf16.mxu0 %v1212
    %1878 = vmatpush2.bf16.msra.mxu0 %v1211
    %1879 = vmatprep.subr.bf16.mxu0 %v1204
    %1880 = vmatpush2.bf16.msra.mxu0 %v1203
    %1881 = vmatprep.subr.bf16.mxu0 %v1196
    %1882 = vmatpush2.bf16.msra.mxu0 %v1195
    %1883 = vmatprep.mubr.bf16.mxu0 %v1850
    %1884 = vmatmul.mubr.bf16.gmra.mxu0 %v1849
    %v1885 = vpop.f32.mrf.mxu0
    %v1886 = vadd.f32 0.0, %v1885
    %v1887 = vpop.f32.mrf.mxu0
    %v1888 = vadd.f32 0.0, %v1887
    %v1889 = vpop.f32.mrf.mxu0
    %v1890 = vpop.f32.mrf.mxu0
    %1891 = vdwg.mxu0
    %1892 = vmatprep.subr.bf16.mxu0 %v1190
    %1893 = vmatpush1.bf16.msra.mxu0 %v1189
    %1894 = vmatprep.subr.bf16.mxu0 %v1182
    %1895 = vmatpush1.bf16.msra.mxu0 %v1181
    %1896 = vmatprep.subr.bf16.mxu0 %v1174
    %1897 = vmatpush1.bf16.msra.mxu0 %v1173
    %1898 = vmatprep.subr.bf16.mxu0 %v1166
    %1899 = vmatpush1.bf16.msra.mxu0 %v1165
    %1900 = vmatprep.subr.bf16.mxu0 %v1158
    %1901 = vmatpush1.bf16.msra.mxu0 %v1157
    %1902 = vmatprep.subr.bf16.mxu0 %v1150
    %1903 = vmatpush1.bf16.msra.mxu0 %v1149
    %1904 = vmatprep.subr.bf16.mxu0 %v1142
    %1905 = vmatpush1.bf16.msra.mxu0 %v1141
    %1906 = vmatprep.subr.bf16.mxu0 %v1134
    %1907 = vmatpush1.bf16.msra.mxu0 %v1133
    %1908 = vmatprep.subr.bf16.mxu0 %v1254
    %1909 = vmatpush2.bf16.msra.mxu0 %v1253
    %1910 = vmatprep.subr.bf16.mxu0 %v1246
    %1911 = vmatpush2.bf16.msra.mxu0 %v1245
    %1912 = vmatprep.subr.bf16.mxu0 %v1238
    %1913 = vmatpush2.bf16.msra.mxu0 %v1237
    %1914 = vmatprep.subr.bf16.mxu0 %v1230
    %1915 = vmatpush2.bf16.msra.mxu0 %v1229
    %1916 = vmatprep.subr.bf16.mxu0 %v1222
    %1917 = vmatpush2.bf16.msra.mxu0 %v1221
    %1918 = vmatprep.subr.bf16.mxu0 %v1214
    %1919 = vmatpush2.bf16.msra.mxu0 %v1213
    %1920 = vmatprep.subr.bf16.mxu0 %v1206
    %1921 = vmatpush2.bf16.msra.mxu0 %v1205
    %1922 = vmatprep.subr.bf16.mxu0 %v1198
    %1923 = vmatpush2.bf16.msra.mxu0 %v1197
    %1924 = vmatprep.mubr.bf16.mxu0 %v1850
    %1925 = vmatmul.mubr.bf16.gmra.mxu0 %v1849
    %v1926 = vpop.f32.mrf.mxu0
    %v1927 = vadd.f32 0.0, %v1926
    %v1928 = vpop.f32.mrf.mxu0
    %v1929 = vadd.f32 0.0, %v1928
    %v1930 = vpop.f32.mrf.mxu0
    %v1931 = vpop.f32.mrf.mxu0
    %1932 = vdwg.mxu0
    %1933 = vmatprep.subr.bf16.mxu0 %v1192
    %1934 = vmatpush1.bf16.msra.mxu0 %v1191
    %1935 = vmatprep.subr.bf16.mxu0 %v1184
    %1936 = vmatpush1.bf16.msra.mxu0 %v1183
    %1937 = vmatprep.subr.bf16.mxu0 %v1176
    %1938 = vmatpush1.bf16.msra.mxu0 %v1175
    %1939 = vmatprep.subr.bf16.mxu0 %v1168
    %1940 = vmatpush1.bf16.msra.mxu0 %v1167
    %1941 = vmatprep.subr.bf16.mxu0 %v1160
    %1942 = vmatpush1.bf16.msra.mxu0 %v1159
    %1943 = vmatprep.subr.bf16.mxu0 %v1152
    %1944 = vmatpush1.bf16.msra.mxu0 %v1151
    %1945 = vmatprep.subr.bf16.mxu0 %v1144
    %1946 = vmatpush1.bf16.msra.mxu0 %v1143
    %1947 = vmatprep.subr.bf16.mxu0 %v1136
    %1948 = vmatpush1.bf16.msra.mxu0 %v1135
    %1949 = vmatprep.subr.bf16.mxu0 %v1256
    %1950 = vmatpush2.bf16.msra.mxu0 %v1255
    %1951 = vmatprep.subr.bf16.mxu0 %v1248
    %1952 = vmatpush2.bf16.msra.mxu0 %v1247
    %1953 = vmatprep.subr.bf16.mxu0 %v1240
    %1954 = vmatpush2.bf16.msra.mxu0 %v1239
    %1955 = vmatprep.subr.bf16.mxu0 %v1232
    %1956 = vmatpush2.bf16.msra.mxu0 %v1231
    %1957 = vmatprep.subr.bf16.mxu0 %v1224
    %1958 = vmatpush2.bf16.msra.mxu0 %v1223
    %1959 = vmatprep.subr.bf16.mxu0 %v1216
    %1960 = vmatpush2.bf16.msra.mxu0 %v1215
    %1961 = vmatprep.subr.bf16.mxu0 %v1208
    %1962 = vmatpush2.bf16.msra.mxu0 %v1207
    %1963 = vmatprep.subr.bf16.mxu0 %v1200
    %1964 = vmatpush2.bf16.msra.mxu0 %v1199
    %1965 = vmatprep.mubr.bf16.mxu0 %v1850
    %1966 = vmatmul.mubr.bf16.gmra.mxu0 %v1849
    %v1967 = vpop.f32.mrf.mxu0
    %v1968 = vadd.f32 0.0, %v1967
    %v1969 = vpop.f32.mrf.mxu0
    %v1970 = vadd.f32 0.0, %v1969
    %v1971 = vpop.f32.mrf.mxu0
    %v1972 = vpop.f32.mrf.mxu0
    %1973 = vdwg.mxu0
    %1974 = vmatprep.subr.bf16.mxu0 %v1194
    %1975 = vmatpush1.bf16.msra.mxu0 %v1193
    %1976 = vmatprep.subr.bf16.mxu0 %v1186
    %1977 = vmatpush1.bf16.msra.mxu0 %v1185
    %1978 = vmatprep.subr.bf16.mxu0 %v1178
    %1979 = vmatpush1.bf16.msra.mxu0 %v1177
    %1980 = vmatprep.subr.bf16.mxu0 %v1170
    %1981 = vmatpush1.bf16.msra.mxu0 %v1169
    %1982 = vmatprep.subr.bf16.mxu0 %v1162
    %1983 = vmatpush1.bf16.msra.mxu0 %v1161
    %1984 = vmatprep.subr.bf16.mxu0 %v1154
    %1985 = vmatpush1.bf16.msra.mxu0 %v1153
    %1986 = vmatprep.subr.bf16.mxu0 %v1146
    %1987 = vmatpush1.bf16.msra.mxu0 %v1145
    %1988 = vmatprep.subr.bf16.mxu0 %v1138
    %1989 = vmatpush1.bf16.msra.mxu0 %v1137
    %1990 = vmatprep.subr.bf16.mxu0 %v1258
    %1991 = vmatpush2.bf16.msra.mxu0 %v1257
    %1992 = vmatprep.subr.bf16.mxu0 %v1250
    %1993 = vmatpush2.bf16.msra.mxu0 %v1249
    %1994 = vmatprep.subr.bf16.mxu0 %v1242
    %1995 = vmatpush2.bf16.msra.mxu0 %v1241
    %1996 = vmatprep.subr.bf16.mxu0 %v1234
    %1997 = vmatpush2.bf16.msra.mxu0 %v1233
    %1998 = vmatprep.subr.bf16.mxu0 %v1226
    %1999 = vmatpush2.bf16.msra.mxu0 %v1225
    %2000 = vmatprep.subr.bf16.mxu0 %v1218
    %2001 = vmatpush2.bf16.msra.mxu0 %v1217
    %2002 = vmatprep.subr.bf16.mxu0 %v1210
    %2003 = vmatpush2.bf16.msra.mxu0 %v1209
    %2004 = vmatprep.subr.bf16.mxu0 %v1202
    %2005 = vmatpush2.bf16.msra.mxu0 %v1201
    %2006 = vmatprep.mubr.bf16.mxu0 %v1850
    %2007 = vmatmul.mubr.bf16.gmra.mxu0 %v1849
    %v2008 = vpop.f32.mrf.mxu0
    %v2009 = vadd.f32 0.0, %v2008
    %v2010 = vpop.f32.mrf.mxu0
    %v2011 = vadd.f32 0.0, %v2010
    %v2012 = vpop.f32.mrf.mxu0
    %v2013 = vpop.f32.mrf.mxu0
    %2014 = vdwg.mxu0
    %v2015 = vld [vmem:[#allocation2 + $0x80] sm:$0xff]
    %v2016 = vld [vmem:[#allocation2 + $0x88] sm:$0xff]
    %v2017 = vld [vmem:[#allocation2 + $0x90] sm:$0xff]
    %v2018 = vld [vmem:[#allocation2 + $0x98] sm:$0xff]
    %v2019 = vld [vmem:[#allocation2 + $0x160] sm:$0xff]
    %v2020 = vld [vmem:[#allocation2 + $0x168] sm:$0xff]
    %v2021 = vld [vmem:[#allocation2 + $0x170] sm:$0xff]
    %v2022 = vld [vmem:[#allocation2 + $0x178] sm:$0xff]
    %v2023 = vadd.f32 %v2015, %v1886
    %v2024 = vadd.f32 %v2016, %v1888
    %v2025 = vadd.f32 %v2017, %v1927
    %v2026 = vadd.f32 %v2018, %v1929
    %v2027 = vadd.f32 %v2019, %v1968
    %v2028 = vadd.f32 %v2020, %v1970
    %v2029 = vadd.f32 %v2021, %v2009
    %v2030 = vadd.f32 %v2022, %v2011
    %v2031 = vxor.u32 %v2023, 2147483648
    %v2032 = vxor.u32 %v2024, 2147483648
    %v2033 = vxor.u32 %v2025, 2147483648
    %v2034 = vmul.f32 %v2031, 1.442695
    %v2035 = vpow.pop %v2034
    %v2036 = vmul.f32 %v2032, 1.442695
    %v2037 = vpow.pop %v2036
    %v2038 = vmul.f32 %v2033, 1.442695
    %v2039 = vpow.pop %v2038
    %v2040 = vadd.f32 %v2035, 1.0
    %v2041 = vadd.f32 %v2037, 1.0
    %v2042 = vadd.f32 %v2039, 1.0
    %v2043 = vrcp.pop %v2040
    %v2044 = vmul.f32 1.0, %v2043
    %v2045 = vrcp.pop %v2041
    %v2046 = vmul.f32 1.0, %v2045
    %v2047 = vrcp.pop %v2042
    %v2048 = vmul.f32 1.0, %v2047
    %v2049 = vtanh.pop %v2026
    %v2050 = vtanh.pop %v2027
    %v2051 = vxor.u32 %v2028, 2147483648
    %v2052 = vxor.u32 %v2029, 2147483648
    %v2053 = vxor.u32 %v2030, 2147483648
    %v2054 = vmul.f32 %v2051, 1.442695
    %v2055 = vpow.pop %v2054
    %v2056 = vmul.f32 %v2052, 1.442695
    %v2057 = vpow.pop %v2056
    %v2058 = vmul.f32 %v2053, 1.442695
    %v2059 = vpow.pop %v2058
    %v2060 = vadd.f32 %v2055, 1.0
    %v2061 = vadd.f32 %v2057, 1.0
    %v2062 = vadd.f32 %v2059, 1.0
    %v2063 = vrcp.pop %v2060
    %v2064 = vmul.f32 1.0, %v2063
    %v2065 = vrcp.pop %v2061
    %v2066 = vmul.f32 1.0, %v2065
    %v2067 = vrcp.pop %v2062
    %v2068 = vmul.f32 1.0, %v2067
    %v2069 = vmul.f32 %v2046, %v1841
    %v2070 = vmul.f32 %v2066, %v1842
    %v2071 = vmul.f32 %v2044, %v2049
    %v2072 = vmul.f32 %v2068, %v2050
    %v2073 = vadd.f32 %v2069, %v2071
    %v2074 = vadd.f32 %v2070, %v2072
    %v2075 = vtanh.pop %v2073
    %v2076 = vtanh.pop %v2074
    %v2077 = vmul.f32 %v2048, %v2075
    %v2078 = vmul.f32 %v2064, %v2076
    %2079 = vst [vmem:[#allocation3 + $0x20] sm:$0xff] %v2077
    %2080 = vst [vmem:[#allocation3 + $0x58] sm:$0xff] %v2078
    %v2081 = vpack.c.bf16 %v2077, %v2077
    %v2082 = vpack.c.bf16 %v2078, %v2078
    %2083 = vmatprep.subr.bf16.mxu0 %v1188
    %2084 = vmatpush1.bf16.msra.mxu0 %v1187
    %2085 = vmatprep.subr.bf16.mxu0 %v1180
    %2086 = vmatpush1.bf16.msra.mxu0 %v1179
    %2087 = vmatprep.subr.bf16.mxu0 %v1172
    %2088 = vmatpush1.bf16.msra.mxu0 %v1171
    %2089 = vmatprep.subr.bf16.mxu0 %v1164
    %2090 = vmatpush1.bf16.msra.mxu0 %v1163
    %2091 = vmatprep.subr.bf16.mxu0 %v1156
    %2092 = vmatpush1.bf16.msra.mxu0 %v1155
    %2093 = vmatprep.subr.bf16.mxu0 %v1148
    %2094 = vmatpush1.bf16.msra.mxu0 %v1147
    %2095 = vmatprep.subr.bf16.mxu0 %v1140
    %2096 = vmatpush1.bf16.msra.mxu0 %v1139
    %2097 = vmatprep.subr.bf16.mxu0 %v1132
    %2098 = vmatpush1.bf16.msra.mxu0 %v1131
    %2099 = vmatprep.subr.bf16.mxu0 %v1252
    %2100 = vmatpush2.bf16.msra.mxu0 %v1251
    %2101 = vmatprep.subr.bf16.mxu0 %v1244
    %2102 = vmatpush2.bf16.msra.mxu0 %v1243
    %2103 = vmatprep.subr.bf16.mxu0 %v1236
    %2104 = vmatpush2.bf16.msra.mxu0 %v1235
    %2105 = vmatprep.subr.bf16.mxu0 %v1228
    %2106 = vmatpush2.bf16.msra.mxu0 %v1227
    %2107 = vmatprep.subr.bf16.mxu0 %v1220
    %2108 = vmatpush2.bf16.msra.mxu0 %v1219
    %2109 = vmatprep.subr.bf16.mxu0 %v1212
    %2110 = vmatpush2.bf16.msra.mxu0 %v1211
    %2111 = vmatprep.subr.bf16.mxu0 %v1204
    %2112 = vmatpush2.bf16.msra.mxu0 %v1203
    %2113 = vmatprep.subr.bf16.mxu0 %v1196
    %2114 = vmatpush2.bf16.msra.mxu0 %v1195
    %2115 = vmatprep.mubr.bf16.mxu0 %v2082
    %2116 = vmatmul.mubr.bf16.gmra.mxu0 %v2081
    %v2117 = vpop.f32.mrf.mxu0
    %v2118 = vadd.f32 0.0, %v2117
    %v2119 = vpop.f32.mrf.mxu0
    %v2120 = vadd.f32 0.0, %v2119
    %v2121 = vpop.f32.mrf.mxu0
    %v2122 = vpop.f32.mrf.mxu0
    %2123 = vdwg.mxu0
    %2124 = vmatprep.subr.bf16.mxu0 %v1190
    %2125 = vmatpush1.bf16.msra.mxu0 %v1189
    %2126 = vmatprep.subr.bf16.mxu0 %v1182
    %2127 = vmatpush1.bf16.msra.mxu0 %v1181
    %2128 = vmatprep.subr.bf16.mxu0 %v1174
    %2129 = vmatpush1.bf16.msra.mxu0 %v1173
    %2130 = vmatprep.subr.bf16.mxu0 %v1166
    %2131 = vmatpush1.bf16.msra.mxu0 %v1165
    %2132 = vmatprep.subr.bf16.mxu0 %v1158
    %2133 = vmatpush1.bf16.msra.mxu0 %v1157
    %2134 = vmatprep.subr.bf16.mxu0 %v1150
    %2135 = vmatpush1.bf16.msra.mxu0 %v1149
    %2136 = vmatprep.subr.bf16.mxu0 %v1142
    %2137 = vmatpush1.bf16.msra.mxu0 %v1141
    %2138 = vmatprep.subr.bf16.mxu0 %v1134
    %2139 = vmatpush1.bf16.msra.mxu0 %v1133
    %2140 = vmatprep.subr.bf16.mxu0 %v1254
    %2141 = vmatpush2.bf16.msra.mxu0 %v1253
    %2142 = vmatprep.subr.bf16.mxu0 %v1246
    %2143 = vmatpush2.bf16.msra.mxu0 %v1245
    %2144 = vmatprep.subr.bf16.mxu0 %v1238
    %2145 = vmatpush2.bf16.msra.mxu0 %v1237
    %2146 = vmatprep.subr.bf16.mxu0 %v1230
    %2147 = vmatpush2.bf16.msra.mxu0 %v1229
    %2148 = vmatprep.subr.bf16.mxu0 %v1222
    %2149 = vmatpush2.bf16.msra.mxu0 %v1221
    %2150 = vmatprep.subr.bf16.mxu0 %v1214
    %2151 = vmatpush2.bf16.msra.mxu0 %v1213
    %2152 = vmatprep.subr.bf16.mxu0 %v1206
    %2153 = vmatpush2.bf16.msra.mxu0 %v1205
    %2154 = vmatprep.subr.bf16.mxu0 %v1198
    %2155 = vmatpush2.bf16.msra.mxu0 %v1197
    %2156 = vmatprep.mubr.bf16.mxu0 %v2082
    %2157 = vmatmul.mubr.bf16.gmra.mxu0 %v2081
    %v2158 = vpop.f32.mrf.mxu0
    %v2159 = vadd.f32 0.0, %v2158
    %v2160 = vpop.f32.mrf.mxu0
    %v2161 = vadd.f32 0.0, %v2160
    %v2162 = vpop.f32.mrf.mxu0
    %v2163 = vpop.f32.mrf.mxu0
    %2164 = vdwg.mxu0
    %2165 = vmatprep.subr.bf16.mxu0 %v1192
    %2166 = vmatpush1.bf16.msra.mxu0 %v1191
    %2167 = vmatprep.subr.bf16.mxu0 %v1184
    %2168 = vmatpush1.bf16.msra.mxu0 %v1183
    %2169 = vmatprep.subr.bf16.mxu0 %v1176
    %2170 = vmatpush1.bf16.msra.mxu0 %v1175
    %2171 = vmatprep.subr.bf16.mxu0 %v1168
    %2172 = vmatpush1.bf16.msra.mxu0 %v1167
    %2173 = vmatprep.subr.bf16.mxu0 %v1160
    %2174 = vmatpush1.bf16.msra.mxu0 %v1159
    %2175 = vmatprep.subr.bf16.mxu0 %v1152
    %2176 = vmatpush1.bf16.msra.mxu0 %v1151
    %2177 = vmatprep.subr.bf16.mxu0 %v1144
    %2178 = vmatpush1.bf16.msra.mxu0 %v1143
    %2179 = vmatprep.subr.bf16.mxu0 %v1136
    %2180 = vmatpush1.bf16.msra.mxu0 %v1135
    %2181 = vmatprep.subr.bf16.mxu0 %v1256
    %2182 = vmatpush2.bf16.msra.mxu0 %v1255
    %2183 = vmatprep.subr.bf16.mxu0 %v1248
    %2184 = vmatpush2.bf16.msra.mxu0 %v1247
    %2185 = vmatprep.subr.bf16.mxu0 %v1240
    %2186 = vmatpush2.bf16.msra.mxu0 %v1239
    %2187 = vmatprep.subr.bf16.mxu0 %v1232
    %2188 = vmatpush2.bf16.msra.mxu0 %v1231
    %2189 = vmatprep.subr.bf16.mxu0 %v1224
    %2190 = vmatpush2.bf16.msra.mxu0 %v1223
    %2191 = vmatprep.subr.bf16.mxu0 %v1216
    %2192 = vmatpush2.bf16.msra.mxu0 %v1215
    %2193 = vmatprep.subr.bf16.mxu0 %v1208
    %2194 = vmatpush2.bf16.msra.mxu0 %v1207
    %2195 = vmatprep.subr.bf16.mxu0 %v1200
    %2196 = vmatpush2.bf16.msra.mxu0 %v1199
    %2197 = vmatprep.mubr.bf16.mxu0 %v2082
    %2198 = vmatmul.mubr.bf16.gmra.mxu0 %v2081
    %v2199 = vpop.f32.mrf.mxu0
    %v2200 = vadd.f32 0.0, %v2199
    %v2201 = vpop.f32.mrf.mxu0
    %v2202 = vadd.f32 0.0, %v2201
    %v2203 = vpop.f32.mrf.mxu0
    %v2204 = vpop.f32.mrf.mxu0
    %2205 = vdwg.mxu0
    %2206 = vmatprep.subr.bf16.mxu0 %v1194
    %2207 = vmatpush1.bf16.msra.mxu0 %v1193
    %2208 = vmatprep.subr.bf16.mxu0 %v1186
    %2209 = vmatpush1.bf16.msra.mxu0 %v1185
    %2210 = vmatprep.subr.bf16.mxu0 %v1178
    %2211 = vmatpush1.bf16.msra.mxu0 %v1177
    %2212 = vmatprep.subr.bf16.mxu0 %v1170
    %2213 = vmatpush1.bf16.msra.mxu0 %v1169
    %2214 = vmatprep.subr.bf16.mxu0 %v1162
    %2215 = vmatpush1.bf16.msra.mxu0 %v1161
    %2216 = vmatprep.subr.bf16.mxu0 %v1154
    %2217 = vmatpush1.bf16.msra.mxu0 %v1153
    %2218 = vmatprep.subr.bf16.mxu0 %v1146
    %2219 = vmatpush1.bf16.msra.mxu0 %v1145
    %2220 = vmatprep.subr.bf16.mxu0 %v1138
    %2221 = vmatpush1.bf16.msra.mxu0 %v1137
    %2222 = vmatprep.subr.bf16.mxu0 %v1258
    %2223 = vmatpush2.bf16.msra.mxu0 %v1257
    %2224 = vmatprep.subr.bf16.mxu0 %v1250
    %2225 = vmatpush2.bf16.msra.mxu0 %v1249
    %2226 = vmatprep.subr.bf16.mxu0 %v1242
    %2227 = vmatpush2.bf16.msra.mxu0 %v1241
    %2228 = vmatprep.subr.bf16.mxu0 %v1234
    %2229 = vmatpush2.bf16.msra.mxu0 %v1233
    %2230 = vmatprep.subr.bf16.mxu0 %v1226
    %2231 = vmatpush2.bf16.msra.mxu0 %v1225
    %2232 = vmatprep.subr.bf16.mxu0 %v1218
    %2233 = vmatpush2.bf16.msra.mxu0 %v1217
    %2234 = vmatprep.subr.bf16.mxu0 %v1210
    %2235 = vmatpush2.bf16.msra.mxu0 %v1209
    %2236 = vmatprep.subr.bf16.mxu0 %v1202
    %2237 = vmatpush2.bf16.msra.mxu0 %v1201
    %2238 = vmatprep.mubr.bf16.mxu0 %v2082
    %2239 = vmatmul.mubr.bf16.gmra.mxu0 %v2081
    %v2240 = vpop.f32.mrf.mxu0
    %v2241 = vadd.f32 0.0, %v2240
    %v2242 = vpop.f32.mrf.mxu0
    %v2243 = vadd.f32 0.0, %v2242
    %v2244 = vpop.f32.mrf.mxu0
    %v2245 = vpop.f32.mrf.mxu0
    %2246 = vdwg.mxu0
    %v2247 = vld [vmem:[#allocation2 + $0xc0] sm:$0xff]
    %v2248 = vld [vmem:[#allocation2 + $0xc8] sm:$0xff]
    %v2249 = vld [vmem:[#allocation2 + $0xd0] sm:$0xff]
    %v2250 = vld [vmem:[#allocation2 + $0xd8] sm:$0xff]
    %v2251 = vld [vmem:[#allocation2 + $0x120] sm:$0xff]
    %v2252 = vld [vmem:[#allocation2 + $0x128] sm:$0xff]
    %v2253 = vld [vmem:[#allocation2 + $0x130] sm:$0xff]
    %v2254 = vld [vmem:[#allocation2 + $0x138] sm:$0xff]
    %v2255 = vadd.f32 %v2247, %v2118
    %v2256 = vadd.f32 %v2248, %v2120
    %v2257 = vadd.f32 %v2249, %v2159
    %v2258 = vadd.f32 %v2250, %v2161
    %v2259 = vadd.f32 %v2251, %v2200
    %v2260 = vadd.f32 %v2252, %v2202
    %v2261 = vadd.f32 %v2253, %v2241
    %v2262 = vadd.f32 %v2254, %v2243
    %v2263 = vxor.u32 %v2255, 2147483648
    %v2264 = vxor.u32 %v2256, 2147483648
    %v2265 = vxor.u32 %v2257, 2147483648
    %v2266 = vmul.f32 %v2263, 1.442695
    %v2267 = vpow.pop %v2266
    %v2268 = vmul.f32 %v2264, 1.442695
    %v2269 = vpow.pop %v2268
    %v2270 = vmul.f32 %v2265, 1.442695
    %v2271 = vpow.pop %v2270
    %v2272 = vadd.f32 %v2267, 1.0
    %v2273 = vadd.f32 %v2269, 1.0
    %v2274 = vadd.f32 %v2271, 1.0
    %v2275 = vrcp.pop %v2272
    %v2276 = vmul.f32 1.0, %v2275
    %v2277 = vrcp.pop %v2273
    %v2278 = vmul.f32 1.0, %v2277
    %v2279 = vrcp.pop %v2274
    %v2280 = vmul.f32 1.0, %v2279
    %v2281 = vtanh.pop %v2258
    %v2282 = vtanh.pop %v2259
    %v2283 = vxor.u32 %v2260, 2147483648
    %v2284 = vxor.u32 %v2261, 2147483648
    %v2285 = vxor.u32 %v2262, 2147483648
    %v2286 = vmul.f32 %v2283, 1.442695
    %v2287 = vpow.pop %v2286
    %v2288 = vmul.f32 %v2284, 1.442695
    %v2289 = vpow.pop %v2288
    %v2290 = vmul.f32 %v2285, 1.442695
    %v2291 = vpow.pop %v2290
    %v2292 = vadd.f32 %v2287, 1.0
    %v2293 = vadd.f32 %v2289, 1.0
    %v2294 = vadd.f32 %v2291, 1.0
    %v2295 = vrcp.pop %v2292
    %v2296 = vmul.f32 1.0, %v2295
    %v2297 = vrcp.pop %v2293
    %v2298 = vmul.f32 1.0, %v2297
    %v2299 = vrcp.pop %v2294
    %v2300 = vmul.f32 1.0, %v2299
    %v2301 = vmul.f32 %v2278, %v2073
    %v2302 = vmul.f32 %v2298, %v2074
    %v2303 = vmul.f32 %v2276, %v2281
    %v2304 = vmul.f32 %v2300, %v2282
    %v2305 = vadd.f32 %v2301, %v2303
    %v2306 = vadd.f32 %v2302, %v2304
    %v2307 = vtanh.pop %v2305
    %v2308 = vtanh.pop %v2306
    %v2309 = vmul.f32 %v2280, %v2307
    %v2310 = vmul.f32 %v2296, %v2308
    %2311 = vst [vmem:[#allocation3 + $0x30] sm:$0xff] %v2309
    %2312 = vst [vmem:[#allocation3 + $0x48] sm:$0xff] %v2310
    %v2313 = vpack.c.bf16 %v2309, %v2309
    %v2314 = vpack.c.bf16 %v2310, %v2310
    %2315 = vmatprep.subr.bf16.mxu0 %v1188
    %2316 = vmatpush1.bf16.msra.mxu0 %v1187
    %2317 = vmatprep.subr.bf16.mxu0 %v1180
    %2318 = vmatpush1.bf16.msra.mxu0 %v1179
    %2319 = vmatprep.subr.bf16.mxu0 %v1172
    %2320 = vmatpush1.bf16.msra.mxu0 %v1171
    %2321 = vmatprep.subr.bf16.mxu0 %v1164
    %2322 = vmatpush1.bf16.msra.mxu0 %v1163
    %2323 = vmatprep.subr.bf16.mxu0 %v1156
    %2324 = vmatpush1.bf16.msra.mxu0 %v1155
    %2325 = vmatprep.subr.bf16.mxu0 %v1148
    %2326 = vmatpush1.bf16.msra.mxu0 %v1147
    %2327 = vmatprep.subr.bf16.mxu0 %v1140
    %2328 = vmatpush1.bf16.msra.mxu0 %v1139
    %2329 = vmatprep.subr.bf16.mxu0 %v1132
    %2330 = vmatpush1.bf16.msra.mxu0 %v1131
    %2331 = vmatprep.subr.bf16.mxu0 %v1252
    %2332 = vmatpush2.bf16.msra.mxu0 %v1251
    %2333 = vmatprep.subr.bf16.mxu0 %v1244
    %2334 = vmatpush2.bf16.msra.mxu0 %v1243
    %2335 = vmatprep.subr.bf16.mxu0 %v1236
    %2336 = vmatpush2.bf16.msra.mxu0 %v1235
    %2337 = vmatprep.subr.bf16.mxu0 %v1228
    %2338 = vmatpush2.bf16.msra.mxu0 %v1227
    %2339 = vmatprep.subr.bf16.mxu0 %v1220
    %2340 = vmatpush2.bf16.msra.mxu0 %v1219
    %2341 = vmatprep.subr.bf16.mxu0 %v1212
    %2342 = vmatpush2.bf16.msra.mxu0 %v1211
    %2343 = vmatprep.subr.bf16.mxu0 %v1204
    %2344 = vmatpush2.bf16.msra.mxu0 %v1203
    %2345 = vmatprep.subr.bf16.mxu0 %v1196
    %2346 = vmatpush2.bf16.msra.mxu0 %v1195
    %2347 = vmatprep.mubr.bf16.mxu0 %v2314
    %2348 = vmatmul.mubr.bf16.gmra.mxu0 %v2313
    %v2349 = vpop.f32.mrf.mxu0
    %v2350 = vadd.f32 0.0, %v2349
    %v2351 = vpop.f32.mrf.mxu0
    %v2352 = vadd.f32 0.0, %v2351
    %v2353 = vpop.f32.mrf.mxu0
    %v2354 = vpop.f32.mrf.mxu0
    %2355 = vdwg.mxu0
    %2356 = vmatprep.subr.bf16.mxu0 %v1190
    %2357 = vmatpush1.bf16.msra.mxu0 %v1189
    %2358 = vmatprep.subr.bf16.mxu0 %v1182
    %2359 = vmatpush1.bf16.msra.mxu0 %v1181
    %2360 = vmatprep.subr.bf16.mxu0 %v1174
    %2361 = vmatpush1.bf16.msra.mxu0 %v1173
    %2362 = vmatprep.subr.bf16.mxu0 %v1166
    %2363 = vmatpush1.bf16.msra.mxu0 %v1165
    %2364 = vmatprep.subr.bf16.mxu0 %v1158
    %2365 = vmatpush1.bf16.msra.mxu0 %v1157
    %2366 = vmatprep.subr.bf16.mxu0 %v1150
    %2367 = vmatpush1.bf16.msra.mxu0 %v1149
    %2368 = vmatprep.subr.bf16.mxu0 %v1142
    %2369 = vmatpush1.bf16.msra.mxu0 %v1141
    %2370 = vmatprep.subr.bf16.mxu0 %v1134
    %2371 = vmatpush1.bf16.msra.mxu0 %v1133
    %2372 = vmatprep.subr.bf16.mxu0 %v1254
    %2373 = vmatpush2.bf16.msra.mxu0 %v1253
    %2374 = vmatprep.subr.bf16.mxu0 %v1246
    %2375 = vmatpush2.bf16.msra.mxu0 %v1245
    %2376 = vmatprep.subr.bf16.mxu0 %v1238
    %2377 = vmatpush2.bf16.msra.mxu0 %v1237
    %2378 = vmatprep.subr.bf16.mxu0 %v1230
    %2379 = vmatpush2.bf16.msra.mxu0 %v1229
    %2380 = vmatprep.subr.bf16.mxu0 %v1222
    %2381 = vmatpush2.bf16.msra.mxu0 %v1221
    %2382 = vmatprep.subr.bf16.mxu0 %v1214
    %2383 = vmatpush2.bf16.msra.mxu0 %v1213
    %2384 = vmatprep.subr.bf16.mxu0 %v1206
    %2385 = vmatpush2.bf16.msra.mxu0 %v1205
    %2386 = vmatprep.subr.bf16.mxu0 %v1198
    %2387 = vmatpush2.bf16.msra.mxu0 %v1197
    %2388 = vmatprep.mubr.bf16.mxu0 %v2314
    %2389 = vmatmul.mubr.bf16.gmra.mxu0 %v2313
    %v2390 = vpop.f32.mrf.mxu0
    %v2391 = vadd.f32 0.0, %v2390
    %v2392 = vpop.f32.mrf.mxu0
    %v2393 = vadd.f32 0.0, %v2392
    %v2394 = vpop.f32.mrf.mxu0
    %v2395 = vpop.f32.mrf.mxu0
    %2396 = vdwg.mxu0
    %2397 = vmatprep.subr.bf16.mxu0 %v1192
    %2398 = vmatpush1.bf16.msra.mxu0 %v1191
    %2399 = vmatprep.subr.bf16.mxu0 %v1184
    %2400 = vmatpush1.bf16.msra.mxu0 %v1183
    %2401 = vmatprep.subr.bf16.mxu0 %v1176
    %2402 = vmatpush1.bf16.msra.mxu0 %v1175
    %2403 = vmatprep.subr.bf16.mxu0 %v1168
    %2404 = vmatpush1.bf16.msra.mxu0 %v1167
    %2405 = vmatprep.subr.bf16.mxu0 %v1160
    %2406 = vmatpush1.bf16.msra.mxu0 %v1159
    %2407 = vmatprep.subr.bf16.mxu0 %v1152
    %2408 = vmatpush1.bf16.msra.mxu0 %v1151
    %2409 = vmatprep.subr.bf16.mxu0 %v1144
    %2410 = vmatpush1.bf16.msra.mxu0 %v1143
    %2411 = vmatprep.subr.bf16.mxu0 %v1136
    %2412 = vmatpush1.bf16.msra.mxu0 %v1135
    %2413 = vmatprep.subr.bf16.mxu0 %v1256
    %2414 = vmatpush2.bf16.msra.mxu0 %v1255
    %2415 = vmatprep.subr.bf16.mxu0 %v1248
    %2416 = vmatpush2.bf16.msra.mxu0 %v1247
    %2417 = vmatprep.subr.bf16.mxu0 %v1240
    %2418 = vmatpush2.bf16.msra.mxu0 %v1239
    %2419 = vmatprep.subr.bf16.mxu0 %v1232
    %2420 = vmatpush2.bf16.msra.mxu0 %v1231
    %2421 = vmatprep.subr.bf16.mxu0 %v1224
    %2422 = vmatpush2.bf16.msra.mxu0 %v1223
    %2423 = vmatprep.subr.bf16.mxu0 %v1216
    %2424 = vmatpush2.bf16.msra.mxu0 %v1215
    %2425 = vmatprep.subr.bf16.mxu0 %v1208
    %2426 = vmatpush2.bf16.msra.mxu0 %v1207
    %2427 = vmatprep.subr.bf16.mxu0 %v1200
    %2428 = vmatpush2.bf16.msra.mxu0 %v1199
    %2429 = vmatprep.mubr.bf16.mxu0 %v2314
    %2430 = vmatmul.mubr.bf16.gmra.mxu0 %v2313
    %v2431 = vpop.f32.mrf.mxu0
    %v2432 = vadd.f32 0.0, %v2431
    %v2433 = vpop.f32.mrf.mxu0
    %v2434 = vadd.f32 0.0, %v2433
    %v2435 = vpop.f32.mrf.mxu0
    %v2436 = vpop.f32.mrf.mxu0
    %2437 = vdwg.mxu0
    %2438 = vmatprep.subr.bf16.mxu0 %v1194
    %2439 = vmatpush1.bf16.msra.mxu0 %v1193
    %2440 = vmatprep.subr.bf16.mxu0 %v1186
    %2441 = vmatpush1.bf16.msra.mxu0 %v1185
    %2442 = vmatprep.subr.bf16.mxu0 %v1178
    %2443 = vmatpush1.bf16.msra.mxu0 %v1177
    %2444 = vmatprep.subr.bf16.mxu0 %v1170
    %2445 = vmatpush1.bf16.msra.mxu0 %v1169
    %2446 = vmatprep.subr.bf16.mxu0 %v1162
    %2447 = vmatpush1.bf16.msra.mxu0 %v1161
    %2448 = vmatprep.subr.bf16.mxu0 %v1154
    %2449 = vmatpush1.bf16.msra.mxu0 %v1153
    %2450 = vmatprep.subr.bf16.mxu0 %v1146
    %2451 = vmatpush1.bf16.msra.mxu0 %v1145
    %2452 = vmatprep.subr.bf16.mxu0 %v1138
    %2453 = vmatpush1.bf16.msra.mxu0 %v1137
    %2454 = vmatprep.subr.bf16.mxu0 %v1258
    %2455 = vmatpush2.bf16.msra.mxu0 %v1257
    %2456 = vmatprep.subr.bf16.mxu0 %v1250
    %2457 = vmatpush2.bf16.msra.mxu0 %v1249
    %2458 = vmatprep.subr.bf16.mxu0 %v1242
    %2459 = vmatpush2.bf16.msra.mxu0 %v1241
    %2460 = vmatprep.subr.bf16.mxu0 %v1234
    %2461 = vmatpush2.bf16.msra.mxu0 %v1233
    %2462 = vmatprep.subr.bf16.mxu0 %v1226
    %2463 = vmatpush2.bf16.msra.mxu0 %v1225
    %2464 = vmatprep.subr.bf16.mxu0 %v1218
    %2465 = vmatpush2.bf16.msra.mxu0 %v1217
    %2466 = vmatprep.subr.bf16.mxu0 %v1210
    %2467 = vmatpush2.bf16.msra.mxu0 %v1209
    %2468 = vmatprep.subr.bf16.mxu0 %v1202
    %2469 = vmatpush2.bf16.msra.mxu0 %v1201
    %2470 = vmatprep.mubr.bf16.mxu0 %v2314
    %2471 = vmatmul.mubr.bf16.gmra.mxu0 %v2313
    %v2472 = vpop.f32.mrf.mxu0
    %v2473 = vadd.f32 0.0, %v2472
    %v2474 = vpop.f32.mrf.mxu0
    %v2475 = vadd.f32 0.0, %v2474
    %v2476 = vpop.f32.mrf.mxu0
    %v2477 = vpop.f32.mrf.mxu0
    %2478 = vdwg.mxu0
    %v2479 = vld [vmem:[#allocation2 + $0x100] sm:$0xff]
    %v2480 = vld [vmem:[#allocation2 + $0x108] sm:$0xff]
    %v2481 = vld [vmem:[#allocation2 + $0x110] sm:$0xff]
    %v2482 = vld [vmem:[#allocation2 + $0x118] sm:$0xff]
    %v2483 = vld [vmem:[#allocation2 + $0xe0] sm:$0xff]
    %v2484 = vld [vmem:[#allocation2 + $0xe8] sm:$0xff]
    %v2485 = vld [vmem:[#allocation2 + $0xf0] sm:$0xff]
    %v2486 = vld [vmem:[#allocation2 + $0xf8] sm:$0xff]
    %v2487 = vadd.f32 %v2479, %v2350
    %v2488 = vadd.f32 %v2480, %v2352
    %v2489 = vadd.f32 %v2481, %v2391
    %v2490 = vadd.f32 %v2482, %v2393
    %v2491 = vadd.f32 %v2483, %v2432
    %v2492 = vadd.f32 %v2484, %v2434
    %v2493 = vadd.f32 %v2485, %v2473
    %v2494 = vadd.f32 %v2486, %v2475
    %v2495 = vxor.u32 %v2487, 2147483648
    %v2496 = vxor.u32 %v2488, 2147483648
    %v2497 = vxor.u32 %v2489, 2147483648
    %v2498 = vmul.f32 %v2495, 1.442695
    %v2499 = vpow.pop %v2498
    %v2500 = vmul.f32 %v2496, 1.442695
    %v2501 = vpow.pop %v2500
    %v2502 = vmul.f32 %v2497, 1.442695
    %v2503 = vpow.pop %v2502
    %v2504 = vadd.f32 %v2499, 1.0
    %v2505 = vadd.f32 %v2501, 1.0
    %v2506 = vadd.f32 %v2503, 1.0
    %v2507 = vrcp.pop %v2504
    %v2508 = vmul.f32 1.0, %v2507
    %v2509 = vrcp.pop %v2505
    %v2510 = vmul.f32 1.0, %v2509
    %v2511 = vrcp.pop %v2506
    %v2512 = vmul.f32 1.0, %v2511
    %v2513 = vtanh.pop %v2490
    %v2514 = vtanh.pop %v2491
    %v2515 = vxor.u32 %v2492, 2147483648
    %v2516 = vxor.u32 %v2493, 2147483648
    %v2517 = vxor.u32 %v2494, 2147483648
    %v2518 = vmul.f32 %v2515, 1.442695
    %v2519 = vpow.pop %v2518
    %v2520 = vmul.f32 %v2516, 1.442695
    %v2521 = vpow.pop %v2520
    %v2522 = vmul.f32 %v2517, 1.442695
    %v2523 = vpow.pop %v2522
    %v2524 = vadd.f32 %v2519, 1.0
    %v2525 = vadd.f32 %v2521, 1.0
    %v2526 = vadd.f32 %v2523, 1.0
    %v2527 = vrcp.pop %v2524
    %v2528 = vmul.f32 1.0, %v2527
    %v2529 = vrcp.pop %v2525
    %v2530 = vmul.f32 1.0, %v2529
    %v2531 = vrcp.pop %v2526
    %v2532 = vmul.f32 1.0, %v2531
    %v2533 = vmul.f32 %v2510, %v2305
    %v2534 = vmul.f32 %v2530, %v2306
    %v2535 = vmul.f32 %v2508, %v2513
    %v2536 = vmul.f32 %v2532, %v2514
    %v2537 = vadd.f32 %v2533, %v2535
    %v2538 = vadd.f32 %v2534, %v2536
    %v2539 = vtanh.pop %v2537
    %v2540 = vtanh.pop %v2538
    %v2541 = vmul.f32 %v2512, %v2539
    %v2542 = vmul.f32 %v2528, %v2540
    %2543 = vst [vmem:[#allocation3 + $0x40] sm:$0xff] %v2541
    %2544 = vst [vmem:[#allocation3 + $0x38] sm:$0xff] %v2542
    %v2545 = vpack.c.bf16 %v2541, %v2541
    %v2546 = vpack.c.bf16 %v2542, %v2542
    %2547 = vmatprep.subr.bf16.mxu0 %v1188
    %2548 = vmatpush1.bf16.msra.mxu0 %v1187
    %2549 = vmatprep.subr.bf16.mxu0 %v1180
    %2550 = vmatpush1.bf16.msra.mxu0 %v1179
    %2551 = vmatprep.subr.bf16.mxu0 %v1172
    %2552 = vmatpush1.bf16.msra.mxu0 %v1171
    %2553 = vmatprep.subr.bf16.mxu0 %v1164
    %2554 = vmatpush1.bf16.msra.mxu0 %v1163
    %2555 = vmatprep.subr.bf16.mxu0 %v1156
    %2556 = vmatpush1.bf16.msra.mxu0 %v1155
    %2557 = vmatprep.subr.bf16.mxu0 %v1148
    %2558 = vmatpush1.bf16.msra.mxu0 %v1147
    %2559 = vmatprep.subr.bf16.mxu0 %v1140
    %2560 = vmatpush1.bf16.msra.mxu0 %v1139
    %2561 = vmatprep.subr.bf16.mxu0 %v1132
    %2562 = vmatpush1.bf16.msra.mxu0 %v1131
    %2563 = vmatprep.subr.bf16.mxu0 %v1252
    %2564 = vmatpush2.bf16.msra.mxu0 %v1251
    %2565 = vmatprep.subr.bf16.mxu0 %v1244
    %2566 = vmatpush2.bf16.msra.mxu0 %v1243
    %2567 = vmatprep.subr.bf16.mxu0 %v1236
    %2568 = vmatpush2.bf16.msra.mxu0 %v1235
    %2569 = vmatprep.subr.bf16.mxu0 %v1228
    %2570 = vmatpush2.bf16.msra.mxu0 %v1227
    %2571 = vmatprep.subr.bf16.mxu0 %v1220
    %2572 = vmatpush2.bf16.msra.mxu0 %v1219
    %2573 = vmatprep.subr.bf16.mxu0 %v1212
    %2574 = vmatpush2.bf16.msra.mxu0 %v1211
    %2575 = vmatprep.subr.bf16.mxu0 %v1204
    %2576 = vmatpush2.bf16.msra.mxu0 %v1203
    %2577 = vmatprep.subr.bf16.mxu0 %v1196
    %2578 = vmatpush2.bf16.msra.mxu0 %v1195
    %2579 = vmatprep.mubr.bf16.mxu0 %v2546
    %2580 = vmatmul.mubr.bf16.gmra.mxu0 %v2545
    %v2581 = vpop.f32.mrf.mxu0
    %v2582 = vadd.f32 0.0, %v2581
    %v2583 = vpop.f32.mrf.mxu0
    %v2584 = vadd.f32 0.0, %v2583
    %v2585 = vpop.f32.mrf.mxu0
    %v2586 = vpop.f32.mrf.mxu0
    %2587 = vdwg.mxu0
    %2588 = vmatprep.subr.bf16.mxu0 %v1190
    %2589 = vmatpush1.bf16.msra.mxu0 %v1189
    %2590 = vmatprep.subr.bf16.mxu0 %v1182
    %2591 = vmatpush1.bf16.msra.mxu0 %v1181
    %2592 = vmatprep.subr.bf16.mxu0 %v1174
    %2593 = vmatpush1.bf16.msra.mxu0 %v1173
    %2594 = vmatprep.subr.bf16.mxu0 %v1166
    %2595 = vmatpush1.bf16.msra.mxu0 %v1165
    %2596 = vmatprep.subr.bf16.mxu0 %v1158
    %2597 = vmatpush1.bf16.msra.mxu0 %v1157
    %2598 = vmatprep.subr.bf16.mxu0 %v1150
    %2599 = vmatpush1.bf16.msra.mxu0 %v1149
    %2600 = vmatprep.subr.bf16.mxu0 %v1142
    %2601 = vmatpush1.bf16.msra.mxu0 %v1141
    %2602 = vmatprep.subr.bf16.mxu0 %v1134
    %2603 = vmatpush1.bf16.msra.mxu0 %v1133
    %2604 = vmatprep.subr.bf16.mxu0 %v1254
    %2605 = vmatpush2.bf16.msra.mxu0 %v1253
    %2606 = vmatprep.subr.bf16.mxu0 %v1246
    %2607 = vmatpush2.bf16.msra.mxu0 %v1245
    %2608 = vmatprep.subr.bf16.mxu0 %v1238
    %2609 = vmatpush2.bf16.msra.mxu0 %v1237
    %2610 = vmatprep.subr.bf16.mxu0 %v1230
    %2611 = vmatpush2.bf16.msra.mxu0 %v1229
    %2612 = vmatprep.subr.bf16.mxu0 %v1222
    %2613 = vmatpush2.bf16.msra.mxu0 %v1221
    %2614 = vmatprep.subr.bf16.mxu0 %v1214
    %2615 = vmatpush2.bf16.msra.mxu0 %v1213
    %2616 = vmatprep.subr.bf16.mxu0 %v1206
    %2617 = vmatpush2.bf16.msra.mxu0 %v1205
    %2618 = vmatprep.subr.bf16.mxu0 %v1198
    %2619 = vmatpush2.bf16.msra.mxu0 %v1197
    %2620 = vmatprep.mubr.bf16.mxu0 %v2546
    %2621 = vmatmul.mubr.bf16.gmra.mxu0 %v2545
    %v2622 = vpop.f32.mrf.mxu0
    %v2623 = vadd.f32 0.0, %v2622
    %v2624 = vpop.f32.mrf.mxu0
    %v2625 = vadd.f32 0.0, %v2624
    %v2626 = vpop.f32.mrf.mxu0
    %v2627 = vpop.f32.mrf.mxu0
    %2628 = vdwg.mxu0
    %2629 = vmatprep.subr.bf16.mxu0 %v1192
    %2630 = vmatpush1.bf16.msra.mxu0 %v1191
    %2631 = vmatprep.subr.bf16.mxu0 %v1184
    %2632 = vmatpush1.bf16.msra.mxu0 %v1183
    %2633 = vmatprep.subr.bf16.mxu0 %v1176
    %2634 = vmatpush1.bf16.msra.mxu0 %v1175
    %2635 = vmatprep.subr.bf16.mxu0 %v1168
    %2636 = vmatpush1.bf16.msra.mxu0 %v1167
    %2637 = vmatprep.subr.bf16.mxu0 %v1160
    %2638 = vmatpush1.bf16.msra.mxu0 %v1159
    %2639 = vmatprep.subr.bf16.mxu0 %v1152
    %2640 = vmatpush1.bf16.msra.mxu0 %v1151
    %2641 = vmatprep.subr.bf16.mxu0 %v1144
    %2642 = vmatpush1.bf16.msra.mxu0 %v1143
    %2643 = vmatprep.subr.bf16.mxu0 %v1136
    %2644 = vmatpush1.bf16.msra.mxu0 %v1135
    %2645 = vmatprep.subr.bf16.mxu0 %v1256
    %2646 = vmatpush2.bf16.msra.mxu0 %v1255
    %2647 = vmatprep.subr.bf16.mxu0 %v1248
    %2648 = vmatpush2.bf16.msra.mxu0 %v1247
    %2649 = vmatprep.subr.bf16.mxu0 %v1240
    %2650 = vmatpush2.bf16.msra.mxu0 %v1239
    %2651 = vmatprep.subr.bf16.mxu0 %v1232
    %2652 = vmatpush2.bf16.msra.mxu0 %v1231
    %2653 = vmatprep.subr.bf16.mxu0 %v1224
    %2654 = vmatpush2.bf16.msra.mxu0 %v1223
    %2655 = vmatprep.subr.bf16.mxu0 %v1216
    %2656 = vmatpush2.bf16.msra.mxu0 %v1215
    %2657 = vmatprep.subr.bf16.mxu0 %v1208
    %2658 = vmatpush2.bf16.msra.mxu0 %v1207
    %2659 = vmatprep.subr.bf16.mxu0 %v1200
    %2660 = vmatpush2.bf16.msra.mxu0 %v1199
    %2661 = vmatprep.mubr.bf16.mxu0 %v2546
    %2662 = vmatmul.mubr.bf16.gmra.mxu0 %v2545
    %v2663 = vpop.f32.mrf.mxu0
    %v2664 = vadd.f32 0.0, %v2663
    %v2665 = vpop.f32.mrf.mxu0
    %v2666 = vadd.f32 0.0, %v2665
    %v2667 = vpop.f32.mrf.mxu0
    %v2668 = vpop.f32.mrf.mxu0
    %2669 = vdwg.mxu0
    %2670 = vmatprep.subr.bf16.mxu0 %v1194
    %2671 = vmatpush1.bf16.msra.mxu0 %v1193
    %2672 = vmatprep.subr.bf16.mxu0 %v1186
    %2673 = vmatpush1.bf16.msra.mxu0 %v1185
    %2674 = vmatprep.subr.bf16.mxu0 %v1178
    %2675 = vmatpush1.bf16.msra.mxu0 %v1177
    %2676 = vmatprep.subr.bf16.mxu0 %v1170
    %2677 = vmatpush1.bf16.msra.mxu0 %v1169
    %2678 = vmatprep.subr.bf16.mxu0 %v1162
    %2679 = vmatpush1.bf16.msra.mxu0 %v1161
    %2680 = vmatprep.subr.bf16.mxu0 %v1154
    %2681 = vmatpush1.bf16.msra.mxu0 %v1153
    %2682 = vmatprep.subr.bf16.mxu0 %v1146
    %2683 = vmatpush1.bf16.msra.mxu0 %v1145
    %2684 = vmatprep.subr.bf16.mxu0 %v1138
    %2685 = vmatpush1.bf16.msra.mxu0 %v1137
    %2686 = vmatprep.subr.bf16.mxu0 %v1258
    %2687 = vmatpush2.bf16.msra.mxu0 %v1257
    %2688 = vmatprep.subr.bf16.mxu0 %v1250
    %2689 = vmatpush2.bf16.msra.mxu0 %v1249
    %2690 = vmatprep.subr.bf16.mxu0 %v1242
    %2691 = vmatpush2.bf16.msra.mxu0 %v1241
    %2692 = vmatprep.subr.bf16.mxu0 %v1234
    %2693 = vmatpush2.bf16.msra.mxu0 %v1233
    %2694 = vmatprep.subr.bf16.mxu0 %v1226
    %2695 = vmatpush2.bf16.msra.mxu0 %v1225
    %2696 = vmatprep.subr.bf16.mxu0 %v1218
    %2697 = vmatpush2.bf16.msra.mxu0 %v1217
    %2698 = vmatprep.subr.bf16.mxu0 %v1210
    %2699 = vmatpush2.bf16.msra.mxu0 %v1209
    %2700 = vmatprep.subr.bf16.mxu0 %v1202
    %2701 = vmatpush2.bf16.msra.mxu0 %v1201
    %2702 = vmatprep.mubr.bf16.mxu0 %v2546
    %2703 = vmatmul.mubr.bf16.gmra.mxu0 %v2545
    %v2704 = vpop.f32.mrf.mxu0
    %v2705 = vadd.f32 0.0, %v2704
    %v2706 = vpop.f32.mrf.mxu0
    %v2707 = vadd.f32 0.0, %v2706
    %v2708 = vpop.f32.mrf.mxu0
    %v2709 = vpop.f32.mrf.mxu0
    %2710 = vdwg.mxu0
    %v2711 = vld [vmem:[#allocation2 + $0x140] sm:$0xff]
    %v2712 = vld [vmem:[#allocation2 + $0x148] sm:$0xff]
    %v2713 = vld [vmem:[#allocation2 + $0x150] sm:$0xff]
    %v2714 = vld [vmem:[#allocation2 + $0x158] sm:$0xff]
    %v2715 = vld [vmem:[#allocation2 + $0xa0] sm:$0xff]
    %v2716 = vld [vmem:[#allocation2 + $0xa8] sm:$0xff]
    %v2717 = vld [vmem:[#allocation2 + $0xb0] sm:$0xff]
    %v2718 = vld [vmem:[#allocation2 + $0xb8] sm:$0xff]
    %v2719 = vadd.f32 %v2711, %v2582
    %v2720 = vadd.f32 %v2712, %v2584
    %v2721 = vadd.f32 %v2713, %v2623
    %v2722 = vadd.f32 %v2714, %v2625
    %v2723 = vadd.f32 %v2715, %v2664
    %v2724 = vadd.f32 %v2716, %v2666
    %v2725 = vadd.f32 %v2717, %v2705
    %v2726 = vadd.f32 %v2718, %v2707
    %v2727 = vxor.u32 %v2719, 2147483648
    %v2728 = vxor.u32 %v2720, 2147483648
    %v2729 = vxor.u32 %v2721, 2147483648
    %v2730 = vmul.f32 %v2727, 1.442695
    %v2731 = vpow.pop %v2730
    %v2732 = vmul.f32 %v2728, 1.442695
    %v2733 = vpow.pop %v2732
    %v2734 = vmul.f32 %v2729, 1.442695
    %v2735 = vpow.pop %v2734
    %v2736 = vadd.f32 %v2731, 1.0
    %v2737 = vadd.f32 %v2733, 1.0
    %v2738 = vadd.f32 %v2735, 1.0
    %v2739 = vrcp.pop %v2736
    %v2740 = vmul.f32 1.0, %v2739
    %v2741 = vrcp.pop %v2737
    %v2742 = vmul.f32 1.0, %v2741
    %v2743 = vrcp.pop %v2738
    %v2744 = vmul.f32 1.0, %v2743
    %v2745 = vtanh.pop %v2722
    %v2746 = vtanh.pop %v2723
    %v2747 = vxor.u32 %v2724, 2147483648
    %v2748 = vxor.u32 %v2725, 2147483648
    %v2749 = vxor.u32 %v2726, 2147483648
    %v2750 = vmul.f32 %v2747, 1.442695
    %v2751 = vpow.pop %v2750
    %v2752 = vmul.f32 %v2748, 1.442695
    %v2753 = vpow.pop %v2752
    %v2754 = vmul.f32 %v2749, 1.442695
    %v2755 = vpow.pop %v2754
    %v2756 = vadd.f32 %v2751, 1.0
    %v2757 = vadd.f32 %v2753, 1.0
    %v2758 = vadd.f32 %v2755, 1.0
    %v2759 = vrcp.pop %v2756
    %v2760 = vmul.f32 1.0, %v2759
    %v2761 = vrcp.pop %v2757
    %v2762 = vmul.f32 1.0, %v2761
    %v2763 = vrcp.pop %v2758
    %v2764 = vmul.f32 1.0, %v2763
    %v2765 = vmul.f32 %v2742, %v2537
    %v2766 = vmul.f32 %v2762, %v2538
    %v2767 = vmul.f32 %v2740, %v2745
    %v2768 = vmul.f32 %v2764, %v2746
    %v2769 = vadd.f32 %v2765, %v2767
    %v2770 = vadd.f32 %v2766, %v2768
    %v2771 = vtanh.pop %v2769
    %v2772 = vtanh.pop %v2770
    %v2773 = vmul.f32 %v2744, %v2771
    %v2774 = vmul.f32 %v2760, %v2772
    %2775 = vst [vmem:[#allocation3 + $0x50] sm:$0xff] %v2773
    %2776 = vst [vmem:[#allocation3 + $0x28] sm:$0xff] %v2774
    %v2777 = vpack.c.bf16 %v2773, %v2773
    %v2778 = vpack.c.bf16 %v2774, %v2774
    %2779 = vmatprep.subr.bf16.mxu0 %v1188
    %2780 = vmatpush1.bf16.msra.mxu0 %v1187
    %2781 = vmatprep.subr.bf16.mxu0 %v1180
    %2782 = vmatpush1.bf16.msra.mxu0 %v1179
    %2783 = vmatprep.subr.bf16.mxu0 %v1172
    %2784 = vmatpush1.bf16.msra.mxu0 %v1171
    %2785 = vmatprep.subr.bf16.mxu0 %v1164
    %2786 = vmatpush1.bf16.msra.mxu0 %v1163
    %2787 = vmatprep.subr.bf16.mxu0 %v1156
    %2788 = vmatpush1.bf16.msra.mxu0 %v1155
    %2789 = vmatprep.subr.bf16.mxu0 %v1148
    %2790 = vmatpush1.bf16.msra.mxu0 %v1147
    %2791 = vmatprep.subr.bf16.mxu0 %v1140
    %2792 = vmatpush1.bf16.msra.mxu0 %v1139
    %2793 = vmatprep.subr.bf16.mxu0 %v1132
    %2794 = vmatpush1.bf16.msra.mxu0 %v1131
    %2795 = vmatprep.subr.bf16.mxu0 %v1252
    %2796 = vmatpush2.bf16.msra.mxu0 %v1251
    %2797 = vmatprep.subr.bf16.mxu0 %v1244
    %2798 = vmatpush2.bf16.msra.mxu0 %v1243
    %2799 = vmatprep.subr.bf16.mxu0 %v1236
    %2800 = vmatpush2.bf16.msra.mxu0 %v1235
    %2801 = vmatprep.subr.bf16.mxu0 %v1228
    %2802 = vmatpush2.bf16.msra.mxu0 %v1227
    %2803 = vmatprep.subr.bf16.mxu0 %v1220
    %2804 = vmatpush2.bf16.msra.mxu0 %v1219
    %2805 = vmatprep.subr.bf16.mxu0 %v1212
    %2806 = vmatpush2.bf16.msra.mxu0 %v1211
    %2807 = vmatprep.subr.bf16.mxu0 %v1204
    %2808 = vmatpush2.bf16.msra.mxu0 %v1203
    %2809 = vmatprep.subr.bf16.mxu0 %v1196
    %2810 = vmatpush2.bf16.msra.mxu0 %v1195
    %2811 = vmatprep.mubr.bf16.mxu0 %v2778
    %2812 = vmatmul.mubr.bf16.gmra.mxu0 %v2777
    %v2813 = vpop.f32.mrf.mxu0
    %v2814 = vadd.f32 0.0, %v2813
    %v2815 = vpop.f32.mrf.mxu0
    %v2816 = vadd.f32 0.0, %v2815
    %v2817 = vpop.f32.mrf.mxu0
    %v2818 = vpop.f32.mrf.mxu0
    %2819 = vdwg.mxu0
    %2820 = vmatprep.subr.bf16.mxu0 %v1190
    %2821 = vmatpush1.bf16.msra.mxu0 %v1189
    %2822 = vmatprep.subr.bf16.mxu0 %v1182
    %2823 = vmatpush1.bf16.msra.mxu0 %v1181
    %2824 = vmatprep.subr.bf16.mxu0 %v1174
    %2825 = vmatpush1.bf16.msra.mxu0 %v1173
    %2826 = vmatprep.subr.bf16.mxu0 %v1166
    %2827 = vmatpush1.bf16.msra.mxu0 %v1165
    %2828 = vmatprep.subr.bf16.mxu0 %v1158
    %2829 = vmatpush1.bf16.msra.mxu0 %v1157
    %2830 = vmatprep.subr.bf16.mxu0 %v1150
    %2831 = vmatpush1.bf16.msra.mxu0 %v1149
    %2832 = vmatprep.subr.bf16.mxu0 %v1142
    %2833 = vmatpush1.bf16.msra.mxu0 %v1141
    %2834 = vmatprep.subr.bf16.mxu0 %v1134
    %2835 = vmatpush1.bf16.msra.mxu0 %v1133
    %2836 = vmatprep.subr.bf16.mxu0 %v1254
    %2837 = vmatpush2.bf16.msra.mxu0 %v1253
    %2838 = vmatprep.subr.bf16.mxu0 %v1246
    %2839 = vmatpush2.bf16.msra.mxu0 %v1245
    %2840 = vmatprep.subr.bf16.mxu0 %v1238
    %2841 = vmatpush2.bf16.msra.mxu0 %v1237
    %2842 = vmatprep.subr.bf16.mxu0 %v1230
    %2843 = vmatpush2.bf16.msra.mxu0 %v1229
    %2844 = vmatprep.subr.bf16.mxu0 %v1222
    %2845 = vmatpush2.bf16.msra.mxu0 %v1221
    %2846 = vmatprep.subr.bf16.mxu0 %v1214
    %2847 = vmatpush2.bf16.msra.mxu0 %v1213
    %2848 = vmatprep.subr.bf16.mxu0 %v1206
    %2849 = vmatpush2.bf16.msra.mxu0 %v1205
    %2850 = vmatprep.subr.bf16.mxu0 %v1198
    %2851 = vmatpush2.bf16.msra.mxu0 %v1197
    %2852 = vmatprep.mubr.bf16.mxu0 %v2778
    %2853 = vmatmul.mubr.bf16.gmra.mxu0 %v2777
    %v2854 = vpop.f32.mrf.mxu0
    %v2855 = vadd.f32 0.0, %v2854
    %v2856 = vpop.f32.mrf.mxu0
    %v2857 = vadd.f32 0.0, %v2856
    %v2858 = vpop.f32.mrf.mxu0
    %v2859 = vpop.f32.mrf.mxu0
    %2860 = vdwg.mxu0
    %2861 = vmatprep.subr.bf16.mxu0 %v1192
    %2862 = vmatpush1.bf16.msra.mxu0 %v1191
    %2863 = vmatprep.subr.bf16.mxu0 %v1184
    %2864 = vmatpush1.bf16.msra.mxu0 %v1183
    %2865 = vmatprep.subr.bf16.mxu0 %v1176
    %2866 = vmatpush1.bf16.msra.mxu0 %v1175
    %2867 = vmatprep.subr.bf16.mxu0 %v1168
    %2868 = vmatpush1.bf16.msra.mxu0 %v1167
    %2869 = vmatprep.subr.bf16.mxu0 %v1160
    %2870 = vmatpush1.bf16.msra.mxu0 %v1159
    %2871 = vmatprep.subr.bf16.mxu0 %v1152
    %2872 = vmatpush1.bf16.msra.mxu0 %v1151
    %2873 = vmatprep.subr.bf16.mxu0 %v1144
    %2874 = vmatpush1.bf16.msra.mxu0 %v1143
    %2875 = vmatprep.subr.bf16.mxu0 %v1136
    %2876 = vmatpush1.bf16.msra.mxu0 %v1135
    %2877 = vmatprep.subr.bf16.mxu0 %v1256
    %2878 = vmatpush2.bf16.msra.mxu0 %v1255
    %2879 = vmatprep.subr.bf16.mxu0 %v1248
    %2880 = vmatpush2.bf16.msra.mxu0 %v1247
    %2881 = vmatprep.subr.bf16.mxu0 %v1240
    %2882 = vmatpush2.bf16.msra.mxu0 %v1239
    %2883 = vmatprep.subr.bf16.mxu0 %v1232
    %2884 = vmatpush2.bf16.msra.mxu0 %v1231
    %2885 = vmatprep.subr.bf16.mxu0 %v1224
    %2886 = vmatpush2.bf16.msra.mxu0 %v1223
    %2887 = vmatprep.subr.bf16.mxu0 %v1216
    %2888 = vmatpush2.bf16.msra.mxu0 %v1215
    %2889 = vmatprep.subr.bf16.mxu0 %v1208
    %2890 = vmatpush2.bf16.msra.mxu0 %v1207
    %2891 = vmatprep.subr.bf16.mxu0 %v1200
    %2892 = vmatpush2.bf16.msra.mxu0 %v1199
    %2893 = vmatprep.mubr.bf16.mxu0 %v2778
    %2894 = vmatmul.mubr.bf16.gmra.mxu0 %v2777
    %v2895 = vpop.f32.mrf.mxu0
    %v2896 = vadd.f32 0.0, %v2895
    %v2897 = vpop.f32.mrf.mxu0
    %v2898 = vadd.f32 0.0, %v2897
    %v2899 = vpop.f32.mrf.mxu0
    %v2900 = vpop.f32.mrf.mxu0
    %2901 = vdwg.mxu0
    %2902 = vmatprep.subr.bf16.mxu0 %v1194
    %2903 = vmatpush1.bf16.msra.mxu0 %v1193
    %2904 = vmatprep.subr.bf16.mxu0 %v1186
    %2905 = vmatpush1.bf16.msra.mxu0 %v1185
    %2906 = vmatprep.subr.bf16.mxu0 %v1178
    %2907 = vmatpush1.bf16.msra.mxu0 %v1177
    %2908 = vmatprep.subr.bf16.mxu0 %v1170
    %2909 = vmatpush1.bf16.msra.mxu0 %v1169
    %2910 = vmatprep.subr.bf16.mxu0 %v1162
    %2911 = vmatpush1.bf16.msra.mxu0 %v1161
    %2912 = vmatprep.subr.bf16.mxu0 %v1154
    %2913 = vmatpush1.bf16.msra.mxu0 %v1153
    %2914 = vmatprep.subr.bf16.mxu0 %v1146
    %2915 = vmatpush1.bf16.msra.mxu0 %v1145
    %2916 = vmatprep.subr.bf16.mxu0 %v1138
    %2917 = vmatpush1.bf16.msra.mxu0 %v1137
    %2918 = vmatprep.subr.bf16.mxu0 %v1258
    %2919 = vmatpush2.bf16.msra.mxu0 %v1257
    %2920 = vmatprep.subr.bf16.mxu0 %v1250
    %2921 = vmatpush2.bf16.msra.mxu0 %v1249
    %2922 = vmatprep.subr.bf16.mxu0 %v1242
    %2923 = vmatpush2.bf16.msra.mxu0 %v1241
    %2924 = vmatprep.subr.bf16.mxu0 %v1234
    %2925 = vmatpush2.bf16.msra.mxu0 %v1233
    %2926 = vmatprep.subr.bf16.mxu0 %v1226
    %2927 = vmatpush2.bf16.msra.mxu0 %v1225
    %2928 = vmatprep.subr.bf16.mxu0 %v1218
    %2929 = vmatpush2.bf16.msra.mxu0 %v1217
    %2930 = vmatprep.subr.bf16.mxu0 %v1210
    %2931 = vmatpush2.bf16.msra.mxu0 %v1209
    %2932 = vmatprep.subr.bf16.mxu0 %v1202
    %2933 = vmatpush2.bf16.msra.mxu0 %v1201
    %2934 = vmatprep.mubr.bf16.mxu0 %v2778
    %2935 = vmatmul.mubr.bf16.gmra.mxu0 %v2777
    %v2936 = vpop.f32.mrf.mxu0
    %v2937 = vadd.f32 0.0, %v2936
    %v2938 = vpop.f32.mrf.mxu0
    %v2939 = vadd.f32 0.0, %v2938
    %v2940 = vpop.f32.mrf.mxu0
    %v2941 = vpop.f32.mrf.mxu0
    %2942 = vdwg.mxu0
    %v2943 = vld [vmem:[#allocation2 + $0x180] sm:$0xff]
    %v2944 = vld [vmem:[#allocation2 + $0x188] sm:$0xff]
    %v2945 = vld [vmem:[#allocation2 + $0x190] sm:$0xff]
    %v2946 = vld [vmem:[#allocation2 + $0x198] sm:$0xff]
    %v2947 = vld [vmem:[#allocation2 + $0x60] sm:$0xff]
    %v2948 = vld [vmem:[#allocation2 + $0x68] sm:$0xff]
    %v2949 = vld [vmem:[#allocation2 + $0x70] sm:$0xff]
    %v2950 = vld [vmem:[#allocation2 + $0x78] sm:$0xff]
    %v2951 = vadd.f32 %v2943, %v2814
    %v2952 = vadd.f32 %v2944, %v2816
    %v2953 = vadd.f32 %v2945, %v2855
    %v2954 = vadd.f32 %v2946, %v2857
    %v2955 = vadd.f32 %v2947, %v2896
    %v2956 = vadd.f32 %v2948, %v2898
    %v2957 = vadd.f32 %v2949, %v2937
    %v2958 = vadd.f32 %v2950, %v2939
    %v2959 = vxor.u32 %v2951, 2147483648
    %v2960 = vxor.u32 %v2952, 2147483648
    %v2961 = vxor.u32 %v2953, 2147483648
    %v2962 = vmul.f32 %v2959, 1.442695
    %v2963 = vpow.pop %v2962
    %v2964 = vmul.f32 %v2960, 1.442695
    %v2965 = vpow.pop %v2964
    %v2966 = vmul.f32 %v2961, 1.442695
    %v2967 = vpow.pop %v2966
    %v2968 = vadd.f32 %v2963, 1.0
    %v2969 = vadd.f32 %v2965, 1.0
    %v2970 = vadd.f32 %v2967, 1.0
    %v2971 = vrcp.pop %v2968
    %v2972 = vmul.f32 1.0, %v2971
    %v2973 = vrcp.pop %v2969
    %v2974 = vmul.f32 1.0, %v2973
    %v2975 = vrcp.pop %v2970
    %v2976 = vmul.f32 1.0, %v2975
    %v2977 = vtanh.pop %v2954
    %v2978 = vtanh.pop %v2955
    %v2979 = vxor.u32 %v2956, 2147483648
    %v2980 = vxor.u32 %v2957, 2147483648
    %v2981 = vxor.u32 %v2958, 2147483648
    %v2982 = vmul.f32 %v2979, 1.442695
    %v2983 = vpow.pop %v2982
    %v2984 = vmul.f32 %v2980, 1.442695
    %v2985 = vpow.pop %v2984
    %v2986 = vmul.f32 %v2981, 1.442695
    %v2987 = vpow.pop %v2986
    %v2988 = vadd.f32 %v2983, 1.0
    %v2989 = vadd.f32 %v2985, 1.0
    %v2990 = vadd.f32 %v2987, 1.0
    %v2991 = vrcp.pop %v2988
    %v2992 = vmul.f32 1.0, %v2991
    %v2993 = vrcp.pop %v2989
    %v2994 = vmul.f32 1.0, %v2993
    %v2995 = vrcp.pop %v2990
    %v2996 = vmul.f32 1.0, %v2995
    %v2997 = vmul.f32 %v2974, %v2769
    %v2998 = vmul.f32 %v2994, %v2770
    %v2999 = vmul.f32 %v2972, %v2977
    %v3000 = vmul.f32 %v2996, %v2978
    %v3001 = vadd.f32 %v2997, %v2999
    %v3002 = vadd.f32 %v2998, %v3000
    %v3003 = vtanh.pop %v3001
    %v3004 = vtanh.pop %v3002
    %v3005 = vmul.f32 %v2976, %v3003
    %v3006 = vmul.f32 %v2992, %v3004
    %3007 = vst [vmem:[#allocation3 + $0x60] sm:$0xff] %v3005
    %3008 = vst [vmem:[#allocation3 + $0x18] sm:$0xff] %v3006
    %v3009 = vpack.c.bf16 %v3005, %v3005
    %v3010 = vpack.c.bf16 %v3006, %v3006
    %3011 = vmatprep.subr.bf16.mxu0 %v1188
    %3012 = vmatpush1.bf16.msra.mxu0 %v1187
    %3013 = vmatprep.subr.bf16.mxu0 %v1180
    %3014 = vmatpush1.bf16.msra.mxu0 %v1179
    %3015 = vmatprep.subr.bf16.mxu0 %v1172
    %3016 = vmatpush1.bf16.msra.mxu0 %v1171
    %3017 = vmatprep.subr.bf16.mxu0 %v1164
    %3018 = vmatpush1.bf16.msra.mxu0 %v1163
    %3019 = vmatprep.subr.bf16.mxu0 %v1156
    %3020 = vmatpush1.bf16.msra.mxu0 %v1155
    %3021 = vmatprep.subr.bf16.mxu0 %v1148
    %3022 = vmatpush1.bf16.msra.mxu0 %v1147
    %3023 = vmatprep.subr.bf16.mxu0 %v1140
    %3024 = vmatpush1.bf16.msra.mxu0 %v1139
    %3025 = vmatprep.subr.bf16.mxu0 %v1132
    %3026 = vmatpush1.bf16.msra.mxu0 %v1131
    %3027 = vmatprep.subr.bf16.mxu0 %v1252
    %3028 = vmatpush2.bf16.msra.mxu0 %v1251
    %3029 = vmatprep.subr.bf16.mxu0 %v1244
    %3030 = vmatpush2.bf16.msra.mxu0 %v1243
    %3031 = vmatprep.subr.bf16.mxu0 %v1236
    %3032 = vmatpush2.bf16.msra.mxu0 %v1235
    %3033 = vmatprep.subr.bf16.mxu0 %v1228
    %3034 = vmatpush2.bf16.msra.mxu0 %v1227
    %3035 = vmatprep.subr.bf16.mxu0 %v1220
    %3036 = vmatpush2.bf16.msra.mxu0 %v1219
    %3037 = vmatprep.subr.bf16.mxu0 %v1212
    %3038 = vmatpush2.bf16.msra.mxu0 %v1211
    %3039 = vmatprep.subr.bf16.mxu0 %v1204
    %3040 = vmatpush2.bf16.msra.mxu0 %v1203
    %3041 = vmatprep.subr.bf16.mxu0 %v1196
    %3042 = vmatpush2.bf16.msra.mxu0 %v1195
    %3043 = vmatprep.mubr.bf16.mxu0 %v3010
    %3044 = vmatmul.mubr.bf16.gmra.mxu0 %v3009
    %v3045 = vpop.f32.mrf.mxu0
    %v3046 = vadd.f32 0.0, %v3045
    %v3047 = vpop.f32.mrf.mxu0
    %v3048 = vadd.f32 0.0, %v3047
    %v3049 = vpop.f32.mrf.mxu0
    %v3050 = vpop.f32.mrf.mxu0
    %3051 = vdwg.mxu0
    %3052 = vmatprep.subr.bf16.mxu0 %v1190
    %3053 = vmatpush1.bf16.msra.mxu0 %v1189
    %3054 = vmatprep.subr.bf16.mxu0 %v1182
    %3055 = vmatpush1.bf16.msra.mxu0 %v1181
    %3056 = vmatprep.subr.bf16.mxu0 %v1174
    %3057 = vmatpush1.bf16.msra.mxu0 %v1173
    %3058 = vmatprep.subr.bf16.mxu0 %v1166
    %3059 = vmatpush1.bf16.msra.mxu0 %v1165
    %3060 = vmatprep.subr.bf16.mxu0 %v1158
    %3061 = vmatpush1.bf16.msra.mxu0 %v1157
    %3062 = vmatprep.subr.bf16.mxu0 %v1150
    %3063 = vmatpush1.bf16.msra.mxu0 %v1149
    %3064 = vmatprep.subr.bf16.mxu0 %v1142
    %3065 = vmatpush1.bf16.msra.mxu0 %v1141
    %3066 = vmatprep.subr.bf16.mxu0 %v1134
    %3067 = vmatpush1.bf16.msra.mxu0 %v1133
    %3068 = vmatprep.subr.bf16.mxu0 %v1254
    %3069 = vmatpush2.bf16.msra.mxu0 %v1253
    %3070 = vmatprep.subr.bf16.mxu0 %v1246
    %3071 = vmatpush2.bf16.msra.mxu0 %v1245
    %3072 = vmatprep.subr.bf16.mxu0 %v1238
    %3073 = vmatpush2.bf16.msra.mxu0 %v1237
    %3074 = vmatprep.subr.bf16.mxu0 %v1230
    %3075 = vmatpush2.bf16.msra.mxu0 %v1229
    %3076 = vmatprep.subr.bf16.mxu0 %v1222
    %3077 = vmatpush2.bf16.msra.mxu0 %v1221
    %3078 = vmatprep.subr.bf16.mxu0 %v1214
    %3079 = vmatpush2.bf16.msra.mxu0 %v1213
    %3080 = vmatprep.subr.bf16.mxu0 %v1206
    %3081 = vmatpush2.bf16.msra.mxu0 %v1205
    %3082 = vmatprep.subr.bf16.mxu0 %v1198
    %3083 = vmatpush2.bf16.msra.mxu0 %v1197
    %3084 = vmatprep.mubr.bf16.mxu0 %v3010
    %3085 = vmatmul.mubr.bf16.gmra.mxu0 %v3009
    %v3086 = vpop.f32.mrf.mxu0
    %v3087 = vadd.f32 0.0, %v3086
    %v3088 = vpop.f32.mrf.mxu0
    %v3089 = vadd.f32 0.0, %v3088
    %v3090 = vpop.f32.mrf.mxu0
    %v3091 = vpop.f32.mrf.mxu0
    %3092 = vdwg.mxu0
    %3093 = vmatprep.subr.bf16.mxu0 %v1192
    %3094 = vmatpush1.bf16.msra.mxu0 %v1191
    %3095 = vmatprep.subr.bf16.mxu0 %v1184
    %3096 = vmatpush1.bf16.msra.mxu0 %v1183
    %3097 = vmatprep.subr.bf16.mxu0 %v1176
    %3098 = vmatpush1.bf16.msra.mxu0 %v1175
    %3099 = vmatprep.subr.bf16.mxu0 %v1168
    %3100 = vmatpush1.bf16.msra.mxu0 %v1167
    %3101 = vmatprep.subr.bf16.mxu0 %v1160
    %3102 = vmatpush1.bf16.msra.mxu0 %v1159
    %3103 = vmatprep.subr.bf16.mxu0 %v1152
    %3104 = vmatpush1.bf16.msra.mxu0 %v1151
    %3105 = vmatprep.subr.bf16.mxu0 %v1144
    %3106 = vmatpush1.bf16.msra.mxu0 %v1143
    %3107 = vmatprep.subr.bf16.mxu0 %v1136
    %3108 = vmatpush1.bf16.msra.mxu0 %v1135
    %3109 = vmatprep.subr.bf16.mxu0 %v1256
    %3110 = vmatpush2.bf16.msra.mxu0 %v1255
    %3111 = vmatprep.subr.bf16.mxu0 %v1248
    %3112 = vmatpush2.bf16.msra.mxu0 %v1247
    %3113 = vmatprep.subr.bf16.mxu0 %v1240
    %3114 = vmatpush2.bf16.msra.mxu0 %v1239
    %3115 = vmatprep.subr.bf16.mxu0 %v1232
    %3116 = vmatpush2.bf16.msra.mxu0 %v1231
    %3117 = vmatprep.subr.bf16.mxu0 %v1224
    %3118 = vmatpush2.bf16.msra.mxu0 %v1223
    %3119 = vmatprep.subr.bf16.mxu0 %v1216
    %3120 = vmatpush2.bf16.msra.mxu0 %v1215
    %3121 = vmatprep.subr.bf16.mxu0 %v1208
    %3122 = vmatpush2.bf16.msra.mxu0 %v1207
    %3123 = vmatprep.subr.bf16.mxu0 %v1200
    %3124 = vmatpush2.bf16.msra.mxu0 %v1199
    %3125 = vmatprep.mubr.bf16.mxu0 %v3010
    %3126 = vmatmul.mubr.bf16.gmra.mxu0 %v3009
    %v3127 = vpop.f32.mrf.mxu0
    %v3128 = vadd.f32 0.0, %v3127
    %v3129 = vpop.f32.mrf.mxu0
    %v3130 = vadd.f32 0.0, %v3129
    %v3131 = vpop.f32.mrf.mxu0
    %v3132 = vpop.f32.mrf.mxu0
    %3133 = vdwg.mxu0
    %3134 = vmatprep.subr.bf16.mxu0 %v1194
    %3135 = vmatpush1.bf16.msra.mxu0 %v1193
    %3136 = vmatprep.subr.bf16.mxu0 %v1186
    %3137 = vmatpush1.bf16.msra.mxu0 %v1185
    %3138 = vmatprep.subr.bf16.mxu0 %v1178
    %3139 = vmatpush1.bf16.msra.mxu0 %v1177
    %3140 = vmatprep.subr.bf16.mxu0 %v1170
    %3141 = vmatpush1.bf16.msra.mxu0 %v1169
    %3142 = vmatprep.subr.bf16.mxu0 %v1162
    %3143 = vmatpush1.bf16.msra.mxu0 %v1161
    %3144 = vmatprep.subr.bf16.mxu0 %v1154
    %3145 = vmatpush1.bf16.msra.mxu0 %v1153
    %3146 = vmatprep.subr.bf16.mxu0 %v1146
    %3147 = vmatpush1.bf16.msra.mxu0 %v1145
    %3148 = vmatprep.subr.bf16.mxu0 %v1138
    %3149 = vmatpush1.bf16.msra.mxu0 %v1137
    %3150 = vmatprep.subr.bf16.mxu0 %v1258
    %3151 = vmatpush2.bf16.msra.mxu0 %v1257
    %3152 = vmatprep.subr.bf16.mxu0 %v1250
    %3153 = vmatpush2.bf16.msra.mxu0 %v1249
    %3154 = vmatprep.subr.bf16.mxu0 %v1242
    %3155 = vmatpush2.bf16.msra.mxu0 %v1241
    %3156 = vmatprep.subr.bf16.mxu0 %v1234
    %3157 = vmatpush2.bf16.msra.mxu0 %v1233
    %3158 = vmatprep.subr.bf16.mxu0 %v1226
    %3159 = vmatpush2.bf16.msra.mxu0 %v1225
    %3160 = vmatprep.subr.bf16.mxu0 %v1218
    %3161 = vmatpush2.bf16.msra.mxu0 %v1217
    %3162 = vmatprep.subr.bf16.mxu0 %v1210
    %3163 = vmatpush2.bf16.msra.mxu0 %v1209
    %3164 = vmatprep.subr.bf16.mxu0 %v1202
    %3165 = vmatpush2.bf16.msra.mxu0 %v1201
    %3166 = vmatprep.mubr.bf16.mxu0 %v3010
    %3167 = vmatmul.mubr.bf16.gmra.mxu0 %v3009
    %v3168 = vpop.f32.mrf.mxu0
    %v3169 = vadd.f32 0.0, %v3168
    %v3170 = vpop.f32.mrf.mxu0
    %v3171 = vadd.f32 0.0, %v3170
    %v3172 = vpop.f32.mrf.mxu0
    %v3173 = vpop.f32.mrf.mxu0
    %3174 = vdwg.mxu0
    %v3175 = vld [vmem:[#allocation2 + $0x1c0] sm:$0xff]
    %v3176 = vld [vmem:[#allocation2 + $0x1c8] sm:$0xff]
    %v3177 = vld [vmem:[#allocation2 + $0x1d0] sm:$0xff]
    %v3178 = vld [vmem:[#allocation2 + $0x1d8] sm:$0xff]
    %v3179 = vld [vmem:[#allocation2 + $0x20] sm:$0xff]
    %v3180 = vld [vmem:[#allocation2 + $0x28] sm:$0xff]
    %v3181 = vld [vmem:[#allocation2 + $0x30] sm:$0xff]
    %v3182 = vld [vmem:[#allocation2 + $0x38] sm:$0xff]
    %v3183 = vadd.f32 %v3175, %v3046
    %v3184 = vadd.f32 %v3176, %v3048
    %v3185 = vadd.f32 %v3177, %v3087
    %v3186 = vadd.f32 %v3178, %v3089
    %v3187 = vadd.f32 %v3179, %v3128
    %v3188 = vadd.f32 %v3180, %v3130
    %v3189 = vadd.f32 %v3181, %v3169
    %v3190 = vadd.f32 %v3182, %v3171
    %v3191 = vxor.u32 %v3183, 2147483648
    %v3192 = vxor.u32 %v3184, 2147483648
    %v3193 = vxor.u32 %v3185, 2147483648
    %v3194 = vmul.f32 %v3191, 1.442695
    %v3195 = vpow.pop %v3194
    %v3196 = vmul.f32 %v3192, 1.442695
    %v3197 = vpow.pop %v3196
    %v3198 = vmul.f32 %v3193, 1.442695
    %v3199 = vpow.pop %v3198
    %v3200 = vadd.f32 %v3195, 1.0
    %v3201 = vadd.f32 %v3197, 1.0
    %v3202 = vadd.f32 %v3199, 1.0
    %v3203 = vrcp.pop %v3200
    %v3204 = vmul.f32 1.0, %v3203
    %v3205 = vrcp.pop %v3201
    %v3206 = vmul.f32 1.0, %v3205
    %v3207 = vrcp.pop %v3202
    %v3208 = vmul.f32 1.0, %v3207
    %v3209 = vtanh.pop %v3186
    %v3210 = vtanh.pop %v3187
    %v3211 = vxor.u32 %v3188, 2147483648
    %v3212 = vxor.u32 %v3189, 2147483648
    %v3213 = vxor.u32 %v3190, 2147483648
    %v3214 = vmul.f32 %v3211, 1.442695
    %v3215 = vpow.pop %v3214
    %v3216 = vmul.f32 %v3212, 1.442695
    %v3217 = vpow.pop %v3216
    %v3218 = vmul.f32 %v3213, 1.442695
    %v3219 = vpow.pop %v3218
    %v3220 = vadd.f32 %v3215, 1.0
    %v3221 = vadd.f32 %v3217, 1.0
    %v3222 = vadd.f32 %v3219, 1.0
    %v3223 = vrcp.pop %v3220
    %v3224 = vmul.f32 1.0, %v3223
    %v3225 = vrcp.pop %v3221
    %v3226 = vmul.f32 1.0, %v3225
    %v3227 = vrcp.pop %v3222
    %v3228 = vmul.f32 1.0, %v3227
    %v3229 = vmul.f32 %v3206, %v3001
    %v3230 = vmul.f32 %v3226, %v3002
    %v3231 = vmul.f32 %v3204, %v3209
    %v3232 = vmul.f32 %v3228, %v3210
    %v3233 = vadd.f32 %v3229, %v3231
    %v3234 = vadd.f32 %v3230, %v3232
    %v3235 = vtanh.pop %v3233
    %v3236 = vtanh.pop %v3234
    %v3237 = vmul.f32 %v3208, %v3235
    %v3238 = vmul.f32 %v3224, %v3236
    %3239 = vst [vmem:[#allocation3 + $0x70] sm:$0xff] %v3237
    %3240 = vst [vmem:[#allocation3 + $0x8] sm:$0xff] %v3238
    %v3241 = vld [vmem:[#allocation3] sm:$0xff]
    %v3242 = vld [vmem:[#allocation3 + $0x8] sm:$0xff]
    %v3243 = vld [vmem:[#allocation3 + $0x10] sm:$0xff]
    %v3244 = vld [vmem:[#allocation3 + $0x18] sm:$0xff]
    %v3245 = vld [vmem:[#allocation3 + $0x20] sm:$0xff]
    %v3246 = vld [vmem:[#allocation3 + $0x28] sm:$0xff]
    %v3247 = vld [vmem:[#allocation3 + $0x30] sm:$0xff]
    %v3248 = vld [vmem:[#allocation3 + $0x38] sm:$0xff]
    %v3249 = vld [vmem:[#allocation3 + $0x40] sm:$0xff]
    %v3250 = vld [vmem:[#allocation3 + $0x48] sm:$0xff]
    %v3251 = vld [vmem:[#allocation3 + $0x50] sm:$0xff]
    %v3252 = vld [vmem:[#allocation3 + $0x58] sm:$0xff]
    %v3253 = vld [vmem:[#allocation3 + $0x60] sm:$0xff]
    %v3254 = vld [vmem:[#allocation3 + $0x68] sm:$0xff]
    %v3255 = vld [vmem:[#allocation3 + $0x70] sm:$0xff]
    %v3256 = vld [vmem:[#allocation3 + $0x78] sm:$0xff]
    %v3257 = vpack.c.bf16 %v3243, %v3241
    %v3258 = vpack.c.bf16 %v3244, %v3242
    %v3259 = vpack.c.bf16 %v3247, %v3245
    %v3260 = vpack.c.bf16 %v3248, %v3246
    %v3261 = vpack.c.bf16 %v3251, %v3249
    %v3262 = vpack.c.bf16 %v3252, %v3250
    %v3263 = vpack.c.bf16 %v3255, %v3253
    %v3264 = vpack.c.bf16 %v3256, %v3254
    %v3265 = vld [vmem:[#allocation7] sm:$0xff]
    %v3266 = vld [vmem:[#allocation7 + $0x8] sm:$0xff]
    %v3267 = vld [vmem:[#allocation7 + $0x10] sm:$0xff]
    %v3268 = vld [vmem:[#allocation7 + $0x18] sm:$0xff]
    %v3269 = vld [vmem:[#allocation7 + $0x20] sm:$0xff]
    %v3270 = vld [vmem:[#allocation7 + $0x28] sm:$0xff]
    %v3271 = vld [vmem:[#allocation7 + $0x30] sm:$0xff]
    %v3272 = vld [vmem:[#allocation7 + $0x38] sm:$0xff]
    %v3273 = vld [vmem:[#allocation7 + $0x40] sm:$0xff]
    %v3274 = vld [vmem:[#allocation7 + $0x48] sm:$0xff]
    %v3275 = vld [vmem:[#allocation7 + $0x50] sm:$0xff]
    %v3276 = vld [vmem:[#allocation7 + $0x58] sm:$0xff]
    %v3277 = vld [vmem:[#allocation7 + $0x60] sm:$0xff]
    %v3278 = vld [vmem:[#allocation7 + $0x68] sm:$0xff]
    %v3279 = vld [vmem:[#allocation7 + $0x70] sm:$0xff]
    %v3280 = vld [vmem:[#allocation7 + $0x78] sm:$0xff]
    %v3281 = vld [vmem:[#allocation7 + $0x80] sm:$0xff]
    %v3282 = vld [vmem:[#allocation7 + $0x88] sm:$0xff]
    %v3283 = vld [vmem:[#allocation7 + $0x90] sm:$0xff]
    %v3284 = vld [vmem:[#allocation7 + $0x98] sm:$0xff]
    %v3285 = vld [vmem:[#allocation7 + $0xa0] sm:$0xff]
    %v3286 = vld [vmem:[#allocation7 + $0xa8] sm:$0xff]
    %v3287 = vld [vmem:[#allocation7 + $0xb0] sm:$0xff]
    %v3288 = vld [vmem:[#allocation7 + $0xb8] sm:$0xff]
    %v3289 = vld [vmem:[#allocation7 + $0xc0] sm:$0xff]
    %v3290 = vld [vmem:[#allocation7 + $0xc8] sm:$0xff]
    %v3291 = vld [vmem:[#allocation7 + $0xd0] sm:$0xff]
    %v3292 = vld [vmem:[#allocation7 + $0xd8] sm:$0xff]
    %v3293 = vld [vmem:[#allocation7 + $0xe0] sm:$0xff]
    %v3294 = vld [vmem:[#allocation7 + $0xe8] sm:$0xff]
    %v3295 = vld [vmem:[#allocation7 + $0xf0] sm:$0xff]
    %v3296 = vld [vmem:[#allocation7 + $0xf8] sm:$0xff]
    %v3297 = vld [vmem:[#allocation7 + $0x100] sm:$0xff]
    %v3298 = vld [vmem:[#allocation7 + $0x108] sm:$0xff]
    %v3299 = vld [vmem:[#allocation7 + $0x110] sm:$0xff]
    %v3300 = vld [vmem:[#allocation7 + $0x118] sm:$0xff]
    %v3301 = vld [vmem:[#allocation7 + $0x120] sm:$0xff]
    %v3302 = vld [vmem:[#allocation7 + $0x128] sm:$0xff]
    %v3303 = vld [vmem:[#allocation7 + $0x130] sm:$0xff]
    %v3304 = vld [vmem:[#allocation7 + $0x138] sm:$0xff]
    %v3305 = vld [vmem:[#allocation7 + $0x140] sm:$0xff]
    %v3306 = vld [vmem:[#allocation7 + $0x148] sm:$0xff]
    %v3307 = vld [vmem:[#allocation7 + $0x150] sm:$0xff]
    %v3308 = vld [vmem:[#allocation7 + $0x158] sm:$0xff]
    %v3309 = vld [vmem:[#allocation7 + $0x160] sm:$0xff]
    %v3310 = vld [vmem:[#allocation7 + $0x168] sm:$0xff]
    %v3311 = vld [vmem:[#allocation7 + $0x170] sm:$0xff]
    %v3312 = vld [vmem:[#allocation7 + $0x178] sm:$0xff]
    %v3313 = vld [vmem:[#allocation7 + $0x180] sm:$0xff]
    %v3314 = vld [vmem:[#allocation7 + $0x188] sm:$0xff]
    %v3315 = vld [vmem:[#allocation7 + $0x190] sm:$0xff]
    %v3316 = vld [vmem:[#allocation7 + $0x198] sm:$0xff]
    %v3317 = vld [vmem:[#allocation7 + $0x1a0] sm:$0xff]
    %v3318 = vld [vmem:[#allocation7 + $0x1a8] sm:$0xff]
    %v3319 = vld [vmem:[#allocation7 + $0x1b0] sm:$0xff]
    %v3320 = vld [vmem:[#allocation7 + $0x1b8] sm:$0xff]
    %v3321 = vld [vmem:[#allocation7 + $0x1c0] sm:$0xff]
    %v3322 = vld [vmem:[#allocation7 + $0x1c8] sm:$0xff]
    %v3323 = vld [vmem:[#allocation7 + $0x1d0] sm:$0xff]
    %v3324 = vld [vmem:[#allocation7 + $0x1d8] sm:$0xff]
    %v3325 = vld [vmem:[#allocation7 + $0x1e0] sm:$0xff]
    %v3326 = vld [vmem:[#allocation7 + $0x1e8] sm:$0xff]
    %v3327 = vld [vmem:[#allocation7 + $0x1f0] sm:$0xff]
    %v3328 = vld [vmem:[#allocation7 + $0x1f8] sm:$0xff]
    %v3329 = vld [vmem:[#allocation7 + $0x200] sm:$0xff]
    %v3330 = vld [vmem:[#allocation7 + $0x208] sm:$0xff]
    %v3331 = vld [vmem:[#allocation7 + $0x210] sm:$0xff]
    %v3332 = vld [vmem:[#allocation7 + $0x218] sm:$0xff]
    %v3333 = vld [vmem:[#allocation7 + $0x220] sm:$0xff]
    %v3334 = vld [vmem:[#allocation7 + $0x228] sm:$0xff]
    %v3335 = vld [vmem:[#allocation7 + $0x230] sm:$0xff]
    %v3336 = vld [vmem:[#allocation7 + $0x238] sm:$0xff]
    %v3337 = vld [vmem:[#allocation7 + $0x240] sm:$0xff]
    %v3338 = vld [vmem:[#allocation7 + $0x248] sm:$0xff]
    %v3339 = vld [vmem:[#allocation7 + $0x250] sm:$0xff]
    %v3340 = vld [vmem:[#allocation7 + $0x258] sm:$0xff]
    %v3341 = vld [vmem:[#allocation7 + $0x260] sm:$0xff]
    %v3342 = vld [vmem:[#allocation7 + $0x268] sm:$0xff]
    %v3343 = vld [vmem:[#allocation7 + $0x270] sm:$0xff]
    %v3344 = vld [vmem:[#allocation7 + $0x278] sm:$0xff]
    %v3345 = vld [vmem:[#allocation7 + $0x280] sm:$0xff]
    %v3346 = vld [vmem:[#allocation7 + $0x288] sm:$0xff]
    %v3347 = vld [vmem:[#allocation7 + $0x290] sm:$0xff]
    %v3348 = vld [vmem:[#allocation7 + $0x298] sm:$0xff]
    %v3349 = vld [vmem:[#allocation7 + $0x2a0] sm:$0xff]
    %v3350 = vld [vmem:[#allocation7 + $0x2a8] sm:$0xff]
    %v3351 = vld [vmem:[#allocation7 + $0x2b0] sm:$0xff]
    %v3352 = vld [vmem:[#allocation7 + $0x2b8] sm:$0xff]
    %v3353 = vld [vmem:[#allocation7 + $0x2c0] sm:$0xff]
    %v3354 = vld [vmem:[#allocation7 + $0x2c8] sm:$0xff]
    %v3355 = vld [vmem:[#allocation7 + $0x2d0] sm:$0xff]
    %v3356 = vld [vmem:[#allocation7 + $0x2d8] sm:$0xff]
    %v3357 = vld [vmem:[#allocation7 + $0x2e0] sm:$0xff]
    %v3358 = vld [vmem:[#allocation7 + $0x2e8] sm:$0xff]
    %v3359 = vld [vmem:[#allocation7 + $0x2f0] sm:$0xff]
    %v3360 = vld [vmem:[#allocation7 + $0x2f8] sm:$0xff]
    %v3361 = vld [vmem:[#allocation7 + $0x300] sm:$0xff]
    %v3362 = vld [vmem:[#allocation7 + $0x308] sm:$0xff]
    %v3363 = vld [vmem:[#allocation7 + $0x310] sm:$0xff]
    %v3364 = vld [vmem:[#allocation7 + $0x318] sm:$0xff]
    %v3365 = vld [vmem:[#allocation7 + $0x320] sm:$0xff]
    %v3366 = vld [vmem:[#allocation7 + $0x328] sm:$0xff]
    %v3367 = vld [vmem:[#allocation7 + $0x330] sm:$0xff]
    %v3368 = vld [vmem:[#allocation7 + $0x338] sm:$0xff]
    %v3369 = vld [vmem:[#allocation7 + $0x340] sm:$0xff]
    %v3370 = vld [vmem:[#allocation7 + $0x348] sm:$0xff]
    %v3371 = vld [vmem:[#allocation7 + $0x350] sm:$0xff]
    %v3372 = vld [vmem:[#allocation7 + $0x358] sm:$0xff]
    %v3373 = vld [vmem:[#allocation7 + $0x360] sm:$0xff]
    %v3374 = vld [vmem:[#allocation7 + $0x368] sm:$0xff]
    %v3375 = vld [vmem:[#allocation7 + $0x370] sm:$0xff]
    %v3376 = vld [vmem:[#allocation7 + $0x378] sm:$0xff]
    %v3377 = vld [vmem:[#allocation7 + $0x380] sm:$0xff]
    %v3378 = vld [vmem:[#allocation7 + $0x388] sm:$0xff]
    %v3379 = vld [vmem:[#allocation7 + $0x390] sm:$0xff]
    %v3380 = vld [vmem:[#allocation7 + $0x398] sm:$0xff]
    %v3381 = vld [vmem:[#allocation7 + $0x3a0] sm:$0xff]
    %v3382 = vld [vmem:[#allocation7 + $0x3a8] sm:$0xff]
    %v3383 = vld [vmem:[#allocation7 + $0x3b0] sm:$0xff]
    %v3384 = vld [vmem:[#allocation7 + $0x3b8] sm:$0xff]
    %v3385 = vld [vmem:[#allocation7 + $0x3c0] sm:$0xff]
    %v3386 = vld [vmem:[#allocation7 + $0x3c8] sm:$0xff]
    %v3387 = vld [vmem:[#allocation7 + $0x3d0] sm:$0xff]
    %v3388 = vld [vmem:[#allocation7 + $0x3d8] sm:$0xff]
    %v3389 = vld [vmem:[#allocation7 + $0x3e0] sm:$0xff]
    %v3390 = vld [vmem:[#allocation7 + $0x3e8] sm:$0xff]
    %v3391 = vld [vmem:[#allocation7 + $0x3f0] sm:$0xff]
    %v3392 = vld [vmem:[#allocation7 + $0x3f8] sm:$0xff]
    %v3393 = vld [vmem:[%s5] sm:$0xff]
    %v3395 = vlaneseq
    %v3396 = vshrl.u32 %v3395, 7
    %v3397 = vsub.s32 0, %v3396
    %v3398 = vrot.slane %v3393, %v3397
    %v3399 = vlaneseq
    %v3400 = vshrl.u32 %v3399, 7
    %v3401 = vsub.s32 1, %v3400
    %v3402 = vrot.slane %v3393, %v3401
    %v3403 = vlaneseq
    %v3404 = vshrl.u32 %v3403, 7
    %v3405 = vsub.s32 2, %v3404
    %v3406 = vrot.slane %v3393, %v3405
    %v3407 = vlaneseq
    %v3408 = vshrl.u32 %v3407, 7
    %v3409 = vsub.s32 3, %v3408
    %v3410 = vrot.slane %v3393, %v3409
    %v3411 = vlaneseq
    %v3412 = vshrl.u32 %v3411, 7
    %v3413 = vsub.s32 4, %v3412
    %v3414 = vrot.slane %v3393, %v3413
    %v3415 = vlaneseq
    %v3416 = vshrl.u32 %v3415, 7
    %v3417 = vsub.s32 5, %v3416
    %v3418 = vrot.slane %v3393, %v3417
    %v3419 = vlaneseq
    %v3420 = vshrl.u32 %v3419, 7
    %v3421 = vsub.s32 6, %v3420
    %v3422 = vrot.slane %v3393, %v3421
    %v3423 = vlaneseq
    %v3424 = vshrl.u32 %v3423, 7
    %v3425 = vsub.s32 7, %v3424
    %v3426 = vrot.slane %v3393, %v3425
    %v3563 = vunpack.c.l.b16 %v3265
    %v3564 = vunpack.c.h.b16 %v3265
    %v3565 = vunpack.c.l.b16 %v3266
    %v3566 = vunpack.c.h.b16 %v3266
    %v3567 = vunpack.c.l.b16 %v3267
    %v3568 = vunpack.c.h.b16 %v3267
    %v3569 = vunpack.c.l.b16 %v3268
    %v3570 = vunpack.c.h.b16 %v3268
    %v3571 = vunpack.c.l.b16 %v3269
    %v3572 = vunpack.c.h.b16 %v3269
    %v3573 = vunpack.c.l.b16 %v3270
    %v3574 = vunpack.c.h.b16 %v3270
    %v3575 = vunpack.c.l.b16 %v3271
    %v3576 = vunpack.c.h.b16 %v3271
    %v3577 = vunpack.c.l.b16 %v3272
    %v3578 = vunpack.c.h.b16 %v3272
    %v3579 = vunpack.c.l.b16 %v3273
    %v3580 = vunpack.c.h.b16 %v3273
    %v3581 = vunpack.c.l.b16 %v3274
    %v3582 = vunpack.c.h.b16 %v3274
    %v3583 = vunpack.c.l.b16 %v3275
    %v3584 = vunpack.c.h.b16 %v3275
    %v3585 = vunpack.c.l.b16 %v3276
    %v3586 = vunpack.c.h.b16 %v3276
    %v3587 = vunpack.c.l.b16 %v3277
    %v3588 = vunpack.c.h.b16 %v3277
    %v3589 = vunpack.c.l.b16 %v3278
    %v3590 = vunpack.c.h.b16 %v3278
    %v3591 = vunpack.c.l.b16 %v3279
    %v3592 = vunpack.c.h.b16 %v3279
    %v3593 = vunpack.c.l.b16 %v3280
    %v3594 = vunpack.c.h.b16 %v3280
    %v3595 = vunpack.c.l.b16 %v3281
    %v3596 = vunpack.c.h.b16 %v3281
    %v3597 = vunpack.c.l.b16 %v3282
    %v3598 = vunpack.c.h.b16 %v3282
    %v3599 = vunpack.c.l.b16 %v3283
    %v3600 = vunpack.c.h.b16 %v3283
    %v3601 = vunpack.c.l.b16 %v3284
    %v3602 = vunpack.c.h.b16 %v3284
    %v3603 = vunpack.c.l.b16 %v3285
    %v3604 = vunpack.c.h.b16 %v3285
    %v3605 = vunpack.c.l.b16 %v3286
    %v3606 = vunpack.c.h.b16 %v3286
    %v3607 = vunpack.c.l.b16 %v3287
    %v3608 = vunpack.c.h.b16 %v3287
    %v3609 = vunpack.c.l.b16 %v3288
    %v3610 = vunpack.c.h.b16 %v3288
    %v3611 = vunpack.c.l.b16 %v3289
    %v3612 = vunpack.c.h.b16 %v3289
    %v3613 = vunpack.c.l.b16 %v3290
    %v3614 = vunpack.c.h.b16 %v3290
    %v3615 = vunpack.c.l.b16 %v3291
    %v3616 = vunpack.c.h.b16 %v3291
    %v3617 = vunpack.c.l.b16 %v3292
    %v3618 = vunpack.c.h.b16 %v3292
    %v3619 = vunpack.c.l.b16 %v3293
    %v3620 = vunpack.c.h.b16 %v3293
    %v3621 = vunpack.c.l.b16 %v3294
    %v3622 = vunpack.c.h.b16 %v3294
    %v3623 = vunpack.c.l.b16 %v3295
    %v3624 = vunpack.c.h.b16 %v3295
    %v3625 = vunpack.c.l.b16 %v3296
    %v3626 = vunpack.c.h.b16 %v3296
    %v3627 = vunpack.c.l.b16 %v3297
    %v3628 = vunpack.c.h.b16 %v3297
    %v3629 = vunpack.c.l.b16 %v3298
    %v3630 = vunpack.c.h.b16 %v3298
    %v3631 = vunpack.c.l.b16 %v3299
    %v3632 = vunpack.c.h.b16 %v3299
    %v3633 = vunpack.c.l.b16 %v3300
    %v3634 = vunpack.c.h.b16 %v3300
    %v3635 = vunpack.c.l.b16 %v3301
    %v3636 = vunpack.c.h.b16 %v3301
    %v3637 = vunpack.c.l.b16 %v3302
    %v3638 = vunpack.c.h.b16 %v3302
    %v3639 = vunpack.c.l.b16 %v3303
    %v3640 = vunpack.c.h.b16 %v3303
    %v3641 = vunpack.c.l.b16 %v3304
    %v3642 = vunpack.c.h.b16 %v3304
    %v3643 = vunpack.c.l.b16 %v3305
    %v3644 = vunpack.c.h.b16 %v3305
    %v3645 = vunpack.c.l.b16 %v3306
    %v3646 = vunpack.c.h.b16 %v3306
    %v3647 = vunpack.c.l.b16 %v3307
    %v3648 = vunpack.c.h.b16 %v3307
    %v3649 = vunpack.c.l.b16 %v3308
    %v3650 = vunpack.c.h.b16 %v3308
    %v3651 = vunpack.c.l.b16 %v3309
    %v3652 = vunpack.c.h.b16 %v3309
    %v3653 = vunpack.c.l.b16 %v3310
    %v3654 = vunpack.c.h.b16 %v3310
    %v3655 = vunpack.c.l.b16 %v3311
    %v3656 = vunpack.c.h.b16 %v3311
    %v3657 = vunpack.c.l.b16 %v3312
    %v3658 = vunpack.c.h.b16 %v3312
    %v3659 = vunpack.c.l.b16 %v3313
    %v3660 = vunpack.c.h.b16 %v3313
    %v3661 = vunpack.c.l.b16 %v3314
    %v3662 = vunpack.c.h.b16 %v3314
    %v3663 = vunpack.c.l.b16 %v3315
    %v3664 = vunpack.c.h.b16 %v3315
    %v3665 = vunpack.c.l.b16 %v3316
    %v3666 = vunpack.c.h.b16 %v3316
    %v3667 = vunpack.c.l.b16 %v3317
    %v3668 = vunpack.c.h.b16 %v3317
    %v3669 = vunpack.c.l.b16 %v3318
    %v3670 = vunpack.c.h.b16 %v3318
    %v3671 = vunpack.c.l.b16 %v3319
    %v3672 = vunpack.c.h.b16 %v3319
    %v3673 = vunpack.c.l.b16 %v3320
    %v3674 = vunpack.c.h.b16 %v3320
    %v3675 = vunpack.c.l.b16 %v3321
    %v3676 = vunpack.c.h.b16 %v3321
    %v3677 = vunpack.c.l.b16 %v3322
    %v3678 = vunpack.c.h.b16 %v3322
    %v3679 = vunpack.c.l.b16 %v3323
    %v3680 = vunpack.c.h.b16 %v3323
    %v3681 = vunpack.c.l.b16 %v3324
    %v3682 = vunpack.c.h.b16 %v3324
    %v3683 = vunpack.c.l.b16 %v3325
    %v3684 = vunpack.c.h.b16 %v3325
    %v3685 = vunpack.c.l.b16 %v3326
    %v3686 = vunpack.c.h.b16 %v3326
    %v3687 = vunpack.c.l.b16 %v3327
    %v3688 = vunpack.c.h.b16 %v3327
    %v3689 = vunpack.c.l.b16 %v3328
    %v3690 = vunpack.c.h.b16 %v3328
    %v3691 = vunpack.c.l.b16 %v3329
    %v3692 = vunpack.c.h.b16 %v3329
    %v3693 = vunpack.c.l.b16 %v3330
    %v3694 = vunpack.c.h.b16 %v3330
    %v3695 = vunpack.c.l.b16 %v3331
    %v3696 = vunpack.c.h.b16 %v3331
    %v3697 = vunpack.c.l.b16 %v3332
    %v3698 = vunpack.c.h.b16 %v3332
    %v3699 = vunpack.c.l.b16 %v3333
    %v3700 = vunpack.c.h.b16 %v3333
    %v3701 = vunpack.c.l.b16 %v3334
    %v3702 = vunpack.c.h.b16 %v3334
    %v3703 = vunpack.c.l.b16 %v3335
    %v3704 = vunpack.c.h.b16 %v3335
    %v3705 = vunpack.c.l.b16 %v3336
    %v3706 = vunpack.c.h.b16 %v3336
    %v3707 = vunpack.c.l.b16 %v3337
    %v3708 = vunpack.c.h.b16 %v3337
    %v3709 = vunpack.c.l.b16 %v3338
    %v3710 = vunpack.c.h.b16 %v3338
    %v3711 = vunpack.c.l.b16 %v3339
    %v3712 = vunpack.c.h.b16 %v3339
    %v3713 = vunpack.c.l.b16 %v3340
    %v3714 = vunpack.c.h.b16 %v3340
    %v3715 = vunpack.c.l.b16 %v3341
    %v3716 = vunpack.c.h.b16 %v3341
    %v3717 = vunpack.c.l.b16 %v3342
    %v3718 = vunpack.c.h.b16 %v3342
    %v3719 = vunpack.c.l.b16 %v3343
    %v3720 = vunpack.c.h.b16 %v3343
    %v3721 = vunpack.c.l.b16 %v3344
    %v3722 = vunpack.c.h.b16 %v3344
    %v3723 = vunpack.c.l.b16 %v3345
    %v3724 = vunpack.c.h.b16 %v3345
    %v3725 = vunpack.c.l.b16 %v3346
    %v3726 = vunpack.c.h.b16 %v3346
    %v3727 = vunpack.c.l.b16 %v3347
    %v3728 = vunpack.c.h.b16 %v3347
    %v3729 = vunpack.c.l.b16 %v3348
    %v3730 = vunpack.c.h.b16 %v3348
    %v3731 = vunpack.c.l.b16 %v3349
    %v3732 = vunpack.c.h.b16 %v3349
    %v3733 = vunpack.c.l.b16 %v3350
    %v3734 = vunpack.c.h.b16 %v3350
    %v3735 = vunpack.c.l.b16 %v3351
    %v3736 = vunpack.c.h.b16 %v3351
    %v3737 = vunpack.c.l.b16 %v3352
    %v3738 = vunpack.c.h.b16 %v3352
    %v3739 = vunpack.c.l.b16 %v3353
    %v3740 = vunpack.c.h.b16 %v3353
    %v3741 = vunpack.c.l.b16 %v3354
    %v3742 = vunpack.c.h.b16 %v3354
    %v3743 = vunpack.c.l.b16 %v3355
    %v3744 = vunpack.c.h.b16 %v3355
    %v3745 = vunpack.c.l.b16 %v3356
    %v3746 = vunpack.c.h.b16 %v3356
    %v3747 = vunpack.c.l.b16 %v3357
    %v3748 = vunpack.c.h.b16 %v3357
    %v3749 = vunpack.c.l.b16 %v3358
    %v3750 = vunpack.c.h.b16 %v3358
    %v3751 = vunpack.c.l.b16 %v3359
    %v3752 = vunpack.c.h.b16 %v3359
    %v3753 = vunpack.c.l.b16 %v3360
    %v3754 = vunpack.c.h.b16 %v3360
    %v3755 = vunpack.c.l.b16 %v3361
    %v3756 = vunpack.c.h.b16 %v3361
    %v3757 = vunpack.c.l.b16 %v3362
    %v3758 = vunpack.c.h.b16 %v3362
    %v3759 = vunpack.c.l.b16 %v3363
    %v3760 = vunpack.c.h.b16 %v3363
    %v3761 = vunpack.c.l.b16 %v3364
    %v3762 = vunpack.c.h.b16 %v3364
    %v3763 = vunpack.c.l.b16 %v3365
    %v3764 = vunpack.c.h.b16 %v3365
    %v3765 = vunpack.c.l.b16 %v3366
    %v3766 = vunpack.c.h.b16 %v3366
    %v3767 = vunpack.c.l.b16 %v3367
    %v3768 = vunpack.c.h.b16 %v3367
    %v3769 = vunpack.c.l.b16 %v3368
    %v3770 = vunpack.c.h.b16 %v3368
    %v3771 = vunpack.c.l.b16 %v3369
    %v3772 = vunpack.c.h.b16 %v3369
    %v3773 = vunpack.c.l.b16 %v3370
    %v3774 = vunpack.c.h.b16 %v3370
    %v3775 = vunpack.c.l.b16 %v3371
    %v3776 = vunpack.c.h.b16 %v3371
    %v3777 = vunpack.c.l.b16 %v3372
    %v3778 = vunpack.c.h.b16 %v3372
    %v3779 = vunpack.c.l.b16 %v3373
    %v3780 = vunpack.c.h.b16 %v3373
    %v3781 = vunpack.c.l.b16 %v3374
    %v3782 = vunpack.c.h.b16 %v3374
    %v3783 = vunpack.c.l.b16 %v3375
    %v3784 = vunpack.c.h.b16 %v3375
    %v3785 = vunpack.c.l.b16 %v3376
    %v3786 = vunpack.c.h.b16 %v3376
    %v3787 = vunpack.c.l.b16 %v3377
    %v3788 = vunpack.c.h.b16 %v3377
    %v3789 = vunpack.c.l.b16 %v3378
    %v3790 = vunpack.c.h.b16 %v3378
    %v3791 = vunpack.c.l.b16 %v3379
    %v3792 = vunpack.c.h.b16 %v3379
    %v3793 = vunpack.c.l.b16 %v3380
    %v3794 = vunpack.c.h.b16 %v3380
    %v3795 = vunpack.c.l.b16 %v3381
    %v3796 = vunpack.c.h.b16 %v3381
    %v3797 = vunpack.c.l.b16 %v3382
    %v3798 = vunpack.c.h.b16 %v3382
    %v3799 = vunpack.c.l.b16 %v3383
    %v3800 = vunpack.c.h.b16 %v3383
    %v3801 = vunpack.c.l.b16 %v3384
    %v3802 = vunpack.c.h.b16 %v3384
    %v3803 = vunpack.c.l.b16 %v3385
    %v3804 = vunpack.c.h.b16 %v3385
    %v3805 = vunpack.c.l.b16 %v3386
    %v3806 = vunpack.c.h.b16 %v3386
    %v3807 = vunpack.c.l.b16 %v3387
    %v3808 = vunpack.c.h.b16 %v3387
    %v3809 = vunpack.c.l.b16 %v3388
    %v3810 = vunpack.c.h.b16 %v3388
    %v3811 = vunpack.c.l.b16 %v3389
    %v3812 = vunpack.c.h.b16 %v3389
    %v3813 = vunpack.c.l.b16 %v3390
    %v3814 = vunpack.c.h.b16 %v3390
    %v3815 = vunpack.c.l.b16 %v3391
    %v3816 = vunpack.c.h.b16 %v3391
    %v3817 = vunpack.c.l.b16 %v3392
    %v3818 = vunpack.c.h.b16 %v3392
    %v3819 = vpack.c.b16 %v3571, %v3563
    %v3820 = vpack.c.b16 %v3572, %v3564
    %v3821 = vpack.c.b16 %v3573, %v3565
    %v3822 = vpack.c.b16 %v3574, %v3566
    %v3823 = vpack.c.b16 %v3575, %v3567
    %v3824 = vpack.c.b16 %v3576, %v3568
    %v3825 = vpack.c.b16 %v3577, %v3569
    %v3826 = vpack.c.b16 %v3578, %v3570
    %v3827 = vpack.c.b16 %v3587, %v3579
    %v3828 = vpack.c.b16 %v3588, %v3580
    %v3829 = vpack.c.b16 %v3589, %v3581
    %v3830 = vpack.c.b16 %v3590, %v3582
    %v3831 = vpack.c.b16 %v3591, %v3583
    %v3832 = vpack.c.b16 %v3592, %v3584
    %v3833 = vpack.c.b16 %v3593, %v3585
    %v3834 = vpack.c.b16 %v3594, %v3586
    %v3835 = vpack.c.b16 %v3603, %v3595
    %v3836 = vpack.c.b16 %v3604, %v3596
    %v3837 = vpack.c.b16 %v3605, %v3597
    %v3838 = vpack.c.b16 %v3606, %v3598
    %v3839 = vpack.c.b16 %v3607, %v3599
    %v3840 = vpack.c.b16 %v3608, %v3600
    %v3841 = vpack.c.b16 %v3609, %v3601
    %v3842 = vpack.c.b16 %v3610, %v3602
    %v3843 = vpack.c.b16 %v3619, %v3611
    %v3844 = vpack.c.b16 %v3620, %v3612
    %v3845 = vpack.c.b16 %v3621, %v3613
    %v3846 = vpack.c.b16 %v3622, %v3614
    %v3847 = vpack.c.b16 %v3623, %v3615
    %v3848 = vpack.c.b16 %v3624, %v3616
    %v3849 = vpack.c.b16 %v3625, %v3617
    %v3850 = vpack.c.b16 %v3626, %v3618
    %v3851 = vpack.c.b16 %v3635, %v3627
    %v3852 = vpack.c.b16 %v3636, %v3628
    %v3853 = vpack.c.b16 %v3637, %v3629
    %v3854 = vpack.c.b16 %v3638, %v3630
    %v3855 = vpack.c.b16 %v3639, %v3631
    %v3856 = vpack.c.b16 %v3640, %v3632
    %v3857 = vpack.c.b16 %v3641, %v3633
    %v3858 = vpack.c.b16 %v3642, %v3634
    %v3859 = vpack.c.b16 %v3651, %v3643
    %v3860 = vpack.c.b16 %v3652, %v3644
    %v3861 = vpack.c.b16 %v3653, %v3645
    %v3862 = vpack.c.b16 %v3654, %v3646
    %v3863 = vpack.c.b16 %v3655, %v3647
    %v3864 = vpack.c.b16 %v3656, %v3648
    %v3865 = vpack.c.b16 %v3657, %v3649
    %v3866 = vpack.c.b16 %v3658, %v3650
    %v3867 = vpack.c.b16 %v3667, %v3659
    %v3868 = vpack.c.b16 %v3668, %v3660
    %v3869 = vpack.c.b16 %v3669, %v3661
    %v3870 = vpack.c.b16 %v3670, %v3662
    %v3871 = vpack.c.b16 %v3671, %v3663
    %v3872 = vpack.c.b16 %v3672, %v3664
    %v3873 = vpack.c.b16 %v3673, %v3665
    %v3874 = vpack.c.b16 %v3674, %v3666
    %v3875 = vpack.c.b16 %v3683, %v3675
    %v3876 = vpack.c.b16 %v3684, %v3676
    %v3877 = vpack.c.b16 %v3685, %v3677
    %v3878 = vpack.c.b16 %v3686, %v3678
    %v3879 = vpack.c.b16 %v3687, %v3679
    %v3880 = vpack.c.b16 %v3688, %v3680
    %v3881 = vpack.c.b16 %v3689, %v3681
    %v3882 = vpack.c.b16 %v3690, %v3682
    %v3883 = vpack.c.b16 %v3699, %v3691
    %v3884 = vpack.c.b16 %v3700, %v3692
    %v3885 = vpack.c.b16 %v3701, %v3693
    %v3886 = vpack.c.b16 %v3702, %v3694
    %v3887 = vpack.c.b16 %v3703, %v3695
    %v3888 = vpack.c.b16 %v3704, %v3696
    %v3889 = vpack.c.b16 %v3705, %v3697
    %v3890 = vpack.c.b16 %v3706, %v3698
    %v3891 = vpack.c.b16 %v3715, %v3707
    %v3892 = vpack.c.b16 %v3716, %v3708
    %v3893 = vpack.c.b16 %v3717, %v3709
    %v3894 = vpack.c.b16 %v3718, %v3710
    %v3895 = vpack.c.b16 %v3719, %v3711
    %v3896 = vpack.c.b16 %v3720, %v3712
    %v3897 = vpack.c.b16 %v3721, %v3713
    %v3898 = vpack.c.b16 %v3722, %v3714
    %v3899 = vpack.c.b16 %v3731, %v3723
    %v3900 = vpack.c.b16 %v3732, %v3724
    %v3901 = vpack.c.b16 %v3733, %v3725
    %v3902 = vpack.c.b16 %v3734, %v3726
    %v3903 = vpack.c.b16 %v3735, %v3727
    %v3904 = vpack.c.b16 %v3736, %v3728
    %v3905 = vpack.c.b16 %v3737, %v3729
    %v3906 = vpack.c.b16 %v3738, %v3730
    %v3907 = vpack.c.b16 %v3747, %v3739
    %v3908 = vpack.c.b16 %v3748, %v3740
    %v3909 = vpack.c.b16 %v3749, %v3741
    %v3910 = vpack.c.b16 %v3750, %v3742
    %v3911 = vpack.c.b16 %v3751, %v3743
    %v3912 = vpack.c.b16 %v3752, %v3744
    %v3913 = vpack.c.b16 %v3753, %v3745
    %v3914 = vpack.c.b16 %v3754, %v3746
    %v3915 = vpack.c.b16 %v3763, %v3755
    %v3916 = vpack.c.b16 %v3764, %v3756
    %v3917 = vpack.c.b16 %v3765, %v3757
    %v3918 = vpack.c.b16 %v3766, %v3758
    %v3919 = vpack.c.b16 %v3767, %v3759
    %v3920 = vpack.c.b16 %v3768, %v3760
    %v3921 = vpack.c.b16 %v3769, %v3761
    %v3922 = vpack.c.b16 %v3770, %v3762
    %v3923 = vpack.c.b16 %v3779, %v3771
    %v3924 = vpack.c.b16 %v3780, %v3772
    %v3925 = vpack.c.b16 %v3781, %v3773
    %v3926 = vpack.c.b16 %v3782, %v3774
    %v3927 = vpack.c.b16 %v3783, %v3775
    %v3928 = vpack.c.b16 %v3784, %v3776
    %v3929 = vpack.c.b16 %v3785, %v3777
    %v3930 = vpack.c.b16 %v3786, %v3778
    %v3931 = vpack.c.b16 %v3795, %v3787
    %v3932 = vpack.c.b16 %v3796, %v3788
    %v3933 = vpack.c.b16 %v3797, %v3789
    %v3934 = vpack.c.b16 %v3798, %v3790
    %v3935 = vpack.c.b16 %v3799, %v3791
    %v3936 = vpack.c.b16 %v3800, %v3792
    %v3937 = vpack.c.b16 %v3801, %v3793
    %v3938 = vpack.c.b16 %v3802, %v3794
    %v3939 = vpack.c.b16 %v3811, %v3803
    %v3940 = vpack.c.b16 %v3812, %v3804
    %v3941 = vpack.c.b16 %v3813, %v3805
    %v3942 = vpack.c.b16 %v3814, %v3806
    %v3943 = vpack.c.b16 %v3815, %v3807
    %v3944 = vpack.c.b16 %v3816, %v3808
    %v3945 = vpack.c.b16 %v3817, %v3809
    %v3946 = vpack.c.b16 %v3818, %v3810
    %4075 = vmatprep.subr.bf16.mxu0 %v3876
    %4076 = vmatpush1.bf16.msra.mxu0 %v3875
    %4077 = vmatprep.subr.bf16.mxu0 %v3868
    %4078 = vmatpush1.bf16.msra.mxu0 %v3867
    %4079 = vmatprep.subr.bf16.mxu0 %v3860
    %4080 = vmatpush1.bf16.msra.mxu0 %v3859
    %4081 = vmatprep.subr.bf16.mxu0 %v3852
    %4082 = vmatpush1.bf16.msra.mxu0 %v3851
    %4083 = vmatprep.subr.bf16.mxu0 %v3844
    %4084 = vmatpush1.bf16.msra.mxu0 %v3843
    %4085 = vmatprep.subr.bf16.mxu0 %v3836
    %4086 = vmatpush1.bf16.msra.mxu0 %v3835
    %4087 = vmatprep.subr.bf16.mxu0 %v3828
    %4088 = vmatpush1.bf16.msra.mxu0 %v3827
    %4089 = vmatprep.subr.bf16.mxu0 %v3820
    %4090 = vmatpush1.bf16.msra.mxu0 %v3819
    %4091 = vmatprep.subr.bf16.mxu0 %v3940
    %4092 = vmatpush2.bf16.msra.mxu0 %v3939
    %4093 = vmatprep.subr.bf16.mxu0 %v3932
    %4094 = vmatpush2.bf16.msra.mxu0 %v3931
    %4095 = vmatprep.subr.bf16.mxu0 %v3924
    %4096 = vmatpush2.bf16.msra.mxu0 %v3923
    %4097 = vmatprep.subr.bf16.mxu0 %v3916
    %4098 = vmatpush2.bf16.msra.mxu0 %v3915
    %4099 = vmatprep.subr.bf16.mxu0 %v3908
    %4100 = vmatpush2.bf16.msra.mxu0 %v3907
    %4101 = vmatprep.subr.bf16.mxu0 %v3900
    %4102 = vmatpush2.bf16.msra.mxu0 %v3899
    %4103 = vmatprep.subr.bf16.mxu0 %v3892
    %4104 = vmatpush2.bf16.msra.mxu0 %v3891
    %4105 = vmatprep.subr.bf16.mxu0 %v3884
    %4106 = vmatpush2.bf16.msra.mxu0 %v3883
    %4107 = vmatprep.mubr.bf16.mxu0 %v3258
    %4108 = vmatmul.mubr.bf16.gmra.mxu0 %v3257
    %v4109 = vpop.f32.mrf.mxu0
    %v4110 = vadd.f32 %v3398, %v4109
    %v4111 = vpop.f32.mrf.mxu0
    %v4112 = vadd.f32 %v3402, %v4111
    %v4113 = vpop.f32.mrf.mxu0
    %v4114 = vadd.f32 %v3398, %v4113
    %v4115 = vpop.f32.mrf.mxu0
    %v4116 = vadd.f32 %v3402, %v4115
    %4117 = vmatprep.mubr.bf16.mxu0 %v3260
    %4118 = vmatmul.mubr.bf16.gmra.mxu0 %v3259
    %v4119 = vpop.f32.mrf.mxu0
    %v4120 = vadd.f32 %v3398, %v4119
    %v4121 = vpop.f32.mrf.mxu0
    %v4122 = vadd.f32 %v3402, %v4121
    %v4123 = vpop.f32.mrf.mxu0
    %v4124 = vadd.f32 %v3398, %v4123
    %v4125 = vpop.f32.mrf.mxu0
    %v4126 = vadd.f32 %v3402, %v4125
    %4127 = vmatprep.mubr.bf16.mxu0 %v3262
    %4128 = vmatmul.mubr.bf16.gmra.mxu0 %v3261
    %v4129 = vpop.f32.mrf.mxu0
    %v4130 = vadd.f32 %v3398, %v4129
    %v4131 = vpop.f32.mrf.mxu0
    %v4132 = vadd.f32 %v3402, %v4131
    %v4133 = vpop.f32.mrf.mxu0
    %v4134 = vadd.f32 %v3398, %v4133
    %v4135 = vpop.f32.mrf.mxu0
    %v4136 = vadd.f32 %v3402, %v4135
    %4137 = vmatprep.mubr.bf16.mxu0 %v3264
    %4138 = vmatmul.mubr.bf16.gmra.mxu0 %v3263
    %v4139 = vpop.f32.mrf.mxu0
    %v4140 = vadd.f32 %v3398, %v4139
    %v4141 = vpop.f32.mrf.mxu0
    %v4142 = vadd.f32 %v3402, %v4141
    %v4143 = vpop.f32.mrf.mxu0
    %v4144 = vadd.f32 %v3398, %v4143
    %v4145 = vpop.f32.mrf.mxu0
    %v4146 = vadd.f32 %v3402, %v4145
    %4147 = vdwg.mxu0
    %4148 = vmatprep.subr.bf16.mxu0 %v3878
    %4149 = vmatpush1.bf16.msra.mxu0 %v3877
    %4150 = vmatprep.subr.bf16.mxu0 %v3870
    %4151 = vmatpush1.bf16.msra.mxu0 %v3869
    %4152 = vmatprep.subr.bf16.mxu0 %v3862
    %4153 = vmatpush1.bf16.msra.mxu0 %v3861
    %4154 = vmatprep.subr.bf16.mxu0 %v3854
    %4155 = vmatpush1.bf16.msra.mxu0 %v3853
    %4156 = vmatprep.subr.bf16.mxu0 %v3846
    %4157 = vmatpush1.bf16.msra.mxu0 %v3845
    %4158 = vmatprep.subr.bf16.mxu0 %v3838
    %4159 = vmatpush1.bf16.msra.mxu0 %v3837
    %4160 = vmatprep.subr.bf16.mxu0 %v3830
    %4161 = vmatpush1.bf16.msra.mxu0 %v3829
    %4162 = vmatprep.subr.bf16.mxu0 %v3822
    %4163 = vmatpush1.bf16.msra.mxu0 %v3821
    %4164 = vmatprep.subr.bf16.mxu0 %v3942
    %4165 = vmatpush2.bf16.msra.mxu0 %v3941
    %4166 = vmatprep.subr.bf16.mxu0 %v3934
    %4167 = vmatpush2.bf16.msra.mxu0 %v3933
    %4168 = vmatprep.subr.bf16.mxu0 %v3926
    %4169 = vmatpush2.bf16.msra.mxu0 %v3925
    %4170 = vmatprep.subr.bf16.mxu0 %v3918
    %4171 = vmatpush2.bf16.msra.mxu0 %v3917
    %4172 = vmatprep.subr.bf16.mxu0 %v3910
    %4173 = vmatpush2.bf16.msra.mxu0 %v3909
    %4174 = vmatprep.subr.bf16.mxu0 %v3902
    %4175 = vmatpush2.bf16.msra.mxu0 %v3901
    %4176 = vmatprep.subr.bf16.mxu0 %v3894
    %4177 = vmatpush2.bf16.msra.mxu0 %v3893
    %4178 = vmatprep.subr.bf16.mxu0 %v3886
    %4179 = vmatpush2.bf16.msra.mxu0 %v3885
    %4180 = vmatprep.mubr.bf16.mxu0 %v3258
    %4181 = vmatmul.mubr.bf16.gmra.mxu0 %v3257
    %v4182 = vpop.f32.mrf.mxu0
    %v4183 = vadd.f32 %v3406, %v4182
    %v4184 = vpop.f32.mrf.mxu0
    %v4185 = vadd.f32 %v3410, %v4184
    %v4186 = vpop.f32.mrf.mxu0
    %v4187 = vadd.f32 %v3406, %v4186
    %v4188 = vpop.f32.mrf.mxu0
    %v4189 = vadd.f32 %v3410, %v4188
    %4190 = vmatprep.mubr.bf16.mxu0 %v3260
    %4191 = vmatmul.mubr.bf16.gmra.mxu0 %v3259
    %v4192 = vpop.f32.mrf.mxu0
    %v4193 = vadd.f32 %v3406, %v4192
    %v4194 = vpop.f32.mrf.mxu0
    %v4195 = vadd.f32 %v3410, %v4194
    %v4196 = vpop.f32.mrf.mxu0
    %v4197 = vadd.f32 %v3406, %v4196
    %v4198 = vpop.f32.mrf.mxu0
    %v4199 = vadd.f32 %v3410, %v4198
    %4200 = vmatprep.mubr.bf16.mxu0 %v3262
    %4201 = vmatmul.mubr.bf16.gmra.mxu0 %v3261
    %v4202 = vpop.f32.mrf.mxu0
    %v4203 = vadd.f32 %v3406, %v4202
    %v4204 = vpop.f32.mrf.mxu0
    %v4205 = vadd.f32 %v3410, %v4204
    %v4206 = vpop.f32.mrf.mxu0
    %v4207 = vadd.f32 %v3406, %v4206
    %v4208 = vpop.f32.mrf.mxu0
    %v4209 = vadd.f32 %v3410, %v4208
    %4210 = vmatprep.mubr.bf16.mxu0 %v3264
    %4211 = vmatmul.mubr.bf16.gmra.mxu0 %v3263
    %v4212 = vpop.f32.mrf.mxu0
    %v4213 = vadd.f32 %v3406, %v4212
    %v4214 = vpop.f32.mrf.mxu0
    %v4215 = vadd.f32 %v3410, %v4214
    %v4216 = vpop.f32.mrf.mxu0
    %v4217 = vadd.f32 %v3406, %v4216
    %v4218 = vpop.f32.mrf.mxu0
    %v4219 = vadd.f32 %v3410, %v4218
    %4220 = vdwg.mxu0
    %4221 = vmatprep.subr.bf16.mxu0 %v3880
    %4222 = vmatpush1.bf16.msra.mxu0 %v3879
    %4223 = vmatprep.subr.bf16.mxu0 %v3872
    %4224 = vmatpush1.bf16.msra.mxu0 %v3871
    %4225 = vmatprep.subr.bf16.mxu0 %v3864
    %4226 = vmatpush1.bf16.msra.mxu0 %v3863
    %4227 = vmatprep.subr.bf16.mxu0 %v3856
    %4228 = vmatpush1.bf16.msra.mxu0 %v3855
    %4229 = vmatprep.subr.bf16.mxu0 %v3848
    %4230 = vmatpush1.bf16.msra.mxu0 %v3847
    %4231 = vmatprep.subr.bf16.mxu0 %v3840
    %4232 = vmatpush1.bf16.msra.mxu0 %v3839
    %4233 = vmatprep.subr.bf16.mxu0 %v3832
    %4234 = vmatpush1.bf16.msra.mxu0 %v3831
    %4235 = vmatprep.subr.bf16.mxu0 %v3824
    %4236 = vmatpush1.bf16.msra.mxu0 %v3823
    %4237 = vmatprep.subr.bf16.mxu0 %v3944
    %4238 = vmatpush2.bf16.msra.mxu0 %v3943
    %4239 = vmatprep.subr.bf16.mxu0 %v3936
    %4240 = vmatpush2.bf16.msra.mxu0 %v3935
    %4241 = vmatprep.subr.bf16.mxu0 %v3928
    %4242 = vmatpush2.bf16.msra.mxu0 %v3927
    %4243 = vmatprep.subr.bf16.mxu0 %v3920
    %4244 = vmatpush2.bf16.msra.mxu0 %v3919
    %4245 = vmatprep.subr.bf16.mxu0 %v3912
    %4246 = vmatpush2.bf16.msra.mxu0 %v3911
    %4247 = vmatprep.subr.bf16.mxu0 %v3904
    %4248 = vmatpush2.bf16.msra.mxu0 %v3903
    %4249 = vmatprep.subr.bf16.mxu0 %v3896
    %4250 = vmatpush2.bf16.msra.mxu0 %v3895
    %4251 = vmatprep.subr.bf16.mxu0 %v3888
    %4252 = vmatpush2.bf16.msra.mxu0 %v3887
    %4253 = vmatprep.mubr.bf16.mxu0 %v3258
    %4254 = vmatmul.mubr.bf16.gmra.mxu0 %v3257
    %v4255 = vpop.f32.mrf.mxu0
    %v4256 = vadd.f32 %v3414, %v4255
    %v4257 = vpop.f32.mrf.mxu0
    %v4258 = vadd.f32 %v3418, %v4257
    %v4259 = vpop.f32.mrf.mxu0
    %v4260 = vadd.f32 %v3414, %v4259
    %v4261 = vpop.f32.mrf.mxu0
    %v4262 = vadd.f32 %v3418, %v4261
    %4263 = vmatprep.mubr.bf16.mxu0 %v3260
    %4264 = vmatmul.mubr.bf16.gmra.mxu0 %v3259
    %v4265 = vpop.f32.mrf.mxu0
    %v4266 = vadd.f32 %v3414, %v4265
    %v4267 = vpop.f32.mrf.mxu0
    %v4268 = vadd.f32 %v3418, %v4267
    %v4269 = vpop.f32.mrf.mxu0
    %v4270 = vadd.f32 %v3414, %v4269
    %v4271 = vpop.f32.mrf.mxu0
    %v4272 = vadd.f32 %v3418, %v4271
    %4273 = vmatprep.mubr.bf16.mxu0 %v3262
    %4274 = vmatmul.mubr.bf16.gmra.mxu0 %v3261
    %v4275 = vpop.f32.mrf.mxu0
    %v4276 = vadd.f32 %v3414, %v4275
    %v4277 = vpop.f32.mrf.mxu0
    %v4278 = vadd.f32 %v3418, %v4277
    %v4279 = vpop.f32.mrf.mxu0
    %v4280 = vadd.f32 %v3414, %v4279
    %v4281 = vpop.f32.mrf.mxu0
    %v4282 = vadd.f32 %v3418, %v4281
    %4283 = vmatprep.mubr.bf16.mxu0 %v3264
    %4284 = vmatmul.mubr.bf16.gmra.mxu0 %v3263
    %v4285 = vpop.f32.mrf.mxu0
    %v4286 = vadd.f32 %v3414, %v4285
    %v4287 = vpop.f32.mrf.mxu0
    %v4288 = vadd.f32 %v3418, %v4287
    %v4289 = vpop.f32.mrf.mxu0
    %v4290 = vadd.f32 %v3414, %v4289
    %v4291 = vpop.f32.mrf.mxu0
    %v4292 = vadd.f32 %v3418, %v4291
    %4293 = vdwg.mxu0
    %4294 = vmatprep.subr.bf16.mxu0 %v3882
    %4295 = vmatpush1.bf16.msra.mxu0 %v3881
    %4296 = vmatprep.subr.bf16.mxu0 %v3874
    %4297 = vmatpush1.bf16.msra.mxu0 %v3873
    %4298 = vmatprep.subr.bf16.mxu0 %v3866
    %4299 = vmatpush1.bf16.msra.mxu0 %v3865
    %4300 = vmatprep.subr.bf16.mxu0 %v3858
    %4301 = vmatpush1.bf16.msra.mxu0 %v3857
    %4302 = vmatprep.subr.bf16.mxu0 %v3850
    %4303 = vmatpush1.bf16.msra.mxu0 %v3849
    %4304 = vmatprep.subr.bf16.mxu0 %v3842
    %4305 = vmatpush1.bf16.msra.mxu0 %v3841
    %4306 = vmatprep.subr.bf16.mxu0 %v3834
    %4307 = vmatpush1.bf16.msra.mxu0 %v3833
    %4308 = vmatprep.subr.bf16.mxu0 %v3826
    %4309 = vmatpush1.bf16.msra.mxu0 %v3825
    %4310 = vmatprep.subr.bf16.mxu0 %v3946
    %4311 = vmatpush2.bf16.msra.mxu0 %v3945
    %4312 = vmatprep.subr.bf16.mxu0 %v3938
    %4313 = vmatpush2.bf16.msra.mxu0 %v3937
    %4314 = vmatprep.subr.bf16.mxu0 %v3930
    %4315 = vmatpush2.bf16.msra.mxu0 %v3929
    %4316 = vmatprep.subr.bf16.mxu0 %v3922
    %4317 = vmatpush2.bf16.msra.mxu0 %v3921
    %4318 = vmatprep.subr.bf16.mxu0 %v3914
    %4319 = vmatpush2.bf16.msra.mxu0 %v3913
    %4320 = vmatprep.subr.bf16.mxu0 %v3906
    %4321 = vmatpush2.bf16.msra.mxu0 %v3905
    %4322 = vmatprep.subr.bf16.mxu0 %v3898
    %4323 = vmatpush2.bf16.msra.mxu0 %v3897
    %4324 = vmatprep.subr.bf16.mxu0 %v3890
    %4325 = vmatpush2.bf16.msra.mxu0 %v3889
    %4326 = vmatprep.mubr.bf16.mxu0 %v3258
    %4327 = vmatmul.mubr.bf16.gmra.mxu0 %v3257
    %v4328 = vpop.f32.mrf.mxu0
    %v4329 = vadd.f32 %v3422, %v4328
    %v4330 = vpop.f32.mrf.mxu0
    %v4331 = vadd.f32 %v3426, %v4330
    %v4332 = vpop.f32.mrf.mxu0
    %v4333 = vadd.f32 %v3422, %v4332
    %v4334 = vpop.f32.mrf.mxu0
    %v4335 = vadd.f32 %v3426, %v4334
    %4336 = vmatprep.mubr.bf16.mxu0 %v3260
    %4337 = vmatmul.mubr.bf16.gmra.mxu0 %v3259
    %v4338 = vpop.f32.mrf.mxu0
    %v4339 = vadd.f32 %v3422, %v4338
    %v4340 = vpop.f32.mrf.mxu0
    %v4341 = vadd.f32 %v3426, %v4340
    %v4342 = vpop.f32.mrf.mxu0
    %v4343 = vadd.f32 %v3422, %v4342
    %v4344 = vpop.f32.mrf.mxu0
    %v4345 = vadd.f32 %v3426, %v4344
    %4346 = vmatprep.mubr.bf16.mxu0 %v3262
    %4347 = vmatmul.mubr.bf16.gmra.mxu0 %v3261
    %v4348 = vpop.f32.mrf.mxu0
    %v4349 = vadd.f32 %v3422, %v4348
    %v4350 = vpop.f32.mrf.mxu0
    %v4351 = vadd.f32 %v3426, %v4350
    %v4352 = vpop.f32.mrf.mxu0
    %v4353 = vadd.f32 %v3422, %v4352
    %v4354 = vpop.f32.mrf.mxu0
    %v4355 = vadd.f32 %v3426, %v4354
    %4356 = vmatprep.mubr.bf16.mxu0 %v3264
    %4357 = vmatmul.mubr.bf16.gmra.mxu0 %v3263
    %v4358 = vpop.f32.mrf.mxu0
    %v4359 = vadd.f32 %v3422, %v4358
    %v4360 = vpop.f32.mrf.mxu0
    %v4361 = vadd.f32 %v3426, %v4360
    %v4362 = vpop.f32.mrf.mxu0
    %v4363 = vadd.f32 %v3422, %v4362
    %v4364 = vpop.f32.mrf.mxu0
    %v4365 = vadd.f32 %v3426, %v4364
    %4366 = vdwg.mxu0
    %4367 = vst [vmem:[#allocation2] sm:$0xff] %v4110
    %4368 = vst [vmem:[#allocation2 + $0x8] sm:$0xff] %v4112
    %4369 = vst [vmem:[#allocation2 + $0x10] sm:$0xff] %v4183
    %4370 = vst [vmem:[#allocation2 + $0x18] sm:$0xff] %v4185
    %4371 = vst [vmem:[#allocation2 + $0x20] sm:$0xff] %v4256
    %4372 = vst [vmem:[#allocation2 + $0x28] sm:$0xff] %v4258
    %4373 = vst [vmem:[#allocation2 + $0x30] sm:$0xff] %v4329
    %4374 = vst [vmem:[#allocation2 + $0x38] sm:$0xff] %v4331
    %4375 = vst [vmem:[#allocation2 + $0x40] sm:$0xff] %v4114
    %4376 = vst [vmem:[#allocation2 + $0x48] sm:$0xff] %v4116
    %4377 = vst [vmem:[#allocation2 + $0x50] sm:$0xff] %v4187
    %4378 = vst [vmem:[#allocation2 + $0x58] sm:$0xff] %v4189
    %4379 = vst [vmem:[#allocation2 + $0x60] sm:$0xff] %v4260
    %4380 = vst [vmem:[#allocation2 + $0x68] sm:$0xff] %v4262
    %4381 = vst [vmem:[#allocation2 + $0x70] sm:$0xff] %v4333
    %4382 = vst [vmem:[#allocation2 + $0x78] sm:$0xff] %v4335
    %4383 = vst [vmem:[#allocation2 + $0x80] sm:$0xff] %v4120
    %4384 = vst [vmem:[#allocation2 + $0x88] sm:$0xff] %v4122
    %4385 = vst [vmem:[#allocation2 + $0x90] sm:$0xff] %v4193
    %4386 = vst [vmem:[#allocation2 + $0x98] sm:$0xff] %v4195
    %4387 = vst [vmem:[#allocation2 + $0xa0] sm:$0xff] %v4266
    %4388 = vst [vmem:[#allocation2 + $0xa8] sm:$0xff] %v4268
    %4389 = vst [vmem:[#allocation2 + $0xb0] sm:$0xff] %v4339
    %4390 = vst [vmem:[#allocation2 + $0xb8] sm:$0xff] %v4341
    %4391 = vst [vmem:[#allocation2 + $0xc0] sm:$0xff] %v4124
    %4392 = vst [vmem:[#allocation2 + $0xc8] sm:$0xff] %v4126
    %4393 = vst [vmem:[#allocation2 + $0xd0] sm:$0xff] %v4197
    %4394 = vst [vmem:[#allocation2 + $0xd8] sm:$0xff] %v4199
    %4395 = vst [vmem:[#allocation2 + $0xe0] sm:$0xff] %v4270
    %4396 = vst [vmem:[#allocation2 + $0xe8] sm:$0xff] %v4272
    %4397 = vst [vmem:[#allocation2 + $0xf0] sm:$0xff] %v4343
    %4398 = vst [vmem:[#allocation2 + $0xf8] sm:$0xff] %v4345
    %4399 = vst [vmem:[#allocation2 + $0x100] sm:$0xff] %v4130
    %4400 = vst [vmem:[#allocation2 + $0x108] sm:$0xff] %v4132
    %4401 = vst [vmem:[#allocation2 + $0x110] sm:$0xff] %v4203
    %4402 = vst [vmem:[#allocation2 + $0x118] sm:$0xff] %v4205
    %4403 = vst [vmem:[#allocation2 + $0x120] sm:$0xff] %v4276
    %4404 = vst [vmem:[#allocation2 + $0x128] sm:$0xff] %v4278
    %4405 = vst [vmem:[#allocation2 + $0x130] sm:$0xff] %v4349
    %4406 = vst [vmem:[#allocation2 + $0x138] sm:$0xff] %v4351
    %4407 = vst [vmem:[#allocation2 + $0x140] sm:$0xff] %v4134
    %4408 = vst [vmem:[#allocation2 + $0x148] sm:$0xff] %v4136
    %4409 = vst [vmem:[#allocation2 + $0x150] sm:$0xff] %v4207
    %4410 = vst [vmem:[#allocation2 + $0x158] sm:$0xff] %v4209
    %4411 = vst [vmem:[#allocation2 + $0x160] sm:$0xff] %v4280
    %4412 = vst [vmem:[#allocation2 + $0x168] sm:$0xff] %v4282
    %4413 = vst [vmem:[#allocation2 + $0x170] sm:$0xff] %v4353
    %4414 = vst [vmem:[#allocation2 + $0x178] sm:$0xff] %v4355
    %4415 = vst [vmem:[#allocation2 + $0x180] sm:$0xff] %v4140
    %4416 = vst [vmem:[#allocation2 + $0x188] sm:$0xff] %v4142
    %4417 = vst [vmem:[#allocation2 + $0x190] sm:$0xff] %v4213
    %4418 = vst [vmem:[#allocation2 + $0x198] sm:$0xff] %v4215
    %4419 = vst [vmem:[#allocation2 + $0x1a0] sm:$0xff] %v4286
    %4420 = vst [vmem:[#allocation2 + $0x1a8] sm:$0xff] %v4288
    %4421 = vst [vmem:[#allocation2 + $0x1b0] sm:$0xff] %v4359
    %4422 = vst [vmem:[#allocation2 + $0x1b8] sm:$0xff] %v4361
    %4423 = vst [vmem:[#allocation2 + $0x1c0] sm:$0xff] %v4144
    %4424 = vst [vmem:[#allocation2 + $0x1c8] sm:$0xff] %v4146
    %4425 = vst [vmem:[#allocation2 + $0x1d0] sm:$0xff] %v4217
    %4426 = vst [vmem:[#allocation2 + $0x1d8] sm:$0xff] %v4219
    %4427 = vst [vmem:[#allocation2 + $0x1e0] sm:$0xff] %v4290
    %4428 = vst [vmem:[#allocation2 + $0x1e8] sm:$0xff] %v4292
    %4429 = vst [vmem:[#allocation2 + $0x1f0] sm:$0xff] %v4363
    %4430 = vst [vmem:[#allocation2 + $0x1f8] sm:$0xff] %v4365
    %v4431 = vld [vmem:[#allocation9] sm:$0xff]
    %v4432 = vld [vmem:[#allocation9 + $0x8] sm:$0xff]
    %v4433 = vld [vmem:[#allocation9 + $0x10] sm:$0xff]
    %v4434 = vld [vmem:[#allocation9 + $0x18] sm:$0xff]
    %v4435 = vld [vmem:[#allocation9 + $0x20] sm:$0xff]
    %v4436 = vld [vmem:[#allocation9 + $0x28] sm:$0xff]
    %v4437 = vld [vmem:[#allocation9 + $0x30] sm:$0xff]
    %v4438 = vld [vmem:[#allocation9 + $0x38] sm:$0xff]
    %v4439 = vld [vmem:[#allocation9 + $0x40] sm:$0xff]
    %v4440 = vld [vmem:[#allocation9 + $0x48] sm:$0xff]
    %v4441 = vld [vmem:[#allocation9 + $0x50] sm:$0xff]
    %v4442 = vld [vmem:[#allocation9 + $0x58] sm:$0xff]
    %v4443 = vld [vmem:[#allocation9 + $0x60] sm:$0xff]
    %v4444 = vld [vmem:[#allocation9 + $0x68] sm:$0xff]
    %v4445 = vld [vmem:[#allocation9 + $0x70] sm:$0xff]
    %v4446 = vld [vmem:[#allocation9 + $0x78] sm:$0xff]
    %v4447 = vld [vmem:[#allocation9 + $0x80] sm:$0xff]
    %v4448 = vld [vmem:[#allocation9 + $0x88] sm:$0xff]
    %v4449 = vld [vmem:[#allocation9 + $0x90] sm:$0xff]
    %v4450 = vld [vmem:[#allocation9 + $0x98] sm:$0xff]
    %v4451 = vld [vmem:[#allocation9 + $0xa0] sm:$0xff]
    %v4452 = vld [vmem:[#allocation9 + $0xa8] sm:$0xff]
    %v4453 = vld [vmem:[#allocation9 + $0xb0] sm:$0xff]
    %v4454 = vld [vmem:[#allocation9 + $0xb8] sm:$0xff]
    %v4455 = vld [vmem:[#allocation9 + $0xc0] sm:$0xff]
    %v4456 = vld [vmem:[#allocation9 + $0xc8] sm:$0xff]
    %v4457 = vld [vmem:[#allocation9 + $0xd0] sm:$0xff]
    %v4458 = vld [vmem:[#allocation9 + $0xd8] sm:$0xff]
    %v4459 = vld [vmem:[#allocation9 + $0xe0] sm:$0xff]
    %v4460 = vld [vmem:[#allocation9 + $0xe8] sm:$0xff]
    %v4461 = vld [vmem:[#allocation9 + $0xf0] sm:$0xff]
    %v4462 = vld [vmem:[#allocation9 + $0xf8] sm:$0xff]
    %v4463 = vld [vmem:[#allocation9 + $0x100] sm:$0xff]
    %v4464 = vld [vmem:[#allocation9 + $0x108] sm:$0xff]
    %v4465 = vld [vmem:[#allocation9 + $0x110] sm:$0xff]
    %v4466 = vld [vmem:[#allocation9 + $0x118] sm:$0xff]
    %v4467 = vld [vmem:[#allocation9 + $0x120] sm:$0xff]
    %v4468 = vld [vmem:[#allocation9 + $0x128] sm:$0xff]
    %v4469 = vld [vmem:[#allocation9 + $0x130] sm:$0xff]
    %v4470 = vld [vmem:[#allocation9 + $0x138] sm:$0xff]
    %v4471 = vld [vmem:[#allocation9 + $0x140] sm:$0xff]
    %v4472 = vld [vmem:[#allocation9 + $0x148] sm:$0xff]
    %v4473 = vld [vmem:[#allocation9 + $0x150] sm:$0xff]
    %v4474 = vld [vmem:[#allocation9 + $0x158] sm:$0xff]
    %v4475 = vld [vmem:[#allocation9 + $0x160] sm:$0xff]
    %v4476 = vld [vmem:[#allocation9 + $0x168] sm:$0xff]
    %v4477 = vld [vmem:[#allocation9 + $0x170] sm:$0xff]
    %v4478 = vld [vmem:[#allocation9 + $0x178] sm:$0xff]
    %v4479 = vld [vmem:[#allocation9 + $0x180] sm:$0xff]
    %v4480 = vld [vmem:[#allocation9 + $0x188] sm:$0xff]
    %v4481 = vld [vmem:[#allocation9 + $0x190] sm:$0xff]
    %v4482 = vld [vmem:[#allocation9 + $0x198] sm:$0xff]
    %v4483 = vld [vmem:[#allocation9 + $0x1a0] sm:$0xff]
    %v4484 = vld [vmem:[#allocation9 + $0x1a8] sm:$0xff]
    %v4485 = vld [vmem:[#allocation9 + $0x1b0] sm:$0xff]
    %v4486 = vld [vmem:[#allocation9 + $0x1b8] sm:$0xff]
    %v4487 = vld [vmem:[#allocation9 + $0x1c0] sm:$0xff]
    %v4488 = vld [vmem:[#allocation9 + $0x1c8] sm:$0xff]
    %v4489 = vld [vmem:[#allocation9 + $0x1d0] sm:$0xff]
    %v4490 = vld [vmem:[#allocation9 + $0x1d8] sm:$0xff]
    %v4491 = vld [vmem:[#allocation9 + $0x1e0] sm:$0xff]
    %v4492 = vld [vmem:[#allocation9 + $0x1e8] sm:$0xff]
    %v4493 = vld [vmem:[#allocation9 + $0x1f0] sm:$0xff]
    %v4494 = vld [vmem:[#allocation9 + $0x1f8] sm:$0xff]
    %v4495 = vld [vmem:[#allocation9 + $0x200] sm:$0xff]
    %v4496 = vld [vmem:[#allocation9 + $0x208] sm:$0xff]
    %v4497 = vld [vmem:[#allocation9 + $0x210] sm:$0xff]
    %v4498 = vld [vmem:[#allocation9 + $0x218] sm:$0xff]
    %v4499 = vld [vmem:[#allocation9 + $0x220] sm:$0xff]
    %v4500 = vld [vmem:[#allocation9 + $0x228] sm:$0xff]
    %v4501 = vld [vmem:[#allocation9 + $0x230] sm:$0xff]
    %v4502 = vld [vmem:[#allocation9 + $0x238] sm:$0xff]
    %v4503 = vld [vmem:[#allocation9 + $0x240] sm:$0xff]
    %v4504 = vld [vmem:[#allocation9 + $0x248] sm:$0xff]
    %v4505 = vld [vmem:[#allocation9 + $0x250] sm:$0xff]
    %v4506 = vld [vmem:[#allocation9 + $0x258] sm:$0xff]
    %v4507 = vld [vmem:[#allocation9 + $0x260] sm:$0xff]
    %v4508 = vld [vmem:[#allocation9 + $0x268] sm:$0xff]
    %v4509 = vld [vmem:[#allocation9 + $0x270] sm:$0xff]
    %v4510 = vld [vmem:[#allocation9 + $0x278] sm:$0xff]
    %v4511 = vld [vmem:[#allocation9 + $0x280] sm:$0xff]
    %v4512 = vld [vmem:[#allocation9 + $0x288] sm:$0xff]
    %v4513 = vld [vmem:[#allocation9 + $0x290] sm:$0xff]
    %v4514 = vld [vmem:[#allocation9 + $0x298] sm:$0xff]
    %v4515 = vld [vmem:[#allocation9 + $0x2a0] sm:$0xff]
    %v4516 = vld [vmem:[#allocation9 + $0x2a8] sm:$0xff]
    %v4517 = vld [vmem:[#allocation9 + $0x2b0] sm:$0xff]
    %v4518 = vld [vmem:[#allocation9 + $0x2b8] sm:$0xff]
    %v4519 = vld [vmem:[#allocation9 + $0x2c0] sm:$0xff]
    %v4520 = vld [vmem:[#allocation9 + $0x2c8] sm:$0xff]
    %v4521 = vld [vmem:[#allocation9 + $0x2d0] sm:$0xff]
    %v4522 = vld [vmem:[#allocation9 + $0x2d8] sm:$0xff]
    %v4523 = vld [vmem:[#allocation9 + $0x2e0] sm:$0xff]
    %v4524 = vld [vmem:[#allocation9 + $0x2e8] sm:$0xff]
    %v4525 = vld [vmem:[#allocation9 + $0x2f0] sm:$0xff]
    %v4526 = vld [vmem:[#allocation9 + $0x2f8] sm:$0xff]
    %v4527 = vld [vmem:[#allocation9 + $0x300] sm:$0xff]
    %v4528 = vld [vmem:[#allocation9 + $0x308] sm:$0xff]
    %v4529 = vld [vmem:[#allocation9 + $0x310] sm:$0xff]
    %v4530 = vld [vmem:[#allocation9 + $0x318] sm:$0xff]
    %v4531 = vld [vmem:[#allocation9 + $0x320] sm:$0xff]
    %v4532 = vld [vmem:[#allocation9 + $0x328] sm:$0xff]
    %v4533 = vld [vmem:[#allocation9 + $0x330] sm:$0xff]
    %v4534 = vld [vmem:[#allocation9 + $0x338] sm:$0xff]
    %v4535 = vld [vmem:[#allocation9 + $0x340] sm:$0xff]
    %v4536 = vld [vmem:[#allocation9 + $0x348] sm:$0xff]
    %v4537 = vld [vmem:[#allocation9 + $0x350] sm:$0xff]
    %v4538 = vld [vmem:[#allocation9 + $0x358] sm:$0xff]
    %v4539 = vld [vmem:[#allocation9 + $0x360] sm:$0xff]
    %v4540 = vld [vmem:[#allocation9 + $0x368] sm:$0xff]
    %v4541 = vld [vmem:[#allocation9 + $0x370] sm:$0xff]
    %v4542 = vld [vmem:[#allocation9 + $0x378] sm:$0xff]
    %v4543 = vld [vmem:[#allocation9 + $0x380] sm:$0xff]
    %v4544 = vld [vmem:[#allocation9 + $0x388] sm:$0xff]
    %v4545 = vld [vmem:[#allocation9 + $0x390] sm:$0xff]
    %v4546 = vld [vmem:[#allocation9 + $0x398] sm:$0xff]
    %v4547 = vld [vmem:[#allocation9 + $0x3a0] sm:$0xff]
    %v4548 = vld [vmem:[#allocation9 + $0x3a8] sm:$0xff]
    %v4549 = vld [vmem:[#allocation9 + $0x3b0] sm:$0xff]
    %v4550 = vld [vmem:[#allocation9 + $0x3b8] sm:$0xff]
    %v4551 = vld [vmem:[#allocation9 + $0x3c0] sm:$0xff]
    %v4552 = vld [vmem:[#allocation9 + $0x3c8] sm:$0xff]
    %v4553 = vld [vmem:[#allocation9 + $0x3d0] sm:$0xff]
    %v4554 = vld [vmem:[#allocation9 + $0x3d8] sm:$0xff]
    %v4555 = vld [vmem:[#allocation9 + $0x3e0] sm:$0xff]
    %v4556 = vld [vmem:[#allocation9 + $0x3e8] sm:$0xff]
    %v4557 = vld [vmem:[#allocation9 + $0x3f0] sm:$0xff]
    %v4558 = vld [vmem:[#allocation9 + $0x3f8] sm:$0xff]
    %v4559 = vld [vmem:[%s9] sm:$0xff]
    %v4560 = vld [vmem:[%s9 + $0x8] sm:$0xff]
    %v4561 = vld [vmem:[%s10] sm:$0xff]
    %v4562 = vld [vmem:[%s10 + $0x8] sm:$0xff]
    %v4563 = vpack.c.bf16 %v4559, %v4559
    %v4564 = vpack.c.bf16 %v4560, %v4560
    %v4693 = vunpack.c.l.b16 %v4431
    %v4694 = vunpack.c.h.b16 %v4431
    %v4695 = vunpack.c.l.b16 %v4432
    %v4696 = vunpack.c.h.b16 %v4432
    %v4697 = vunpack.c.l.b16 %v4433
    %v4698 = vunpack.c.h.b16 %v4433
    %v4699 = vunpack.c.l.b16 %v4434
    %v4700 = vunpack.c.h.b16 %v4434
    %v4701 = vunpack.c.l.b16 %v4435
    %v4702 = vunpack.c.h.b16 %v4435
    %v4703 = vunpack.c.l.b16 %v4436
    %v4704 = vunpack.c.h.b16 %v4436
    %v4705 = vunpack.c.l.b16 %v4437
    %v4706 = vunpack.c.h.b16 %v4437
    %v4707 = vunpack.c.l.b16 %v4438
    %v4708 = vunpack.c.h.b16 %v4438
    %v4709 = vunpack.c.l.b16 %v4439
    %v4710 = vunpack.c.h.b16 %v4439
    %v4711 = vunpack.c.l.b16 %v4440
    %v4712 = vunpack.c.h.b16 %v4440
    %v4713 = vunpack.c.l.b16 %v4441
    %v4714 = vunpack.c.h.b16 %v4441
    %v4715 = vunpack.c.l.b16 %v4442
    %v4716 = vunpack.c.h.b16 %v4442
    %v4717 = vunpack.c.l.b16 %v4443
    %v4718 = vunpack.c.h.b16 %v4443
    %v4719 = vunpack.c.l.b16 %v4444
    %v4720 = vunpack.c.h.b16 %v4444
    %v4721 = vunpack.c.l.b16 %v4445
    %v4722 = vunpack.c.h.b16 %v4445
    %v4723 = vunpack.c.l.b16 %v4446
    %v4724 = vunpack.c.h.b16 %v4446
    %v4725 = vunpack.c.l.b16 %v4447
    %v4726 = vunpack.c.h.b16 %v4447
    %v4727 = vunpack.c.l.b16 %v4448
    %v4728 = vunpack.c.h.b16 %v4448
    %v4729 = vunpack.c.l.b16 %v4449
    %v4730 = vunpack.c.h.b16 %v4449
    %v4731 = vunpack.c.l.b16 %v4450
    %v4732 = vunpack.c.h.b16 %v4450
    %v4733 = vunpack.c.l.b16 %v4451
    %v4734 = vunpack.c.h.b16 %v4451
    %v4735 = vunpack.c.l.b16 %v4452
    %v4736 = vunpack.c.h.b16 %v4452
    %v4737 = vunpack.c.l.b16 %v4453
    %v4738 = vunpack.c.h.b16 %v4453
    %v4739 = vunpack.c.l.b16 %v4454
    %v4740 = vunpack.c.h.b16 %v4454
    %v4741 = vunpack.c.l.b16 %v4455
    %v4742 = vunpack.c.h.b16 %v4455
    %v4743 = vunpack.c.l.b16 %v4456
    %v4744 = vunpack.c.h.b16 %v4456
    %v4745 = vunpack.c.l.b16 %v4457
    %v4746 = vunpack.c.h.b16 %v4457
    %v4747 = vunpack.c.l.b16 %v4458
    %v4748 = vunpack.c.h.b16 %v4458
    %v4749 = vunpack.c.l.b16 %v4459
    %v4750 = vunpack.c.h.b16 %v4459
    %v4751 = vunpack.c.l.b16 %v4460
    %v4752 = vunpack.c.h.b16 %v4460
    %v4753 = vunpack.c.l.b16 %v4461
    %v4754 = vunpack.c.h.b16 %v4461
    %v4755 = vunpack.c.l.b16 %v4462
    %v4756 = vunpack.c.h.b16 %v4462
    %v4757 = vunpack.c.l.b16 %v4463
    %v4758 = vunpack.c.h.b16 %v4463
    %v4759 = vunpack.c.l.b16 %v4464
    %v4760 = vunpack.c.h.b16 %v4464
    %v4761 = vunpack.c.l.b16 %v4465
    %v4762 = vunpack.c.h.b16 %v4465
    %v4763 = vunpack.c.l.b16 %v4466
    %v4764 = vunpack.c.h.b16 %v4466
    %v4765 = vunpack.c.l.b16 %v4467
    %v4766 = vunpack.c.h.b16 %v4467
    %v4767 = vunpack.c.l.b16 %v4468
    %v4768 = vunpack.c.h.b16 %v4468
    %v4769 = vunpack.c.l.b16 %v4469
    %v4770 = vunpack.c.h.b16 %v4469
    %v4771 = vunpack.c.l.b16 %v4470
    %v4772 = vunpack.c.h.b16 %v4470
    %v4773 = vunpack.c.l.b16 %v4471
    %v4774 = vunpack.c.h.b16 %v4471
    %v4775 = vunpack.c.l.b16 %v4472
    %v4776 = vunpack.c.h.b16 %v4472
    %v4777 = vunpack.c.l.b16 %v4473
    %v4778 = vunpack.c.h.b16 %v4473
    %v4779 = vunpack.c.l.b16 %v4474
    %v4780 = vunpack.c.h.b16 %v4474
    %v4781 = vunpack.c.l.b16 %v4475
    %v4782 = vunpack.c.h.b16 %v4475
    %v4783 = vunpack.c.l.b16 %v4476
    %v4784 = vunpack.c.h.b16 %v4476
    %v4785 = vunpack.c.l.b16 %v4477
    %v4786 = vunpack.c.h.b16 %v4477
    %v4787 = vunpack.c.l.b16 %v4478
    %v4788 = vunpack.c.h.b16 %v4478
    %v4789 = vunpack.c.l.b16 %v4479
    %v4790 = vunpack.c.h.b16 %v4479
    %v4791 = vunpack.c.l.b16 %v4480
    %v4792 = vunpack.c.h.b16 %v4480
    %v4793 = vunpack.c.l.b16 %v4481
    %v4794 = vunpack.c.h.b16 %v4481
    %v4795 = vunpack.c.l.b16 %v4482
    %v4796 = vunpack.c.h.b16 %v4482
    %v4797 = vunpack.c.l.b16 %v4483
    %v4798 = vunpack.c.h.b16 %v4483
    %v4799 = vunpack.c.l.b16 %v4484
    %v4800 = vunpack.c.h.b16 %v4484
    %v4801 = vunpack.c.l.b16 %v4485
    %v4802 = vunpack.c.h.b16 %v4485
    %v4803 = vunpack.c.l.b16 %v4486
    %v4804 = vunpack.c.h.b16 %v4486
    %v4805 = vunpack.c.l.b16 %v4487
    %v4806 = vunpack.c.h.b16 %v4487
    %v4807 = vunpack.c.l.b16 %v4488
    %v4808 = vunpack.c.h.b16 %v4488
    %v4809 = vunpack.c.l.b16 %v4489
    %v4810 = vunpack.c.h.b16 %v4489
    %v4811 = vunpack.c.l.b16 %v4490
    %v4812 = vunpack.c.h.b16 %v4490
    %v4813 = vunpack.c.l.b16 %v4491
    %v4814 = vunpack.c.h.b16 %v4491
    %v4815 = vunpack.c.l.b16 %v4492
    %v4816 = vunpack.c.h.b16 %v4492
    %v4817 = vunpack.c.l.b16 %v4493
    %v4818 = vunpack.c.h.b16 %v4493
    %v4819 = vunpack.c.l.b16 %v4494
    %v4820 = vunpack.c.h.b16 %v4494
    %v4821 = vunpack.c.l.b16 %v4495
    %v4822 = vunpack.c.h.b16 %v4495
    %v4823 = vunpack.c.l.b16 %v4496
    %v4824 = vunpack.c.h.b16 %v4496
    %v4825 = vunpack.c.l.b16 %v4497
    %v4826 = vunpack.c.h.b16 %v4497
    %v4827 = vunpack.c.l.b16 %v4498
    %v4828 = vunpack.c.h.b16 %v4498
    %v4829 = vunpack.c.l.b16 %v4499
    %v4830 = vunpack.c.h.b16 %v4499
    %v4831 = vunpack.c.l.b16 %v4500
    %v4832 = vunpack.c.h.b16 %v4500
    %v4833 = vunpack.c.l.b16 %v4501
    %v4834 = vunpack.c.h.b16 %v4501
    %v4835 = vunpack.c.l.b16 %v4502
    %v4836 = vunpack.c.h.b16 %v4502
    %v4837 = vunpack.c.l.b16 %v4503
    %v4838 = vunpack.c.h.b16 %v4503
    %v4839 = vunpack.c.l.b16 %v4504
    %v4840 = vunpack.c.h.b16 %v4504
    %v4841 = vunpack.c.l.b16 %v4505
    %v4842 = vunpack.c.h.b16 %v4505
    %v4843 = vunpack.c.l.b16 %v4506
    %v4844 = vunpack.c.h.b16 %v4506
    %v4845 = vunpack.c.l.b16 %v4507
    %v4846 = vunpack.c.h.b16 %v4507
    %v4847 = vunpack.c.l.b16 %v4508
    %v4848 = vunpack.c.h.b16 %v4508
    %v4849 = vunpack.c.l.b16 %v4509
    %v4850 = vunpack.c.h.b16 %v4509
    %v4851 = vunpack.c.l.b16 %v4510
    %v4852 = vunpack.c.h.b16 %v4510
    %v4853 = vunpack.c.l.b16 %v4511
    %v4854 = vunpack.c.h.b16 %v4511
    %v4855 = vunpack.c.l.b16 %v4512
    %v4856 = vunpack.c.h.b16 %v4512
    %v4857 = vunpack.c.l.b16 %v4513
    %v4858 = vunpack.c.h.b16 %v4513
    %v4859 = vunpack.c.l.b16 %v4514
    %v4860 = vunpack.c.h.b16 %v4514
    %v4861 = vunpack.c.l.b16 %v4515
    %v4862 = vunpack.c.h.b16 %v4515
    %v4863 = vunpack.c.l.b16 %v4516
    %v4864 = vunpack.c.h.b16 %v4516
    %v4865 = vunpack.c.l.b16 %v4517
    %v4866 = vunpack.c.h.b16 %v4517
    %v4867 = vunpack.c.l.b16 %v4518
    %v4868 = vunpack.c.h.b16 %v4518
    %v4869 = vunpack.c.l.b16 %v4519
    %v4870 = vunpack.c.h.b16 %v4519
    %v4871 = vunpack.c.l.b16 %v4520
    %v4872 = vunpack.c.h.b16 %v4520
    %v4873 = vunpack.c.l.b16 %v4521
    %v4874 = vunpack.c.h.b16 %v4521
    %v4875 = vunpack.c.l.b16 %v4522
    %v4876 = vunpack.c.h.b16 %v4522
    %v4877 = vunpack.c.l.b16 %v4523
    %v4878 = vunpack.c.h.b16 %v4523
    %v4879 = vunpack.c.l.b16 %v4524
    %v4880 = vunpack.c.h.b16 %v4524
    %v4881 = vunpack.c.l.b16 %v4525
    %v4882 = vunpack.c.h.b16 %v4525
    %v4883 = vunpack.c.l.b16 %v4526
    %v4884 = vunpack.c.h.b16 %v4526
    %v4885 = vunpack.c.l.b16 %v4527
    %v4886 = vunpack.c.h.b16 %v4527
    %v4887 = vunpack.c.l.b16 %v4528
    %v4888 = vunpack.c.h.b16 %v4528
    %v4889 = vunpack.c.l.b16 %v4529
    %v4890 = vunpack.c.h.b16 %v4529
    %v4891 = vunpack.c.l.b16 %v4530
    %v4892 = vunpack.c.h.b16 %v4530
    %v4893 = vunpack.c.l.b16 %v4531
    %v4894 = vunpack.c.h.b16 %v4531
    %v4895 = vunpack.c.l.b16 %v4532
    %v4896 = vunpack.c.h.b16 %v4532
    %v4897 = vunpack.c.l.b16 %v4533
    %v4898 = vunpack.c.h.b16 %v4533
    %v4899 = vunpack.c.l.b16 %v4534
    %v4900 = vunpack.c.h.b16 %v4534
    %v4901 = vunpack.c.l.b16 %v4535
    %v4902 = vunpack.c.h.b16 %v4535
    %v4903 = vunpack.c.l.b16 %v4536
    %v4904 = vunpack.c.h.b16 %v4536
    %v4905 = vunpack.c.l.b16 %v4537
    %v4906 = vunpack.c.h.b16 %v4537
    %v4907 = vunpack.c.l.b16 %v4538
    %v4908 = vunpack.c.h.b16 %v4538
    %v4909 = vunpack.c.l.b16 %v4539
    %v4910 = vunpack.c.h.b16 %v4539
    %v4911 = vunpack.c.l.b16 %v4540
    %v4912 = vunpack.c.h.b16 %v4540
    %v4913 = vunpack.c.l.b16 %v4541
    %v4914 = vunpack.c.h.b16 %v4541
    %v4915 = vunpack.c.l.b16 %v4542
    %v4916 = vunpack.c.h.b16 %v4542
    %v4917 = vunpack.c.l.b16 %v4543
    %v4918 = vunpack.c.h.b16 %v4543
    %v4919 = vunpack.c.l.b16 %v4544
    %v4920 = vunpack.c.h.b16 %v4544
    %v4921 = vunpack.c.l.b16 %v4545
    %v4922 = vunpack.c.h.b16 %v4545
    %v4923 = vunpack.c.l.b16 %v4546
    %v4924 = vunpack.c.h.b16 %v4546
    %v4925 = vunpack.c.l.b16 %v4547
    %v4926 = vunpack.c.h.b16 %v4547
    %v4927 = vunpack.c.l.b16 %v4548
    %v4928 = vunpack.c.h.b16 %v4548
    %v4929 = vunpack.c.l.b16 %v4549
    %v4930 = vunpack.c.h.b16 %v4549
    %v4931 = vunpack.c.l.b16 %v4550
    %v4932 = vunpack.c.h.b16 %v4550
    %v4933 = vunpack.c.l.b16 %v4551
    %v4934 = vunpack.c.h.b16 %v4551
    %v4935 = vunpack.c.l.b16 %v4552
    %v4936 = vunpack.c.h.b16 %v4552
    %v4937 = vunpack.c.l.b16 %v4553
    %v4938 = vunpack.c.h.b16 %v4553
    %v4939 = vunpack.c.l.b16 %v4554
    %v4940 = vunpack.c.h.b16 %v4554
    %v4941 = vunpack.c.l.b16 %v4555
    %v4942 = vunpack.c.h.b16 %v4555
    %v4943 = vunpack.c.l.b16 %v4556
    %v4944 = vunpack.c.h.b16 %v4556
    %v4945 = vunpack.c.l.b16 %v4557
    %v4946 = vunpack.c.h.b16 %v4557
    %v4947 = vunpack.c.l.b16 %v4558
    %v4948 = vunpack.c.h.b16 %v4558
    %v4949 = vpack.c.b16 %v4701, %v4693
    %v4950 = vpack.c.b16 %v4702, %v4694
    %v4951 = vpack.c.b16 %v4703, %v4695
    %v4952 = vpack.c.b16 %v4704, %v4696
    %v4953 = vpack.c.b16 %v4705, %v4697
    %v4954 = vpack.c.b16 %v4706, %v4698
    %v4955 = vpack.c.b16 %v4707, %v4699
    %v4956 = vpack.c.b16 %v4708, %v4700
    %v4957 = vpack.c.b16 %v4717, %v4709
    %v4958 = vpack.c.b16 %v4718, %v4710
    %v4959 = vpack.c.b16 %v4719, %v4711
    %v4960 = vpack.c.b16 %v4720, %v4712
    %v4961 = vpack.c.b16 %v4721, %v4713
    %v4962 = vpack.c.b16 %v4722, %v4714
    %v4963 = vpack.c.b16 %v4723, %v4715
    %v4964 = vpack.c.b16 %v4724, %v4716
    %v4965 = vpack.c.b16 %v4733, %v4725
    %v4966 = vpack.c.b16 %v4734, %v4726
    %v4967 = vpack.c.b16 %v4735, %v4727
    %v4968 = vpack.c.b16 %v4736, %v4728
    %v4969 = vpack.c.b16 %v4737, %v4729
    %v4970 = vpack.c.b16 %v4738, %v4730
    %v4971 = vpack.c.b16 %v4739, %v4731
    %v4972 = vpack.c.b16 %v4740, %v4732
    %v4973 = vpack.c.b16 %v4749, %v4741
    %v4974 = vpack.c.b16 %v4750, %v4742
    %v4975 = vpack.c.b16 %v4751, %v4743
    %v4976 = vpack.c.b16 %v4752, %v4744
    %v4977 = vpack.c.b16 %v4753, %v4745
    %v4978 = vpack.c.b16 %v4754, %v4746
    %v4979 = vpack.c.b16 %v4755, %v4747
    %v4980 = vpack.c.b16 %v4756, %v4748
    %v4981 = vpack.c.b16 %v4765, %v4757
    %v4982 = vpack.c.b16 %v4766, %v4758
    %v4983 = vpack.c.b16 %v4767, %v4759
    %v4984 = vpack.c.b16 %v4768, %v4760
    %v4985 = vpack.c.b16 %v4769, %v4761
    %v4986 = vpack.c.b16 %v4770, %v4762
    %v4987 = vpack.c.b16 %v4771, %v4763
    %v4988 = vpack.c.b16 %v4772, %v4764
    %v4989 = vpack.c.b16 %v4781, %v4773
    %v4990 = vpack.c.b16 %v4782, %v4774
    %v4991 = vpack.c.b16 %v4783, %v4775
    %v4992 = vpack.c.b16 %v4784, %v4776
    %v4993 = vpack.c.b16 %v4785, %v4777
    %v4994 = vpack.c.b16 %v4786, %v4778
    %v4995 = vpack.c.b16 %v4787, %v4779
    %v4996 = vpack.c.b16 %v4788, %v4780
    %v4997 = vpack.c.b16 %v4797, %v4789
    %v4998 = vpack.c.b16 %v4798, %v4790
    %v4999 = vpack.c.b16 %v4799, %v4791
    %v5000 = vpack.c.b16 %v4800, %v4792
    %v5001 = vpack.c.b16 %v4801, %v4793
    %v5002 = vpack.c.b16 %v4802, %v4794
    %v5003 = vpack.c.b16 %v4803, %v4795
    %v5004 = vpack.c.b16 %v4804, %v4796
    %v5005 = vpack.c.b16 %v4813, %v4805
    %v5006 = vpack.c.b16 %v4814, %v4806
    %v5007 = vpack.c.b16 %v4815, %v4807
    %v5008 = vpack.c.b16 %v4816, %v4808
    %v5009 = vpack.c.b16 %v4817, %v4809
    %v5010 = vpack.c.b16 %v4818, %v4810
    %v5011 = vpack.c.b16 %v4819, %v4811
    %v5012 = vpack.c.b16 %v4820, %v4812
    %v5013 = vpack.c.b16 %v4829, %v4821
    %v5014 = vpack.c.b16 %v4830, %v4822
    %v5015 = vpack.c.b16 %v4831, %v4823
    %v5016 = vpack.c.b16 %v4832, %v4824
    %v5017 = vpack.c.b16 %v4833, %v4825
    %v5018 = vpack.c.b16 %v4834, %v4826
    %v5019 = vpack.c.b16 %v4835, %v4827
    %v5020 = vpack.c.b16 %v4836, %v4828
    %v5021 = vpack.c.b16 %v4845, %v4837
    %v5022 = vpack.c.b16 %v4846, %v4838
    %v5023 = vpack.c.b16 %v4847, %v4839
    %v5024 = vpack.c.b16 %v4848, %v4840
    %v5025 = vpack.c.b16 %v4849, %v4841
    %v5026 = vpack.c.b16 %v4850, %v4842
    %v5027 = vpack.c.b16 %v4851, %v4843
    %v5028 = vpack.c.b16 %v4852, %v4844
    %v5029 = vpack.c.b16 %v4861, %v4853
    %v5030 = vpack.c.b16 %v4862, %v4854
    %v5031 = vpack.c.b16 %v4863, %v4855
    %v5032 = vpack.c.b16 %v4864, %v4856
    %v5033 = vpack.c.b16 %v4865, %v4857
    %v5034 = vpack.c.b16 %v4866, %v4858
    %v5035 = vpack.c.b16 %v4867, %v4859
    %v5036 = vpack.c.b16 %v4868, %v4860
    %v5037 = vpack.c.b16 %v4877, %v4869
    %v5038 = vpack.c.b16 %v4878, %v4870
    %v5039 = vpack.c.b16 %v4879, %v4871
    %v5040 = vpack.c.b16 %v4880, %v4872
    %v5041 = vpack.c.b16 %v4881, %v4873
    %v5042 = vpack.c.b16 %v4882, %v4874
    %v5043 = vpack.c.b16 %v4883, %v4875
    %v5044 = vpack.c.b16 %v4884, %v4876
    %v5045 = vpack.c.b16 %v4893, %v4885
    %v5046 = vpack.c.b16 %v4894, %v4886
    %v5047 = vpack.c.b16 %v4895, %v4887
    %v5048 = vpack.c.b16 %v4896, %v4888
    %v5049 = vpack.c.b16 %v4897, %v4889
    %v5050 = vpack.c.b16 %v4898, %v4890
    %v5051 = vpack.c.b16 %v4899, %v4891
    %v5052 = vpack.c.b16 %v4900, %v4892
    %v5053 = vpack.c.b16 %v4909, %v4901
    %v5054 = vpack.c.b16 %v4910, %v4902
    %v5055 = vpack.c.b16 %v4911, %v4903
    %v5056 = vpack.c.b16 %v4912, %v4904
    %v5057 = vpack.c.b16 %v4913, %v4905
    %v5058 = vpack.c.b16 %v4914, %v4906
    %v5059 = vpack.c.b16 %v4915, %v4907
    %v5060 = vpack.c.b16 %v4916, %v4908
    %v5061 = vpack.c.b16 %v4925, %v4917
    %v5062 = vpack.c.b16 %v4926, %v4918
    %v5063 = vpack.c.b16 %v4927, %v4919
    %v5064 = vpack.c.b16 %v4928, %v4920
    %v5065 = vpack.c.b16 %v4929, %v4921
    %v5066 = vpack.c.b16 %v4930, %v4922
    %v5067 = vpack.c.b16 %v4931, %v4923
    %v5068 = vpack.c.b16 %v4932, %v4924
    %v5069 = vpack.c.b16 %v4941, %v4933
    %v5070 = vpack.c.b16 %v4942, %v4934
    %v5071 = vpack.c.b16 %v4943, %v4935
    %v5072 = vpack.c.b16 %v4944, %v4936
    %v5073 = vpack.c.b16 %v4945, %v4937
    %v5074 = vpack.c.b16 %v4946, %v4938
    %v5075 = vpack.c.b16 %v4947, %v4939
    %v5076 = vpack.c.b16 %v4948, %v4940
    %5205 = vmatprep.subr.bf16.mxu0 %v5006
    %5206 = vmatpush1.bf16.msra.mxu0 %v5005
    %5207 = vmatprep.subr.bf16.mxu0 %v4998
    %5208 = vmatpush1.bf16.msra.mxu0 %v4997
    %5209 = vmatprep.subr.bf16.mxu0 %v4990
    %5210 = vmatpush1.bf16.msra.mxu0 %v4989
    %5211 = vmatprep.subr.bf16.mxu0 %v4982
    %5212 = vmatpush1.bf16.msra.mxu0 %v4981
    %5213 = vmatprep.subr.bf16.mxu0 %v4974
    %5214 = vmatpush1.bf16.msra.mxu0 %v4973
    %5215 = vmatprep.subr.bf16.mxu0 %v4966
    %5216 = vmatpush1.bf16.msra.mxu0 %v4965
    %5217 = vmatprep.subr.bf16.mxu0 %v4958
    %5218 = vmatpush1.bf16.msra.mxu0 %v4957
    %5219 = vmatprep.subr.bf16.mxu0 %v4950
    %5220 = vmatpush1.bf16.msra.mxu0 %v4949
    %5221 = vmatprep.subr.bf16.mxu0 %v5070
    %5222 = vmatpush2.bf16.msra.mxu0 %v5069
    %5223 = vmatprep.subr.bf16.mxu0 %v5062
    %5224 = vmatpush2.bf16.msra.mxu0 %v5061
    %5225 = vmatprep.subr.bf16.mxu0 %v5054
    %5226 = vmatpush2.bf16.msra.mxu0 %v5053
    %5227 = vmatprep.subr.bf16.mxu0 %v5046
    %5228 = vmatpush2.bf16.msra.mxu0 %v5045
    %5229 = vmatprep.subr.bf16.mxu0 %v5038
    %5230 = vmatpush2.bf16.msra.mxu0 %v5037
    %5231 = vmatprep.subr.bf16.mxu0 %v5030
    %5232 = vmatpush2.bf16.msra.mxu0 %v5029
    %5233 = vmatprep.subr.bf16.mxu0 %v5022
    %5234 = vmatpush2.bf16.msra.mxu0 %v5021
    %5235 = vmatprep.subr.bf16.mxu0 %v5014
    %5236 = vmatpush2.bf16.msra.mxu0 %v5013
    %5237 = vmatprep.mubr.bf16.mxu0 %v4564
    %5238 = vmatmul.mubr.bf16.gmra.mxu0 %v4563
    %v5239 = vpop.f32.mrf.mxu0
    %v5240 = vadd.f32 0.0, %v5239
    %v5241 = vpop.f32.mrf.mxu0
    %v5242 = vadd.f32 0.0, %v5241
    %v5243 = vpop.f32.mrf.mxu0
    %v5244 = vpop.f32.mrf.mxu0
    %5245 = vdwg.mxu0
    %5246 = vmatprep.subr.bf16.mxu0 %v5008
    %5247 = vmatpush1.bf16.msra.mxu0 %v5007
    %5248 = vmatprep.subr.bf16.mxu0 %v5000
    %5249 = vmatpush1.bf16.msra.mxu0 %v4999
    %5250 = vmatprep.subr.bf16.mxu0 %v4992
    %5251 = vmatpush1.bf16.msra.mxu0 %v4991
    %5252 = vmatprep.subr.bf16.mxu0 %v4984
    %5253 = vmatpush1.bf16.msra.mxu0 %v4983
    %5254 = vmatprep.subr.bf16.mxu0 %v4976
    %5255 = vmatpush1.bf16.msra.mxu0 %v4975
    %5256 = vmatprep.subr.bf16.mxu0 %v4968
    %5257 = vmatpush1.bf16.msra.mxu0 %v4967
    %5258 = vmatprep.subr.bf16.mxu0 %v4960
    %5259 = vmatpush1.bf16.msra.mxu0 %v4959
    %5260 = vmatprep.subr.bf16.mxu0 %v4952
    %5261 = vmatpush1.bf16.msra.mxu0 %v4951
    %5262 = vmatprep.subr.bf16.mxu0 %v5072
    %5263 = vmatpush2.bf16.msra.mxu0 %v5071
    %5264 = vmatprep.subr.bf16.mxu0 %v5064
    %5265 = vmatpush2.bf16.msra.mxu0 %v5063
    %5266 = vmatprep.subr.bf16.mxu0 %v5056
    %5267 = vmatpush2.bf16.msra.mxu0 %v5055
    %5268 = vmatprep.subr.bf16.mxu0 %v5048
    %5269 = vmatpush2.bf16.msra.mxu0 %v5047
    %5270 = vmatprep.subr.bf16.mxu0 %v5040
    %5271 = vmatpush2.bf16.msra.mxu0 %v5039
    %5272 = vmatprep.subr.bf16.mxu0 %v5032
    %5273 = vmatpush2.bf16.msra.mxu0 %v5031
    %5274 = vmatprep.subr.bf16.mxu0 %v5024
    %5275 = vmatpush2.bf16.msra.mxu0 %v5023
    %5276 = vmatprep.subr.bf16.mxu0 %v5016
    %5277 = vmatpush2.bf16.msra.mxu0 %v5015
    %5278 = vmatprep.mubr.bf16.mxu0 %v4564
    %5279 = vmatmul.mubr.bf16.gmra.mxu0 %v4563
    %v5280 = vpop.f32.mrf.mxu0
    %v5281 = vadd.f32 0.0, %v5280
    %v5282 = vpop.f32.mrf.mxu0
    %v5283 = vadd.f32 0.0, %v5282
    %v5284 = vpop.f32.mrf.mxu0
    %v5285 = vpop.f32.mrf.mxu0
    %5286 = vdwg.mxu0
    %5287 = vmatprep.subr.bf16.mxu0 %v5010
    %5288 = vmatpush1.bf16.msra.mxu0 %v5009
    %5289 = vmatprep.subr.bf16.mxu0 %v5002
    %5290 = vmatpush1.bf16.msra.mxu0 %v5001
    %5291 = vmatprep.subr.bf16.mxu0 %v4994
    %5292 = vmatpush1.bf16.msra.mxu0 %v4993
    %5293 = vmatprep.subr.bf16.mxu0 %v4986
    %5294 = vmatpush1.bf16.msra.mxu0 %v4985
    %5295 = vmatprep.subr.bf16.mxu0 %v4978
    %5296 = vmatpush1.bf16.msra.mxu0 %v4977
    %5297 = vmatprep.subr.bf16.mxu0 %v4970
    %5298 = vmatpush1.bf16.msra.mxu0 %v4969
    %5299 = vmatprep.subr.bf16.mxu0 %v4962
    %5300 = vmatpush1.bf16.msra.mxu0 %v4961
    %5301 = vmatprep.subr.bf16.mxu0 %v4954
    %5302 = vmatpush1.bf16.msra.mxu0 %v4953
    %5303 = vmatprep.subr.bf16.mxu0 %v5074
    %5304 = vmatpush2.bf16.msra.mxu0 %v5073
    %5305 = vmatprep.subr.bf16.mxu0 %v5066
    %5306 = vmatpush2.bf16.msra.mxu0 %v5065
    %5307 = vmatprep.subr.bf16.mxu0 %v5058
    %5308 = vmatpush2.bf16.msra.mxu0 %v5057
    %5309 = vmatprep.subr.bf16.mxu0 %v5050
    %5310 = vmatpush2.bf16.msra.mxu0 %v5049
    %5311 = vmatprep.subr.bf16.mxu0 %v5042
    %5312 = vmatpush2.bf16.msra.mxu0 %v5041
    %5313 = vmatprep.subr.bf16.mxu0 %v5034
    %5314 = vmatpush2.bf16.msra.mxu0 %v5033
    %5315 = vmatprep.subr.bf16.mxu0 %v5026
    %5316 = vmatpush2.bf16.msra.mxu0 %v5025
    %5317 = vmatprep.subr.bf16.mxu0 %v5018
    %5318 = vmatpush2.bf16.msra.mxu0 %v5017
    %5319 = vmatprep.mubr.bf16.mxu0 %v4564
    %5320 = vmatmul.mubr.bf16.gmra.mxu0 %v4563
    %v5321 = vpop.f32.mrf.mxu0
    %v5322 = vadd.f32 0.0, %v5321
    %v5323 = vpop.f32.mrf.mxu0
    %v5324 = vadd.f32 0.0, %v5323
    %v5325 = vpop.f32.mrf.mxu0
    %v5326 = vpop.f32.mrf.mxu0
    %5327 = vdwg.mxu0
    %5328 = vmatprep.subr.bf16.mxu0 %v5012
    %5329 = vmatpush1.bf16.msra.mxu0 %v5011
    %5330 = vmatprep.subr.bf16.mxu0 %v5004
    %5331 = vmatpush1.bf16.msra.mxu0 %v5003
    %5332 = vmatprep.subr.bf16.mxu0 %v4996
    %5333 = vmatpush1.bf16.msra.mxu0 %v4995
    %5334 = vmatprep.subr.bf16.mxu0 %v4988
    %5335 = vmatpush1.bf16.msra.mxu0 %v4987
    %5336 = vmatprep.subr.bf16.mxu0 %v4980
    %5337 = vmatpush1.bf16.msra.mxu0 %v4979
    %5338 = vmatprep.subr.bf16.mxu0 %v4972
    %5339 = vmatpush1.bf16.msra.mxu0 %v4971
    %5340 = vmatprep.subr.bf16.mxu0 %v4964
    %5341 = vmatpush1.bf16.msra.mxu0 %v4963
    %5342 = vmatprep.subr.bf16.mxu0 %v4956
    %5343 = vmatpush1.bf16.msra.mxu0 %v4955
    %5344 = vmatprep.subr.bf16.mxu0 %v5076
    %5345 = vmatpush2.bf16.msra.mxu0 %v5075
    %5346 = vmatprep.subr.bf16.mxu0 %v5068
    %5347 = vmatpush2.bf16.msra.mxu0 %v5067
    %5348 = vmatprep.subr.bf16.mxu0 %v5060
    %5349 = vmatpush2.bf16.msra.mxu0 %v5059
    %5350 = vmatprep.subr.bf16.mxu0 %v5052
    %5351 = vmatpush2.bf16.msra.mxu0 %v5051
    %5352 = vmatprep.subr.bf16.mxu0 %v5044
    %5353 = vmatpush2.bf16.msra.mxu0 %v5043
    %5354 = vmatprep.subr.bf16.mxu0 %v5036
    %5355 = vmatpush2.bf16.msra.mxu0 %v5035
    %5356 = vmatprep.subr.bf16.mxu0 %v5028
    %5357 = vmatpush2.bf16.msra.mxu0 %v5027
    %5358 = vmatprep.subr.bf16.mxu0 %v5020
    %5359 = vmatpush2.bf16.msra.mxu0 %v5019
    %5360 = vmatprep.mubr.bf16.mxu0 %v4564
    %5361 = vmatmul.mubr.bf16.gmra.mxu0 %v4563
    %v5362 = vpop.f32.mrf.mxu0
    %v5363 = vadd.f32 0.0, %v5362
    %v5364 = vpop.f32.mrf.mxu0
    %v5365 = vadd.f32 0.0, %v5364
    %v5366 = vpop.f32.mrf.mxu0
    %v5367 = vpop.f32.mrf.mxu0
    %5368 = vdwg.mxu0
    %v5369 = vld [vmem:[#allocation2] sm:$0xff]
    %v5370 = vld [vmem:[#allocation2 + $0x8] sm:$0xff]
    %v5371 = vld [vmem:[#allocation2 + $0x10] sm:$0xff]
    %v5372 = vld [vmem:[#allocation2 + $0x18] sm:$0xff]
    %v5373 = vld [vmem:[#allocation2 + $0x1e0] sm:$0xff]
    %v5374 = vld [vmem:[#allocation2 + $0x1e8] sm:$0xff]
    %v5375 = vld [vmem:[#allocation2 + $0x1f0] sm:$0xff]
    %v5376 = vld [vmem:[#allocation2 + $0x1f8] sm:$0xff]
    %v5377 = vadd.f32 %v5369, %v5240
    %v5378 = vadd.f32 %v5370, %v5242
    %v5379 = vadd.f32 %v5371, %v5281
    %v5380 = vadd.f32 %v5372, %v5283
    %v5381 = vadd.f32 %v5373, %v5322
    %v5382 = vadd.f32 %v5374, %v5324
    %v5383 = vadd.f32 %v5375, %v5363
    %v5384 = vadd.f32 %v5376, %v5365
    %v5385 = vxor.u32 %v5377, 2147483648
    %v5386 = vxor.u32 %v5378, 2147483648
    %v5387 = vxor.u32 %v5379, 2147483648
    %v5388 = vmul.f32 %v5385, 1.442695
    %v5389 = vpow.pop %v5388
    %v5390 = vmul.f32 %v5386, 1.442695
    %v5391 = vpow.pop %v5390
    %v5392 = vmul.f32 %v5387, 1.442695
    %v5393 = vpow.pop %v5392
    %v5394 = vadd.f32 %v5389, 1.0
    %v5395 = vadd.f32 %v5391, 1.0
    %v5396 = vadd.f32 %v5393, 1.0
    %v5397 = vrcp.pop %v5394
    %v5398 = vmul.f32 1.0, %v5397
    %v5399 = vrcp.pop %v5395
    %v5400 = vmul.f32 1.0, %v5399
    %v5401 = vrcp.pop %v5396
    %v5402 = vmul.f32 1.0, %v5401
    %v5403 = vtanh.pop %v5380
    %v5404 = vtanh.pop %v5381
    %v5405 = vxor.u32 %v5382, 2147483648
    %v5406 = vxor.u32 %v5383, 2147483648
    %v5407 = vxor.u32 %v5384, 2147483648
    %v5408 = vmul.f32 %v5405, 1.442695
    %v5409 = vpow.pop %v5408
    %v5410 = vmul.f32 %v5406, 1.442695
    %v5411 = vpow.pop %v5410
    %v5412 = vmul.f32 %v5407, 1.442695
    %v5413 = vpow.pop %v5412
    %v5414 = vadd.f32 %v5409, 1.0
    %v5415 = vadd.f32 %v5411, 1.0
    %v5416 = vadd.f32 %v5413, 1.0
    %v5417 = vrcp.pop %v5414
    %v5418 = vmul.f32 1.0, %v5417
    %v5419 = vrcp.pop %v5415
    %v5420 = vmul.f32 1.0, %v5419
    %v5421 = vrcp.pop %v5416
    %v5422 = vmul.f32 1.0, %v5421
    %v5423 = vmul.f32 %v5400, %v4561
    %v5424 = vmul.f32 %v5420, %v4562
    %v5425 = vmul.f32 %v5398, %v5403
    %v5426 = vmul.f32 %v5422, %v5404
    %v5427 = vadd.f32 %v5423, %v5425
    %v5428 = vadd.f32 %v5424, %v5426
    %v5429 = vtanh.pop %v5427
    %v5430 = vtanh.pop %v5428
    %v5431 = vmul.f32 %v5402, %v5429
    %v5432 = vmul.f32 %v5418, %v5430
    %v5433 = vpack.c.bf16 %v5431, %v5431
    %v5434 = vpack.c.bf16 %v5432, %v5432
    %5435 = vmatprep.subr.bf16.mxu0 %v5006
    %5436 = vmatpush1.bf16.msra.mxu0 %v5005
    %5437 = vmatprep.subr.bf16.mxu0 %v4998
    %5438 = vmatpush1.bf16.msra.mxu0 %v4997
    %5439 = vmatprep.subr.bf16.mxu0 %v4990
    %5440 = vmatpush1.bf16.msra.mxu0 %v4989
    %5441 = vmatprep.subr.bf16.mxu0 %v4982
    %5442 = vmatpush1.bf16.msra.mxu0 %v4981
    %5443 = vmatprep.subr.bf16.mxu0 %v4974
    %5444 = vmatpush1.bf16.msra.mxu0 %v4973
    %5445 = vmatprep.subr.bf16.mxu0 %v4966
    %5446 = vmatpush1.bf16.msra.mxu0 %v4965
    %5447 = vmatprep.subr.bf16.mxu0 %v4958
    %5448 = vmatpush1.bf16.msra.mxu0 %v4957
    %5449 = vmatprep.subr.bf16.mxu0 %v4950
    %5450 = vmatpush1.bf16.msra.mxu0 %v4949
    %5451 = vmatprep.subr.bf16.mxu0 %v5070
    %5452 = vmatpush2.bf16.msra.mxu0 %v5069
    %5453 = vmatprep.subr.bf16.mxu0 %v5062
    %5454 = vmatpush2.bf16.msra.mxu0 %v5061
    %5455 = vmatprep.subr.bf16.mxu0 %v5054
    %5456 = vmatpush2.bf16.msra.mxu0 %v5053
    %5457 = vmatprep.subr.bf16.mxu0 %v5046
    %5458 = vmatpush2.bf16.msra.mxu0 %v5045
    %5459 = vmatprep.subr.bf16.mxu0 %v5038
    %5460 = vmatpush2.bf16.msra.mxu0 %v5037
    %5461 = vmatprep.subr.bf16.mxu0 %v5030
    %5462 = vmatpush2.bf16.msra.mxu0 %v5029
    %5463 = vmatprep.subr.bf16.mxu0 %v5022
    %5464 = vmatpush2.bf16.msra.mxu0 %v5021
    %5465 = vmatprep.subr.bf16.mxu0 %v5014
    %5466 = vmatpush2.bf16.msra.mxu0 %v5013
    %5467 = vmatprep.mubr.bf16.mxu0 %v5434
    %5468 = vmatmul.mubr.bf16.gmra.mxu0 %v5433
    %v5469 = vpop.f32.mrf.mxu0
    %v5470 = vadd.f32 0.0, %v5469
    %v5471 = vpop.f32.mrf.mxu0
    %v5472 = vadd.f32 0.0, %v5471
    %v5473 = vpop.f32.mrf.mxu0
    %v5474 = vpop.f32.mrf.mxu0
    %5475 = vdwg.mxu0
    %5476 = vmatprep.subr.bf16.mxu0 %v5008
    %5477 = vmatpush1.bf16.msra.mxu0 %v5007
    %5478 = vmatprep.subr.bf16.mxu0 %v5000
    %5479 = vmatpush1.bf16.msra.mxu0 %v4999
    %5480 = vmatprep.subr.bf16.mxu0 %v4992
    %5481 = vmatpush1.bf16.msra.mxu0 %v4991
    %5482 = vmatprep.subr.bf16.mxu0 %v4984
    %5483 = vmatpush1.bf16.msra.mxu0 %v4983
    %5484 = vmatprep.subr.bf16.mxu0 %v4976
    %5485 = vmatpush1.bf16.msra.mxu0 %v4975
    %5486 = vmatprep.subr.bf16.mxu0 %v4968
    %5487 = vmatpush1.bf16.msra.mxu0 %v4967
    %5488 = vmatprep.subr.bf16.mxu0 %v4960
    %5489 = vmatpush1.bf16.msra.mxu0 %v4959
    %5490 = vmatprep.subr.bf16.mxu0 %v4952
    %5491 = vmatpush1.bf16.msra.mxu0 %v4951
    %5492 = vmatprep.subr.bf16.mxu0 %v5072
    %5493 = vmatpush2.bf16.msra.mxu0 %v5071
    %5494 = vmatprep.subr.bf16.mxu0 %v5064
    %5495 = vmatpush2.bf16.msra.mxu0 %v5063
    %5496 = vmatprep.subr.bf16.mxu0 %v5056
    %5497 = vmatpush2.bf16.msra.mxu0 %v5055
    %5498 = vmatprep.subr.bf16.mxu0 %v5048
    %5499 = vmatpush2.bf16.msra.mxu0 %v5047
    %5500 = vmatprep.subr.bf16.mxu0 %v5040
    %5501 = vmatpush2.bf16.msra.mxu0 %v5039
    %5502 = vmatprep.subr.bf16.mxu0 %v5032
    %5503 = vmatpush2.bf16.msra.mxu0 %v5031
    %5504 = vmatprep.subr.bf16.mxu0 %v5024
    %5505 = vmatpush2.bf16.msra.mxu0 %v5023
    %5506 = vmatprep.subr.bf16.mxu0 %v5016
    %5507 = vmatpush2.bf16.msra.mxu0 %v5015
    %5508 = vmatprep.mubr.bf16.mxu0 %v5434
    %5509 = vmatmul.mubr.bf16.gmra.mxu0 %v5433
    %v5510 = vpop.f32.mrf.mxu0
    %v5511 = vadd.f32 0.0, %v5510
    %v5512 = vpop.f32.mrf.mxu0
    %v5513 = vadd.f32 0.0, %v5512
    %v5514 = vpop.f32.mrf.mxu0
    %v5515 = vpop.f32.mrf.mxu0
    %5516 = vdwg.mxu0
    %5517 = vmatprep.subr.bf16.mxu0 %v5010
    %5518 = vmatpush1.bf16.msra.mxu0 %v5009
    %5519 = vmatprep.subr.bf16.mxu0 %v5002
    %5520 = vmatpush1.bf16.msra.mxu0 %v5001
    %5521 = vmatprep.subr.bf16.mxu0 %v4994
    %5522 = vmatpush1.bf16.msra.mxu0 %v4993
    %5523 = vmatprep.subr.bf16.mxu0 %v4986
    %5524 = vmatpush1.bf16.msra.mxu0 %v4985
    %5525 = vmatprep.subr.bf16.mxu0 %v4978
    %5526 = vmatpush1.bf16.msra.mxu0 %v4977
    %5527 = vmatprep.subr.bf16.mxu0 %v4970
    %5528 = vmatpush1.bf16.msra.mxu0 %v4969
    %5529 = vmatprep.subr.bf16.mxu0 %v4962
    %5530 = vmatpush1.bf16.msra.mxu0 %v4961
    %5531 = vmatprep.subr.bf16.mxu0 %v4954
    %5532 = vmatpush1.bf16.msra.mxu0 %v4953
    %5533 = vmatprep.subr.bf16.mxu0 %v5074
    %5534 = vmatpush2.bf16.msra.mxu0 %v5073
    %5535 = vmatprep.subr.bf16.mxu0 %v5066
    %5536 = vmatpush2.bf16.msra.mxu0 %v5065
    %5537 = vmatprep.subr.bf16.mxu0 %v5058
    %5538 = vmatpush2.bf16.msra.mxu0 %v5057
    %5539 = vmatprep.subr.bf16.mxu0 %v5050
    %5540 = vmatpush2.bf16.msra.mxu0 %v5049
    %5541 = vmatprep.subr.bf16.mxu0 %v5042
    %5542 = vmatpush2.bf16.msra.mxu0 %v5041
    %5543 = vmatprep.subr.bf16.mxu0 %v5034
    %5544 = vmatpush2.bf16.msra.mxu0 %v5033
    %5545 = vmatprep.subr.bf16.mxu0 %v5026
    %5546 = vmatpush2.bf16.msra.mxu0 %v5025
    %5547 = vmatprep.subr.bf16.mxu0 %v5018
    %5548 = vmatpush2.bf16.msra.mxu0 %v5017
    %5549 = vmatprep.mubr.bf16.mxu0 %v5434
    %5550 = vmatmul.mubr.bf16.gmra.mxu0 %v5433
    %v5551 = vpop.f32.mrf.mxu0
    %v5552 = vadd.f32 0.0, %v5551
    %v5553 = vpop.f32.mrf.mxu0
    %v5554 = vadd.f32 0.0, %v5553
    %v5555 = vpop.f32.mrf.mxu0
    %v5556 = vpop.f32.mrf.mxu0
    %5557 = vdwg.mxu0
    %5558 = vmatprep.subr.bf16.mxu0 %v5012
    %5559 = vmatpush1.bf16.msra.mxu0 %v5011
    %5560 = vmatprep.subr.bf16.mxu0 %v5004
    %5561 = vmatpush1.bf16.msra.mxu0 %v5003
    %5562 = vmatprep.subr.bf16.mxu0 %v4996
    %5563 = vmatpush1.bf16.msra.mxu0 %v4995
    %5564 = vmatprep.subr.bf16.mxu0 %v4988
    %5565 = vmatpush1.bf16.msra.mxu0 %v4987
    %5566 = vmatprep.subr.bf16.mxu0 %v4980
    %5567 = vmatpush1.bf16.msra.mxu0 %v4979
    %5568 = vmatprep.subr.bf16.mxu0 %v4972
    %5569 = vmatpush1.bf16.msra.mxu0 %v4971
    %5570 = vmatprep.subr.bf16.mxu0 %v4964
    %5571 = vmatpush1.bf16.msra.mxu0 %v4963
    %5572 = vmatprep.subr.bf16.mxu0 %v4956
    %5573 = vmatpush1.bf16.msra.mxu0 %v4955
    %5574 = vmatprep.subr.bf16.mxu0 %v5076
    %5575 = vmatpush2.bf16.msra.mxu0 %v5075
    %5576 = vmatprep.subr.bf16.mxu0 %v5068
    %5577 = vmatpush2.bf16.msra.mxu0 %v5067
    %5578 = vmatprep.subr.bf16.mxu0 %v5060
    %5579 = vmatpush2.bf16.msra.mxu0 %v5059
    %5580 = vmatprep.subr.bf16.mxu0 %v5052
    %5581 = vmatpush2.bf16.msra.mxu0 %v5051
    %5582 = vmatprep.subr.bf16.mxu0 %v5044
    %5583 = vmatpush2.bf16.msra.mxu0 %v5043
    %5584 = vmatprep.subr.bf16.mxu0 %v5036
    %5585 = vmatpush2.bf16.msra.mxu0 %v5035
    %5586 = vmatprep.subr.bf16.mxu0 %v5028
    %5587 = vmatpush2.bf16.msra.mxu0 %v5027
    %5588 = vmatprep.subr.bf16.mxu0 %v5020
    %5589 = vmatpush2.bf16.msra.mxu0 %v5019
    %5590 = vmatprep.mubr.bf16.mxu0 %v5434
    %5591 = vmatmul.mubr.bf16.gmra.mxu0 %v5433
    %v5592 = vpop.f32.mrf.mxu0
    %v5593 = vadd.f32 0.0, %v5592
    %v5594 = vpop.f32.mrf.mxu0
    %v5595 = vadd.f32 0.0, %v5594
    %v5596 = vpop.f32.mrf.mxu0
    %v5597 = vpop.f32.mrf.mxu0
    %5598 = vdwg.mxu0
    %v5599 = vld [vmem:[#allocation2 + $0x40] sm:$0xff]
    %v5600 = vld [vmem:[#allocation2 + $0x48] sm:$0xff]
    %v5601 = vld [vmem:[#allocation2 + $0x50] sm:$0xff]
    %v5602 = vld [vmem:[#allocation2 + $0x58] sm:$0xff]
    %v5603 = vld [vmem:[#allocation2 + $0x1a0] sm:$0xff]
    %v5604 = vld [vmem:[#allocation2 + $0x1a8] sm:$0xff]
    %v5605 = vld [vmem:[#allocation2 + $0x1b0] sm:$0xff]
    %v5606 = vld [vmem:[#allocation2 + $0x1b8] sm:$0xff]
    %v5607 = vadd.f32 %v5599, %v5470
    %v5608 = vadd.f32 %v5600, %v5472
    %v5609 = vadd.f32 %v5601, %v5511
    %v5610 = vadd.f32 %v5602, %v5513
    %v5611 = vadd.f32 %v5603, %v5552
    %v5612 = vadd.f32 %v5604, %v5554
    %v5613 = vadd.f32 %v5605, %v5593
    %v5614 = vadd.f32 %v5606, %v5595
    %v5615 = vxor.u32 %v5607, 2147483648
    %v5616 = vxor.u32 %v5608, 2147483648
    %v5617 = vxor.u32 %v5609, 2147483648
    %v5618 = vmul.f32 %v5615, 1.442695
    %v5619 = vpow.pop %v5618
    %v5620 = vmul.f32 %v5616, 1.442695
    %v5621 = vpow.pop %v5620
    %v5622 = vmul.f32 %v5617, 1.442695
    %v5623 = vpow.pop %v5622
    %v5624 = vadd.f32 %v5619, 1.0
    %v5625 = vadd.f32 %v5621, 1.0
    %v5626 = vadd.f32 %v5623, 1.0
    %v5627 = vrcp.pop %v5624
    %v5628 = vmul.f32 1.0, %v5627
    %v5629 = vrcp.pop %v5625
    %v5630 = vmul.f32 1.0, %v5629
    %v5631 = vrcp.pop %v5626
    %v5632 = vmul.f32 1.0, %v5631
    %v5633 = vtanh.pop %v5610
    %v5634 = vtanh.pop %v5611
    %v5635 = vxor.u32 %v5612, 2147483648
    %v5636 = vxor.u32 %v5613, 2147483648
    %v5637 = vxor.u32 %v5614, 2147483648
    %v5638 = vmul.f32 %v5635, 1.442695
    %v5639 = vpow.pop %v5638
    %v5640 = vmul.f32 %v5636, 1.442695
    %v5641 = vpow.pop %v5640
    %v5642 = vmul.f32 %v5637, 1.442695
    %v5643 = vpow.pop %v5642
    %v5644 = vadd.f32 %v5639, 1.0
    %v5645 = vadd.f32 %v5641, 1.0
    %v5646 = vadd.f32 %v5643, 1.0
    %v5647 = vrcp.pop %v5644
    %v5648 = vmul.f32 1.0, %v5647
    %v5649 = vrcp.pop %v5645
    %v5650 = vmul.f32 1.0, %v5649
    %v5651 = vrcp.pop %v5646
    %v5652 = vmul.f32 1.0, %v5651
    %v5653 = vmul.f32 %v5630, %v5427
    %v5654 = vmul.f32 %v5650, %v5428
    %v5655 = vmul.f32 %v5628, %v5633
    %v5656 = vmul.f32 %v5652, %v5634
    %v5657 = vadd.f32 %v5653, %v5655
    %v5658 = vadd.f32 %v5654, %v5656
    %v5659 = vtanh.pop %v5657
    %v5660 = vtanh.pop %v5658
    %v5661 = vmul.f32 %v5632, %v5659
    %v5662 = vmul.f32 %v5648, %v5660
    %v5663 = vpack.c.bf16 %v5661, %v5661
    %v5664 = vpack.c.bf16 %v5662, %v5662
    %5665 = vmatprep.subr.bf16.mxu0 %v5006
    %5666 = vmatpush1.bf16.msra.mxu0 %v5005
    %5667 = vmatprep.subr.bf16.mxu0 %v4998
    %5668 = vmatpush1.bf16.msra.mxu0 %v4997
    %5669 = vmatprep.subr.bf16.mxu0 %v4990
    %5670 = vmatpush1.bf16.msra.mxu0 %v4989
    %5671 = vmatprep.subr.bf16.mxu0 %v4982
    %5672 = vmatpush1.bf16.msra.mxu0 %v4981
    %5673 = vmatprep.subr.bf16.mxu0 %v4974
    %5674 = vmatpush1.bf16.msra.mxu0 %v4973
    %5675 = vmatprep.subr.bf16.mxu0 %v4966
    %5676 = vmatpush1.bf16.msra.mxu0 %v4965
    %5677 = vmatprep.subr.bf16.mxu0 %v4958
    %5678 = vmatpush1.bf16.msra.mxu0 %v4957
    %5679 = vmatprep.subr.bf16.mxu0 %v4950
    %5680 = vmatpush1.bf16.msra.mxu0 %v4949
    %5681 = vmatprep.subr.bf16.mxu0 %v5070
    %5682 = vmatpush2.bf16.msra.mxu0 %v5069
    %5683 = vmatprep.subr.bf16.mxu0 %v5062
    %5684 = vmatpush2.bf16.msra.mxu0 %v5061
    %5685 = vmatprep.subr.bf16.mxu0 %v5054
    %5686 = vmatpush2.bf16.msra.mxu0 %v5053
    %5687 = vmatprep.subr.bf16.mxu0 %v5046
    %5688 = vmatpush2.bf16.msra.mxu0 %v5045
    %5689 = vmatprep.subr.bf16.mxu0 %v5038
    %5690 = vmatpush2.bf16.msra.mxu0 %v5037
    %5691 = vmatprep.subr.bf16.mxu0 %v5030
    %5692 = vmatpush2.bf16.msra.mxu0 %v5029
    %5693 = vmatprep.subr.bf16.mxu0 %v5022
    %5694 = vmatpush2.bf16.msra.mxu0 %v5021
    %5695 = vmatprep.subr.bf16.mxu0 %v5014
    %5696 = vmatpush2.bf16.msra.mxu0 %v5013
    %5697 = vmatprep.mubr.bf16.mxu0 %v5664
    %5698 = vmatmul.mubr.bf16.gmra.mxu0 %v5663
    %v5699 = vpop.f32.mrf.mxu0
    %v5700 = vadd.f32 0.0, %v5699
    %v5701 = vpop.f32.mrf.mxu0
    %v5702 = vadd.f32 0.0, %v5701
    %v5703 = vpop.f32.mrf.mxu0
    %v5704 = vpop.f32.mrf.mxu0
    %5705 = vdwg.mxu0
    %5706 = vmatprep.subr.bf16.mxu0 %v5008
    %5707 = vmatpush1.bf16.msra.mxu0 %v5007
    %5708 = vmatprep.subr.bf16.mxu0 %v5000
    %5709 = vmatpush1.bf16.msra.mxu0 %v4999
    %5710 = vmatprep.subr.bf16.mxu0 %v4992
    %5711 = vmatpush1.bf16.msra.mxu0 %v4991
    %5712 = vmatprep.subr.bf16.mxu0 %v4984
    %5713 = vmatpush1.bf16.msra.mxu0 %v4983
    %5714 = vmatprep.subr.bf16.mxu0 %v4976
    %5715 = vmatpush1.bf16.msra.mxu0 %v4975
    %5716 = vmatprep.subr.bf16.mxu0 %v4968
    %5717 = vmatpush1.bf16.msra.mxu0 %v4967
    %5718 = vmatprep.subr.bf16.mxu0 %v4960
    %5719 = vmatpush1.bf16.msra.mxu0 %v4959
    %5720 = vmatprep.subr.bf16.mxu0 %v4952
    %5721 = vmatpush1.bf16.msra.mxu0 %v4951
    %5722 = vmatprep.subr.bf16.mxu0 %v5072
    %5723 = vmatpush2.bf16.msra.mxu0 %v5071
    %5724 = vmatprep.subr.bf16.mxu0 %v5064
    %5725 = vmatpush2.bf16.msra.mxu0 %v5063
    %5726 = vmatprep.subr.bf16.mxu0 %v5056
    %5727 = vmatpush2.bf16.msra.mxu0 %v5055
    %5728 = vmatprep.subr.bf16.mxu0 %v5048
    %5729 = vmatpush2.bf16.msra.mxu0 %v5047
    %5730 = vmatprep.subr.bf16.mxu0 %v5040
    %5731 = vmatpush2.bf16.msra.mxu0 %v5039
    %5732 = vmatprep.subr.bf16.mxu0 %v5032
    %5733 = vmatpush2.bf16.msra.mxu0 %v5031
    %5734 = vmatprep.subr.bf16.mxu0 %v5024
    %5735 = vmatpush2.bf16.msra.mxu0 %v5023
    %5736 = vmatprep.subr.bf16.mxu0 %v5016
    %5737 = vmatpush2.bf16.msra.mxu0 %v5015
    %5738 = vmatprep.mubr.bf16.mxu0 %v5664
    %5739 = vmatmul.mubr.bf16.gmra.mxu0 %v5663
    %v5740 = vpop.f32.mrf.mxu0
    %v5741 = vadd.f32 0.0, %v5740
    %v5742 = vpop.f32.mrf.mxu0
    %v5743 = vadd.f32 0.0, %v5742
    %v5744 = vpop.f32.mrf.mxu0
    %v5745 = vpop.f32.mrf.mxu0
    %5746 = vdwg.mxu0
    %5747 = vmatprep.subr.bf16.mxu0 %v5010
    %5748 = vmatpush1.bf16.msra.mxu0 %v5009
    %5749 = vmatprep.subr.bf16.mxu0 %v5002
    %5750 = vmatpush1.bf16.msra.mxu0 %v5001
    %5751 = vmatprep.subr.bf16.mxu0 %v4994
    %5752 = vmatpush1.bf16.msra.mxu0 %v4993
    %5753 = vmatprep.subr.bf16.mxu0 %v4986
    %5754 = vmatpush1.bf16.msra.mxu0 %v4985
    %5755 = vmatprep.subr.bf16.mxu0 %v4978
    %5756 = vmatpush1.bf16.msra.mxu0 %v4977
    %5757 = vmatprep.subr.bf16.mxu0 %v4970
    %5758 = vmatpush1.bf16.msra.mxu0 %v4969
    %5759 = vmatprep.subr.bf16.mxu0 %v4962
    %5760 = vmatpush1.bf16.msra.mxu0 %v4961
    %5761 = vmatprep.subr.bf16.mxu0 %v4954
    %5762 = vmatpush1.bf16.msra.mxu0 %v4953
    %5763 = vmatprep.subr.bf16.mxu0 %v5074
    %5764 = vmatpush2.bf16.msra.mxu0 %v5073
    %5765 = vmatprep.subr.bf16.mxu0 %v5066
    %5766 = vmatpush2.bf16.msra.mxu0 %v5065
    %5767 = vmatprep.subr.bf16.mxu0 %v5058
    %5768 = vmatpush2.bf16.msra.mxu0 %v5057
    %5769 = vmatprep.subr.bf16.mxu0 %v5050
    %5770 = vmatpush2.bf16.msra.mxu0 %v5049
    %5771 = vmatprep.subr.bf16.mxu0 %v5042
    %5772 = vmatpush2.bf16.msra.mxu0 %v5041
    %5773 = vmatprep.subr.bf16.mxu0 %v5034
    %5774 = vmatpush2.bf16.msra.mxu0 %v5033
    %5775 = vmatprep.subr.bf16.mxu0 %v5026
    %5776 = vmatpush2.bf16.msra.mxu0 %v5025
    %5777 = vmatprep.subr.bf16.mxu0 %v5018
    %5778 = vmatpush2.bf16.msra.mxu0 %v5017
    %5779 = vmatprep.mubr.bf16.mxu0 %v5664
    %5780 = vmatmul.mubr.bf16.gmra.mxu0 %v5663
    %v5781 = vpop.f32.mrf.mxu0
    %v5782 = vadd.f32 0.0, %v5781
    %v5783 = vpop.f32.mrf.mxu0
    %v5784 = vadd.f32 0.0, %v5783
    %v5785 = vpop.f32.mrf.mxu0
    %v5786 = vpop.f32.mrf.mxu0
    %5787 = vdwg.mxu0
    %5788 = vmatprep.subr.bf16.mxu0 %v5012
    %5789 = vmatpush1.bf16.msra.mxu0 %v5011
    %5790 = vmatprep.subr.bf16.mxu0 %v5004
    %5791 = vmatpush1.bf16.msra.mxu0 %v5003
    %5792 = vmatprep.subr.bf16.mxu0 %v4996
    %5793 = vmatpush1.bf16.msra.mxu0 %v4995
    %5794 = vmatprep.subr.bf16.mxu0 %v4988
    %5795 = vmatpush1.bf16.msra.mxu0 %v4987
    %5796 = vmatprep.subr.bf16.mxu0 %v4980
    %5797 = vmatpush1.bf16.msra.mxu0 %v4979
    %5798 = vmatprep.subr.bf16.mxu0 %v4972
    %5799 = vmatpush1.bf16.msra.mxu0 %v4971
    %5800 = vmatprep.subr.bf16.mxu0 %v4964
    %5801 = vmatpush1.bf16.msra.mxu0 %v4963
    %5802 = vmatprep.subr.bf16.mxu0 %v4956
    %5803 = vmatpush1.bf16.msra.mxu0 %v4955
    %5804 = vmatprep.subr.bf16.mxu0 %v5076
    %5805 = vmatpush2.bf16.msra.mxu0 %v5075
    %5806 = vmatprep.subr.bf16.mxu0 %v5068
    %5807 = vmatpush2.bf16.msra.mxu0 %v5067
    %5808 = vmatprep.subr.bf16.mxu0 %v5060
    %5809 = vmatpush2.bf16.msra.mxu0 %v5059
    %5810 = vmatprep.subr.bf16.mxu0 %v5052
    %5811 = vmatpush2.bf16.msra.mxu0 %v5051
    %5812 = vmatprep.subr.bf16.mxu0 %v5044
    %5813 = vmatpush2.bf16.msra.mxu0 %v5043
    %5814 = vmatprep.subr.bf16.mxu0 %v5036
    %5815 = vmatpush2.bf16.msra.mxu0 %v5035
    %5816 = vmatprep.subr.bf16.mxu0 %v5028
    %5817 = vmatpush2.bf16.msra.mxu0 %v5027
    %5818 = vmatprep.subr.bf16.mxu0 %v5020
    %5819 = vmatpush2.bf16.msra.mxu0 %v5019
    %5820 = vmatprep.mubr.bf16.mxu0 %v5664
    %5821 = vmatmul.mubr.bf16.gmra.mxu0 %v5663
    %v5822 = vpop.f32.mrf.mxu0
    %v5823 = vadd.f32 0.0, %v5822
    %v5824 = vpop.f32.mrf.mxu0
    %v5825 = vadd.f32 0.0, %v5824
    %v5826 = vpop.f32.mrf.mxu0
    %v5827 = vpop.f32.mrf.mxu0
    %5828 = vdwg.mxu0
    %v5829 = vld [vmem:[#allocation2 + $0x80] sm:$0xff]
    %v5830 = vld [vmem:[#allocation2 + $0x88] sm:$0xff]
    %v5831 = vld [vmem:[#allocation2 + $0x90] sm:$0xff]
    %v5832 = vld [vmem:[#allocation2 + $0x98] sm:$0xff]
    %v5833 = vld [vmem:[#allocation2 + $0x160] sm:$0xff]
    %v5834 = vld [vmem:[#allocation2 + $0x168] sm:$0xff]
    %v5835 = vld [vmem:[#allocation2 + $0x170] sm:$0xff]
    %v5836 = vld [vmem:[#allocation2 + $0x178] sm:$0xff]
    %v5837 = vadd.f32 %v5829, %v5700
    %v5838 = vadd.f32 %v5830, %v5702
    %v5839 = vadd.f32 %v5831, %v5741
    %v5840 = vadd.f32 %v5832, %v5743
    %v5841 = vadd.f32 %v5833, %v5782
    %v5842 = vadd.f32 %v5834, %v5784
    %v5843 = vadd.f32 %v5835, %v5823
    %v5844 = vadd.f32 %v5836, %v5825
    %v5845 = vxor.u32 %v5837, 2147483648
    %v5846 = vxor.u32 %v5838, 2147483648
    %v5847 = vxor.u32 %v5839, 2147483648
    %v5848 = vmul.f32 %v5845, 1.442695
    %v5849 = vpow.pop %v5848
    %v5850 = vmul.f32 %v5846, 1.442695
    %v5851 = vpow.pop %v5850
    %v5852 = vmul.f32 %v5847, 1.442695
    %v5853 = vpow.pop %v5852
    %v5854 = vadd.f32 %v5849, 1.0
    %v5855 = vadd.f32 %v5851, 1.0
    %v5856 = vadd.f32 %v5853, 1.0
    %v5857 = vrcp.pop %v5854
    %v5858 = vmul.f32 1.0, %v5857
    %v5859 = vrcp.pop %v5855
    %v5860 = vmul.f32 1.0, %v5859
    %v5861 = vrcp.pop %v5856
    %v5862 = vmul.f32 1.0, %v5861
    %v5863 = vtanh.pop %v5840
    %v5864 = vtanh.pop %v5841
    %v5865 = vxor.u32 %v5842, 2147483648
    %v5866 = vxor.u32 %v5843, 2147483648
    %v5867 = vxor.u32 %v5844, 2147483648
    %v5868 = vmul.f32 %v5865, 1.442695
    %v5869 = vpow.pop %v5868
    %v5870 = vmul.f32 %v5866, 1.442695
    %v5871 = vpow.pop %v5870
    %v5872 = vmul.f32 %v5867, 1.442695
    %v5873 = vpow.pop %v5872
    %v5874 = vadd.f32 %v5869, 1.0
    %v5875 = vadd.f32 %v5871, 1.0
    %v5876 = vadd.f32 %v5873, 1.0
    %v5877 = vrcp.pop %v5874
    %v5878 = vmul.f32 1.0, %v5877
    %v5879 = vrcp.pop %v5875
    %v5880 = vmul.f32 1.0, %v5879
    %v5881 = vrcp.pop %v5876
    %v5882 = vmul.f32 1.0, %v5881
    %v5883 = vmul.f32 %v5860, %v5657
    %v5884 = vmul.f32 %v5880, %v5658
    %v5885 = vmul.f32 %v5858, %v5863
    %v5886 = vmul.f32 %v5882, %v5864
    %v5887 = vadd.f32 %v5883, %v5885
    %v5888 = vadd.f32 %v5884, %v5886
    %v5889 = vtanh.pop %v5887
    %v5890 = vtanh.pop %v5888
    %v5891 = vmul.f32 %v5862, %v5889
    %v5892 = vmul.f32 %v5878, %v5890
    %v5893 = vpack.c.bf16 %v5891, %v5891
    %v5894 = vpack.c.bf16 %v5892, %v5892
    %5895 = vmatprep.subr.bf16.mxu0 %v5006
    %5896 = vmatpush1.bf16.msra.mxu0 %v5005
    %5897 = vmatprep.subr.bf16.mxu0 %v4998
    %5898 = vmatpush1.bf16.msra.mxu0 %v4997
    %5899 = vmatprep.subr.bf16.mxu0 %v4990
    %5900 = vmatpush1.bf16.msra.mxu0 %v4989
    %5901 = vmatprep.subr.bf16.mxu0 %v4982
    %5902 = vmatpush1.bf16.msra.mxu0 %v4981
    %5903 = vmatprep.subr.bf16.mxu0 %v4974
    %5904 = vmatpush1.bf16.msra.mxu0 %v4973
    %5905 = vmatprep.subr.bf16.mxu0 %v4966
    %5906 = vmatpush1.bf16.msra.mxu0 %v4965
    %5907 = vmatprep.subr.bf16.mxu0 %v4958
    %5908 = vmatpush1.bf16.msra.mxu0 %v4957
    %5909 = vmatprep.subr.bf16.mxu0 %v4950
    %5910 = vmatpush1.bf16.msra.mxu0 %v4949
    %5911 = vmatprep.subr.bf16.mxu0 %v5070
    %5912 = vmatpush2.bf16.msra.mxu0 %v5069
    %5913 = vmatprep.subr.bf16.mxu0 %v5062
    %5914 = vmatpush2.bf16.msra.mxu0 %v5061
    %5915 = vmatprep.subr.bf16.mxu0 %v5054
    %5916 = vmatpush2.bf16.msra.mxu0 %v5053
    %5917 = vmatprep.subr.bf16.mxu0 %v5046
    %5918 = vmatpush2.bf16.msra.mxu0 %v5045
    %5919 = vmatprep.subr.bf16.mxu0 %v5038
    %5920 = vmatpush2.bf16.msra.mxu0 %v5037
    %5921 = vmatprep.subr.bf16.mxu0 %v5030
    %5922 = vmatpush2.bf16.msra.mxu0 %v5029
    %5923 = vmatprep.subr.bf16.mxu0 %v5022
    %5924 = vmatpush2.bf16.msra.mxu0 %v5021
    %5925 = vmatprep.subr.bf16.mxu0 %v5014
    %5926 = vmatpush2.bf16.msra.mxu0 %v5013
    %5927 = vmatprep.mubr.bf16.mxu0 %v5894
    %5928 = vmatmul.mubr.bf16.gmra.mxu0 %v5893
    %v5929 = vpop.f32.mrf.mxu0
    %v5930 = vadd.f32 0.0, %v5929
    %v5931 = vpop.f32.mrf.mxu0
    %v5932 = vadd.f32 0.0, %v5931
    %v5933 = vpop.f32.mrf.mxu0
    %v5934 = vpop.f32.mrf.mxu0
    %5935 = vdwg.mxu0
    %5936 = vmatprep.subr.bf16.mxu0 %v5008
    %5937 = vmatpush1.bf16.msra.mxu0 %v5007
    %5938 = vmatprep.subr.bf16.mxu0 %v5000
    %5939 = vmatpush1.bf16.msra.mxu0 %v4999
    %5940 = vmatprep.subr.bf16.mxu0 %v4992
    %5941 = vmatpush1.bf16.msra.mxu0 %v4991
    %5942 = vmatprep.subr.bf16.mxu0 %v4984
    %5943 = vmatpush1.bf16.msra.mxu0 %v4983
    %5944 = vmatprep.subr.bf16.mxu0 %v4976
    %5945 = vmatpush1.bf16.msra.mxu0 %v4975
    %5946 = vmatprep.subr.bf16.mxu0 %v4968
    %5947 = vmatpush1.bf16.msra.mxu0 %v4967
    %5948 = vmatprep.subr.bf16.mxu0 %v4960
    %5949 = vmatpush1.bf16.msra.mxu0 %v4959
    %5950 = vmatprep.subr.bf16.mxu0 %v4952
    %5951 = vmatpush1.bf16.msra.mxu0 %v4951
    %5952 = vmatprep.subr.bf16.mxu0 %v5072
    %5953 = vmatpush2.bf16.msra.mxu0 %v5071
    %5954 = vmatprep.subr.bf16.mxu0 %v5064
    %5955 = vmatpush2.bf16.msra.mxu0 %v5063
    %5956 = vmatprep.subr.bf16.mxu0 %v5056
    %5957 = vmatpush2.bf16.msra.mxu0 %v5055
    %5958 = vmatprep.subr.bf16.mxu0 %v5048
    %5959 = vmatpush2.bf16.msra.mxu0 %v5047
    %5960 = vmatprep.subr.bf16.mxu0 %v5040
    %5961 = vmatpush2.bf16.msra.mxu0 %v5039
    %5962 = vmatprep.subr.bf16.mxu0 %v5032
    %5963 = vmatpush2.bf16.msra.mxu0 %v5031
    %5964 = vmatprep.subr.bf16.mxu0 %v5024
    %5965 = vmatpush2.bf16.msra.mxu0 %v5023
    %5966 = vmatprep.subr.bf16.mxu0 %v5016
    %5967 = vmatpush2.bf16.msra.mxu0 %v5015
    %5968 = vmatprep.mubr.bf16.mxu0 %v5894
    %5969 = vmatmul.mubr.bf16.gmra.mxu0 %v5893
    %v5970 = vpop.f32.mrf.mxu0
    %v5971 = vadd.f32 0.0, %v5970
    %v5972 = vpop.f32.mrf.mxu0
    %v5973 = vadd.f32 0.0, %v5972
    %v5974 = vpop.f32.mrf.mxu0
    %v5975 = vpop.f32.mrf.mxu0
    %5976 = vdwg.mxu0
    %5977 = vmatprep.subr.bf16.mxu0 %v5010
    %5978 = vmatpush1.bf16.msra.mxu0 %v5009
    %5979 = vmatprep.subr.bf16.mxu0 %v5002
    %5980 = vmatpush1.bf16.msra.mxu0 %v5001
    %5981 = vmatprep.subr.bf16.mxu0 %v4994
    %5982 = vmatpush1.bf16.msra.mxu0 %v4993
    %5983 = vmatprep.subr.bf16.mxu0 %v4986
    %5984 = vmatpush1.bf16.msra.mxu0 %v4985
    %5985 = vmatprep.subr.bf16.mxu0 %v4978
    %5986 = vmatpush1.bf16.msra.mxu0 %v4977
    %5987 = vmatprep.subr.bf16.mxu0 %v4970
    %5988 = vmatpush1.bf16.msra.mxu0 %v4969
    %5989 = vmatprep.subr.bf16.mxu0 %v4962
    %5990 = vmatpush1.bf16.msra.mxu0 %v4961
    %5991 = vmatprep.subr.bf16.mxu0 %v4954
    %5992 = vmatpush1.bf16.msra.mxu0 %v4953
    %5993 = vmatprep.subr.bf16.mxu0 %v5074
    %5994 = vmatpush2.bf16.msra.mxu0 %v5073
    %5995 = vmatprep.subr.bf16.mxu0 %v5066
    %5996 = vmatpush2.bf16.msra.mxu0 %v5065
    %5997 = vmatprep.subr.bf16.mxu0 %v5058
    %5998 = vmatpush2.bf16.msra.mxu0 %v5057
    %5999 = vmatprep.subr.bf16.mxu0 %v5050
    %6000 = vmatpush2.bf16.msra.mxu0 %v5049
    %6001 = vmatprep.subr.bf16.mxu0 %v5042
    %6002 = vmatpush2.bf16.msra.mxu0 %v5041
    %6003 = vmatprep.subr.bf16.mxu0 %v5034
    %6004 = vmatpush2.bf16.msra.mxu0 %v5033
    %6005 = vmatprep.subr.bf16.mxu0 %v5026
    %6006 = vmatpush2.bf16.msra.mxu0 %v5025
    %6007 = vmatprep.subr.bf16.mxu0 %v5018
    %6008 = vmatpush2.bf16.msra.mxu0 %v5017
    %6009 = vmatprep.mubr.bf16.mxu0 %v5894
    %6010 = vmatmul.mubr.bf16.gmra.mxu0 %v5893
    %v6011 = vpop.f32.mrf.mxu0
    %v6012 = vadd.f32 0.0, %v6011
    %v6013 = vpop.f32.mrf.mxu0
    %v6014 = vadd.f32 0.0, %v6013
    %v6015 = vpop.f32.mrf.mxu0
    %v6016 = vpop.f32.mrf.mxu0
    %6017 = vdwg.mxu0
    %6018 = vmatprep.subr.bf16.mxu0 %v5012
    %6019 = vmatpush1.bf16.msra.mxu0 %v5011
    %6020 = vmatprep.subr.bf16.mxu0 %v5004
    %6021 = vmatpush1.bf16.msra.mxu0 %v5003
    %6022 = vmatprep.subr.bf16.mxu0 %v4996
    %6023 = vmatpush1.bf16.msra.mxu0 %v4995
    %6024 = vmatprep.subr.bf16.mxu0 %v4988
    %6025 = vmatpush1.bf16.msra.mxu0 %v4987
    %6026 = vmatprep.subr.bf16.mxu0 %v4980
    %6027 = vmatpush1.bf16.msra.mxu0 %v4979
    %6028 = vmatprep.subr.bf16.mxu0 %v4972
    %6029 = vmatpush1.bf16.msra.mxu0 %v4971
    %6030 = vmatprep.subr.bf16.mxu0 %v4964
    %6031 = vmatpush1.bf16.msra.mxu0 %v4963
    %6032 = vmatprep.subr.bf16.mxu0 %v4956
    %6033 = vmatpush1.bf16.msra.mxu0 %v4955
    %6034 = vmatprep.subr.bf16.mxu0 %v5076
    %6035 = vmatpush2.bf16.msra.mxu0 %v5075
    %6036 = vmatprep.subr.bf16.mxu0 %v5068
    %6037 = vmatpush2.bf16.msra.mxu0 %v5067
    %6038 = vmatprep.subr.bf16.mxu0 %v5060
    %6039 = vmatpush2.bf16.msra.mxu0 %v5059
    %6040 = vmatprep.subr.bf16.mxu0 %v5052
    %6041 = vmatpush2.bf16.msra.mxu0 %v5051
    %6042 = vmatprep.subr.bf16.mxu0 %v5044
    %6043 = vmatpush2.bf16.msra.mxu0 %v5043
    %6044 = vmatprep.subr.bf16.mxu0 %v5036
    %6045 = vmatpush2.bf16.msra.mxu0 %v5035
    %6046 = vmatprep.subr.bf16.mxu0 %v5028
    %6047 = vmatpush2.bf16.msra.mxu0 %v5027
    %6048 = vmatprep.subr.bf16.mxu0 %v5020
    %6049 = vmatpush2.bf16.msra.mxu0 %v5019
    %6050 = vmatprep.mubr.bf16.mxu0 %v5894
    %6051 = vmatmul.mubr.bf16.gmra.mxu0 %v5893
    %v6052 = vpop.f32.mrf.mxu0
    %v6053 = vadd.f32 0.0, %v6052
    %v6054 = vpop.f32.mrf.mxu0
    %v6055 = vadd.f32 0.0, %v6054
    %v6056 = vpop.f32.mrf.mxu0
    %v6057 = vpop.f32.mrf.mxu0
    %6058 = vdwg.mxu0
    %v6059 = vld [vmem:[#allocation2 + $0xc0] sm:$0xff]
    %v6060 = vld [vmem:[#allocation2 + $0xc8] sm:$0xff]
    %v6061 = vld [vmem:[#allocation2 + $0xd0] sm:$0xff]
    %v6062 = vld [vmem:[#allocation2 + $0xd8] sm:$0xff]
    %v6063 = vld [vmem:[#allocation2 + $0x120] sm:$0xff]
    %v6064 = vld [vmem:[#allocation2 + $0x128] sm:$0xff]
    %v6065 = vld [vmem:[#allocation2 + $0x130] sm:$0xff]
    %v6066 = vld [vmem:[#allocation2 + $0x138] sm:$0xff]
    %v6067 = vadd.f32 %v6059, %v5930
    %v6068 = vadd.f32 %v6060, %v5932
    %v6069 = vadd.f32 %v6061, %v5971
    %v6070 = vadd.f32 %v6062, %v5973
    %v6071 = vadd.f32 %v6063, %v6012
    %v6072 = vadd.f32 %v6064, %v6014
    %v6073 = vadd.f32 %v6065, %v6053
    %v6074 = vadd.f32 %v6066, %v6055
    %v6075 = vxor.u32 %v6067, 2147483648
    %v6076 = vxor.u32 %v6068, 2147483648
    %v6077 = vxor.u32 %v6069, 2147483648
    %v6078 = vmul.f32 %v6075, 1.442695
    %v6079 = vpow.pop %v6078
    %v6080 = vmul.f32 %v6076, 1.442695
    %v6081 = vpow.pop %v6080
    %v6082 = vmul.f32 %v6077, 1.442695
    %v6083 = vpow.pop %v6082
    %v6084 = vadd.f32 %v6079, 1.0
    %v6085 = vadd.f32 %v6081, 1.0
    %v6086 = vadd.f32 %v6083, 1.0
    %v6087 = vrcp.pop %v6084
    %v6088 = vmul.f32 1.0, %v6087
    %v6089 = vrcp.pop %v6085
    %v6090 = vmul.f32 1.0, %v6089
    %v6091 = vrcp.pop %v6086
    %v6092 = vmul.f32 1.0, %v6091
    %v6093 = vtanh.pop %v6070
    %v6094 = vtanh.pop %v6071
    %v6095 = vxor.u32 %v6072, 2147483648
    %v6096 = vxor.u32 %v6073, 2147483648
    %v6097 = vxor.u32 %v6074, 2147483648
    %v6098 = vmul.f32 %v6095, 1.442695
    %v6099 = vpow.pop %v6098
    %v6100 = vmul.f32 %v6096, 1.442695
    %v6101 = vpow.pop %v6100
    %v6102 = vmul.f32 %v6097, 1.442695
    %v6103 = vpow.pop %v6102
    %v6104 = vadd.f32 %v6099, 1.0
    %v6105 = vadd.f32 %v6101, 1.0
    %v6106 = vadd.f32 %v6103, 1.0
    %v6107 = vrcp.pop %v6104
    %v6108 = vmul.f32 1.0, %v6107
    %v6109 = vrcp.pop %v6105
    %v6110 = vmul.f32 1.0, %v6109
    %v6111 = vrcp.pop %v6106
    %v6112 = vmul.f32 1.0, %v6111
    %v6113 = vmul.f32 %v6090, %v5887
    %v6114 = vmul.f32 %v6110, %v5888
    %v6115 = vmul.f32 %v6088, %v6093
    %v6116 = vmul.f32 %v6112, %v6094
    %v6117 = vadd.f32 %v6113, %v6115
    %v6118 = vadd.f32 %v6114, %v6116
    %v6119 = vtanh.pop %v6117
    %v6120 = vtanh.pop %v6118
    %v6121 = vmul.f32 %v6092, %v6119
    %v6122 = vmul.f32 %v6108, %v6120
    %v6123 = vpack.c.bf16 %v6121, %v6121
    %v6124 = vpack.c.bf16 %v6122, %v6122
    %6125 = vmatprep.subr.bf16.mxu0 %v5006
    %6126 = vmatpush1.bf16.msra.mxu0 %v5005
    %6127 = vmatprep.subr.bf16.mxu0 %v4998
    %6128 = vmatpush1.bf16.msra.mxu0 %v4997
    %6129 = vmatprep.subr.bf16.mxu0 %v4990
    %6130 = vmatpush1.bf16.msra.mxu0 %v4989
    %6131 = vmatprep.subr.bf16.mxu0 %v4982
    %6132 = vmatpush1.bf16.msra.mxu0 %v4981
    %6133 = vmatprep.subr.bf16.mxu0 %v4974
    %6134 = vmatpush1.bf16.msra.mxu0 %v4973
    %6135 = vmatprep.subr.bf16.mxu0 %v4966
    %6136 = vmatpush1.bf16.msra.mxu0 %v4965
    %6137 = vmatprep.subr.bf16.mxu0 %v4958
    %6138 = vmatpush1.bf16.msra.mxu0 %v4957
    %6139 = vmatprep.subr.bf16.mxu0 %v4950
    %6140 = vmatpush1.bf16.msra.mxu0 %v4949
    %6141 = vmatprep.subr.bf16.mxu0 %v5070
    %6142 = vmatpush2.bf16.msra.mxu0 %v5069
    %6143 = vmatprep.subr.bf16.mxu0 %v5062
    %6144 = vmatpush2.bf16.msra.mxu0 %v5061
    %6145 = vmatprep.subr.bf16.mxu0 %v5054
    %6146 = vmatpush2.bf16.msra.mxu0 %v5053
    %6147 = vmatprep.subr.bf16.mxu0 %v5046
    %6148 = vmatpush2.bf16.msra.mxu0 %v5045
    %6149 = vmatprep.subr.bf16.mxu0 %v5038
    %6150 = vmatpush2.bf16.msra.mxu0 %v5037
    %6151 = vmatprep.subr.bf16.mxu0 %v5030
    %6152 = vmatpush2.bf16.msra.mxu0 %v5029
    %6153 = vmatprep.subr.bf16.mxu0 %v5022
    %6154 = vmatpush2.bf16.msra.mxu0 %v5021
    %6155 = vmatprep.subr.bf16.mxu0 %v5014
    %6156 = vmatpush2.bf16.msra.mxu0 %v5013
    %6157 = vmatprep.mubr.bf16.mxu0 %v6124
    %6158 = vmatmul.mubr.bf16.gmra.mxu0 %v6123
    %v6159 = vpop.f32.mrf.mxu0
    %v6160 = vadd.f32 0.0, %v6159
    %v6161 = vpop.f32.mrf.mxu0
    %v6162 = vadd.f32 0.0, %v6161
    %v6163 = vpop.f32.mrf.mxu0
    %v6164 = vpop.f32.mrf.mxu0
    %6165 = vdwg.mxu0
    %6166 = vmatprep.subr.bf16.mxu0 %v5008
    %6167 = vmatpush1.bf16.msra.mxu0 %v5007
    %6168 = vmatprep.subr.bf16.mxu0 %v5000
    %6169 = vmatpush1.bf16.msra.mxu0 %v4999
    %6170 = vmatprep.subr.bf16.mxu0 %v4992
    %6171 = vmatpush1.bf16.msra.mxu0 %v4991
    %6172 = vmatprep.subr.bf16.mxu0 %v4984
    %6173 = vmatpush1.bf16.msra.mxu0 %v4983
    %6174 = vmatprep.subr.bf16.mxu0 %v4976
    %6175 = vmatpush1.bf16.msra.mxu0 %v4975
    %6176 = vmatprep.subr.bf16.mxu0 %v4968
    %6177 = vmatpush1.bf16.msra.mxu0 %v4967
    %6178 = vmatprep.subr.bf16.mxu0 %v4960
    %6179 = vmatpush1.bf16.msra.mxu0 %v4959
    %6180 = vmatprep.subr.bf16.mxu0 %v4952
    %6181 = vmatpush1.bf16.msra.mxu0 %v4951
    %6182 = vmatprep.subr.bf16.mxu0 %v5072
    %6183 = vmatpush2.bf16.msra.mxu0 %v5071
    %6184 = vmatprep.subr.bf16.mxu0 %v5064
    %6185 = vmatpush2.bf16.msra.mxu0 %v5063
    %6186 = vmatprep.subr.bf16.mxu0 %v5056
    %6187 = vmatpush2.bf16.msra.mxu0 %v5055
    %6188 = vmatprep.subr.bf16.mxu0 %v5048
    %6189 = vmatpush2.bf16.msra.mxu0 %v5047
    %6190 = vmatprep.subr.bf16.mxu0 %v5040
    %6191 = vmatpush2.bf16.msra.mxu0 %v5039
    %6192 = vmatprep.subr.bf16.mxu0 %v5032
    %6193 = vmatpush2.bf16.msra.mxu0 %v5031
    %6194 = vmatprep.subr.bf16.mxu0 %v5024
    %6195 = vmatpush2.bf16.msra.mxu0 %v5023
    %6196 = vmatprep.subr.bf16.mxu0 %v5016
    %6197 = vmatpush2.bf16.msra.mxu0 %v5015
    %6198 = vmatprep.mubr.bf16.mxu0 %v6124
    %6199 = vmatmul.mubr.bf16.gmra.mxu0 %v6123
    %v6200 = vpop.f32.mrf.mxu0
    %v6201 = vadd.f32 0.0, %v6200
    %v6202 = vpop.f32.mrf.mxu0
    %v6203 = vadd.f32 0.0, %v6202
    %v6204 = vpop.f32.mrf.mxu0
    %v6205 = vpop.f32.mrf.mxu0
    %6206 = vdwg.mxu0
    %6207 = vmatprep.subr.bf16.mxu0 %v5010
    %6208 = vmatpush1.bf16.msra.mxu0 %v5009
    %6209 = vmatprep.subr.bf16.mxu0 %v5002
    %6210 = vmatpush1.bf16.msra.mxu0 %v5001
    %6211 = vmatprep.subr.bf16.mxu0 %v4994
    %6212 = vmatpush1.bf16.msra.mxu0 %v4993
    %6213 = vmatprep.subr.bf16.mxu0 %v4986
    %6214 = vmatpush1.bf16.msra.mxu0 %v4985
    %6215 = vmatprep.subr.bf16.mxu0 %v4978
    %6216 = vmatpush1.bf16.msra.mxu0 %v4977
    %6217 = vmatprep.subr.bf16.mxu0 %v4970
    %6218 = vmatpush1.bf16.msra.mxu0 %v4969
    %6219 = vmatprep.subr.bf16.mxu0 %v4962
    %6220 = vmatpush1.bf16.msra.mxu0 %v4961
    %6221 = vmatprep.subr.bf16.mxu0 %v4954
    %6222 = vmatpush1.bf16.msra.mxu0 %v4953
    %6223 = vmatprep.subr.bf16.mxu0 %v5074
    %6224 = vmatpush2.bf16.msra.mxu0 %v5073
    %6225 = vmatprep.subr.bf16.mxu0 %v5066
    %6226 = vmatpush2.bf16.msra.mxu0 %v5065
    %6227 = vmatprep.subr.bf16.mxu0 %v5058
    %6228 = vmatpush2.bf16.msra.mxu0 %v5057
    %6229 = vmatprep.subr.bf16.mxu0 %v5050
    %6230 = vmatpush2.bf16.msra.mxu0 %v5049
    %6231 = vmatprep.subr.bf16.mxu0 %v5042
    %6232 = vmatpush2.bf16.msra.mxu0 %v5041
    %6233 = vmatprep.subr.bf16.mxu0 %v5034
    %6234 = vmatpush2.bf16.msra.mxu0 %v5033
    %6235 = vmatprep.subr.bf16.mxu0 %v5026
    %6236 = vmatpush2.bf16.msra.mxu0 %v5025
    %6237 = vmatprep.subr.bf16.mxu0 %v5018
    %6238 = vmatpush2.bf16.msra.mxu0 %v5017
    %6239 = vmatprep.mubr.bf16.mxu0 %v6124
    %6240 = vmatmul.mubr.bf16.gmra.mxu0 %v6123
    %v6241 = vpop.f32.mrf.mxu0
    %v6242 = vadd.f32 0.0, %v6241
    %v6243 = vpop.f32.mrf.mxu0
    %v6244 = vadd.f32 0.0, %v6243
    %v6245 = vpop.f32.mrf.mxu0
    %v6246 = vpop.f32.mrf.mxu0
    %6247 = vdwg.mxu0
    %6248 = vmatprep.subr.bf16.mxu0 %v5012
    %6249 = vmatpush1.bf16.msra.mxu0 %v5011
    %6250 = vmatprep.subr.bf16.mxu0 %v5004
    %6251 = vmatpush1.bf16.msra.mxu0 %v5003
    %6252 = vmatprep.subr.bf16.mxu0 %v4996
    %6253 = vmatpush1.bf16.msra.mxu0 %v4995
    %6254 = vmatprep.subr.bf16.mxu0 %v4988
    %6255 = vmatpush1.bf16.msra.mxu0 %v4987
    %6256 = vmatprep.subr.bf16.mxu0 %v4980
    %6257 = vmatpush1.bf16.msra.mxu0 %v4979
    %6258 = vmatprep.subr.bf16.mxu0 %v4972
    %6259 = vmatpush1.bf16.msra.mxu0 %v4971
    %6260 = vmatprep.subr.bf16.mxu0 %v4964
    %6261 = vmatpush1.bf16.msra.mxu0 %v4963
    %6262 = vmatprep.subr.bf16.mxu0 %v4956
    %6263 = vmatpush1.bf16.msra.mxu0 %v4955
    %6264 = vmatprep.subr.bf16.mxu0 %v5076
    %6265 = vmatpush2.bf16.msra.mxu0 %v5075
    %6266 = vmatprep.subr.bf16.mxu0 %v5068
    %6267 = vmatpush2.bf16.msra.mxu0 %v5067
    %6268 = vmatprep.subr.bf16.mxu0 %v5060
    %6269 = vmatpush2.bf16.msra.mxu0 %v5059
    %6270 = vmatprep.subr.bf16.mxu0 %v5052
    %6271 = vmatpush2.bf16.msra.mxu0 %v5051
    %6272 = vmatprep.subr.bf16.mxu0 %v5044
    %6273 = vmatpush2.bf16.msra.mxu0 %v5043
    %6274 = vmatprep.subr.bf16.mxu0 %v5036
    %6275 = vmatpush2.bf16.msra.mxu0 %v5035
    %6276 = vmatprep.subr.bf16.mxu0 %v5028
    %6277 = vmatpush2.bf16.msra.mxu0 %v5027
    %6278 = vmatprep.subr.bf16.mxu0 %v5020
    %6279 = vmatpush2.bf16.msra.mxu0 %v5019
    %6280 = vmatprep.mubr.bf16.mxu0 %v6124
    %6281 = vmatmul.mubr.bf16.gmra.mxu0 %v6123
    %v6282 = vpop.f32.mrf.mxu0
    %v6283 = vadd.f32 0.0, %v6282
    %v6284 = vpop.f32.mrf.mxu0
    %v6285 = vadd.f32 0.0, %v6284
    %v6286 = vpop.f32.mrf.mxu0
    %v6287 = vpop.f32.mrf.mxu0
    %6288 = vdwg.mxu0
    %v6289 = vld [vmem:[#allocation2 + $0x100] sm:$0xff]
    %v6290 = vld [vmem:[#allocation2 + $0x108] sm:$0xff]
    %v6291 = vld [vmem:[#allocation2 + $0x110] sm:$0xff]
    %v6292 = vld [vmem:[#allocation2 + $0x118] sm:$0xff]
    %v6293 = vld [vmem:[#allocation2 + $0xe0] sm:$0xff]
    %v6294 = vld [vmem:[#allocation2 + $0xe8] sm:$0xff]
    %v6295 = vld [vmem:[#allocation2 + $0xf0] sm:$0xff]
    %v6296 = vld [vmem:[#allocation2 + $0xf8] sm:$0xff]
    %v6297 = vadd.f32 %v6289, %v6160
    %v6298 = vadd.f32 %v6290, %v6162
    %v6299 = vadd.f32 %v6291, %v6201
    %v6300 = vadd.f32 %v6292, %v6203
    %v6301 = vadd.f32 %v6293, %v6242
    %v6302 = vadd.f32 %v6294, %v6244
    %v6303 = vadd.f32 %v6295, %v6283
    %v6304 = vadd.f32 %v6296, %v6285
    %v6305 = vxor.u32 %v6297, 2147483648
    %v6306 = vxor.u32 %v6298, 2147483648
    %v6307 = vxor.u32 %v6299, 2147483648
    %v6308 = vmul.f32 %v6305, 1.442695
    %v6309 = vpow.pop %v6308
    %v6310 = vmul.f32 %v6306, 1.442695
    %v6311 = vpow.pop %v6310
    %v6312 = vmul.f32 %v6307, 1.442695
    %v6313 = vpow.pop %v6312
    %v6314 = vadd.f32 %v6309, 1.0
    %v6315 = vadd.f32 %v6311, 1.0
    %v6316 = vadd.f32 %v6313, 1.0
    %v6317 = vrcp.pop %v6314
    %v6318 = vmul.f32 1.0, %v6317
    %v6319 = vrcp.pop %v6315
    %v6320 = vmul.f32 1.0, %v6319
    %v6321 = vrcp.pop %v6316
    %v6322 = vmul.f32 1.0, %v6321
    %v6323 = vtanh.pop %v6300
    %v6324 = vtanh.pop %v6301
    %v6325 = vxor.u32 %v6302, 2147483648
    %v6326 = vxor.u32 %v6303, 2147483648
    %v6327 = vxor.u32 %v6304, 2147483648
    %v6328 = vmul.f32 %v6325, 1.442695
    %v6329 = vpow.pop %v6328
    %v6330 = vmul.f32 %v6326, 1.442695
    %v6331 = vpow.pop %v6330
    %v6332 = vmul.f32 %v6327, 1.442695
    %v6333 = vpow.pop %v6332
    %v6334 = vadd.f32 %v6329, 1.0
    %v6335 = vadd.f32 %v6331, 1.0
    %v6336 = vadd.f32 %v6333, 1.0
    %v6337 = vrcp.pop %v6334
    %v6338 = vmul.f32 1.0, %v6337
    %v6339 = vrcp.pop %v6335
    %v6340 = vmul.f32 1.0, %v6339
    %v6341 = vrcp.pop %v6336
    %v6342 = vmul.f32 1.0, %v6341
    %v6343 = vmul.f32 %v6320, %v6117
    %v6344 = vmul.f32 %v6340, %v6118
    %v6345 = vmul.f32 %v6318, %v6323
    %v6346 = vmul.f32 %v6342, %v6324
    %v6347 = vadd.f32 %v6343, %v6345
    %v6348 = vadd.f32 %v6344, %v6346
    %v6349 = vtanh.pop %v6347
    %v6350 = vtanh.pop %v6348
    %v6351 = vmul.f32 %v6322, %v6349
    %v6352 = vmul.f32 %v6338, %v6350
    %v6353 = vpack.c.bf16 %v6351, %v6351
    %v6354 = vpack.c.bf16 %v6352, %v6352
    %6355 = vmatprep.subr.bf16.mxu0 %v5006
    %6356 = vmatpush1.bf16.msra.mxu0 %v5005
    %6357 = vmatprep.subr.bf16.mxu0 %v4998
    %6358 = vmatpush1.bf16.msra.mxu0 %v4997
    %6359 = vmatprep.subr.bf16.mxu0 %v4990
    %6360 = vmatpush1.bf16.msra.mxu0 %v4989
    %6361 = vmatprep.subr.bf16.mxu0 %v4982
    %6362 = vmatpush1.bf16.msra.mxu0 %v4981
    %6363 = vmatprep.subr.bf16.mxu0 %v4974
    %6364 = vmatpush1.bf16.msra.mxu0 %v4973
    %6365 = vmatprep.subr.bf16.mxu0 %v4966
    %6366 = vmatpush1.bf16.msra.mxu0 %v4965
    %6367 = vmatprep.subr.bf16.mxu0 %v4958
    %6368 = vmatpush1.bf16.msra.mxu0 %v4957
    %6369 = vmatprep.subr.bf16.mxu0 %v4950
    %6370 = vmatpush1.bf16.msra.mxu0 %v4949
    %6371 = vmatprep.subr.bf16.mxu0 %v5070
    %6372 = vmatpush2.bf16.msra.mxu0 %v5069
    %6373 = vmatprep.subr.bf16.mxu0 %v5062
    %6374 = vmatpush2.bf16.msra.mxu0 %v5061
    %6375 = vmatprep.subr.bf16.mxu0 %v5054
    %6376 = vmatpush2.bf16.msra.mxu0 %v5053
    %6377 = vmatprep.subr.bf16.mxu0 %v5046
    %6378 = vmatpush2.bf16.msra.mxu0 %v5045
    %6379 = vmatprep.subr.bf16.mxu0 %v5038
    %6380 = vmatpush2.bf16.msra.mxu0 %v5037
    %6381 = vmatprep.subr.bf16.mxu0 %v5030
    %6382 = vmatpush2.bf16.msra.mxu0 %v5029
    %6383 = vmatprep.subr.bf16.mxu0 %v5022
    %6384 = vmatpush2.bf16.msra.mxu0 %v5021
    %6385 = vmatprep.subr.bf16.mxu0 %v5014
    %6386 = vmatpush2.bf16.msra.mxu0 %v5013
    %6387 = vmatprep.mubr.bf16.mxu0 %v6354
    %6388 = vmatmul.mubr.bf16.gmra.mxu0 %v6353
    %v6389 = vpop.f32.mrf.mxu0
    %v6390 = vadd.f32 0.0, %v6389
    %v6391 = vpop.f32.mrf.mxu0
    %v6392 = vadd.f32 0.0, %v6391
    %v6393 = vpop.f32.mrf.mxu0
    %v6394 = vpop.f32.mrf.mxu0
    %6395 = vdwg.mxu0
    %6396 = vmatprep.subr.bf16.mxu0 %v5008
    %6397 = vmatpush1.bf16.msra.mxu0 %v5007
    %6398 = vmatprep.subr.bf16.mxu0 %v5000
    %6399 = vmatpush1.bf16.msra.mxu0 %v4999
    %6400 = vmatprep.subr.bf16.mxu0 %v4992
    %6401 = vmatpush1.bf16.msra.mxu0 %v4991
    %6402 = vmatprep.subr.bf16.mxu0 %v4984
    %6403 = vmatpush1.bf16.msra.mxu0 %v4983
    %6404 = vmatprep.subr.bf16.mxu0 %v4976
    %6405 = vmatpush1.bf16.msra.mxu0 %v4975
    %6406 = vmatprep.subr.bf16.mxu0 %v4968
    %6407 = vmatpush1.bf16.msra.mxu0 %v4967
    %6408 = vmatprep.subr.bf16.mxu0 %v4960
    %6409 = vmatpush1.bf16.msra.mxu0 %v4959
    %6410 = vmatprep.subr.bf16.mxu0 %v4952
    %6411 = vmatpush1.bf16.msra.mxu0 %v4951
    %6412 = vmatprep.subr.bf16.mxu0 %v5072
    %6413 = vmatpush2.bf16.msra.mxu0 %v5071
    %6414 = vmatprep.subr.bf16.mxu0 %v5064
    %6415 = vmatpush2.bf16.msra.mxu0 %v5063
    %6416 = vmatprep.subr.bf16.mxu0 %v5056
    %6417 = vmatpush2.bf16.msra.mxu0 %v5055
    %6418 = vmatprep.subr.bf16.mxu0 %v5048
    %6419 = vmatpush2.bf16.msra.mxu0 %v5047
    %6420 = vmatprep.subr.bf16.mxu0 %v5040
    %6421 = vmatpush2.bf16.msra.mxu0 %v5039
    %6422 = vmatprep.subr.bf16.mxu0 %v5032
    %6423 = vmatpush2.bf16.msra.mxu0 %v5031
    %6424 = vmatprep.subr.bf16.mxu0 %v5024
    %6425 = vmatpush2.bf16.msra.mxu0 %v5023
    %6426 = vmatprep.subr.bf16.mxu0 %v5016
    %6427 = vmatpush2.bf16.msra.mxu0 %v5015
    %6428 = vmatprep.mubr.bf16.mxu0 %v6354
    %6429 = vmatmul.mubr.bf16.gmra.mxu0 %v6353
    %v6430 = vpop.f32.mrf.mxu0
    %v6431 = vadd.f32 0.0, %v6430
    %v6432 = vpop.f32.mrf.mxu0
    %v6433 = vadd.f32 0.0, %v6432
    %v6434 = vpop.f32.mrf.mxu0
    %v6435 = vpop.f32.mrf.mxu0
    %6436 = vdwg.mxu0
    %6437 = vmatprep.subr.bf16.mxu0 %v5010
    %6438 = vmatpush1.bf16.msra.mxu0 %v5009
    %6439 = vmatprep.subr.bf16.mxu0 %v5002
    %6440 = vmatpush1.bf16.msra.mxu0 %v5001
    %6441 = vmatprep.subr.bf16.mxu0 %v4994
    %6442 = vmatpush1.bf16.msra.mxu0 %v4993
    %6443 = vmatprep.subr.bf16.mxu0 %v4986
    %6444 = vmatpush1.bf16.msra.mxu0 %v4985
    %6445 = vmatprep.subr.bf16.mxu0 %v4978
    %6446 = vmatpush1.bf16.msra.mxu0 %v4977
    %6447 = vmatprep.subr.bf16.mxu0 %v4970
    %6448 = vmatpush1.bf16.msra.mxu0 %v4969
    %6449 = vmatprep.subr.bf16.mxu0 %v4962
    %6450 = vmatpush1.bf16.msra.mxu0 %v4961
    %6451 = vmatprep.subr.bf16.mxu0 %v4954
    %6452 = vmatpush1.bf16.msra.mxu0 %v4953
    %6453 = vmatprep.subr.bf16.mxu0 %v5074
    %6454 = vmatpush2.bf16.msra.mxu0 %v5073
    %6455 = vmatprep.subr.bf16.mxu0 %v5066
    %6456 = vmatpush2.bf16.msra.mxu0 %v5065
    %6457 = vmatprep.subr.bf16.mxu0 %v5058
    %6458 = vmatpush2.bf16.msra.mxu0 %v5057
    %6459 = vmatprep.subr.bf16.mxu0 %v5050
    %6460 = vmatpush2.bf16.msra.mxu0 %v5049
    %6461 = vmatprep.subr.bf16.mxu0 %v5042
    %6462 = vmatpush2.bf16.msra.mxu0 %v5041
    %6463 = vmatprep.subr.bf16.mxu0 %v5034
    %6464 = vmatpush2.bf16.msra.mxu0 %v5033
    %6465 = vmatprep.subr.bf16.mxu0 %v5026
    %6466 = vmatpush2.bf16.msra.mxu0 %v5025
    %6467 = vmatprep.subr.bf16.mxu0 %v5018
    %6468 = vmatpush2.bf16.msra.mxu0 %v5017
    %6469 = vmatprep.mubr.bf16.mxu0 %v6354
    %6470 = vmatmul.mubr.bf16.gmra.mxu0 %v6353
    %v6471 = vpop.f32.mrf.mxu0
    %v6472 = vadd.f32 0.0, %v6471
    %v6473 = vpop.f32.mrf.mxu0
    %v6474 = vadd.f32 0.0, %v6473
    %v6475 = vpop.f32.mrf.mxu0
    %v6476 = vpop.f32.mrf.mxu0
    %6477 = vdwg.mxu0
    %6478 = vmatprep.subr.bf16.mxu0 %v5012
    %6479 = vmatpush1.bf16.msra.mxu0 %v5011
    %6480 = vmatprep.subr.bf16.mxu0 %v5004
    %6481 = vmatpush1.bf16.msra.mxu0 %v5003
    %6482 = vmatprep.subr.bf16.mxu0 %v4996
    %6483 = vmatpush1.bf16.msra.mxu0 %v4995
    %6484 = vmatprep.subr.bf16.mxu0 %v4988
    %6485 = vmatpush1.bf16.msra.mxu0 %v4987
    %6486 = vmatprep.subr.bf16.mxu0 %v4980
    %6487 = vmatpush1.bf16.msra.mxu0 %v4979
    %6488 = vmatprep.subr.bf16.mxu0 %v4972
    %6489 = vmatpush1.bf16.msra.mxu0 %v4971
    %6490 = vmatprep.subr.bf16.mxu0 %v4964
    %6491 = vmatpush1.bf16.msra.mxu0 %v4963
    %6492 = vmatprep.subr.bf16.mxu0 %v4956
    %6493 = vmatpush1.bf16.msra.mxu0 %v4955
    %6494 = vmatprep.subr.bf16.mxu0 %v5076
    %6495 = vmatpush2.bf16.msra.mxu0 %v5075
    %6496 = vmatprep.subr.bf16.mxu0 %v5068
    %6497 = vmatpush2.bf16.msra.mxu0 %v5067
    %6498 = vmatprep.subr.bf16.mxu0 %v5060
    %6499 = vmatpush2.bf16.msra.mxu0 %v5059
    %6500 = vmatprep.subr.bf16.mxu0 %v5052
    %6501 = vmatpush2.bf16.msra.mxu0 %v5051
    %6502 = vmatprep.subr.bf16.mxu0 %v5044
    %6503 = vmatpush2.bf16.msra.mxu0 %v5043
    %6504 = vmatprep.subr.bf16.mxu0 %v5036
    %6505 = vmatpush2.bf16.msra.mxu0 %v5035
    %6506 = vmatprep.subr.bf16.mxu0 %v5028
    %6507 = vmatpush2.bf16.msra.mxu0 %v5027
    %6508 = vmatprep.subr.bf16.mxu0 %v5020
    %6509 = vmatpush2.bf16.msra.mxu0 %v5019
    %6510 = vmatprep.mubr.bf16.mxu0 %v6354
    %6511 = vmatmul.mubr.bf16.gmra.mxu0 %v6353
    %v6512 = vpop.f32.mrf.mxu0
    %v6513 = vadd.f32 0.0, %v6512
    %v6514 = vpop.f32.mrf.mxu0
    %v6515 = vadd.f32 0.0, %v6514
    %v6516 = vpop.f32.mrf.mxu0
    %v6517 = vpop.f32.mrf.mxu0
    %6518 = vdwg.mxu0
    %v6519 = vld [vmem:[#allocation2 + $0x140] sm:$0xff]
    %v6520 = vld [vmem:[#allocation2 + $0x148] sm:$0xff]
    %v6521 = vld [vmem:[#allocation2 + $0x150] sm:$0xff]
    %v6522 = vld [vmem:[#allocation2 + $0x158] sm:$0xff]
    %v6523 = vld [vmem:[#allocation2 + $0xa0] sm:$0xff]
    %v6524 = vld [vmem:[#allocation2 + $0xa8] sm:$0xff]
    %v6525 = vld [vmem:[#allocation2 + $0xb0] sm:$0xff]
    %v6526 = vld [vmem:[#allocation2 + $0xb8] sm:$0xff]
    %v6527 = vadd.f32 %v6519, %v6390
    %v6528 = vadd.f32 %v6520, %v6392
    %v6529 = vadd.f32 %v6521, %v6431
    %v6530 = vadd.f32 %v6522, %v6433
    %v6531 = vadd.f32 %v6523, %v6472
    %v6532 = vadd.f32 %v6524, %v6474
    %v6533 = vadd.f32 %v6525, %v6513
    %v6534 = vadd.f32 %v6526, %v6515
    %v6535 = vxor.u32 %v6527, 2147483648
    %v6536 = vxor.u32 %v6528, 2147483648
    %v6537 = vxor.u32 %v6529, 2147483648
    %v6538 = vmul.f32 %v6535, 1.442695
    %v6539 = vpow.pop %v6538
    %v6540 = vmul.f32 %v6536, 1.442695
    %v6541 = vpow.pop %v6540
    %v6542 = vmul.f32 %v6537, 1.442695
    %v6543 = vpow.pop %v6542
    %v6544 = vadd.f32 %v6539, 1.0
    %v6545 = vadd.f32 %v6541, 1.0
    %v6546 = vadd.f32 %v6543, 1.0
    %v6547 = vrcp.pop %v6544
    %v6548 = vmul.f32 1.0, %v6547
    %v6549 = vrcp.pop %v6545
    %v6550 = vmul.f32 1.0, %v6549
    %v6551 = vrcp.pop %v6546
    %v6552 = vmul.f32 1.0, %v6551
    %v6553 = vtanh.pop %v6530
    %v6554 = vtanh.pop %v6531
    %v6555 = vxor.u32 %v6532, 2147483648
    %v6556 = vxor.u32 %v6533, 2147483648
    %v6557 = vxor.u32 %v6534, 2147483648
    %v6558 = vmul.f32 %v6555, 1.442695
    %v6559 = vpow.pop %v6558
    %v6560 = vmul.f32 %v6556, 1.442695
    %v6561 = vpow.pop %v6560
    %v6562 = vmul.f32 %v6557, 1.442695
    %v6563 = vpow.pop %v6562
    %v6564 = vadd.f32 %v6559, 1.0
    %v6565 = vadd.f32 %v6561, 1.0
    %v6566 = vadd.f32 %v6563, 1.0
    %v6567 = vrcp.pop %v6564
    %v6568 = vmul.f32 1.0, %v6567
    %v6569 = vrcp.pop %v6565
    %v6570 = vmul.f32 1.0, %v6569
    %v6571 = vrcp.pop %v6566
    %v6572 = vmul.f32 1.0, %v6571
    %v6573 = vmul.f32 %v6550, %v6347
    %v6574 = vmul.f32 %v6570, %v6348
    %v6575 = vmul.f32 %v6548, %v6553
    %v6576 = vmul.f32 %v6572, %v6554
    %v6577 = vadd.f32 %v6573, %v6575
    %v6578 = vadd.f32 %v6574, %v6576
    %v6579 = vtanh.pop %v6577
    %v6580 = vtanh.pop %v6578
    %v6581 = vmul.f32 %v6552, %v6579
    %v6582 = vmul.f32 %v6568, %v6580
    %v6583 = vpack.c.bf16 %v6581, %v6581
    %v6584 = vpack.c.bf16 %v6582, %v6582
    %6585 = vmatprep.subr.bf16.mxu0 %v5006
    %6586 = vmatpush1.bf16.msra.mxu0 %v5005
    %6587 = vmatprep.subr.bf16.mxu0 %v4998
    %6588 = vmatpush1.bf16.msra.mxu0 %v4997
    %6589 = vmatprep.subr.bf16.mxu0 %v4990
    %6590 = vmatpush1.bf16.msra.mxu0 %v4989
    %6591 = vmatprep.subr.bf16.mxu0 %v4982
    %6592 = vmatpush1.bf16.msra.mxu0 %v4981
    %6593 = vmatprep.subr.bf16.mxu0 %v4974
    %6594 = vmatpush1.bf16.msra.mxu0 %v4973
    %6595 = vmatprep.subr.bf16.mxu0 %v4966
    %6596 = vmatpush1.bf16.msra.mxu0 %v4965
    %6597 = vmatprep.subr.bf16.mxu0 %v4958
    %6598 = vmatpush1.bf16.msra.mxu0 %v4957
    %6599 = vmatprep.subr.bf16.mxu0 %v4950
    %6600 = vmatpush1.bf16.msra.mxu0 %v4949
    %6601 = vmatprep.subr.bf16.mxu0 %v5070
    %6602 = vmatpush2.bf16.msra.mxu0 %v5069
    %6603 = vmatprep.subr.bf16.mxu0 %v5062
    %6604 = vmatpush2.bf16.msra.mxu0 %v5061
    %6605 = vmatprep.subr.bf16.mxu0 %v5054
    %6606 = vmatpush2.bf16.msra.mxu0 %v5053
    %6607 = vmatprep.subr.bf16.mxu0 %v5046
    %6608 = vmatpush2.bf16.msra.mxu0 %v5045
    %6609 = vmatprep.subr.bf16.mxu0 %v5038
    %6610 = vmatpush2.bf16.msra.mxu0 %v5037
    %6611 = vmatprep.subr.bf16.mxu0 %v5030
    %6612 = vmatpush2.bf16.msra.mxu0 %v5029
    %6613 = vmatprep.subr.bf16.mxu0 %v5022
    %6614 = vmatpush2.bf16.msra.mxu0 %v5021
    %6615 = vmatprep.subr.bf16.mxu0 %v5014
    %6616 = vmatpush2.bf16.msra.mxu0 %v5013
    %6617 = vmatprep.mubr.bf16.mxu0 %v6584
    %6618 = vmatmul.mubr.bf16.gmra.mxu0 %v6583
    %v6619 = vpop.f32.mrf.mxu0
    %v6620 = vadd.f32 0.0, %v6619
    %v6621 = vpop.f32.mrf.mxu0
    %v6622 = vadd.f32 0.0, %v6621
    %v6623 = vpop.f32.mrf.mxu0
    %v6624 = vpop.f32.mrf.mxu0
    %6625 = vdwg.mxu0
    %6626 = vmatprep.subr.bf16.mxu0 %v5008
    %6627 = vmatpush1.bf16.msra.mxu0 %v5007
    %6628 = vmatprep.subr.bf16.mxu0 %v5000
    %6629 = vmatpush1.bf16.msra.mxu0 %v4999
    %6630 = vmatprep.subr.bf16.mxu0 %v4992
    %6631 = vmatpush1.bf16.msra.mxu0 %v4991
    %6632 = vmatprep.subr.bf16.mxu0 %v4984
    %6633 = vmatpush1.bf16.msra.mxu0 %v4983
    %6634 = vmatprep.subr.bf16.mxu0 %v4976
    %6635 = vmatpush1.bf16.msra.mxu0 %v4975
    %6636 = vmatprep.subr.bf16.mxu0 %v4968
    %6637 = vmatpush1.bf16.msra.mxu0 %v4967
    %6638 = vmatprep.subr.bf16.mxu0 %v4960
    %6639 = vmatpush1.bf16.msra.mxu0 %v4959
    %6640 = vmatprep.subr.bf16.mxu0 %v4952
    %6641 = vmatpush1.bf16.msra.mxu0 %v4951
    %6642 = vmatprep.subr.bf16.mxu0 %v5072
    %6643 = vmatpush2.bf16.msra.mxu0 %v5071
    %6644 = vmatprep.subr.bf16.mxu0 %v5064
    %6645 = vmatpush2.bf16.msra.mxu0 %v5063
    %6646 = vmatprep.subr.bf16.mxu0 %v5056
    %6647 = vmatpush2.bf16.msra.mxu0 %v5055
    %6648 = vmatprep.subr.bf16.mxu0 %v5048
    %6649 = vmatpush2.bf16.msra.mxu0 %v5047
    %6650 = vmatprep.subr.bf16.mxu0 %v5040
    %6651 = vmatpush2.bf16.msra.mxu0 %v5039
    %6652 = vmatprep.subr.bf16.mxu0 %v5032
    %6653 = vmatpush2.bf16.msra.mxu0 %v5031
    %6654 = vmatprep.subr.bf16.mxu0 %v5024
    %6655 = vmatpush2.bf16.msra.mxu0 %v5023
    %6656 = vmatprep.subr.bf16.mxu0 %v5016
    %6657 = vmatpush2.bf16.msra.mxu0 %v5015
    %6658 = vmatprep.mubr.bf16.mxu0 %v6584
    %6659 = vmatmul.mubr.bf16.gmra.mxu0 %v6583
    %v6660 = vpop.f32.mrf.mxu0
    %v6661 = vadd.f32 0.0, %v6660
    %v6662 = vpop.f32.mrf.mxu0
    %v6663 = vadd.f32 0.0, %v6662
    %v6664 = vpop.f32.mrf.mxu0
    %v6665 = vpop.f32.mrf.mxu0
    %6666 = vdwg.mxu0
    %6667 = vmatprep.subr.bf16.mxu0 %v5010
    %6668 = vmatpush1.bf16.msra.mxu0 %v5009
    %6669 = vmatprep.subr.bf16.mxu0 %v5002
    %6670 = vmatpush1.bf16.msra.mxu0 %v5001
    %6671 = vmatprep.subr.bf16.mxu0 %v4994
    %6672 = vmatpush1.bf16.msra.mxu0 %v4993
    %6673 = vmatprep.subr.bf16.mxu0 %v4986
    %6674 = vmatpush1.bf16.msra.mxu0 %v4985
    %6675 = vmatprep.subr.bf16.mxu0 %v4978
    %6676 = vmatpush1.bf16.msra.mxu0 %v4977
    %6677 = vmatprep.subr.bf16.mxu0 %v4970
    %6678 = vmatpush1.bf16.msra.mxu0 %v4969
    %6679 = vmatprep.subr.bf16.mxu0 %v4962
    %6680 = vmatpush1.bf16.msra.mxu0 %v4961
    %6681 = vmatprep.subr.bf16.mxu0 %v4954
    %6682 = vmatpush1.bf16.msra.mxu0 %v4953
    %6683 = vmatprep.subr.bf16.mxu0 %v5074
    %6684 = vmatpush2.bf16.msra.mxu0 %v5073
    %6685 = vmatprep.subr.bf16.mxu0 %v5066
    %6686 = vmatpush2.bf16.msra.mxu0 %v5065
    %6687 = vmatprep.subr.bf16.mxu0 %v5058
    %6688 = vmatpush2.bf16.msra.mxu0 %v5057
    %6689 = vmatprep.subr.bf16.mxu0 %v5050
    %6690 = vmatpush2.bf16.msra.mxu0 %v5049
    %6691 = vmatprep.subr.bf16.mxu0 %v5042
    %6692 = vmatpush2.bf16.msra.mxu0 %v5041
    %6693 = vmatprep.subr.bf16.mxu0 %v5034
    %6694 = vmatpush2.bf16.msra.mxu0 %v5033
    %6695 = vmatprep.subr.bf16.mxu0 %v5026
    %6696 = vmatpush2.bf16.msra.mxu0 %v5025
    %6697 = vmatprep.subr.bf16.mxu0 %v5018
    %6698 = vmatpush2.bf16.msra.mxu0 %v5017
    %6699 = vmatprep.mubr.bf16.mxu0 %v6584
    %6700 = vmatmul.mubr.bf16.gmra.mxu0 %v6583
    %v6701 = vpop.f32.mrf.mxu0
    %v6702 = vadd.f32 0.0, %v6701
    %v6703 = vpop.f32.mrf.mxu0
    %v6704 = vadd.f32 0.0, %v6703
    %v6705 = vpop.f32.mrf.mxu0
    %v6706 = vpop.f32.mrf.mxu0
    %6707 = vdwg.mxu0
    %6708 = vmatprep.subr.bf16.mxu0 %v5012
    %6709 = vmatpush1.bf16.msra.mxu0 %v5011
    %6710 = vmatprep.subr.bf16.mxu0 %v5004
    %6711 = vmatpush1.bf16.msra.mxu0 %v5003
    %6712 = vmatprep.subr.bf16.mxu0 %v4996
    %6713 = vmatpush1.bf16.msra.mxu0 %v4995
    %6714 = vmatprep.subr.bf16.mxu0 %v4988
    %6715 = vmatpush1.bf16.msra.mxu0 %v4987
    %6716 = vmatprep.subr.bf16.mxu0 %v4980
    %6717 = vmatpush1.bf16.msra.mxu0 %v4979
    %6718 = vmatprep.subr.bf16.mxu0 %v4972
    %6719 = vmatpush1.bf16.msra.mxu0 %v4971
    %6720 = vmatprep.subr.bf16.mxu0 %v4964
    %6721 = vmatpush1.bf16.msra.mxu0 %v4963
    %6722 = vmatprep.subr.bf16.mxu0 %v4956
    %6723 = vmatpush1.bf16.msra.mxu0 %v4955
    %6724 = vmatprep.subr.bf16.mxu0 %v5076
    %6725 = vmatpush2.bf16.msra.mxu0 %v5075
    %6726 = vmatprep.subr.bf16.mxu0 %v5068
    %6727 = vmatpush2.bf16.msra.mxu0 %v5067
    %6728 = vmatprep.subr.bf16.mxu0 %v5060
    %6729 = vmatpush2.bf16.msra.mxu0 %v5059
    %6730 = vmatprep.subr.bf16.mxu0 %v5052
    %6731 = vmatpush2.bf16.msra.mxu0 %v5051
    %6732 = vmatprep.subr.bf16.mxu0 %v5044
    %6733 = vmatpush2.bf16.msra.mxu0 %v5043
    %6734 = vmatprep.subr.bf16.mxu0 %v5036
    %6735 = vmatpush2.bf16.msra.mxu0 %v5035
    %6736 = vmatprep.subr.bf16.mxu0 %v5028
    %6737 = vmatpush2.bf16.msra.mxu0 %v5027
    %6738 = vmatprep.subr.bf16.mxu0 %v5020
    %6739 = vmatpush2.bf16.msra.mxu0 %v5019
    %6740 = vmatprep.mubr.bf16.mxu0 %v6584
    %6741 = vmatmul.mubr.bf16.gmra.mxu0 %v6583
    %v6742 = vpop.f32.mrf.mxu0
    %v6743 = vadd.f32 0.0, %v6742
    %v6744 = vpop.f32.mrf.mxu0
    %v6745 = vadd.f32 0.0, %v6744
    %v6746 = vpop.f32.mrf.mxu0
    %v6747 = vpop.f32.mrf.mxu0
    %6748 = vdwg.mxu0
    %v6749 = vld [vmem:[#allocation2 + $0x180] sm:$0xff]
    %v6750 = vld [vmem:[#allocation2 + $0x188] sm:$0xff]
    %v6751 = vld [vmem:[#allocation2 + $0x190] sm:$0xff]
    %v6752 = vld [vmem:[#allocation2 + $0x198] sm:$0xff]
    %v6753 = vld [vmem:[#allocation2 + $0x60] sm:$0xff]
    %v6754 = vld [vmem:[#allocation2 + $0x68] sm:$0xff]
    %v6755 = vld [vmem:[#allocation2 + $0x70] sm:$0xff]
    %v6756 = vld [vmem:[#allocation2 + $0x78] sm:$0xff]
    %v6757 = vadd.f32 %v6749, %v6620
    %v6758 = vadd.f32 %v6750, %v6622
    %v6759 = vadd.f32 %v6751, %v6661
    %v6760 = vadd.f32 %v6752, %v6663
    %v6761 = vadd.f32 %v6753, %v6702
    %v6762 = vadd.f32 %v6754, %v6704
    %v6763 = vadd.f32 %v6755, %v6743
    %v6764 = vadd.f32 %v6756, %v6745
    %v6765 = vxor.u32 %v6757, 2147483648
    %v6766 = vxor.u32 %v6758, 2147483648
    %v6767 = vxor.u32 %v6759, 2147483648
    %v6768 = vmul.f32 %v6765, 1.442695
    %v6769 = vpow.pop %v6768
    %v6770 = vmul.f32 %v6766, 1.442695
    %v6771 = vpow.pop %v6770
    %v6772 = vmul.f32 %v6767, 1.442695
    %v6773 = vpow.pop %v6772
    %v6774 = vadd.f32 %v6769, 1.0
    %v6775 = vadd.f32 %v6771, 1.0
    %v6776 = vadd.f32 %v6773, 1.0
    %v6777 = vrcp.pop %v6774
    %v6778 = vmul.f32 1.0, %v6777
    %v6779 = vrcp.pop %v6775
    %v6780 = vmul.f32 1.0, %v6779
    %v6781 = vrcp.pop %v6776
    %v6782 = vmul.f32 1.0, %v6781
    %v6783 = vtanh.pop %v6760
    %v6784 = vtanh.pop %v6761
    %v6785 = vxor.u32 %v6762, 2147483648
    %v6786 = vxor.u32 %v6763, 2147483648
    %v6787 = vxor.u32 %v6764, 2147483648
    %v6788 = vmul.f32 %v6785, 1.442695
    %v6789 = vpow.pop %v6788
    %v6790 = vmul.f32 %v6786, 1.442695
    %v6791 = vpow.pop %v6790
    %v6792 = vmul.f32 %v6787, 1.442695
    %v6793 = vpow.pop %v6792
    %v6794 = vadd.f32 %v6789, 1.0
    %v6795 = vadd.f32 %v6791, 1.0
    %v6796 = vadd.f32 %v6793, 1.0
    %v6797 = vrcp.pop %v6794
    %v6798 = vmul.f32 1.0, %v6797
    %v6799 = vrcp.pop %v6795
    %v6800 = vmul.f32 1.0, %v6799
    %v6801 = vrcp.pop %v6796
    %v6802 = vmul.f32 1.0, %v6801
    %v6803 = vmul.f32 %v6780, %v6577
    %v6804 = vmul.f32 %v6800, %v6578
    %v6805 = vmul.f32 %v6778, %v6783
    %v6806 = vmul.f32 %v6802, %v6784
    %v6807 = vadd.f32 %v6803, %v6805
    %v6808 = vadd.f32 %v6804, %v6806
    %v6809 = vtanh.pop %v6807
    %v6810 = vtanh.pop %v6808
    %v6811 = vmul.f32 %v6782, %v6809
    %v6812 = vmul.f32 %v6798, %v6810
    %v6813 = vpack.c.bf16 %v6811, %v6811
    %v6814 = vpack.c.bf16 %v6812, %v6812
    %6815 = vmatprep.subr.bf16.mxu0 %v5006
    %6816 = vmatpush1.bf16.msra.mxu0 %v5005
    %6817 = vmatprep.subr.bf16.mxu0 %v4998
    %6818 = vmatpush1.bf16.msra.mxu0 %v4997
    %6819 = vmatprep.subr.bf16.mxu0 %v4990
    %6820 = vmatpush1.bf16.msra.mxu0 %v4989
    %6821 = vmatprep.subr.bf16.mxu0 %v4982
    %6822 = vmatpush1.bf16.msra.mxu0 %v4981
    %6823 = vmatprep.subr.bf16.mxu0 %v4974
    %6824 = vmatpush1.bf16.msra.mxu0 %v4973
    %6825 = vmatprep.subr.bf16.mxu0 %v4966
    %6826 = vmatpush1.bf16.msra.mxu0 %v4965
    %6827 = vmatprep.subr.bf16.mxu0 %v4958
    %6828 = vmatpush1.bf16.msra.mxu0 %v4957
    %6829 = vmatprep.subr.bf16.mxu0 %v4950
    %6830 = vmatpush1.bf16.msra.mxu0 %v4949
    %6831 = vmatprep.subr.bf16.mxu0 %v5070
    %6832 = vmatpush2.bf16.msra.mxu0 %v5069
    %6833 = vmatprep.subr.bf16.mxu0 %v5062
    %6834 = vmatpush2.bf16.msra.mxu0 %v5061
    %6835 = vmatprep.subr.bf16.mxu0 %v5054
    %6836 = vmatpush2.bf16.msra.mxu0 %v5053
    %6837 = vmatprep.subr.bf16.mxu0 %v5046
    %6838 = vmatpush2.bf16.msra.mxu0 %v5045
    %6839 = vmatprep.subr.bf16.mxu0 %v5038
    %6840 = vmatpush2.bf16.msra.mxu0 %v5037
    %6841 = vmatprep.subr.bf16.mxu0 %v5030
    %6842 = vmatpush2.bf16.msra.mxu0 %v5029
    %6843 = vmatprep.subr.bf16.mxu0 %v5022
    %6844 = vmatpush2.bf16.msra.mxu0 %v5021
    %6845 = vmatprep.subr.bf16.mxu0 %v5014
    %6846 = vmatpush2.bf16.msra.mxu0 %v5013
    %6847 = vmatprep.mubr.bf16.mxu0 %v6814
    %6848 = vmatmul.mubr.bf16.gmra.mxu0 %v6813
    %v6849 = vpop.f32.mrf.mxu0
    %v6850 = vadd.f32 0.0, %v6849
    %v6851 = vpop.f32.mrf.mxu0
    %v6852 = vadd.f32 0.0, %v6851
    %v6853 = vpop.f32.mrf.mxu0
    %v6854 = vpop.f32.mrf.mxu0
    %6855 = vdwg.mxu0
    %6856 = vmatprep.subr.bf16.mxu0 %v5008
    %6857 = vmatpush1.bf16.msra.mxu0 %v5007
    %6858 = vmatprep.subr.bf16.mxu0 %v5000
    %6859 = vmatpush1.bf16.msra.mxu0 %v4999
    %6860 = vmatprep.subr.bf16.mxu0 %v4992
    %6861 = vmatpush1.bf16.msra.mxu0 %v4991
    %6862 = vmatprep.subr.bf16.mxu0 %v4984
    %6863 = vmatpush1.bf16.msra.mxu0 %v4983
    %6864 = vmatprep.subr.bf16.mxu0 %v4976
    %6865 = vmatpush1.bf16.msra.mxu0 %v4975
    %6866 = vmatprep.subr.bf16.mxu0 %v4968
    %6867 = vmatpush1.bf16.msra.mxu0 %v4967
    %6868 = vmatprep.subr.bf16.mxu0 %v4960
    %6869 = vmatpush1.bf16.msra.mxu0 %v4959
    %6870 = vmatprep.subr.bf16.mxu0 %v4952
    %6871 = vmatpush1.bf16.msra.mxu0 %v4951
    %6872 = vmatprep.subr.bf16.mxu0 %v5072
    %6873 = vmatpush2.bf16.msra.mxu0 %v5071
    %6874 = vmatprep.subr.bf16.mxu0 %v5064
    %6875 = vmatpush2.bf16.msra.mxu0 %v5063
    %6876 = vmatprep.subr.bf16.mxu0 %v5056
    %6877 = vmatpush2.bf16.msra.mxu0 %v5055
    %6878 = vmatprep.subr.bf16.mxu0 %v5048
    %6879 = vmatpush2.bf16.msra.mxu0 %v5047
    %6880 = vmatprep.subr.bf16.mxu0 %v5040
    %6881 = vmatpush2.bf16.msra.mxu0 %v5039
    %6882 = vmatprep.subr.bf16.mxu0 %v5032
    %6883 = vmatpush2.bf16.msra.mxu0 %v5031
    %6884 = vmatprep.subr.bf16.mxu0 %v5024
    %6885 = vmatpush2.bf16.msra.mxu0 %v5023
    %6886 = vmatprep.subr.bf16.mxu0 %v5016
    %6887 = vmatpush2.bf16.msra.mxu0 %v5015
    %6888 = vmatprep.mubr.bf16.mxu0 %v6814
    %6889 = vmatmul.mubr.bf16.gmra.mxu0 %v6813
    %v6890 = vpop.f32.mrf.mxu0
    %v6891 = vadd.f32 0.0, %v6890
    %v6892 = vpop.f32.mrf.mxu0
    %v6893 = vadd.f32 0.0, %v6892
    %v6894 = vpop.f32.mrf.mxu0
    %v6895 = vpop.f32.mrf.mxu0
    %6896 = vdwg.mxu0
    %v6897 = vld [vmem:[#allocation2 + $0x1c0] sm:$0xff]
    %v6898 = vld [vmem:[#allocation2 + $0x1c8] sm:$0xff]
    %v6899 = vld [vmem:[#allocation2 + $0x1d0] sm:$0xff]
    %v6900 = vld [vmem:[#allocation2 + $0x1d8] sm:$0xff]
    %v6901 = vadd.f32 %v6897, %v6850
    %v6902 = vadd.f32 %v6898, %v6852
    %v6903 = vadd.f32 %v6899, %v6891
    %v6904 = vadd.f32 %v6900, %v6893
    %v6905 = vxor.u32 %v6901, 2147483648
    %v6906 = vxor.u32 %v6902, 2147483648
    %v6907 = vxor.u32 %v6903, 2147483648
    %v6908 = vmul.f32 %v6905, 1.442695
    %v6909 = vpow.pop %v6908
    %v6910 = vmul.f32 %v6906, 1.442695
    %v6911 = vpow.pop %v6910
    %v6912 = vmul.f32 %v6907, 1.442695
    %v6913 = vpow.pop %v6912
    %v6914 = vadd.f32 %v6909, 1.0
    %v6915 = vadd.f32 %v6911, 1.0
    %v6916 = vadd.f32 %v6913, 1.0
    %v6917 = vrcp.pop %v6914
    %v6918 = vmul.f32 1.0, %v6917
    %v6919 = vrcp.pop %v6915
    %v6920 = vmul.f32 1.0, %v6919
    %v6921 = vrcp.pop %v6916
    %v6922 = vmul.f32 1.0, %v6921
    %v6923 = vtanh.pop %v6904
    %v6924 = vmul.f32 %v6920, %v6807
    %v6925 = vmul.f32 %v6918, %v6923
    %v6926 = vadd.f32 %v6924, %v6925
    %v6927 = vtanh.pop %v6926
    %v6928 = vmul.f32 %v6922, %v6927
    %v6929 = vld [vmem:[%s11] sm:$0xff]
    %v6930 = vld [vmem:[%s11 + $0x8] sm:$0xff]
    %v6931 = vld [vmem:[%s11 + $0x10] sm:$0xff]
    %v6932 = vld [vmem:[%s11 + $0x18] sm:$0xff]
    %v6933 = vld [vmem:[%s11 + $0x20] sm:$0xff]
    %v6934 = vld [vmem:[%s11 + $0x28] sm:$0xff]
    %v6935 = vld [vmem:[%s11 + $0x30] sm:$0xff]
    %v6936 = vld [vmem:[%s11 + $0x38] sm:$0xff]
    %v6937 = vld [vmem:[%s11 + $0x40] sm:$0xff]
    %v6938 = vld [vmem:[%s11 + $0x48] sm:$0xff]
    %v6939 = vld [vmem:[%s11 + $0x50] sm:$0xff]
    %v6940 = vld [vmem:[%s11 + $0x58] sm:$0xff]
    %v6941 = vld [vmem:[%s11 + $0x60] sm:$0xff]
    %v6942 = vld [vmem:[%s11 + $0x68] sm:$0xff]
    %v6943 = vld [vmem:[%s11 + $0x70] sm:$0xff]
    %v6944 = vld [vmem:[%s11 + $0x78] sm:$0xff]
    %v6945 = vld [vmem:[%s11 + $0x80] sm:$0xff]
    %v6946 = vld [vmem:[%s11 + $0x88] sm:$0xff]
    %v6947 = vld [vmem:[%s11 + $0x90] sm:$0xff]
    %v6948 = vld [vmem:[%s11 + $0x98] sm:$0xff]
    %v6949 = vld [vmem:[%s11 + $0xa0] sm:$0xff]
    %v6950 = vld [vmem:[%s11 + $0xa8] sm:$0xff]
    %v6951 = vld [vmem:[%s11 + $0xb0] sm:$0xff]
    %v6952 = vld [vmem:[%s11 + $0xb8] sm:$0xff]
    %v6953 = vld [vmem:[%s11 + $0xc0] sm:$0xff]
    %v6954 = vld [vmem:[%s11 + $0xc8] sm:$0xff]
    %v6955 = vld [vmem:[%s11 + $0xd0] sm:$0xff]
    %v6956 = vld [vmem:[%s11 + $0xd8] sm:$0xff]
    %v6957 = vld [vmem:[%s11 + $0xe0] sm:$0xff]
    %v6958 = vld [vmem:[%s11 + $0xe8] sm:$0xff]
    %v6959 = vld [vmem:[%s11 + $0xf0] sm:$0xff]
    %v6960 = vld [vmem:[%s11 + $0xf8] sm:$0xff]
    %v6961 = vld [vmem:[%s12] sm:$0x1]
    %v6963 = vlaneseq
    %v6964 = vshrl.u32 %v6963, 7
    %v6965 = vsub.s32 0, %v6964
    %v6966 = vrot.slane %v6961, %v6965
    %6968 = vmatprep.subr.mxu0 0.0
    %6969 = vmatpush1.msra.mxu0 %v6944
    %6970 = vmatprep.subr.mxu0 0.0
    %6971 = vmatpush1.msra.mxu0 %v6943
    %6972 = vmatprep.subr.mxu0 0.0
    %6973 = vmatpush1.msra.mxu0 %v6942
    %6974 = vmatprep.subr.mxu0 0.0
    %6975 = vmatpush1.msra.mxu0 %v6941
    %6976 = vmatprep.subr.mxu0 0.0
    %6977 = vmatpush1.msra.mxu0 %v6940
    %6978 = vmatprep.subr.mxu0 0.0
    %6979 = vmatpush1.msra.mxu0 %v6939
    %6980 = vmatprep.subr.mxu0 0.0
    %6981 = vmatpush1.msra.mxu0 %v6938
    %6982 = vmatprep.subr.mxu0 0.0
    %6983 = vmatpush1.msra.mxu0 %v6937
    %6984 = vmatprep.subr.mxu0 0.0
    %6985 = vmatpush1.msra.mxu0 %v6936
    %6986 = vmatprep.subr.mxu0 0.0
    %6987 = vmatpush1.msra.mxu0 %v6935
    %6988 = vmatprep.subr.mxu0 0.0
    %6989 = vmatpush1.msra.mxu0 %v6934
    %6990 = vmatprep.subr.mxu0 0.0
    %6991 = vmatpush1.msra.mxu0 %v6933
    %6992 = vmatprep.subr.mxu0 0.0
    %6993 = vmatpush1.msra.mxu0 %v6932
    %6994 = vmatprep.subr.mxu0 0.0
    %6995 = vmatpush1.msra.mxu0 %v6931
    %6996 = vmatprep.subr.mxu0 0.0
    %6997 = vmatpush1.msra.mxu0 %v6930
    %6998 = vmatprep.subr.mxu0 0.0
    %6999 = vmatpush1.msra.mxu0 %v6929
    %7000 = vmatprep.subr.mxu0 0.0
    %7001 = vmatpush2.msra.mxu0 %v6960
    %7002 = vmatprep.subr.mxu0 0.0
    %7003 = vmatpush2.msra.mxu0 %v6959
    %7004 = vmatprep.subr.mxu0 0.0
    %7005 = vmatpush2.msra.mxu0 %v6958
    %7006 = vmatprep.subr.mxu0 0.0
    %7007 = vmatpush2.msra.mxu0 %v6957
    %7008 = vmatprep.subr.mxu0 0.0
    %7009 = vmatpush2.msra.mxu0 %v6956
    %7010 = vmatprep.subr.mxu0 0.0
    %7011 = vmatpush2.msra.mxu0 %v6955
    %7012 = vmatprep.subr.mxu0 0.0
    %7013 = vmatpush2.msra.mxu0 %v6954
    %7014 = vmatprep.subr.mxu0 0.0
    %7015 = vmatpush2.msra.mxu0 %v6953
    %7016 = vmatprep.subr.mxu0 0.0
    %7017 = vmatpush2.msra.mxu0 %v6952
    %7018 = vmatprep.subr.mxu0 0.0
    %7019 = vmatpush2.msra.mxu0 %v6951
    %7020 = vmatprep.subr.mxu0 0.0
    %7021 = vmatpush2.msra.mxu0 %v6950
    %7022 = vmatprep.subr.mxu0 0.0
    %7023 = vmatpush2.msra.mxu0 %v6949
    %7024 = vmatprep.subr.mxu0 0.0
    %7025 = vmatpush2.msra.mxu0 %v6948
    %7026 = vmatprep.subr.mxu0 0.0
    %7027 = vmatpush2.msra.mxu0 %v6947
    %7028 = vmatprep.subr.mxu0 0.0
    %7029 = vmatpush2.msra.mxu0 %v6946
    %7030 = vmatprep.subr.mxu0 0.0
    %7031 = vmatpush2.msra.mxu0 %v6945
    %7032 = vmatprep.mubr.f32.mxu0 %v5432
    %7033 = vmatmul.mubr.f32.gmra.mxu0 %v6928
    %v7034 = vpop.f32.mrf.mxu0
    %v7035 = vadd.f32 %v6966, %v7034
    %v7036 = vpop.f32.mrf.mxu0
    %7037 = vdwg.mxu0
    %vm7038 = vcmask 80896
    %7039 = vst.msk [vmem:[#allocation10] sm:$0xff] %vm7038, %v7035
    // Predicated region
    $region66: #{tpu_custom_call.1} parent=1 // pred_check
      _
    $region67: #{tpu_custom_call.1} parent=1 // pred_check_branch
      %7041 = sbr.rel (0) target = $region69
    $region68: #{tpu_custom_call.1} parent=1 // pred_region
      %s7043 = ssub.s32 128, 128
      %7044 = vsyncadd [#allocation6], %s7043
      %s7046 = sshll.u32 [#allocation10], 4
      %s7047 = int_to_ptr.vmem [resolvable:$true] %s7046
      %7049 = dma.vmem_to_hbm [thread:$0]  %s7047, 128, %s13, [#allocation6]
    $region69: #{tpu_custom_call.1} parent=1 // pred_fallthru
      _
    // Predicated region
    $region70: #{tpu_custom_call.1} parent=1 // pred_check
      _
    $region71: #{tpu_custom_call.1} parent=1 // pred_check_branch
      %7051 = sbr.rel (0) target = $region73
    $region72: #{tpu_custom_call.1} parent=1 // pred_region
      %7052 = dma.done [#allocation6], 128
    $region73: #{tpu_custom_call.1} parent=1 // pred_fallthru
      _
    %7053 = vsyncpa [#allocation5], 1
    %7054 = vsyncpa [#allocation8], 1
    %7055 = vsyncpa [#allocation6], 1

</llo_original>
